<compile_context>
chip_gen: v7x
topology: tpu7x:2x2x1
jax: 0.10.0
libtpu: 0.0.40
codegen_flags: <defaults>
</compile_context>

<pallas_src>
import functools
import math

import jax
import jax.numpy as jnp
from jax.experimental import pallas as pl
from jax.experimental.pallas import tpu as pltpu


def _round_up(x, m):
    return (x + m - 1) // m * m


def _layernorm(x, gamma, beta, eps):
    # Biased variance, matching torch.nn.LayerNorm.
    mu = jnp.mean(x, axis=-1, keepdims=True)
    var = jnp.mean((x - mu) ** 2, axis=-1, keepdims=True)
    return (x - mu) * jax.lax.rsqrt(var + eps) * gamma + beta


def _fused_kernel(
        # inputs
        text_ref, img_ref, tab_ref,
        fc_text_w_ref, fc_text_b_ref, fc_img_w_ref, fc_img_b_ref,
        pos_text_ref, pos_img_ref, pos_tab_ref,
        tok_text_ref, tok_img_ref, tok_tab_ref,
        mean_w_ref,
        w_qkv_ref, b_qkv_ref, w_o_ref, b_o_ref,
        g1_ref, b1_ref, g2_ref, b2_ref,
        w_f1_ref, b_f1_ref, w_f2_ref, b_f2_ref,
        head_w_ref, head_b_ref,
        # outputs
        out_ref,
        # scratch (VMEM-resident activation slabs, one per modality, N padded to 8)
        act_text_ref, act_img_ref, act_tab_ref,
        *, depth, heads, L, eps, n_valid):
    bb = text_ref.shape[0]
    D = fc_text_w_ref.shape[1]
    hd = D // heads
    scale = 1.0 / math.sqrt(hd)
    OUTW = head_w_ref.shape[1]

    # ---------------- prologue: fc + pos + fusion-token prepend + zero pad ---
    def project(feat_ref, w_ref, b_ref, pos_ref):
        Bf, Nf, Df = feat_ref.shape
        x2 = feat_ref[...].reshape(Bf * Nf, Df)
        y2 = jnp.dot(x2, w_ref[...], preferred_element_type=jnp.float32) + b_ref[...]
        return y2.reshape(Bf, Nf, D) + pos_ref[0]

    def fill(act_ref, tok_ref, feat3, nv):
        npad = act_ref.shape[1]
        act_ref[:, 0:L, :] = jnp.broadcast_to(tok_ref[0], (bb, L, D))
        act_ref[:, L:nv, :] = feat3
        if npad > nv:  # zero padded rows (kept finite; masked as keys below)
            act_ref[:, nv:, :] = jnp.zeros((bb, npad - nv, D), jnp.float32)

    fill(act_text_ref, tok_text_ref,
         project(text_ref, fc_text_w_ref, fc_text_b_ref, pos_text_ref), n_valid[0])
    fill(act_img_ref, tok_img_ref,
         project(img_ref, fc_img_w_ref, fc_img_b_ref, pos_img_ref), n_valid[1])
    fill(act_tab_ref, tok_tab_ref, tab_ref[...] + pos_tab_ref[0], n_valid[2])

    act_refs = (act_text_ref, act_img_ref, act_tab_ref)

    # Hoisted, compile-time-constant key-padding bias per modality.
    def key_bias(nv, npad):
        lane = jax.lax.broadcasted_iota(jnp.int32, (1, 1, npad), 2)
        return jnp.where(lane < nv, 0.0, -1e30).astype(jnp.float32)

    kbias = tuple(key_bias(nv, r.shape[1]) for nv, r in zip(n_valid, act_refs))

    # ---------------- one post-norm TransformerEncoderLayer (eval, ReLU) -----
    def encoder_layer(x3, m, d, kb):
        Bx, N, _ = x3.shape
        x2 = x3.reshape(Bx * N, D)                 # free view: N % 8 == 0
        # Fused Q|K|V projection: one (D, 3D) matmul over all rows.
        qkv = (jnp.dot(x2, w_qkv_ref[m, d], preferred_element_type=jnp.float32)
               + b_qkv_ref[m, d])
        qkv3 = qkv.reshape(Bx, N, 3 * D)
        q = qkv3[:, :, 0:D]
        k = qkv3[:, :, D:2 * D]
        v = qkv3[:, :, 2 * D:3 * D]
        parts = []
        for h in range(heads):                     # static unroll over heads
            sl = slice(h * hd, (h + 1) * hd)
            s = jnp.einsum("bqd,bkd->bqk", q[:, :, sl], k[:, :, sl],
                           preferred_element_type=jnp.float32) * scale + kb
            s = s - jnp.max(s, axis=-1, keepdims=True)
            p = jnp.exp(s)
            p = p * pl.reciprocal(jnp.sum(p, axis=-1, keepdims=True), approx=True)
            parts.append(jnp.einsum("bqk,bkd->bqd", p, v[:, :, sl],
                                    preferred_element_type=jnp.float32))
        ctx = jnp.concatenate(parts, axis=-1).reshape(Bx * N, D)
        attn_out = (jnp.dot(ctx, w_o_ref[m, d], preferred_element_type=jnp.float32)
                    + b_o_ref[m, d])
        x1 = _layernorm(x2 + attn_out, g1_ref[m, d], b1_ref[m, d], eps)
        h1 = jnp.maximum(                          # ReLU (dropout = identity, eval)
            jnp.dot(x1, w_f1_ref[m, d], preferred_element_type=jnp.float32)
            + b_f1_ref[m, d], 0.0)
        ff = (jnp.dot(h1, w_f2_ref[m, d], preferred_element_type=jnp.float32)
              + b_f2_ref[m, d])
        y2 = _layernorm(x1 + ff, g2_ref[m, d], b2_ref[m, d], eps)
        return y2.reshape(Bx, N, D)

    # ---------------- depth loop: Transformer_fusion_missing (missing == 0) --
    mw = mean_w_ref[...]                            # (1, 3), order: text, img, tab
    inv_wsum = 1.0 / (mw[:, 0:1] + mw[:, 1:2] + mw[:, 2:3])
    w0 = mw[:, 0:1] * inv_wsum
    w1 = mw[:, 1:2] * inv_wsum
    w2 = mw[:, 2:3] * inv_wsum

    fusion = None
    for d in range(depth):                          # static unroll (depth small)
        fts = []
        for m, (ref_m, kb) in enumerate(zip(act_refs, kbias)):
            y3 = encoder_layer(ref_m[...], m, d, kb)
            if d < depth - 1:                       # last layer: no write-back needed
                ref_m[:, L:, :] = y3[:, L:, :]      # fusion rows written only once
            fts.append(y3[:, 0:L, :])
        fusion = w0 * fts[0] + w1 * fts[1] + w2 * fts[2]
        if d < depth - 1:
            for ref_m in act_refs:                  # in-VMEM fusion-token write-back
                ref_m[:, 0:L, :] = fusion

    # ---------------- pooling ('cls') + mlp_head, lane-dense combined output -
    pooled = fusion[:, 0, :]                        # (bb, D)
    # head_w_ref = [ I_D | W_head | 0 ]  ->  out lanes = [ pooled | logits | 0 ]
    out = (jnp.dot(pooled, head_w_ref[...], preferred_element_type=jnp.float32)
           + head_b_ref[...])
    out_ref[...] = out.reshape(bb, 1, OUTW)         # single unmasked 128-lane store


# ----------------------------- parameter init -----------------------------

def make_params(key, cfg):
    D = cfg["dim_fusion"]
    dff = cfg["dim_feedforward"]
    depth = cfg["depth"]
    C = cfg["num_classes"]
    ks = jax.random.split(key, 13)
    s = 0.05
    # Per-(modality, depth) encoder-layer params; modality order [text, img, tab]
    # matches the PyTorch ModuleLists and mean_weights indexing.
    return {
        "fc_text_w": s * jax.random.normal(ks[0], (cfg["dim_text"], D), jnp.float32),
        "fc_text_b": jnp.zeros((1, D), jnp.float32),
        "fc_img_w": s * jax.random.normal(ks[1], (cfg["dim_img"], D), jnp.float32),
        "fc_img_b": jnp.zeros((1, D), jnp.float32),
        "pos_text": s * jax.random.normal(ks[2], (1, cfg["seq_text"], D), jnp.float32),
        "pos_img": s * jax.random.normal(ks[3], (1, cfg["img_lenth"], D), jnp.float32),
        "pos_tab": s * jax.random.normal(ks[4], (1, cfg["n_steps"], D), jnp.float32),
        "fusion_tok_text": s * jax.random.normal(ks[5], (1, cfg["fusion_lenth"], D), jnp.float32),
        "fusion_tok_img": s * jax.random.normal(ks[6], (1, cfg["fusion_lenth"], D), jnp.float32),
        "fusion_tok_tab": s * jax.random.normal(ks[7], (1, cfg["fusion_lenth"], D), jnp.float32),
        "mean_weights": jnp.ones((1, 3), jnp.float32),     # pool_fusion == 'mean'
        "w_qkv": s * jax.random.normal(ks[8], (3, depth, D, 3 * D), jnp.float32),
        "b_qkv": jnp.zeros((3, depth, 1, 3 * D), jnp.float32),
        "w_o": s * jax.random.normal(ks[9], (3, depth, D, D), jnp.float32),
        "b_o": jnp.zeros((3, depth, 1, D), jnp.float32),
        "g1": jnp.ones((3, depth, 1, D), jnp.float32),
        "b1": jnp.zeros((3, depth, 1, D), jnp.float32),
        "g2": jnp.ones((3, depth, 1, D), jnp.float32),
        "b2": jnp.zeros((3, depth, 1, D), jnp.float32),
        "w_f1": s * jax.random.normal(ks[10], (3, depth, D, dff), jnp.float32),
        "b_f1": jnp.zeros((3, depth, 1, dff), jnp.float32),
        "w_f2": s * jax.random.normal(ks[11], (3, depth, dff, D), jnp.float32),
        "b_f2": jnp.zeros((3, depth, 1, D), jnp.float32),
        "head_w": s * jax.random.normal(ks[12], (D, C), jnp.float32),
        "head_b": jnp.zeros((1, C), jnp.float32),
    }


# ----------------------------- forward pass -----------------------------

def forward(params, text_feat, img_feat, tab_feat, cfg):
    """text_feat: (B, seq_text, dim_text)   -- stands in for BERT output [0]
       img_feat : (B, dim_img, P, P)        -- stands in for DenseNet+AvgPool
       tab_feat : (n_steps, B, dim_fusion)  -- stands in for TabNet step outputs
    """
    assert cfg["depth"] >= 1, "depth must be >= 1 (fusion token is produced in the loop)"
    B = text_feat.shape[0]
    D = cfg["dim_fusion"]
    L = cfg["fusion_lenth"]
    C = cfg["num_classes"]
    dff = cfg["dim_feedforward"]

    # One-time cheap XLA rearranges (the rest is fused in the kernel):
    #   img: 'a b c d -> a (c d) b',   tabular: 'h b n -> b h n'
    img = jnp.transpose(img_feat.reshape(B, img_feat.shape[1], -1), (0, 2, 1))
    tab = jnp.transpose(tab_feat, (1, 0, 2))

    n_text = L + text_feat.shape[1]
    n_img = L + img.shape[1]
    n_tab = L + tab.shape[1]
    n_valid = (n_text, n_img, n_tab)
    n_pad = tuple(_round_up(n, 8) for n in n_valid)       # sublane-aligned slabs

    # Lane-dense combined head: out = pooled @ [I_D | W_head | 0] + [0 | b | 0]
    OUTW = _round_up(D + C, 128)
    head_w_comb = jnp.concatenate(
        [jnp.eye(D, dtype=jnp.float32), params["head_w"],
         jnp.zeros((D, OUTW - D - C), jnp.float32)], axis=1)
    head_b_comb = jnp.concatenate(
        [jnp.zeros((1, D), jnp.float32), params["head_b"],
         jnp.zeros((1, OUTW - D - C), jnp.float32)], axis=1)

    # Batch grid: 2 parallel blocks when possible (uses both TensorCores on v7x,
    # near-neutral on single-core v5e/v6e).
    n_blocks = 2 if (B >= 2 and B % 2 == 0) else 1
    bb = B // n_blocks

    inputs = (
        text_feat, img, tab,
        params["fc_text_w"], params["fc_text_b"],
        params["fc_img_w"], params["fc_img_b"],
        params["pos_text"], params["pos_img"], params["pos_tab"],
        params["fusion_tok_text"], params["fusion_tok_img"], params["fusion_tok_tab"],
        params["mean_weights"],
        params["w_qkv"], params["b_qkv"], params["w_o"], params["b_o"],
        params["g1"], params["b1"], params["g2"], params["b2"],
        params["w_f1"], params["b_f1"], params["w_f2"], params["b_f2"],
        head_w_comb, head_b_comb,
    )

    def batch_spec(x):
        return pl.BlockSpec((bb,) + x.shape[1:],
                            lambda b, nd=x.ndim: (b,) + (0,) * (nd - 1))

    def full_spec(x):
        return pl.BlockSpec(x.shape, lambda b, nd=x.ndim: (0,) * nd)

    in_specs = ([batch_spec(text_feat), batch_spec(img), batch_spec(tab)]
                + [full_spec(x) for x in inputs[3:]])
    out_spec = pl.BlockSpec((bb, 1, OUTW), lambda b: (b, 0, 0))

    # Advisory cost estimate for the XLA scheduler.
    flops = 2 * B * text_feat.shape[1] * text_feat.shape[2] * D
    flops += 2 * B * img.shape[1] * img.shape[2] * D
    for npd in n_pad:
        per_row = (2 * npd * D * 3 * D            # fused QKV
                   + 4 * npd * npd * D            # scores + context (all heads)
                   + 2 * npd * D * D              # out projection
                   + 4 * npd * D * dff)           # FFN
        flops += cfg["depth"] * B * per_row
    flops += 2 * B * D * OUTW
    transcend = cfg["depth"] * cfg["heads"] * B * sum(n * n for n in n_pad)
    bytes_accessed = sum(int(x.size) * x.dtype.itemsize for x in inputs) + B * OUTW * 4
    cost = pl.CostEstimate(flops=flops, transcendentals=transcend,
                           bytes_accessed=bytes_accessed)

    kern = functools.partial(_fused_kernel, depth=cfg["depth"], heads=cfg["heads"],
                             L=L, eps=cfg["layer_norm_eps"], n_valid=n_valid)
    out = pl.pallas_call(
        kern,
        out_shape=jax.ShapeDtypeStruct((B, 1, OUTW), jnp.float32),
        grid=(n_blocks,),
        in_specs=in_specs,
        out_specs=out_spec,
        scratch_shapes=[pltpu.VMEM((bb, n_pad[0], D), jnp.float32),
                        pltpu.VMEM((bb, n_pad[1], D), jnp.float32),
                        pltpu.VMEM((bb, n_pad[2], D), jnp.float32)],
        compiler_params=pltpu.CompilerParams(
            dimension_semantics=("parallel",),
            vmem_limit_bytes=32 * 1024 * 1024),
        cost_estimate=cost,
    )(*inputs)

    pooled = out[:, 0, 0:D]
    logits = out[:, 0, D:D + C]
    return logits, pooled


# ----------------------------- driver -----------------------------

if __name__ == "__main__":
    cfg = dict(
        dim_text=48, dim_img=24, dim_fusion=32,
        seq_text=8, pool_size=2, img_lenth=4, n_steps=3,
        fusion_lenth=2, depth=2, heads=4, dim_feedforward=64,
        num_classes=3, layer_norm_eps=1e-5,
    )
    B = 2

    key = jax.random.PRNGKey(0)
    k_par, k_text, k_img, k_tab = jax.random.split(key, 4)
    params = make_params(k_par, cfg)

    text_feat = jax.random.normal(k_text, (B, cfg["seq_text"], cfg["dim_text"]), jnp.float32)
    img_feat = jax.random.normal(k_img, (B, cfg["dim_img"], cfg["pool_size"], cfg["pool_size"]), jnp.float32)
    tab_feat = jax.random.normal(k_tab, (cfg["n_steps"], B, cfg["dim_fusion"]), jnp.float32)

    fwd = jax.jit(functools.partial(forward, cfg=cfg))
    logits, pooled = fwd(params, text_feat, img_feat, tab_feat)
    jax.block_until_ready((logits, pooled))
    assert logits.shape == (B, cfg["num_classes"])
    assert pooled.shape == (B, cfg["dim_fusion"])
    assert bool(jnp.all(jnp.isfinite(logits))) and bool(jnp.all(jnp.isfinite(pooled)))
    print("KERNEL_OK")
</pallas_src>

<mosaic_0001>
module attributes {stable_mosaic.version = 11 : i64} {
  func.func @_fused_kernel(%arg0: i32, %arg1: memref<1x8x48xf32, #tpu.memory_space<vmem>>, %arg2: memref<1x4x24xf32, #tpu.memory_space<vmem>>, %arg3: memref<1x3x32xf32, #tpu.memory_space<vmem>>, %arg4: memref<48x32xf32, #tpu.memory_space<vmem>>, %arg5: memref<1x32xf32, #tpu.memory_space<vmem>>, %arg6: memref<24x32xf32, #tpu.memory_space<vmem>>, %arg7: memref<1x32xf32, #tpu.memory_space<vmem>>, %arg8: memref<1x8x32xf32, #tpu.memory_space<vmem>>, %arg9: memref<1x4x32xf32, #tpu.memory_space<vmem>>, %arg10: memref<1x3x32xf32, #tpu.memory_space<vmem>>, %arg11: memref<1x2x32xf32, #tpu.memory_space<vmem>>, %arg12: memref<1x2x32xf32, #tpu.memory_space<vmem>>, %arg13: memref<1x2x32xf32, #tpu.memory_space<vmem>>, %arg14: memref<1x3xf32, #tpu.memory_space<vmem>>, %arg15: memref<3x2x32x96xf32, #tpu.memory_space<vmem>>, %arg16: memref<3x2x1x96xf32, #tpu.memory_space<vmem>>, %arg17: memref<3x2x32x32xf32, #tpu.memory_space<vmem>>, %arg18: memref<3x2x1x32xf32, #tpu.memory_space<vmem>>, %arg19: memref<3x2x1x32xf32, #tpu.memory_space<vmem>>, %arg20: memref<3x2x1x32xf32, #tpu.memory_space<vmem>>, %arg21: memref<3x2x1x32xf32, #tpu.memory_space<vmem>>, %arg22: memref<3x2x1x32xf32, #tpu.memory_space<vmem>>, %arg23: memref<3x2x32x64xf32, #tpu.memory_space<vmem>>, %arg24: memref<3x2x1x64xf32, #tpu.memory_space<vmem>>, %arg25: memref<3x2x64x32xf32, #tpu.memory_space<vmem>>, %arg26: memref<3x2x1x32xf32, #tpu.memory_space<vmem>>, %arg27: memref<32x128xf32, #tpu.memory_space<vmem>>, %arg28: memref<1x128xf32, #tpu.memory_space<vmem>>, %arg29: memref<1x1x128xf32, #tpu.memory_space<vmem>>, %arg30: memref<1x16x32xf32, #tpu.memory_space<vmem>>, %arg31: memref<1x8x32xf32, #tpu.memory_space<vmem>>, %arg32: memref<1x8x32xf32, #tpu.memory_space<vmem>>) attributes {dimension_semantics = [#tpu.dimension_semantics<parallel>], iteration_bounds = array<i64: 2>, scalar_prefetch = 0 : i64, scratch_operands = 3 : i64, tpu.core_type = #tpu.core_type<tc>, window_params = [{transform_indices = @transform_0, window_bounds = array<i64: 1, 8, 48>}, {transform_indices = @transform_1, window_bounds = array<i64: 1, 4, 24>}, {transform_indices = @transform_2, window_bounds = array<i64: 1, 3, 32>}, {pipeline_mode = #tpu.pipeline_mode<synchronous>, transform_indices = @transform_3, window_bounds = array<i64: 48, 32>}, {pipeline_mode = #tpu.pipeline_mode<synchronous>, transform_indices = @transform_4, window_bounds = array<i64: 1, 32>}, {pipeline_mode = #tpu.pipeline_mode<synchronous>, transform_indices = @transform_5, window_bounds = array<i64: 24, 32>}, {pipeline_mode = #tpu.pipeline_mode<synchronous>, transform_indices = @transform_6, window_bounds = array<i64: 1, 32>}, {pipeline_mode = #tpu.pipeline_mode<synchronous>, transform_indices = @transform_7, window_bounds = array<i64: 1, 8, 32>}, {pipeline_mode = #tpu.pipeline_mode<synchronous>, transform_indices = @transform_8, window_bounds = array<i64: 1, 4, 32>}, {pipeline_mode = #tpu.pipeline_mode<synchronous>, transform_indices = @transform_9, window_bounds = array<i64: 1, 3, 32>}, {pipeline_mode = #tpu.pipeline_mode<synchronous>, transform_indices = @transform_10, window_bounds = array<i64: 1, 2, 32>}, {pipeline_mode = #tpu.pipeline_mode<synchronous>, transform_indices = @transform_11, window_bounds = array<i64: 1, 2, 32>}, {pipeline_mode = #tpu.pipeline_mode<synchronous>, transform_indices = @transform_12, window_bounds = array<i64: 1, 2, 32>}, {pipeline_mode = #tpu.pipeline_mode<synchronous>, transform_indices = @transform_13, window_bounds = array<i64: 1, 3>}, {pipeline_mode = #tpu.pipeline_mode<synchronous>, transform_indices = @transform_14, window_bounds = array<i64: 3, 2, 32, 96>}, {pipeline_mode = #tpu.pipeline_mode<synchronous>, transform_indices = @transform_15, window_bounds = array<i64: 3, 2, 1, 96>}, {pipeline_mode = #tpu.pipeline_mode<synchronous>, transform_indices = @transform_16, window_bounds = array<i64: 3, 2, 32, 32>}, {pipeline_mode = #tpu.pipeline_mode<synchronous>, transform_indices = @transform_17, window_bounds = array<i64: 3, 2, 1, 32>}, {pipeline_mode = #tpu.pipeline_mode<synchronous>, transform_indices = @transform_18, window_bounds = array<i64: 3, 2, 1, 32>}, {pipeline_mode = #tpu.pipeline_mode<synchronous>, transform_indices = @transform_19, window_bounds = array<i64: 3, 2, 1, 32>}, {pipeline_mode = #tpu.pipeline_mode<synchronous>, transform_indices = @transform_20, window_bounds = array<i64: 3, 2, 1, 32>}, {pipeline_mode = #tpu.pipeline_mode<synchronous>, transform_indices = @transform_21, window_bounds = array<i64: 3, 2, 1, 32>}, {pipeline_mode = #tpu.pipeline_mode<synchronous>, transform_indices = @transform_22, window_bounds = array<i64: 3, 2, 32, 64>}, {pipeline_mode = #tpu.pipeline_mode<synchronous>, transform_indices = @transform_23, window_bounds = array<i64: 3, 2, 1, 64>}, {pipeline_mode = #tpu.pipeline_mode<synchronous>, transform_indices = @transform_24, window_bounds = array<i64: 3, 2, 64, 32>}, {pipeline_mode = #tpu.pipeline_mode<synchronous>, transform_indices = @transform_25, window_bounds = array<i64: 3, 2, 1, 32>}, {pipeline_mode = #tpu.pipeline_mode<synchronous>, transform_indices = @transform_26, window_bounds = array<i64: 32, 128>}, {pipeline_mode = #tpu.pipeline_mode<synchronous>, transform_indices = @transform_27, window_bounds = array<i64: 1, 128>}, {transform_indices = @transform_28, window_bounds = array<i64: 1, 1, 128>}]} {
    %c0 = arith.constant 0 : index
    %c0_0 = arith.constant 0 : index
    %c0_1 = arith.constant 0 : index
    %0 = vector.load %arg1[%c0, %c0_0, %c0_1] : memref<1x8x48xf32, #tpu.memory_space<vmem>>, vector<1x8x48xf32>
    %1 = vector.shape_cast %0 : vector<1x8x48xf32> to vector<8x48xf32>
    %c0_2 = arith.constant 0 : index
    %c0_3 = arith.constant 0 : index
    %2 = vector.load %arg4[%c0_2, %c0_3] : memref<48x32xf32, #tpu.memory_space<vmem>>, vector<48x32xf32>
    %cst = arith.constant dense<0.000000e+00> : vector<8x32xf32>
    %3 = tpu.matmul %1, %2, %cst {dimension_numbers = #tpu.dot_dimension_numbers<[1], [0], [0], [1], [0, 0, 1, 1], [], []>} : vector<8x48xf32>, vector<48x32xf32>, vector<8x32xf32> -> vector<8x32xf32>
    %c0_4 = arith.constant 0 : index
    %c0_5 = arith.constant 0 : index
    %4 = vector.load %arg5[%c0_4, %c0_5] : memref<1x32xf32, #tpu.memory_space<vmem>>, vector<1x32xf32>
    %5 = vector.broadcast %4 : vector<1x32xf32> to vector<8x32xf32>
    %6 = arith.addf %3, %5 : vector<8x32xf32>
    %7 = vector.shape_cast %6 : vector<8x32xf32> to vector<1x8x32xf32>
    %c0_6 = arith.constant 0 : index
    %c0_7 = arith.constant 0 : index
    %c0_8 = arith.constant 0 : index
    %8 = vector.load %arg8[%c0_6, %c0_7, %c0_8] : memref<1x8x32xf32, #tpu.memory_space<vmem>>, vector<1x8x32xf32>
    %9 = vector.shape_cast %8 : vector<1x8x32xf32> to vector<8x32xf32>
    %10 = vector.shape_cast %9 : vector<8x32xf32> to vector<1x8x32xf32>
    %11 = arith.addf %7, %10 : vector<1x8x32xf32>
    %c0_9 = arith.constant 0 : index
    %c0_10 = arith.constant 0 : index
    %c0_11 = arith.constant 0 : index
    %12 = vector.load %arg11[%c0_9, %c0_10, %c0_11] : memref<1x2x32xf32, #tpu.memory_space<vmem>>, vector<1x2x32xf32>
    %13 = vector.shape_cast %12 : vector<1x2x32xf32> to vector<2x32xf32>
    %14 = vector.shape_cast %13 : vector<2x32xf32> to vector<1x2x32xf32>
    %c0_12 = arith.constant 0 : index
    %c0_13 = arith.constant 0 : index
    %c0_14 = arith.constant 0 : index
    %15 = vector.load %arg30[%c0_12, %c0_13, %c0_14] : memref<1x16x32xf32, #tpu.memory_space<vmem>>, vector<1x2x32xf32>
    tpu.vector_store %arg30[%c0_12, %c0_13, %c0_14], %14 {strides = array<i32>} : memref<1x16x32xf32, #tpu.memory_space<vmem>>, vector<1x2x32xf32>,
    %c0_15 = arith.constant 0 : index
    %c2 = arith.constant 2 : index
    %c0_16 = arith.constant 0 : index
    %16 = vector.load %arg30[%c0_15, %c2, %c0_16] : memref<1x16x32xf32, #tpu.memory_space<vmem>>, vector<1x8x32xf32>
    tpu.vector_store %arg30[%c0_15, %c2, %c0_16], %11 {strides = array<i32>} : memref<1x16x32xf32, #tpu.memory_space<vmem>>, vector<1x8x32xf32>,
    %cst_17 = arith.constant 0.000000e+00 : f32
    %17 = vector.broadcast %cst_17 : f32 to vector<1x6x32xf32>
    %c0_18 = arith.constant 0 : index
    %c10 = arith.constant 10 : index
    %c0_19 = arith.constant 0 : index
    %18 = vector.load %arg30[%c0_18, %c10, %c0_19] : memref<1x16x32xf32, #tpu.memory_space<vmem>>, vector<1x6x32xf32>
    tpu.vector_store %arg30[%c0_18, %c10, %c0_19], %17 {strides = array<i32>} : memref<1x16x32xf32, #tpu.memory_space<vmem>>, vector<1x6x32xf32>,
    %c0_20 = arith.constant 0 : index
    %c0_21 = arith.constant 0 : index
    %c0_22 = arith.constant 0 : index
    %19 = vector.load %arg2[%c0_20, %c0_21, %c0_22] : memref<1x4x24xf32, #tpu.memory_space<vmem>>, vector<1x4x24xf32>
    %20 = vector.shape_cast %19 : vector<1x4x24xf32> to vector<4x24xf32>
    %c0_23 = arith.constant 0 : index
    %c0_24 = arith.constant 0 : index
    %21 = vector.load %arg6[%c0_23, %c0_24] : memref<24x32xf32, #tpu.memory_space<vmem>>, vector<24x32xf32>
    %cst_25 = arith.constant dense<0.000000e+00> : vector<4x32xf32>
    %22 = tpu.matmul %20, %21, %cst_25 {dimension_numbers = #tpu.dot_dimension_numbers<[1], [0], [0], [1], [0, 0, 1, 1], [], []>} : vector<4x24xf32>, vector<24x32xf32>, vector<4x32xf32> -> vector<4x32xf32>
    %c0_26 = arith.constant 0 : index
    %c0_27 = arith.constant 0 : index
    %23 = vector.load %arg7[%c0_26, %c0_27] : memref<1x32xf32, #tpu.memory_space<vmem>>, vector<1x32xf32>
    %24 = vector.broadcast %23 : vector<1x32xf32> to vector<4x32xf32>
    %25 = arith.addf %22, %24 : vector<4x32xf32>
    %26 = vector.shape_cast %25 : vector<4x32xf32> to vector<1x4x32xf32>
    %c0_28 = arith.constant 0 : index
    %c0_29 = arith.constant 0 : index
    %c0_30 = arith.constant 0 : index
    %27 = vector.load %arg9[%c0_28, %c0_29, %c0_30] : memref<1x4x32xf32, #tpu.memory_space<vmem>>, vector<1x4x32xf32>
    %28 = vector.shape_cast %27 : vector<1x4x32xf32> to vector<4x32xf32>
    %29 = vector.shape_cast %28 : vector<4x32xf32> to vector<1x4x32xf32>
    %30 = arith.addf %26, %29 : vector<1x4x32xf32>
    %c0_31 = arith.constant 0 : index
    %c0_32 = arith.constant 0 : index
    %c0_33 = arith.constant 0 : index
    %31 = vector.load %arg12[%c0_31, %c0_32, %c0_33] : memref<1x2x32xf32, #tpu.memory_space<vmem>>, vector<1x2x32xf32>
    %32 = vector.shape_cast %31 : vector<1x2x32xf32> to vector<2x32xf32>
    %33 = vector.shape_cast %32 : vector<2x32xf32> to vector<1x2x32xf32>
    %c0_34 = arith.constant 0 : index
    %c0_35 = arith.constant 0 : index
    %c0_36 = arith.constant 0 : index
    %34 = vector.load %arg31[%c0_34, %c0_35, %c0_36] : memref<1x8x32xf32, #tpu.memory_space<vmem>>, vector<1x2x32xf32>
    tpu.vector_store %arg31[%c0_34, %c0_35, %c0_36], %33 {strides = array<i32>} : memref<1x8x32xf32, #tpu.memory_space<vmem>>, vector<1x2x32xf32>,
    %c0_37 = arith.constant 0 : index
    %c2_38 = arith.constant 2 : index
    %c0_39 = arith.constant 0 : index
    %35 = vector.load %arg31[%c0_37, %c2_38, %c0_39] : memref<1x8x32xf32, #tpu.memory_space<vmem>>, vector<1x4x32xf32>
    tpu.vector_store %arg31[%c0_37, %c2_38, %c0_39], %30 {strides = array<i32>} : memref<1x8x32xf32, #tpu.memory_space<vmem>>, vector<1x4x32xf32>,
    %cst_40 = arith.constant 0.000000e+00 : f32
    %36 = vector.broadcast %cst_40 : f32 to vector<1x2x32xf32>
    %c0_41 = arith.constant 0 : index
    %c6 = arith.constant 6 : index
    %c0_42 = arith.constant 0 : index
    %37 = vector.load %arg31[%c0_41, %c6, %c0_42] : memref<1x8x32xf32, #tpu.memory_space<vmem>>, vector<1x2x32xf32>
    tpu.vector_store %arg31[%c0_41, %c6, %c0_42], %36 {strides = array<i32>} : memref<1x8x32xf32, #tpu.memory_space<vmem>>, vector<1x2x32xf32>,
    %c0_43 = arith.constant 0 : index
    %c0_44 = arith.constant 0 : index
    %c0_45 = arith.constant 0 : index
    %38 = vector.load %arg3[%c0_43, %c0_44, %c0_45] : memref<1x3x32xf32, #tpu.memory_space<vmem>>, vector<1x3x32xf32>
    %c0_46 = arith.constant 0 : index
    %c0_47 = arith.constant 0 : index
    %c0_48 = arith.constant 0 : index
    %39 = vector.load %arg10[%c0_46, %c0_47, %c0_48] : memref<1x3x32xf32, #tpu.memory_space<vmem>>, vector<1x3x32xf32>
    %40 = vector.shape_cast %39 : vector<1x3x32xf32> to vector<3x32xf32>
    %41 = vector.shape_cast %40 : vector<3x32xf32> to vector<1x3x32xf32>
    %42 = arith.addf %38, %41 : vector<1x3x32xf32>
    %c0_49 = arith.constant 0 : index
    %c0_50 = arith.constant 0 : index
    %c0_51 = arith.constant 0 : index
    %43 = vector.load %arg13[%c0_49, %c0_50, %c0_51] : memref<1x2x32xf32, #tpu.memory_space<vmem>>, vector<1x2x32xf32>
    %44 = vector.shape_cast %43 : vector<1x2x32xf32> to vector<2x32xf32>
    %45 = vector.shape_cast %44 : vector<2x32xf32> to vector<1x2x32xf32>
    %c0_52 = arith.constant 0 : index
    %c0_53 = arith.constant 0 : index
    %c0_54 = arith.constant 0 : index
    %46 = vector.load %arg32[%c0_52, %c0_53, %c0_54] : memref<1x8x32xf32, #tpu.memory_space<vmem>>, vector<1x2x32xf32>
    tpu.vector_store %arg32[%c0_52, %c0_53, %c0_54], %45 {strides = array<i32>} : memref<1x8x32xf32, #tpu.memory_space<vmem>>, vector<1x2x32xf32>,
    %c0_55 = arith.constant 0 : index
    %c2_56 = arith.constant 2 : index
    %c0_57 = arith.constant 0 : index
    %47 = vector.load %arg32[%c0_55, %c2_56, %c0_57] : memref<1x8x32xf32, #tpu.memory_space<vmem>>, vector<1x3x32xf32>
    tpu.vector_store %arg32[%c0_55, %c2_56, %c0_57], %42 {strides = array<i32>} : memref<1x8x32xf32, #tpu.memory_space<vmem>>, vector<1x3x32xf32>,
    %cst_58 = arith.constant 0.000000e+00 : f32
    %48 = vector.broadcast %cst_58 : f32 to vector<1x3x32xf32>
    %c0_59 = arith.constant 0 : index
    %c5 = arith.constant 5 : index
    %c0_60 = arith.constant 0 : index
    %49 = vector.load %arg32[%c0_59, %c5, %c0_60] : memref<1x8x32xf32, #tpu.memory_space<vmem>>, vector<1x3x32xf32>
    tpu.vector_store %arg32[%c0_59, %c5, %c0_60], %48 {strides = array<i32>} : memref<1x8x32xf32, #tpu.memory_space<vmem>>, vector<1x3x32xf32>,
    %50 = tpu.iota {dimensions = array<i32: 2>} : vector<1x1x16xi32>
    %c10_i32 = arith.constant 10 : i32
    %51 = vector.broadcast %c10_i32 : i32 to vector<1x1x16xi32>
    %52 = arith.cmpi slt, %50, %51 : vector<1x1x16xi32>
    %cst_61 = arith.constant 0.000000e+00 : f32
    %cst_62 = arith.constant -1.000000e+30 : f32
    %53 = vector.broadcast %cst_61 : f32 to vector<1x1x16xf32>
    %54 = vector.broadcast %cst_62 : f32 to vector<1x1x16xf32>
    %55 = arith.select %52, %53, %54 : vector<1x1x16xi1>, vector<1x1x16xf32>
    %56 = tpu.iota {dimensions = array<i32: 2>} : vector<1x1x8xi32>
    %c6_i32 = arith.constant 6 : i32
    %57 = vector.broadcast %c6_i32 : i32 to vector<1x1x8xi32>
    %58 = arith.cmpi slt, %56, %57 : vector<1x1x8xi32>
    %cst_63 = arith.constant 0.000000e+00 : f32
    %cst_64 = arith.constant -1.000000e+30 : f32
    %59 = vector.broadcast %cst_63 : f32 to vector<1x1x8xf32>
    %60 = vector.broadcast %cst_64 : f32 to vector<1x1x8xf32>
    %61 = arith.select %58, %59, %60 : vector<1x1x8xi1>, vector<1x1x8xf32>
    %62 = tpu.iota {dimensions = array<i32: 2>} : vector<1x1x8xi32>
    %c5_i32 = arith.constant 5 : i32
    %63 = vector.broadcast %c5_i32 : i32 to vector<1x1x8xi32>
    %64 = arith.cmpi slt, %62, %63 : vector<1x1x8xi32>
    %cst_65 = arith.constant 0.000000e+00 : f32
    %cst_66 = arith.constant -1.000000e+30 : f32
    %65 = vector.broadcast %cst_65 : f32 to vector<1x1x8xf32>
    %66 = vector.broadcast %cst_66 : f32 to vector<1x1x8xf32>
    %67 = arith.select %64, %65, %66 : vector<1x1x8xi1>, vector<1x1x8xf32>
    %c0_67 = arith.constant 0 : index
    %c0_68 = arith.constant 0 : index
    %68 = vector.load %arg14[%c0_67, %c0_68] : memref<1x3xf32, #tpu.memory_space<vmem>>, vector<1x3xf32>
    %69 = vector.extract_strided_slice %68 {offsets = [0, 0], sizes = [1, 1], strides = [1, 1]} : vector<1x3xf32> to vector<1x1xf32>
    %70 = vector.extract_strided_slice %68 {offsets = [0, 1], sizes = [1, 1], strides = [1, 1]} : vector<1x3xf32> to vector<1x1xf32>
    %71 = arith.addf %69, %70 : vector<1x1xf32>
    %72 = vector.extract_strided_slice %68 {offsets = [0, 2], sizes = [1, 1], strides = [1, 1]} : vector<1x3xf32> to vector<1x1xf32>
    %73 = arith.addf %71, %72 : vector<1x1xf32>
    %cst_69 = arith.constant 1.000000e+00 : f32
    %74 = vector.broadcast %cst_69 : f32 to vector<1x1xf32>
    %75 = arith.divf %74, %73 : vector<1x1xf32>
    %76 = vector.extract_strided_slice %68 {offsets = [0, 0], sizes = [1, 1], strides = [1, 1]} : vector<1x3xf32> to vector<1x1xf32>
    %77 = arith.mulf %76, %75 : vector<1x1xf32>
    %78 = vector.extract_strided_slice %68 {offsets = [0, 1], sizes = [1, 1], strides = [1, 1]} : vector<1x3xf32> to vector<1x1xf32>
    %79 = arith.mulf %78, %75 : vector<1x1xf32>
    %80 = vector.extract_strided_slice %68 {offsets = [0, 2], sizes = [1, 1], strides = [1, 1]} : vector<1x3xf32> to vector<1x1xf32>
    %81 = arith.mulf %80, %75 : vector<1x1xf32>
    %c0_70 = arith.constant 0 : index
    %c0_71 = arith.constant 0 : index
    %c0_72 = arith.constant 0 : index
    %82 = vector.load %arg30[%c0_70, %c0_71, %c0_72] : memref<1x16x32xf32, #tpu.memory_space<vmem>>, vector<1x16x32xf32>
    %83 = vector.shape_cast %82 : vector<1x16x32xf32> to vector<16x32xf32>
    %c0_73 = arith.constant 0 : index
    %c0_74 = arith.constant 0 : index
    %c0_75 = arith.constant 0 : index
    %c0_76 = arith.constant 0 : index
    %84 = vector.load %arg15[%c0_73, %c0_74, %c0_75, %c0_76] : memref<3x2x32x96xf32, #tpu.memory_space<vmem>>, vector<1x1x32x96xf32>
    %85 = vector.shape_cast %84 : vector<1x1x32x96xf32> to vector<32x96xf32>
    %cst_77 = arith.constant dense<0.000000e+00> : vector<16x96xf32>
    %86 = tpu.matmul %83, %85, %cst_77 {dimension_numbers = #tpu.dot_dimension_numbers<[1], [0], [0], [1], [0, 0, 1, 1], [], []>} : vector<16x32xf32>, vector<32x96xf32>, vector<16x96xf32> -> vector<16x96xf32>
    %c0_78 = arith.constant 0 : index
    %c0_79 = arith.constant 0 : index
    %c0_80 = arith.constant 0 : index
    %c0_81 = arith.constant 0 : index
    %87 = vector.load %arg16[%c0_78, %c0_79, %c0_80, %c0_81] : memref<3x2x1x96xf32, #tpu.memory_space<vmem>>, vector<1x1x1x96xf32>
    %88 = vector.shape_cast %87 : vector<1x1x1x96xf32> to vector<1x96xf32>
    %89 = vector.broadcast %88 : vector<1x96xf32> to vector<16x96xf32>
    %90 = arith.addf %86, %89 : vector<16x96xf32>
    %91 = vector.shape_cast %90 : vector<16x96xf32> to vector<1x16x96xf32>
    %92 = vector.extract_strided_slice %91 {offsets = [0, 0, 0], sizes = [1, 16, 32], strides = [1, 1, 1]} : vector<1x16x96xf32> to vector<1x16x32xf32>
    %93 = vector.extract_strided_slice %91 {offsets = [0, 0, 32], sizes = [1, 16, 32], strides = [1, 1, 1]} : vector<1x16x96xf32> to vector<1x16x32xf32>
    %94 = vector.extract_strided_slice %91 {offsets = [0, 0, 64], sizes = [1, 16, 32], strides = [1, 1, 1]} : vector<1x16x96xf32> to vector<1x16x32xf32>
    %95 = vector.extract_strided_slice %92 {offsets = [0, 0, 0], sizes = [1, 16, 8], strides = [1, 1, 1]} : vector<1x16x32xf32> to vector<1x16x8xf32>
    %96 = vector.extract_strided_slice %93 {offsets = [0, 0, 0], sizes = [1, 16, 8], strides = [1, 1, 1]} : vector<1x16x32xf32> to vector<1x16x8xf32>
    "tpu.trace_start"() <{level = 10 : i32, message = "bqd,bkd->bqk"}> : () -> ()
    %cst_82 = arith.constant dense<0.000000e+00> : vector<1x16x16xf32>
    %97 = tpu.matmul %95, %96, %cst_82 {dimension_numbers = #tpu.dot_dimension_numbers<[2], [2], [1], [1], [0, 0, 0, 1, 1, 1], [0], [0]>} : vector<1x16x8xf32>, vector<1x16x8xf32>, vector<1x16x16xf32> -> vector<1x16x16xf32>
    "tpu.trace_stop"() : () -> ()
    %cst_83 = arith.constant 0.353553385 : f32
    %98 = vector.broadcast %cst_83 : f32 to vector<1x16x16xf32>
    %99 = arith.mulf %97, %98 : vector<1x16x16xf32>
    %100 = vector.broadcast %55 : vector<1x1x16xf32> to vector<1x16x16xf32>
    %101 = arith.addf %99, %100 : vector<1x16x16xf32>
    %cst_84 = arith.constant dense<0xFF800000> : vector<1x16xf32>
    %102 = vector.multi_reduction <maximumf>, %101, %cst_84 [2] : vector<1x16x16xf32> to vector<1x16xf32>
    %103 = vector.shape_cast %102 : vector<1x16xf32> to vector<1x16x1xf32>
    %104 = vector.broadcast %103 : vector<1x16x1xf32> to vector<1x16x16xf32>
    %105 = arith.subf %101, %104 : vector<1x16x16xf32>
    %106 = math.exp %105 : vector<1x16x16xf32>
    %cst_85 = arith.constant dense<0.000000e+00> : vector<1x16xf32>
    %107 = vector.multi_reduction <add>, %106, %cst_85 [2] : vector<1x16x16xf32> to vector<1x16xf32>
    %108 = vector.shape_cast %107 : vector<1x16xf32> to vector<1x16x1xf32>
    %109 = tpu.reciprocal %108 {approx = true} : vector<1x16x1xf32> -> vector<1x16x1xf32>
    %110 = vector.broadcast %109 : vector<1x16x1xf32> to vector<1x16x16xf32>
    %111 = arith.mulf %106, %110 : vector<1x16x16xf32>
    %112 = vector.extract_strided_slice %94 {offsets = [0, 0, 0], sizes = [1, 16, 8], strides = [1, 1, 1]} : vector<1x16x32xf32> to vector<1x16x8xf32>
    "tpu.trace_start"() <{level = 10 : i32, message = "bqk,bkd->bqd"}> : () -> ()
    %cst_86 = arith.constant dense<0.000000e+00> : vector<1x16x8xf32>
    %113 = tpu.matmul %111, %112, %cst_86 {dimension_numbers = #tpu.dot_dimension_numbers<[2], [1], [1], [2], [0, 0, 0, 1, 1, 2], [0], [0]>} : vector<1x16x16xf32>, vector<1x16x8xf32>, vector<1x16x8xf32> -> vector<1x16x8xf32>
    "tpu.trace_stop"() : () -> ()
    %114 = vector.extract_strided_slice %92 {offsets = [0, 0, 8], sizes = [1, 16, 8], strides = [1, 1, 1]} : vector<1x16x32xf32> to vector<1x16x8xf32>
    %115 = vector.extract_strided_slice %93 {offsets = [0, 0, 8], sizes = [1, 16, 8], strides = [1, 1, 1]} : vector<1x16x32xf32> to vector<1x16x8xf32>
    "tpu.trace_start"() <{level = 10 : i32, message = "bqd,bkd->bqk"}> : () -> ()
    %cst_87 = arith.constant dense<0.000000e+00> : vector<1x16x16xf32>
    %116 = tpu.matmul %114, %115, %cst_87 {dimension_numbers = #tpu.dot_dimension_numbers<[2], [2], [1], [1], [0, 0, 0, 1, 1, 1], [0], [0]>} : vector<1x16x8xf32>, vector<1x16x8xf32>, vector<1x16x16xf32> -> vector<1x16x16xf32>
    "tpu.trace_stop"() : () -> ()
    %cst_88 = arith.constant 0.353553385 : f32
    %117 = vector.broadcast %cst_88 : f32 to vector<1x16x16xf32>
    %118 = arith.mulf %116, %117 : vector<1x16x16xf32>
    %119 = vector.broadcast %55 : vector<1x1x16xf32> to vector<1x16x16xf32>
    %120 = arith.addf %118, %119 : vector<1x16x16xf32>
    %cst_89 = arith.constant dense<0xFF800000> : vector<1x16xf32>
    %121 = vector.multi_reduction <maximumf>, %120, %cst_89 [2] : vector<1x16x16xf32> to vector<1x16xf32>
    %122 = vector.shape_cast %121 : vector<1x16xf32> to vector<1x16x1xf32>
    %123 = vector.broadcast %122 : vector<1x16x1xf32> to vector<1x16x16xf32>
    %124 = arith.subf %120, %123 : vector<1x16x16xf32>
    %125 = math.exp %124 : vector<1x16x16xf32>
    %cst_90 = arith.constant dense<0.000000e+00> : vector<1x16xf32>
    %126 = vector.multi_reduction <add>, %125, %cst_90 [2] : vector<1x16x16xf32> to vector<1x16xf32>
    %127 = vector.shape_cast %126 : vector<1x16xf32> to vector<1x16x1xf32>
    %128 = tpu.reciprocal %127 {approx = true} : vector<1x16x1xf32> -> vector<1x16x1xf32>
    %129 = vector.broadcast %128 : vector<1x16x1xf32> to vector<1x16x16xf32>
    %130 = arith.mulf %125, %129 : vector<1x16x16xf32>
    %131 = vector.extract_strided_slice %94 {offsets = [0, 0, 8], sizes = [1, 16, 8], strides = [1, 1, 1]} : vector<1x16x32xf32> to vector<1x16x8xf32>
    "tpu.trace_start"() <{level = 10 : i32, message = "bqk,bkd->bqd"}> : () -> ()
    %cst_91 = arith.constant dense<0.000000e+00> : vector<1x16x8xf32>
    %132 = tpu.matmul %130, %131, %cst_91 {dimension_numbers = #tpu.dot_dimension_numbers<[2], [1], [1], [2], [0, 0, 0, 1, 1, 2], [0], [0]>} : vector<1x16x16xf32>, vector<1x16x8xf32>, vector<1x16x8xf32> -> vector<1x16x8xf32>
    "tpu.trace_stop"() : () -> ()
    %133 = vector.extract_strided_slice %92 {offsets = [0, 0, 16], sizes = [1, 16, 8], strides = [1, 1, 1]} : vector<1x16x32xf32> to vector<1x16x8xf32>
    %134 = vector.extract_strided_slice %93 {offsets = [0, 0, 16], sizes = [1, 16, 8], strides = [1, 1, 1]} : vector<1x16x32xf32> to vector<1x16x8xf32>
    "tpu.trace_start"() <{level = 10 : i32, message = "bqd,bkd->bqk"}> : () -> ()
    %cst_92 = arith.constant dense<0.000000e+00> : vector<1x16x16xf32>
    %135 = tpu.matmul %133, %134, %cst_92 {dimension_numbers = #tpu.dot_dimension_numbers<[2], [2], [1], [1], [0, 0, 0, 1, 1, 1], [0], [0]>} : vector<1x16x8xf32>, vector<1x16x8xf32>, vector<1x16x16xf32> -> vector<1x16x16xf32>
    "tpu.trace_stop"() : () -> ()
    %cst_93 = arith.constant 0.353553385 : f32
    %136 = vector.broadcast %cst_93 : f32 to vector<1x16x16xf32>
    %137 = arith.mulf %135, %136 : vector<1x16x16xf32>
    %138 = vector.broadcast %55 : vector<1x1x16xf32> to vector<1x16x16xf32>
    %139 = arith.addf %137, %138 : vector<1x16x16xf32>
    %cst_94 = arith.constant dense<0xFF800000> : vector<1x16xf32>
    %140 = vector.multi_reduction <maximumf>, %139, %cst_94 [2] : vector<1x16x16xf32> to vector<1x16xf32>
    %141 = vector.shape_cast %140 : vector<1x16xf32> to vector<1x16x1xf32>
    %142 = vector.broadcast %141 : vector<1x16x1xf32> to vector<1x16x16xf32>
    %143 = arith.subf %139, %142 : vector<1x16x16xf32>
    %144 = math.exp %143 : vector<1x16x16xf32>
    %cst_95 = arith.constant dense<0.000000e+00> : vector<1x16xf32>
    %145 = vector.multi_reduction <add>, %144, %cst_95 [2] : vector<1x16x16xf32> to vector<1x16xf32>
    %146 = vector.shape_cast %145 : vector<1x16xf32> to vector<1x16x1xf32>
    %147 = tpu.reciprocal %146 {approx = true} : vector<1x16x1xf32> -> vector<1x16x1xf32>
    %148 = vector.broadcast %147 : vector<1x16x1xf32> to vector<1x16x16xf32>
    %149 = arith.mulf %144, %148 : vector<1x16x16xf32>
    %150 = vector.extract_strided_slice %94 {offsets = [0, 0, 16], sizes = [1, 16, 8], strides = [1, 1, 1]} : vector<1x16x32xf32> to vector<1x16x8xf32>
    "tpu.trace_start"() <{level = 10 : i32, message = "bqk,bkd->bqd"}> : () -> ()
    %cst_96 = arith.constant dense<0.000000e+00> : vector<1x16x8xf32>
    %151 = tpu.matmul %149, %150, %cst_96 {dimension_numbers = #tpu.dot_dimension_numbers<[2], [1], [1], [2], [0, 0, 0, 1, 1, 2], [0], [0]>} : vector<1x16x16xf32>, vector<1x16x8xf32>, vector<1x16x8xf32> -> vector<1x16x8xf32>
    "tpu.trace_stop"() : () -> ()
    %152 = vector.extract_strided_slice %92 {offsets = [0, 0, 24], sizes = [1, 16, 8], strides = [1, 1, 1]} : vector<1x16x32xf32> to vector<1x16x8xf32>
    %153 = vector.extract_strided_slice %93 {offsets = [0, 0, 24], sizes = [1, 16, 8], strides = [1, 1, 1]} : vector<1x16x32xf32> to vector<1x16x8xf32>
    "tpu.trace_start"() <{level = 10 : i32, message = "bqd,bkd->bqk"}> : () -> ()
    %cst_97 = arith.constant dense<0.000000e+00> : vector<1x16x16xf32>
    %154 = tpu.matmul %152, %153, %cst_97 {dimension_numbers = #tpu.dot_dimension_numbers<[2], [2], [1], [1], [0, 0, 0, 1, 1, 1], [0], [0]>} : vector<1x16x8xf32>, vector<1x16x8xf32>, vector<1x16x16xf32> -> vector<1x16x16xf32>
    "tpu.trace_stop"() : () -> ()
    %cst_98 = arith.constant 0.353553385 : f32
    %155 = vector.broadcast %cst_98 : f32 to vector<1x16x16xf32>
    %156 = arith.mulf %154, %155 : vector<1x16x16xf32>
    %157 = vector.broadcast %55 : vector<1x1x16xf32> to vector<1x16x16xf32>
    %158 = arith.addf %156, %157 : vector<1x16x16xf32>
    %cst_99 = arith.constant dense<0xFF800000> : vector<1x16xf32>
    %159 = vector.multi_reduction <maximumf>, %158, %cst_99 [2] : vector<1x16x16xf32> to vector<1x16xf32>
    %160 = vector.shape_cast %159 : vector<1x16xf32> to vector<1x16x1xf32>
    %161 = vector.broadcast %160 : vector<1x16x1xf32> to vector<1x16x16xf32>
    %162 = arith.subf %158, %161 : vector<1x16x16xf32>
    %163 = math.exp %162 : vector<1x16x16xf32>
    %cst_100 = arith.constant dense<0.000000e+00> : vector<1x16xf32>
    %164 = vector.multi_reduction <add>, %163, %cst_100 [2] : vector<1x16x16xf32> to vector<1x16xf32>
    %165 = vector.shape_cast %164 : vector<1x16xf32> to vector<1x16x1xf32>
    %166 = tpu.reciprocal %165 {approx = true} : vector<1x16x1xf32> -> vector<1x16x1xf32>
    %167 = vector.broadcast %166 : vector<1x16x1xf32> to vector<1x16x16xf32>
    %168 = arith.mulf %163, %167 : vector<1x16x16xf32>
    %169 = vector.extract_strided_slice %94 {offsets = [0, 0, 24], sizes = [1, 16, 8], strides = [1, 1, 1]} : vector<1x16x32xf32> to vector<1x16x8xf32>
    "tpu.trace_start"() <{level = 10 : i32, message = "bqk,bkd->bqd"}> : () -> ()
    %cst_101 = arith.constant dense<0.000000e+00> : vector<1x16x8xf32>
    %170 = tpu.matmul %168, %169, %cst_101 {dimension_numbers = #tpu.dot_dimension_numbers<[2], [1], [1], [2], [0, 0, 0, 1, 1, 2], [0], [0]>} : vector<1x16x16xf32>, vector<1x16x8xf32>, vector<1x16x8xf32> -> vector<1x16x8xf32>
    "tpu.trace_stop"() : () -> ()
    %171 = tpu.concatenate %113, %132, %151, %170 in 2 : vector<1x16x8xf32>, vector<1x16x8xf32>, vector<1x16x8xf32>, vector<1x16x8xf32> -> vector<1x16x32xf32>
    %172 = vector.shape_cast %171 : vector<1x16x32xf32> to vector<16x32xf32>
    %c0_102 = arith.constant 0 : index
    %c0_103 = arith.constant 0 : index
    %c0_104 = arith.constant 0 : index
    %c0_105 = arith.constant 0 : index
    %173 = vector.load %arg17[%c0_102, %c0_103, %c0_104, %c0_105] : memref<3x2x32x32xf32, #tpu.memory_space<vmem>>, vector<1x1x32x32xf32>
    %174 = vector.shape_cast %173 : vector<1x1x32x32xf32> to vector<32x32xf32>
    %cst_106 = arith.constant dense<0.000000e+00> : vector<16x32xf32>
    %175 = tpu.matmul %172, %174, %cst_106 {dimension_numbers = #tpu.dot_dimension_numbers<[1], [0], [0], [1], [0, 0, 1, 1], [], []>} : vector<16x32xf32>, vector<32x32xf32>, vector<16x32xf32> -> vector<16x32xf32>
    %c0_107 = arith.constant 0 : index
    %c0_108 = arith.constant 0 : index
    %c0_109 = arith.constant 0 : index
    %c0_110 = arith.constant 0 : index
    %176 = vector.load %arg18[%c0_107, %c0_108, %c0_109, %c0_110] : memref<3x2x1x32xf32, #tpu.memory_space<vmem>>, vector<1x1x1x32xf32>
    %177 = vector.shape_cast %176 : vector<1x1x1x32xf32> to vector<1x32xf32>
    %178 = vector.broadcast %177 : vector<1x32xf32> to vector<16x32xf32>
    %179 = arith.addf %175, %178 : vector<16x32xf32>
    %180 = arith.addf %83, %179 : vector<16x32xf32>
    %c0_111 = arith.constant 0 : index
    %c0_112 = arith.constant 0 : index
    %c0_113 = arith.constant 0 : index
    %c0_114 = arith.constant 0 : index
    %181 = vector.load %arg19[%c0_111, %c0_112, %c0_113, %c0_114] : memref<3x2x1x32xf32, #tpu.memory_space<vmem>>, vector<1x1x1x32xf32>
    %182 = vector.shape_cast %181 : vector<1x1x1x32xf32> to vector<1x32xf32>
    %c0_115 = arith.constant 0 : index
    %c0_116 = arith.constant 0 : index
    %c0_117 = arith.constant 0 : index
    %c0_118 = arith.constant 0 : index
    %183 = vector.load %arg20[%c0_115, %c0_116, %c0_117, %c0_118] : memref<3x2x1x32xf32, #tpu.memory_space<vmem>>, vector<1x1x1x32xf32>
    %184 = vector.shape_cast %183 : vector<1x1x1x32xf32> to vector<1x32xf32>
    %cst_119 = arith.constant dense<0.000000e+00> : vector<16xf32>
    %185 = vector.multi_reduction <add>, %180, %cst_119 [1] : vector<16x32xf32> to vector<16xf32>
    %186 = vector.shape_cast %185 : vector<16xf32> to vector<16x1xf32>
    %cst_120 = arith.constant 3.200000e+01 : f32
    %187 = vector.broadcast %cst_120 : f32 to vector<16x1xf32>
    %188 = arith.divf %186, %187 : vector<16x1xf32>
    %189 = vector.broadcast %188 : vector<16x1xf32> to vector<16x32xf32>
    %190 = arith.subf %180, %189 : vector<16x32xf32>
    %191 = arith.mulf %190, %190 : vector<16x32xf32>
    %cst_121 = arith.constant dense<0.000000e+00> : vector<16xf32>
    %192 = vector.multi_reduction <add>, %191, %cst_121 [1] : vector<16x32xf32> to vector<16xf32>
    %193 = vector.shape_cast %192 : vector<16xf32> to vector<16x1xf32>
    %cst_122 = arith.constant 3.200000e+01 : f32
    %194 = vector.broadcast %cst_122 : f32 to vector<16x1xf32>
    %195 = arith.divf %193, %194 : vector<16x1xf32>
    %196 = vector.broadcast %188 : vector<16x1xf32> to vector<16x32xf32>
    %197 = arith.subf %180, %196 : vector<16x32xf32>
    %cst_123 = arith.constant 9.99999974E-6 : f32
    %198 = vector.broadcast %cst_123 : f32 to vector<16x1xf32>
    %199 = arith.addf %195, %198 : vector<16x1xf32>
    %200 = math.rsqrt %199 : vector<16x1xf32>
    %201 = vector.broadcast %200 : vector<16x1xf32> to vector<16x32xf32>
    %202 = arith.mulf %197, %201 : vector<16x32xf32>
    %203 = vector.broadcast %182 : vector<1x32xf32> to vector<16x32xf32>
    %204 = arith.mulf %202, %203 : vector<16x32xf32>
    %205 = vector.broadcast %184 : vector<1x32xf32> to vector<16x32xf32>
    %206 = arith.addf %204, %205 : vector<16x32xf32>
    %c0_124 = arith.constant 0 : index
    %c0_125 = arith.constant 0 : index
    %c0_126 = arith.constant 0 : index
    %c0_127 = arith.constant 0 : index
    %207 = vector.load %arg23[%c0_124, %c0_125, %c0_126, %c0_127] : memref<3x2x32x64xf32, #tpu.memory_space<vmem>>, vector<1x1x32x64xf32>
    %208 = vector.shape_cast %207 : vector<1x1x32x64xf32> to vector<32x64xf32>
    %cst_128 = arith.constant dense<0.000000e+00> : vector<16x64xf32>
    %209 = tpu.matmul %206, %208, %cst_128 {dimension_numbers = #tpu.dot_dimension_numbers<[1], [0], [0], [1], [0, 0, 1, 1], [], []>} : vector<16x32xf32>, vector<32x64xf32>, vector<16x64xf32> -> vector<16x64xf32>
    %c0_129 = arith.constant 0 : index
    %c0_130 = arith.constant 0 : index
    %c0_131 = arith.constant 0 : index
    %c0_132 = arith.constant 0 : index
    %210 = vector.load %arg24[%c0_129, %c0_130, %c0_131, %c0_132] : memref<3x2x1x64xf32, #tpu.memory_space<vmem>>, vector<1x1x1x64xf32>
    %211 = vector.shape_cast %210 : vector<1x1x1x64xf32> to vector<1x64xf32>
    %212 = vector.broadcast %211 : vector<1x64xf32> to vector<16x64xf32>
    %213 = arith.addf %209, %212 : vector<16x64xf32>
    %cst_133 = arith.constant 0.000000e+00 : f32
    %214 = vector.broadcast %cst_133 : f32 to vector<16x64xf32>
    %215 = arith.maximumf %213, %214 : vector<16x64xf32>
    %c0_134 = arith.constant 0 : index
    %c0_135 = arith.constant 0 : index
    %c0_136 = arith.constant 0 : index
    %c0_137 = arith.constant 0 : index
    %216 = vector.load %arg25[%c0_134, %c0_135, %c0_136, %c0_137] : memref<3x2x64x32xf32, #tpu.memory_space<vmem>>, vector<1x1x64x32xf32>
    %217 = vector.shape_cast %216 : vector<1x1x64x32xf32> to vector<64x32xf32>
    %cst_138 = arith.constant dense<0.000000e+00> : vector<16x32xf32>
    %218 = tpu.matmul %215, %217, %cst_138 {dimension_numbers = #tpu.dot_dimension_numbers<[1], [0], [0], [1], [0, 0, 1, 1], [], []>} : vector<16x64xf32>, vector<64x32xf32>, vector<16x32xf32> -> vector<16x32xf32>
    %c0_139 = arith.constant 0 : index
    %c0_140 = arith.constant 0 : index
    %c0_141 = arith.constant 0 : index
    %c0_142 = arith.constant 0 : index
    %219 = vector.load %arg26[%c0_139, %c0_140, %c0_141, %c0_142] : memref<3x2x1x32xf32, #tpu.memory_space<vmem>>, vector<1x1x1x32xf32>
    %220 = vector.shape_cast %219 : vector<1x1x1x32xf32> to vector<1x32xf32>
    %221 = vector.broadcast %220 : vector<1x32xf32> to vector<16x32xf32>
    %222 = arith.addf %218, %221 : vector<16x32xf32>
    %223 = arith.addf %206, %222 : vector<16x32xf32>
    %c0_143 = arith.constant 0 : index
    %c0_144 = arith.constant 0 : index
    %c0_145 = arith.constant 0 : index
    %c0_146 = arith.constant 0 : index
    %224 = vector.load %arg21[%c0_143, %c0_144, %c0_145, %c0_146] : memref<3x2x1x32xf32, #tpu.memory_space<vmem>>, vector<1x1x1x32xf32>
    %225 = vector.shape_cast %224 : vector<1x1x1x32xf32> to vector<1x32xf32>
    %c0_147 = arith.constant 0 : index
    %c0_148 = arith.constant 0 : index
    %c0_149 = arith.constant 0 : index
    %c0_150 = arith.constant 0 : index
    %226 = vector.load %arg22[%c0_147, %c0_148, %c0_149, %c0_150] : memref<3x2x1x32xf32, #tpu.memory_space<vmem>>, vector<1x1x1x32xf32>
    %227 = vector.shape_cast %226 : vector<1x1x1x32xf32> to vector<1x32xf32>
    %cst_151 = arith.constant dense<0.000000e+00> : vector<16xf32>
    %228 = vector.multi_reduction <add>, %223, %cst_151 [1] : vector<16x32xf32> to vector<16xf32>
    %229 = vector.shape_cast %228 : vector<16xf32> to vector<16x1xf32>
    %cst_152 = arith.constant 3.200000e+01 : f32
    %230 = vector.broadcast %cst_152 : f32 to vector<16x1xf32>
    %231 = arith.divf %229, %230 : vector<16x1xf32>
    %232 = vector.broadcast %231 : vector<16x1xf32> to vector<16x32xf32>
    %233 = arith.subf %223, %232 : vector<16x32xf32>
    %234 = arith.mulf %233, %233 : vector<16x32xf32>
    %cst_153 = arith.constant dense<0.000000e+00> : vector<16xf32>
    %235 = vector.multi_reduction <add>, %234, %cst_153 [1] : vector<16x32xf32> to vector<16xf32>
    %236 = vector.shape_cast %235 : vector<16xf32> to vector<16x1xf32>
    %cst_154 = arith.constant 3.200000e+01 : f32
    %237 = vector.broadcast %cst_154 : f32 to vector<16x1xf32>
    %238 = arith.divf %236, %237 : vector<16x1xf32>
    %239 = vector.broadcast %231 : vector<16x1xf32> to vector<16x32xf32>
    %240 = arith.subf %223, %239 : vector<16x32xf32>
    %cst_155 = arith.constant 9.99999974E-6 : f32
    %241 = vector.broadcast %cst_155 : f32 to vector<16x1xf32>
    %242 = arith.addf %238, %241 : vector<16x1xf32>
    %243 = math.rsqrt %242 : vector<16x1xf32>
    %244 = vector.broadcast %243 : vector<16x1xf32> to vector<16x32xf32>
    %245 = arith.mulf %240, %244 : vector<16x32xf32>
    %246 = vector.broadcast %225 : vector<1x32xf32> to vector<16x32xf32>
    %247 = arith.mulf %245, %246 : vector<16x32xf32>
    %248 = vector.broadcast %227 : vector<1x32xf32> to vector<16x32xf32>
    %249 = arith.addf %247, %248 : vector<16x32xf32>
    %250 = vector.shape_cast %249 : vector<16x32xf32> to vector<1x16x32xf32>
    %251 = vector.extract_strided_slice %250 {offsets = [0, 2, 0], sizes = [1, 14, 32], strides = [1, 1, 1]} : vector<1x16x32xf32> to vector<1x14x32xf32>
    %c0_156 = arith.constant 0 : index
    %c2_157 = arith.constant 2 : index
    %c0_158 = arith.constant 0 : index
    %252 = vector.load %arg30[%c0_156, %c2_157, %c0_158] : memref<1x16x32xf32, #tpu.memory_space<vmem>>, vector<1x14x32xf32>
    tpu.vector_store %arg30[%c0_156, %c2_157, %c0_158], %251 {strides = array<i32>} : memref<1x16x32xf32, #tpu.memory_space<vmem>>, vector<1x14x32xf32>,
    %253 = vector.extract_strided_slice %250 {offsets = [0, 0, 0], sizes = [1, 2, 32], strides = [1, 1, 1]} : vector<1x16x32xf32> to vector<1x2x32xf32>
    %c0_159 = arith.constant 0 : index
    %c0_160 = arith.constant 0 : index
    %c0_161 = arith.constant 0 : index
    %254 = vector.load %arg31[%c0_159, %c0_160, %c0_161] : memref<1x8x32xf32, #tpu.memory_space<vmem>>, vector<1x8x32xf32>
    %255 = vector.shape_cast %254 : vector<1x8x32xf32> to vector<8x32xf32>
    %c1 = arith.constant 1 : index
    %c0_162 = arith.constant 0 : index
    %c0_163 = arith.constant 0 : index
    %c0_164 = arith.constant 0 : index
    %256 = vector.load %arg15[%c1, %c0_162, %c0_163, %c0_164] : memref<3x2x32x96xf32, #tpu.memory_space<vmem>>, vector<1x1x32x96xf32>
    %257 = vector.shape_cast %256 : vector<1x1x32x96xf32> to vector<32x96xf32>
    %cst_165 = arith.constant dense<0.000000e+00> : vector<8x96xf32>
    %258 = tpu.matmul %255, %257, %cst_165 {dimension_numbers = #tpu.dot_dimension_numbers<[1], [0], [0], [1], [0, 0, 1, 1], [], []>} : vector<8x32xf32>, vector<32x96xf32>, vector<8x96xf32> -> vector<8x96xf32>
    %c1_166 = arith.constant 1 : index
    %c0_167 = arith.constant 0 : index
    %c0_168 = arith.constant 0 : index
    %c0_169 = arith.constant 0 : index
    %259 = vector.load %arg16[%c1_166, %c0_167, %c0_168, %c0_169] : memref<3x2x1x96xf32, #tpu.memory_space<vmem>>, vector<1x1x1x96xf32>
    %260 = vector.shape_cast %259 : vector<1x1x1x96xf32> to vector<1x96xf32>
    %261 = vector.broadcast %260 : vector<1x96xf32> to vector<8x96xf32>
    %262 = arith.addf %258, %261 : vector<8x96xf32>
    %263 = vector.shape_cast %262 : vector<8x96xf32> to vector<1x8x96xf32>
    %264 = vector.extract_strided_slice %263 {offsets = [0, 0, 0], sizes = [1, 8, 32], strides = [1, 1, 1]} : vector<1x8x96xf32> to vector<1x8x32xf32>
    %265 = vector.extract_strided_slice %263 {offsets = [0, 0, 32], sizes = [1, 8, 32], strides = [1, 1, 1]} : vector<1x8x96xf32> to vector<1x8x32xf32>
    %266 = vector.extract_strided_slice %263 {offsets = [0, 0, 64], sizes = [1, 8, 32], strides = [1, 1, 1]} : vector<1x8x96xf32> to vector<1x8x32xf32>
    %267 = vector.extract_strided_slice %264 {offsets = [0, 0, 0], sizes = [1, 8, 8], strides = [1, 1, 1]} : vector<1x8x32xf32> to vector<1x8x8xf32>
    %268 = vector.extract_strided_slice %265 {offsets = [0, 0, 0], sizes = [1, 8, 8], strides = [1, 1, 1]} : vector<1x8x32xf32> to vector<1x8x8xf32>
    "tpu.trace_start"() <{level = 10 : i32, message = "bqd,bkd->bqk"}> : () -> ()
    %cst_170 = arith.constant dense<0.000000e+00> : vector<1x8x8xf32>
    %269 = tpu.matmul %267, %268, %cst_170 {dimension_numbers = #tpu.dot_dimension_numbers<[2], [2], [1], [1], [0, 0, 0, 1, 1, 1], [0], [0]>} : vector<1x8x8xf32>, vector<1x8x8xf32>, vector<1x8x8xf32> -> vector<1x8x8xf32>
    "tpu.trace_stop"() : () -> ()
    %cst_171 = arith.constant 0.353553385 : f32
    %270 = vector.broadcast %cst_171 : f32 to vector<1x8x8xf32>
    %271 = arith.mulf %269, %270 : vector<1x8x8xf32>
    %272 = vector.broadcast %61 : vector<1x1x8xf32> to vector<1x8x8xf32>
    %273 = arith.addf %271, %272 : vector<1x8x8xf32>
    %cst_172 = arith.constant dense<0xFF800000> : vector<1x8xf32>
    %274 = vector.multi_reduction <maximumf>, %273, %cst_172 [2] : vector<1x8x8xf32> to vector<1x8xf32>
    %275 = vector.shape_cast %274 : vector<1x8xf32> to vector<1x8x1xf32>
    %276 = vector.broadcast %275 : vector<1x8x1xf32> to vector<1x8x8xf32>
    %277 = arith.subf %273, %276 : vector<1x8x8xf32>
    %278 = math.exp %277 : vector<1x8x8xf32>
    %cst_173 = arith.constant dense<0.000000e+00> : vector<1x8xf32>
    %279 = vector.multi_reduction <add>, %278, %cst_173 [2] : vector<1x8x8xf32> to vector<1x8xf32>
    %280 = vector.shape_cast %279 : vector<1x8xf32> to vector<1x8x1xf32>
    %281 = tpu.reciprocal %280 {approx = true} : vector<1x8x1xf32> -> vector<1x8x1xf32>
    %282 = vector.broadcast %281 : vector<1x8x1xf32> to vector<1x8x8xf32>
    %283 = arith.mulf %278, %282 : vector<1x8x8xf32>
    %284 = vector.extract_strided_slice %266 {offsets = [0, 0, 0], sizes = [1, 8, 8], strides = [1, 1, 1]} : vector<1x8x32xf32> to vector<1x8x8xf32>
    "tpu.trace_start"() <{level = 10 : i32, message = "bqk,bkd->bqd"}> : () -> ()
    %cst_174 = arith.constant dense<0.000000e+00> : vector<1x8x8xf32>
    %285 = tpu.matmul %283, %284, %cst_174 {dimension_numbers = #tpu.dot_dimension_numbers<[2], [1], [1], [2], [0, 0, 0, 1, 1, 2], [0], [0]>} : vector<1x8x8xf32>, vector<1x8x8xf32>, vector<1x8x8xf32> -> vector<1x8x8xf32>
    "tpu.trace_stop"() : () -> ()
    %286 = vector.extract_strided_slice %264 {offsets = [0, 0, 8], sizes = [1, 8, 8], strides = [1, 1, 1]} : vector<1x8x32xf32> to vector<1x8x8xf32>
    %287 = vector.extract_strided_slice %265 {offsets = [0, 0, 8], sizes = [1, 8, 8], strides = [1, 1, 1]} : vector<1x8x32xf32> to vector<1x8x8xf32>
    "tpu.trace_start"() <{level = 10 : i32, message = "bqd,bkd->bqk"}> : () -> ()
    %cst_175 = arith.constant dense<0.000000e+00> : vector<1x8x8xf32>
    %288 = tpu.matmul %286, %287, %cst_175 {dimension_numbers = #tpu.dot_dimension_numbers<[2], [2], [1], [1], [0, 0, 0, 1, 1, 1], [0], [0]>} : vector<1x8x8xf32>, vector<1x8x8xf32>, vector<1x8x8xf32> -> vector<1x8x8xf32>
    "tpu.trace_stop"() : () -> ()
    %cst_176 = arith.constant 0.353553385 : f32
    %289 = vector.broadcast %cst_176 : f32 to vector<1x8x8xf32>
    %290 = arith.mulf %288, %289 : vector<1x8x8xf32>
    %291 = vector.broadcast %61 : vector<1x1x8xf32> to vector<1x8x8xf32>
    %292 = arith.addf %290, %291 : vector<1x8x8xf32>
    %cst_177 = arith.constant dense<0xFF800000> : vector<1x8xf32>
    %293 = vector.multi_reduction <maximumf>, %292, %cst_177 [2] : vector<1x8x8xf32> to vector<1x8xf32>
    %294 = vector.shape_cast %293 : vector<1x8xf32> to vector<1x8x1xf32>
    %295 = vector.broadcast %294 : vector<1x8x1xf32> to vector<1x8x8xf32>
    %296 = arith.subf %292, %295 : vector<1x8x8xf32>
    %297 = math.exp %296 : vector<1x8x8xf32>
    %cst_178 = arith.constant dense<0.000000e+00> : vector<1x8xf32>
    %298 = vector.multi_reduction <add>, %297, %cst_178 [2] : vector<1x8x8xf32> to vector<1x8xf32>
    %299 = vector.shape_cast %298 : vector<1x8xf32> to vector<1x8x1xf32>
    %300 = tpu.reciprocal %299 {approx = true} : vector<1x8x1xf32> -> vector<1x8x1xf32>
    %301 = vector.broadcast %300 : vector<1x8x1xf32> to vector<1x8x8xf32>
    %302 = arith.mulf %297, %301 : vector<1x8x8xf32>
    %303 = vector.extract_strided_slice %266 {offsets = [0, 0, 8], sizes = [1, 8, 8], strides = [1, 1, 1]} : vector<1x8x32xf32> to vector<1x8x8xf32>
    "tpu.trace_start"() <{level = 10 : i32, message = "bqk,bkd->bqd"}> : () -> ()
    %cst_179 = arith.constant dense<0.000000e+00> : vector<1x8x8xf32>
    %304 = tpu.matmul %302, %303, %cst_179 {dimension_numbers = #tpu.dot_dimension_numbers<[2], [1], [1], [2], [0, 0, 0, 1, 1, 2], [0], [0]>} : vector<1x8x8xf32>, vector<1x8x8xf32>, vector<1x8x8xf32> -> vector<1x8x8xf32>
    "tpu.trace_stop"() : () -> ()
    %305 = vector.extract_strided_slice %264 {offsets = [0, 0, 16], sizes = [1, 8, 8], strides = [1, 1, 1]} : vector<1x8x32xf32> to vector<1x8x8xf32>
    %306 = vector.extract_strided_slice %265 {offsets = [0, 0, 16], sizes = [1, 8, 8], strides = [1, 1, 1]} : vector<1x8x32xf32> to vector<1x8x8xf32>
    "tpu.trace_start"() <{level = 10 : i32, message = "bqd,bkd->bqk"}> : () -> ()
    %cst_180 = arith.constant dense<0.000000e+00> : vector<1x8x8xf32>
    %307 = tpu.matmul %305, %306, %cst_180 {dimension_numbers = #tpu.dot_dimension_numbers<[2], [2], [1], [1], [0, 0, 0, 1, 1, 1], [0], [0]>} : vector<1x8x8xf32>, vector<1x8x8xf32>, vector<1x8x8xf32> -> vector<1x8x8xf32>
    "tpu.trace_stop"() : () -> ()
    %cst_181 = arith.constant 0.353553385 : f32
    %308 = vector.broadcast %cst_181 : f32 to vector<1x8x8xf32>
    %309 = arith.mulf %307, %308 : vector<1x8x8xf32>
    %310 = vector.broadcast %61 : vector<1x1x8xf32> to vector<1x8x8xf32>
    %311 = arith.addf %309, %310 : vector<1x8x8xf32>
    %cst_182 = arith.constant dense<0xFF800000> : vector<1x8xf32>
    %312 = vector.multi_reduction <maximumf>, %311, %cst_182 [2] : vector<1x8x8xf32> to vector<1x8xf32>
    %313 = vector.shape_cast %312 : vector<1x8xf32> to vector<1x8x1xf32>
    %314 = vector.broadcast %313 : vector<1x8x1xf32> to vector<1x8x8xf32>
    %315 = arith.subf %311, %314 : vector<1x8x8xf32>
    %316 = math.exp %315 : vector<1x8x8xf32>
    %cst_183 = arith.constant dense<0.000000e+00> : vector<1x8xf32>
    %317 = vector.multi_reduction <add>, %316, %cst_183 [2] : vector<1x8x8xf32> to vector<1x8xf32>
    %318 = vector.shape_cast %317 : vector<1x8xf32> to vector<1x8x1xf32>
    %319 = tpu.reciprocal %318 {approx = true} : vector<1x8x1xf32> -> vector<1x8x1xf32>
    %320 = vector.broadcast %319 : vector<1x8x1xf32> to vector<1x8x8xf32>
    %321 = arith.mulf %316, %320 : vector<1x8x8xf32>
    %322 = vector.extract_strided_slice %266 {offsets = [0, 0, 16], sizes = [1, 8, 8], strides = [1, 1, 1]} : vector<1x8x32xf32> to vector<1x8x8xf32>
    "tpu.trace_start"() <{level = 10 : i32, message = "bqk,bkd->bqd"}> : () -> ()
    %cst_184 = arith.constant dense<0.000000e+00> : vector<1x8x8xf32>
    %323 = tpu.matmul %321, %322, %cst_184 {dimension_numbers = #tpu.dot_dimension_numbers<[2], [1], [1], [2], [0, 0, 0, 1, 1, 2], [0], [0]>} : vector<1x8x8xf32>, vector<1x8x8xf32>, vector<1x8x8xf32> -> vector<1x8x8xf32>
    "tpu.trace_stop"() : () -> ()
    %324 = vector.extract_strided_slice %264 {offsets = [0, 0, 24], sizes = [1, 8, 8], strides = [1, 1, 1]} : vector<1x8x32xf32> to vector<1x8x8xf32>
    %325 = vector.extract_strided_slice %265 {offsets = [0, 0, 24], sizes = [1, 8, 8], strides = [1, 1, 1]} : vector<1x8x32xf32> to vector<1x8x8xf32>
    "tpu.trace_start"() <{level = 10 : i32, message = "bqd,bkd->bqk"}> : () -> ()
    %cst_185 = arith.constant dense<0.000000e+00> : vector<1x8x8xf32>
    %326 = tpu.matmul %324, %325, %cst_185 {dimension_numbers = #tpu.dot_dimension_numbers<[2], [2], [1], [1], [0, 0, 0, 1, 1, 1], [0], [0]>} : vector<1x8x8xf32>, vector<1x8x8xf32>, vector<1x8x8xf32> -> vector<1x8x8xf32>
    "tpu.trace_stop"() : () -> ()
    %cst_186 = arith.constant 0.353553385 : f32
    %327 = vector.broadcast %cst_186 : f32 to vector<1x8x8xf32>
    %328 = arith.mulf %326, %327 : vector<1x8x8xf32>
    %329 = vector.broadcast %61 : vector<1x1x8xf32> to vector<1x8x8xf32>
    %330 = arith.addf %328, %329 : vector<1x8x8xf32>
    %cst_187 = arith.constant dense<0xFF800000> : vector<1x8xf32>
    %331 = vector.multi_reduction <maximumf>, %330, %cst_187 [2] : vector<1x8x8xf32> to vector<1x8xf32>
    %332 = vector.shape_cast %331 : vector<1x8xf32> to vector<1x8x1xf32>
    %333 = vector.broadcast %332 : vector<1x8x1xf32> to vector<1x8x8xf32>
    %334 = arith.subf %330, %333 : vector<1x8x8xf32>
    %335 = math.exp %334 : vector<1x8x8xf32>
    %cst_188 = arith.constant dense<0.000000e+00> : vector<1x8xf32>
    %336 = vector.multi_reduction <add>, %335, %cst_188 [2] : vector<1x8x8xf32> to vector<1x8xf32>
    %337 = vector.shape_cast %336 : vector<1x8xf32> to vector<1x8x1xf32>
    %338 = tpu.reciprocal %337 {approx = true} : vector<1x8x1xf32> -> vector<1x8x1xf32>
    %339 = vector.broadcast %338 : vector<1x8x1xf32> to vector<1x8x8xf32>
    %340 = arith.mulf %335, %339 : vector<1x8x8xf32>
    %341 = vector.extract_strided_slice %266 {offsets = [0, 0, 24], sizes = [1, 8, 8], strides = [1, 1, 1]} : vector<1x8x32xf32> to vector<1x8x8xf32>
    "tpu.trace_start"() <{level = 10 : i32, message = "bqk,bkd->bqd"}> : () -> ()
    %cst_189 = arith.constant dense<0.000000e+00> : vector<1x8x8xf32>
    %342 = tpu.matmul %340, %341, %cst_189 {dimension_numbers = #tpu.dot_dimension_numbers<[2], [1], [1], [2], [0, 0, 0, 1, 1, 2], [0], [0]>} : vector<1x8x8xf32>, vector<1x8x8xf32>, vector<1x8x8xf32> -> vector<1x8x8xf32>
    "tpu.trace_stop"() : () -> ()
    %343 = tpu.concatenate %285, %304, %323, %342 in 2 : vector<1x8x8xf32>, vector<1x8x8xf32>, vector<1x8x8xf32>, vector<1x8x8xf32> -> vector<1x8x32xf32>
    %344 = vector.shape_cast %343 : vector<1x8x32xf32> to vector<8x32xf32>
    %c1_190 = arith.constant 1 : index
    %c0_191 = arith.constant 0 : index
    %c0_192 = arith.constant 0 : index
    %c0_193 = arith.constant 0 : index
    %345 = vector.load %arg17[%c1_190, %c0_191, %c0_192, %c0_193] : memref<3x2x32x32xf32, #tpu.memory_space<vmem>>, vector<1x1x32x32xf32>
    %346 = vector.shape_cast %345 : vector<1x1x32x32xf32> to vector<32x32xf32>
    %cst_194 = arith.constant dense<0.000000e+00> : vector<8x32xf32>
    %347 = tpu.matmul %344, %346, %cst_194 {dimension_numbers = #tpu.dot_dimension_numbers<[1], [0], [0], [1], [0, 0, 1, 1], [], []>} : vector<8x32xf32>, vector<32x32xf32>, vector<8x32xf32> -> vector<8x32xf32>
    %c1_195 = arith.constant 1 : index
    %c0_196 = arith.constant 0 : index
    %c0_197 = arith.constant 0 : index
    %c0_198 = arith.constant 0 : index
    %348 = vector.load %arg18[%c1_195, %c0_196, %c0_197, %c0_198] : memref<3x2x1x32xf32, #tpu.memory_space<vmem>>, vector<1x1x1x32xf32>
    %349 = vector.shape_cast %348 : vector<1x1x1x32xf32> to vector<1x32xf32>
    %350 = vector.broadcast %349 : vector<1x32xf32> to vector<8x32xf32>
    %351 = arith.addf %347, %350 : vector<8x32xf32>
    %352 = arith.addf %255, %351 : vector<8x32xf32>
    %c1_199 = arith.constant 1 : index
    %c0_200 = arith.constant 0 : index
    %c0_201 = arith.constant 0 : index
    %c0_202 = arith.constant 0 : index
    %353 = vector.load %arg19[%c1_199, %c0_200, %c0_201, %c0_202] : memref<3x2x1x32xf32, #tpu.memory_space<vmem>>, vector<1x1x1x32xf32>
    %354 = vector.shape_cast %353 : vector<1x1x1x32xf32> to vector<1x32xf32>
    %c1_203 = arith.constant 1 : index
    %c0_204 = arith.constant 0 : index
    %c0_205 = arith.constant 0 : index
    %c0_206 = arith.constant 0 : index
    %355 = vector.load %arg20[%c1_203, %c0_204, %c0_205, %c0_206] : memref<3x2x1x32xf32, #tpu.memory_space<vmem>>, vector<1x1x1x32xf32>
    %356 = vector.shape_cast %355 : vector<1x1x1x32xf32> to vector<1x32xf32>
    %cst_207 = arith.constant dense<0.000000e+00> : vector<8xf32>
    %357 = vector.multi_reduction <add>, %352, %cst_207 [1] : vector<8x32xf32> to vector<8xf32>
    %358 = vector.shape_cast %357 : vector<8xf32> to vector<8x1xf32>
    %cst_208 = arith.constant 3.200000e+01 : f32
    %359 = vector.broadcast %cst_208 : f32 to vector<8x1xf32>
    %360 = arith.divf %358, %359 : vector<8x1xf32>
    %361 = vector.broadcast %360 : vector<8x1xf32> to vector<8x32xf32>
    %362 = arith.subf %352, %361 : vector<8x32xf32>
    %363 = arith.mulf %362, %362 : vector<8x32xf32>
    %cst_209 = arith.constant dense<0.000000e+00> : vector<8xf32>
    %364 = vector.multi_reduction <add>, %363, %cst_209 [1] : vector<8x32xf32> to vector<8xf32>
    %365 = vector.shape_cast %364 : vector<8xf32> to vector<8x1xf32>
    %cst_210 = arith.constant 3.200000e+01 : f32
    %366 = vector.broadcast %cst_210 : f32 to vector<8x1xf32>
    %367 = arith.divf %365, %366 : vector<8x1xf32>
    %368 = vector.broadcast %360 : vector<8x1xf32> to vector<8x32xf32>
    %369 = arith.subf %352, %368 : vector<8x32xf32>
    %cst_211 = arith.constant 9.99999974E-6 : f32
    %370 = vector.broadcast %cst_211 : f32 to vector<8x1xf32>
    %371 = arith.addf %367, %370 : vector<8x1xf32>
    %372 = math.rsqrt %371 : vector<8x1xf32>
    %373 = vector.broadcast %372 : vector<8x1xf32> to vector<8x32xf32>
    %374 = arith.mulf %369, %373 : vector<8x32xf32>
    %375 = vector.broadcast %354 : vector<1x32xf32> to vector<8x32xf32>
    %376 = arith.mulf %374, %375 : vector<8x32xf32>
    %377 = vector.broadcast %356 : vector<1x32xf32> to vector<8x32xf32>
    %378 = arith.addf %376, %377 : vector<8x32xf32>
    %c1_212 = arith.constant 1 : index
    %c0_213 = arith.constant 0 : index
    %c0_214 = arith.constant 0 : index
    %c0_215 = arith.constant 0 : index
    %379 = vector.load %arg23[%c1_212, %c0_213, %c0_214, %c0_215] : memref<3x2x32x64xf32, #tpu.memory_space<vmem>>, vector<1x1x32x64xf32>
    %380 = vector.shape_cast %379 : vector<1x1x32x64xf32> to vector<32x64xf32>
    %cst_216 = arith.constant dense<0.000000e+00> : vector<8x64xf32>
    %381 = tpu.matmul %378, %380, %cst_216 {dimension_numbers = #tpu.dot_dimension_numbers<[1], [0], [0], [1], [0, 0, 1, 1], [], []>} : vector<8x32xf32>, vector<32x64xf32>, vector<8x64xf32> -> vector<8x64xf32>
    %c1_217 = arith.constant 1 : index
    %c0_218 = arith.constant 0 : index
    %c0_219 = arith.constant 0 : index
    %c0_220 = arith.constant 0 : index
    %382 = vector.load %arg24[%c1_217, %c0_218, %c0_219, %c0_220] : memref<3x2x1x64xf32, #tpu.memory_space<vmem>>, vector<1x1x1x64xf32>
    %383 = vector.shape_cast %382 : vector<1x1x1x64xf32> to vector<1x64xf32>
    %384 = vector.broadcast %383 : vector<1x64xf32> to vector<8x64xf32>
    %385 = arith.addf %381, %384 : vector<8x64xf32>
    %cst_221 = arith.constant 0.000000e+00 : f32
    %386 = vector.broadcast %cst_221 : f32 to vector<8x64xf32>
    %387 = arith.maximumf %385, %386 : vector<8x64xf32>
    %c1_222 = arith.constant 1 : index
    %c0_223 = arith.constant 0 : index
    %c0_224 = arith.constant 0 : index
    %c0_225 = arith.constant 0 : index
    %388 = vector.load %arg25[%c1_222, %c0_223, %c0_224, %c0_225] : memref<3x2x64x32xf32, #tpu.memory_space<vmem>>, vector<1x1x64x32xf32>
    %389 = vector.shape_cast %388 : vector<1x1x64x32xf32> to vector<64x32xf32>
    %cst_226 = arith.constant dense<0.000000e+00> : vector<8x32xf32>
    %390 = tpu.matmul %387, %389, %cst_226 {dimension_numbers = #tpu.dot_dimension_numbers<[1], [0], [0], [1], [0, 0, 1, 1], [], []>} : vector<8x64xf32>, vector<64x32xf32>, vector<8x32xf32> -> vector<8x32xf32>
    %c1_227 = arith.constant 1 : index
    %c0_228 = arith.constant 0 : index
    %c0_229 = arith.constant 0 : index
    %c0_230 = arith.constant 0 : index
    %391 = vector.load %arg26[%c1_227, %c0_228, %c0_229, %c0_230] : memref<3x2x1x32xf32, #tpu.memory_space<vmem>>, vector<1x1x1x32xf32>
    %392 = vector.shape_cast %391 : vector<1x1x1x32xf32> to vector<1x32xf32>
    %393 = vector.broadcast %392 : vector<1x32xf32> to vector<8x32xf32>
    %394 = arith.addf %390, %393 : vector<8x32xf32>
    %395 = arith.addf %378, %394 : vector<8x32xf32>
    %c1_231 = arith.constant 1 : index
    %c0_232 = arith.constant 0 : index
    %c0_233 = arith.constant 0 : index
    %c0_234 = arith.constant 0 : index
    %396 = vector.load %arg21[%c1_231, %c0_232, %c0_233, %c0_234] : memref<3x2x1x32xf32, #tpu.memory_space<vmem>>, vector<1x1x1x32xf32>
    %397 = vector.shape_cast %396 : vector<1x1x1x32xf32> to vector<1x32xf32>
    %c1_235 = arith.constant 1 : index
    %c0_236 = arith.constant 0 : index
    %c0_237 = arith.constant 0 : index
    %c0_238 = arith.constant 0 : index
    %398 = vector.load %arg22[%c1_235, %c0_236, %c0_237, %c0_238] : memref<3x2x1x32xf32, #tpu.memory_space<vmem>>, vector<1x1x1x32xf32>
    %399 = vector.shape_cast %398 : vector<1x1x1x32xf32> to vector<1x32xf32>
    %cst_239 = arith.constant dense<0.000000e+00> : vector<8xf32>
    %400 = vector.multi_reduction <add>, %395, %cst_239 [1] : vector<8x32xf32> to vector<8xf32>
    %401 = vector.shape_cast %400 : vector<8xf32> to vector<8x1xf32>
    %cst_240 = arith.constant 3.200000e+01 : f32
    %402 = vector.broadcast %cst_240 : f32 to vector<8x1xf32>
    %403 = arith.divf %401, %402 : vector<8x1xf32>
    %404 = vector.broadcast %403 : vector<8x1xf32> to vector<8x32xf32>
    %405 = arith.subf %395, %404 : vector<8x32xf32>
    %406 = arith.mulf %405, %405 : vector<8x32xf32>
    %cst_241 = arith.constant dense<0.000000e+00> : vector<8xf32>
    %407 = vector.multi_reduction <add>, %406, %cst_241 [1] : vector<8x32xf32> to vector<8xf32>
    %408 = vector.shape_cast %407 : vector<8xf32> to vector<8x1xf32>
    %cst_242 = arith.constant 3.200000e+01 : f32
    %409 = vector.broadcast %cst_242 : f32 to vector<8x1xf32>
    %410 = arith.divf %408, %409 : vector<8x1xf32>
    %411 = vector.broadcast %403 : vector<8x1xf32> to vector<8x32xf32>
    %412 = arith.subf %395, %411 : vector<8x32xf32>
    %cst_243 = arith.constant 9.99999974E-6 : f32
    %413 = vector.broadcast %cst_243 : f32 to vector<8x1xf32>
    %414 = arith.addf %410, %413 : vector<8x1xf32>
    %415 = math.rsqrt %414 : vector<8x1xf32>
    %416 = vector.broadcast %415 : vector<8x1xf32> to vector<8x32xf32>
    %417 = arith.mulf %412, %416 : vector<8x32xf32>
    %418 = vector.broadcast %397 : vector<1x32xf32> to vector<8x32xf32>
    %419 = arith.mulf %417, %418 : vector<8x32xf32>
    %420 = vector.broadcast %399 : vector<1x32xf32> to vector<8x32xf32>
    %421 = arith.addf %419, %420 : vector<8x32xf32>
    %422 = vector.shape_cast %421 : vector<8x32xf32> to vector<1x8x32xf32>
    %423 = vector.extract_strided_slice %422 {offsets = [0, 2, 0], sizes = [1, 6, 32], strides = [1, 1, 1]} : vector<1x8x32xf32> to vector<1x6x32xf32>
    %c0_244 = arith.constant 0 : index
    %c2_245 = arith.constant 2 : index
    %c0_246 = arith.constant 0 : index
    %424 = vector.load %arg31[%c0_244, %c2_245, %c0_246] : memref<1x8x32xf32, #tpu.memory_space<vmem>>, vector<1x6x32xf32>
    tpu.vector_store %arg31[%c0_244, %c2_245, %c0_246], %423 {strides = array<i32>} : memref<1x8x32xf32, #tpu.memory_space<vmem>>, vector<1x6x32xf32>,
    %425 = vector.extract_strided_slice %422 {offsets = [0, 0, 0], sizes = [1, 2, 32], strides = [1, 1, 1]} : vector<1x8x32xf32> to vector<1x2x32xf32>
    %c0_247 = arith.constant 0 : index
    %c0_248 = arith.constant 0 : index
    %c0_249 = arith.constant 0 : index
    %426 = vector.load %arg32[%c0_247, %c0_248, %c0_249] : memref<1x8x32xf32, #tpu.memory_space<vmem>>, vector<1x8x32xf32>
    %427 = vector.shape_cast %426 : vector<1x8x32xf32> to vector<8x32xf32>
    %c2_250 = arith.constant 2 : index
    %c0_251 = arith.constant 0 : index
    %c0_252 = arith.constant 0 : index
    %c0_253 = arith.constant 0 : index
    %428 = vector.load %arg15[%c2_250, %c0_251, %c0_252, %c0_253] : memref<3x2x32x96xf32, #tpu.memory_space<vmem>>, vector<1x1x32x96xf32>
    %429 = vector.shape_cast %428 : vector<1x1x32x96xf32> to vector<32x96xf32>
    %cst_254 = arith.constant dense<0.000000e+00> : vector<8x96xf32>
    %430 = tpu.matmul %427, %429, %cst_254 {dimension_numbers = #tpu.dot_dimension_numbers<[1], [0], [0], [1], [0, 0, 1, 1], [], []>} : vector<8x32xf32>, vector<32x96xf32>, vector<8x96xf32> -> vector<8x96xf32>
    %c2_255 = arith.constant 2 : index
    %c0_256 = arith.constant 0 : index
    %c0_257 = arith.constant 0 : index
    %c0_258 = arith.constant 0 : index
    %431 = vector.load %arg16[%c2_255, %c0_256, %c0_257, %c0_258] : memref<3x2x1x96xf32, #tpu.memory_space<vmem>>, vector<1x1x1x96xf32>
    %432 = vector.shape_cast %431 : vector<1x1x1x96xf32> to vector<1x96xf32>
    %433 = vector.broadcast %432 : vector<1x96xf32> to vector<8x96xf32>
    %434 = arith.addf %430, %433 : vector<8x96xf32>
    %435 = vector.shape_cast %434 : vector<8x96xf32> to vector<1x8x96xf32>
    %436 = vector.extract_strided_slice %435 {offsets = [0, 0, 0], sizes = [1, 8, 32], strides = [1, 1, 1]} : vector<1x8x96xf32> to vector<1x8x32xf32>
    %437 = vector.extract_strided_slice %435 {offsets = [0, 0, 32], sizes = [1, 8, 32], strides = [1, 1, 1]} : vector<1x8x96xf32> to vector<1x8x32xf32>
    %438 = vector.extract_strided_slice %435 {offsets = [0, 0, 64], sizes = [1, 8, 32], strides = [1, 1, 1]} : vector<1x8x96xf32> to vector<1x8x32xf32>
    %439 = vector.extract_strided_slice %436 {offsets = [0, 0, 0], sizes = [1, 8, 8], strides = [1, 1, 1]} : vector<1x8x32xf32> to vector<1x8x8xf32>
    %440 = vector.extract_strided_slice %437 {offsets = [0, 0, 0], sizes = [1, 8, 8], strides = [1, 1, 1]} : vector<1x8x32xf32> to vector<1x8x8xf32>
    "tpu.trace_start"() <{level = 10 : i32, message = "bqd,bkd->bqk"}> : () -> ()
    %cst_259 = arith.constant dense<0.000000e+00> : vector<1x8x8xf32>
    %441 = tpu.matmul %439, %440, %cst_259 {dimension_numbers = #tpu.dot_dimension_numbers<[2], [2], [1], [1], [0, 0, 0, 1, 1, 1], [0], [0]>} : vector<1x8x8xf32>, vector<1x8x8xf32>, vector<1x8x8xf32> -> vector<1x8x8xf32>
    "tpu.trace_stop"() : () -> ()
    %cst_260 = arith.constant 0.353553385 : f32
    %442 = vector.broadcast %cst_260 : f32 to vector<1x8x8xf32>
    %443 = arith.mulf %441, %442 : vector<1x8x8xf32>
    %444 = vector.broadcast %67 : vector<1x1x8xf32> to vector<1x8x8xf32>
    %445 = arith.addf %443, %444 : vector<1x8x8xf32>
    %cst_261 = arith.constant dense<0xFF800000> : vector<1x8xf32>
    %446 = vector.multi_reduction <maximumf>, %445, %cst_261 [2] : vector<1x8x8xf32> to vector<1x8xf32>
    %447 = vector.shape_cast %446 : vector<1x8xf32> to vector<1x8x1xf32>
    %448 = vector.broadcast %447 : vector<1x8x1xf32> to vector<1x8x8xf32>
    %449 = arith.subf %445, %448 : vector<1x8x8xf32>
    %450 = math.exp %449 : vector<1x8x8xf32>
    %cst_262 = arith.constant dense<0.000000e+00> : vector<1x8xf32>
    %451 = vector.multi_reduction <add>, %450, %cst_262 [2] : vector<1x8x8xf32> to vector<1x8xf32>
    %452 = vector.shape_cast %451 : vector<1x8xf32> to vector<1x8x1xf32>
    %453 = tpu.reciprocal %452 {approx = true} : vector<1x8x1xf32> -> vector<1x8x1xf32>
    %454 = vector.broadcast %453 : vector<1x8x1xf32> to vector<1x8x8xf32>
    %455 = arith.mulf %450, %454 : vector<1x8x8xf32>
    %456 = vector.extract_strided_slice %438 {offsets = [0, 0, 0], sizes = [1, 8, 8], strides = [1, 1, 1]} : vector<1x8x32xf32> to vector<1x8x8xf32>
    "tpu.trace_start"() <{level = 10 : i32, message = "bqk,bkd->bqd"}> : () -> ()
    %cst_263 = arith.constant dense<0.000000e+00> : vector<1x8x8xf32>
    %457 = tpu.matmul %455, %456, %cst_263 {dimension_numbers = #tpu.dot_dimension_numbers<[2], [1], [1], [2], [0, 0, 0, 1, 1, 2], [0], [0]>} : vector<1x8x8xf32>, vector<1x8x8xf32>, vector<1x8x8xf32> -> vector<1x8x8xf32>
    "tpu.trace_stop"() : () -> ()
    %458 = vector.extract_strided_slice %436 {offsets = [0, 0, 8], sizes = [1, 8, 8], strides = [1, 1, 1]} : vector<1x8x32xf32> to vector<1x8x8xf32>
    %459 = vector.extract_strided_slice %437 {offsets = [0, 0, 8], sizes = [1, 8, 8], strides = [1, 1, 1]} : vector<1x8x32xf32> to vector<1x8x8xf32>
    "tpu.trace_start"() <{level = 10 : i32, message = "bqd,bkd->bqk"}> : () -> ()
    %cst_264 = arith.constant dense<0.000000e+00> : vector<1x8x8xf32>
    %460 = tpu.matmul %458, %459, %cst_264 {dimension_numbers = #tpu.dot_dimension_numbers<[2], [2], [1], [1], [0, 0, 0, 1, 1, 1], [0], [0]>} : vector<1x8x8xf32>, vector<1x8x8xf32>, vector<1x8x8xf32> -> vector<1x8x8xf32>
    "tpu.trace_stop"() : () -> ()
    %cst_265 = arith.constant 0.353553385 : f32
    %461 = vector.broadcast %cst_265 : f32 to vector<1x8x8xf32>
    %462 = arith.mulf %460, %461 : vector<1x8x8xf32>
    %463 = vector.broadcast %67 : vector<1x1x8xf32> to vector<1x8x8xf32>
    %464 = arith.addf %462, %463 : vector<1x8x8xf32>
    %cst_266 = arith.constant dense<0xFF800000> : vector<1x8xf32>
    %465 = vector.multi_reduction <maximumf>, %464, %cst_266 [2] : vector<1x8x8xf32> to vector<1x8xf32>
    %466 = vector.shape_cast %465 : vector<1x8xf32> to vector<1x8x1xf32>
    %467 = vector.broadcast %466 : vector<1x8x1xf32> to vector<1x8x8xf32>
    %468 = arith.subf %464, %467 : vector<1x8x8xf32>
    %469 = math.exp %468 : vector<1x8x8xf32>
    %cst_267 = arith.constant dense<0.000000e+00> : vector<1x8xf32>
    %470 = vector.multi_reduction <add>, %469, %cst_267 [2] : vector<1x8x8xf32> to vector<1x8xf32>
    %471 = vector.shape_cast %470 : vector<1x8xf32> to vector<1x8x1xf32>
    %472 = tpu.reciprocal %471 {approx = true} : vector<1x8x1xf32> -> vector<1x8x1xf32>
    %473 = vector.broadcast %472 : vector<1x8x1xf32> to vector<1x8x8xf32>
    %474 = arith.mulf %469, %473 : vector<1x8x8xf32>
    %475 = vector.extract_strided_slice %438 {offsets = [0, 0, 8], sizes = [1, 8, 8], strides = [1, 1, 1]} : vector<1x8x32xf32> to vector<1x8x8xf32>
    "tpu.trace_start"() <{level = 10 : i32, message = "bqk,bkd->bqd"}> : () -> ()
    %cst_268 = arith.constant dense<0.000000e+00> : vector<1x8x8xf32>
    %476 = tpu.matmul %474, %475, %cst_268 {dimension_numbers = #tpu.dot_dimension_numbers<[2], [1], [1], [2], [0, 0, 0, 1, 1, 2], [0], [0]>} : vector<1x8x8xf32>, vector<1x8x8xf32>, vector<1x8x8xf32> -> vector<1x8x8xf32>
    "tpu.trace_stop"() : () -> ()
    %477 = vector.extract_strided_slice %436 {offsets = [0, 0, 16], sizes = [1, 8, 8], strides = [1, 1, 1]} : vector<1x8x32xf32> to vector<1x8x8xf32>
    %478 = vector.extract_strided_slice %437 {offsets = [0, 0, 16], sizes = [1, 8, 8], strides = [1, 1, 1]} : vector<1x8x32xf32> to vector<1x8x8xf32>
    "tpu.trace_start"() <{level = 10 : i32, message = "bqd,bkd->bqk"}> : () -> ()
    %cst_269 = arith.constant dense<0.000000e+00> : vector<1x8x8xf32>
    %479 = tpu.matmul %477, %478, %cst_269 {dimension_numbers = #tpu.dot_dimension_numbers<[2], [2], [1], [1], [0, 0, 0, 1, 1, 1], [0], [0]>} : vector<1x8x8xf32>, vector<1x8x8xf32>, vector<1x8x8xf32> -> vector<1x8x8xf32>
    "tpu.trace_stop"() : () -> ()
    %cst_270 = arith.constant 0.353553385 : f32
    %480 = vector.broadcast %cst_270 : f32 to vector<1x8x8xf32>
    %481 = arith.mulf %479, %480 : vector<1x8x8xf32>
    %482 = vector.broadcast %67 : vector<1x1x8xf32> to vector<1x8x8xf32>
    %483 = arith.addf %481, %482 : vector<1x8x8xf32>
    %cst_271 = arith.constant dense<0xFF800000> : vector<1x8xf32>
    %484 = vector.multi_reduction <maximumf>, %483, %cst_271 [2] : vector<1x8x8xf32> to vector<1x8xf32>
    %485 = vector.shape_cast %484 : vector<1x8xf32> to vector<1x8x1xf32>
    %486 = vector.broadcast %485 : vector<1x8x1xf32> to vector<1x8x8xf32>
    %487 = arith.subf %483, %486 : vector<1x8x8xf32>
    %488 = math.exp %487 : vector<1x8x8xf32>
    %cst_272 = arith.constant dense<0.000000e+00> : vector<1x8xf32>
    %489 = vector.multi_reduction <add>, %488, %cst_272 [2] : vector<1x8x8xf32> to vector<1x8xf32>
    %490 = vector.shape_cast %489 : vector<1x8xf32> to vector<1x8x1xf32>
    %491 = tpu.reciprocal %490 {approx = true} : vector<1x8x1xf32> -> vector<1x8x1xf32>
    %492 = vector.broadcast %491 : vector<1x8x1xf32> to vector<1x8x8xf32>
    %493 = arith.mulf %488, %492 : vector<1x8x8xf32>
    %494 = vector.extract_strided_slice %438 {offsets = [0, 0, 16], sizes = [1, 8, 8], strides = [1, 1, 1]} : vector<1x8x32xf32> to vector<1x8x8xf32>
    "tpu.trace_start"() <{level = 10 : i32, message = "bqk,bkd->bqd"}> : () -> ()
    %cst_273 = arith.constant dense<0.000000e+00> : vector<1x8x8xf32>
    %495 = tpu.matmul %493, %494, %cst_273 {dimension_numbers = #tpu.dot_dimension_numbers<[2], [1], [1], [2], [0, 0, 0, 1, 1, 2], [0], [0]>} : vector<1x8x8xf32>, vector<1x8x8xf32>, vector<1x8x8xf32> -> vector<1x8x8xf32>
    "tpu.trace_stop"() : () -> ()
    %496 = vector.extract_strided_slice %436 {offsets = [0, 0, 24], sizes = [1, 8, 8], strides = [1, 1, 1]} : vector<1x8x32xf32> to vector<1x8x8xf32>
    %497 = vector.extract_strided_slice %437 {offsets = [0, 0, 24], sizes = [1, 8, 8], strides = [1, 1, 1]} : vector<1x8x32xf32> to vector<1x8x8xf32>
    "tpu.trace_start"() <{level = 10 : i32, message = "bqd,bkd->bqk"}> : () -> ()
    %cst_274 = arith.constant dense<0.000000e+00> : vector<1x8x8xf32>
    %498 = tpu.matmul %496, %497, %cst_274 {dimension_numbers = #tpu.dot_dimension_numbers<[2], [2], [1], [1], [0, 0, 0, 1, 1, 1], [0], [0]>} : vector<1x8x8xf32>, vector<1x8x8xf32>, vector<1x8x8xf32> -> vector<1x8x8xf32>
    "tpu.trace_stop"() : () -> ()
    %cst_275 = arith.constant 0.353553385 : f32
    %499 = vector.broadcast %cst_275 : f32 to vector<1x8x8xf32>
    %500 = arith.mulf %498, %499 : vector<1x8x8xf32>
    %501 = vector.broadcast %67 : vector<1x1x8xf32> to vector<1x8x8xf32>
    %502 = arith.addf %500, %501 : vector<1x8x8xf32>
    %cst_276 = arith.constant dense<0xFF800000> : vector<1x8xf32>
    %503 = vector.multi_reduction <maximumf>, %502, %cst_276 [2] : vector<1x8x8xf32> to vector<1x8xf32>
    %504 = vector.shape_cast %503 : vector<1x8xf32> to vector<1x8x1xf32>
    %505 = vector.broadcast %504 : vector<1x8x1xf32> to vector<1x8x8xf32>
    %506 = arith.subf %502, %505 : vector<1x8x8xf32>
    %507 = math.exp %506 : vector<1x8x8xf32>
    %cst_277 = arith.constant dense<0.000000e+00> : vector<1x8xf32>
    %508 = vector.multi_reduction <add>, %507, %cst_277 [2] : vector<1x8x8xf32> to vector<1x8xf32>
    %509 = vector.shape_cast %508 : vector<1x8xf32> to vector<1x8x1xf32>
    %510 = tpu.reciprocal %509 {approx = true} : vector<1x8x1xf32> -> vector<1x8x1xf32>
    %511 = vector.broadcast %510 : vector<1x8x1xf32> to vector<1x8x8xf32>
    %512 = arith.mulf %507, %511 : vector<1x8x8xf32>
    %513 = vector.extract_strided_slice %438 {offsets = [0, 0, 24], sizes = [1, 8, 8], strides = [1, 1, 1]} : vector<1x8x32xf32> to vector<1x8x8xf32>
    "tpu.trace_start"() <{level = 10 : i32, message = "bqk,bkd->bqd"}> : () -> ()
    %cst_278 = arith.constant dense<0.000000e+00> : vector<1x8x8xf32>
    %514 = tpu.matmul %512, %513, %cst_278 {dimension_numbers = #tpu.dot_dimension_numbers<[2], [1], [1], [2], [0, 0, 0, 1, 1, 2], [0], [0]>} : vector<1x8x8xf32>, vector<1x8x8xf32>, vector<1x8x8xf32> -> vector<1x8x8xf32>
    "tpu.trace_stop"() : () -> ()
    %515 = tpu.concatenate %457, %476, %495, %514 in 2 : vector<1x8x8xf32>, vector<1x8x8xf32>, vector<1x8x8xf32>, vector<1x8x8xf32> -> vector<1x8x32xf32>
    %516 = vector.shape_cast %515 : vector<1x8x32xf32> to vector<8x32xf32>
    %c2_279 = arith.constant 2 : index
    %c0_280 = arith.constant 0 : index
    %c0_281 = arith.constant 0 : index
    %c0_282 = arith.constant 0 : index
    %517 = vector.load %arg17[%c2_279, %c0_280, %c0_281, %c0_282] : memref<3x2x32x32xf32, #tpu.memory_space<vmem>>, vector<1x1x32x32xf32>
    %518 = vector.shape_cast %517 : vector<1x1x32x32xf32> to vector<32x32xf32>
    %cst_283 = arith.constant dense<0.000000e+00> : vector<8x32xf32>
    %519 = tpu.matmul %516, %518, %cst_283 {dimension_numbers = #tpu.dot_dimension_numbers<[1], [0], [0], [1], [0, 0, 1, 1], [], []>} : vector<8x32xf32>, vector<32x32xf32>, vector<8x32xf32> -> vector<8x32xf32>
    %c2_284 = arith.constant 2 : index
    %c0_285 = arith.constant 0 : index
    %c0_286 = arith.constant 0 : index
    %c0_287 = arith.constant 0 : index
    %520 = vector.load %arg18[%c2_284, %c0_285, %c0_286, %c0_287] : memref<3x2x1x32xf32, #tpu.memory_space<vmem>>, vector<1x1x1x32xf32>
    %521 = vector.shape_cast %520 : vector<1x1x1x32xf32> to vector<1x32xf32>
    %522 = vector.broadcast %521 : vector<1x32xf32> to vector<8x32xf32>
    %523 = arith.addf %519, %522 : vector<8x32xf32>
    %524 = arith.addf %427, %523 : vector<8x32xf32>
    %c2_288 = arith.constant 2 : index
    %c0_289 = arith.constant 0 : index
    %c0_290 = arith.constant 0 : index
    %c0_291 = arith.constant 0 : index
    %525 = vector.load %arg19[%c2_288, %c0_289, %c0_290, %c0_291] : memref<3x2x1x32xf32, #tpu.memory_space<vmem>>, vector<1x1x1x32xf32>
    %526 = vector.shape_cast %525 : vector<1x1x1x32xf32> to vector<1x32xf32>
    %c2_292 = arith.constant 2 : index
    %c0_293 = arith.constant 0 : index
    %c0_294 = arith.constant 0 : index
    %c0_295 = arith.constant 0 : index
    %527 = vector.load %arg20[%c2_292, %c0_293, %c0_294, %c0_295] : memref<3x2x1x32xf32, #tpu.memory_space<vmem>>, vector<1x1x1x32xf32>
    %528 = vector.shape_cast %527 : vector<1x1x1x32xf32> to vector<1x32xf32>
    %cst_296 = arith.constant dense<0.000000e+00> : vector<8xf32>
    %529 = vector.multi_reduction <add>, %524, %cst_296 [1] : vector<8x32xf32> to vector<8xf32>
    %530 = vector.shape_cast %529 : vector<8xf32> to vector<8x1xf32>
    %cst_297 = arith.constant 3.200000e+01 : f32
    %531 = vector.broadcast %cst_297 : f32 to vector<8x1xf32>
    %532 = arith.divf %530, %531 : vector<8x1xf32>
    %533 = vector.broadcast %532 : vector<8x1xf32> to vector<8x32xf32>
    %534 = arith.subf %524, %533 : vector<8x32xf32>
    %535 = arith.mulf %534, %534 : vector<8x32xf32>
    %cst_298 = arith.constant dense<0.000000e+00> : vector<8xf32>
    %536 = vector.multi_reduction <add>, %535, %cst_298 [1] : vector<8x32xf32> to vector<8xf32>
    %537 = vector.shape_cast %536 : vector<8xf32> to vector<8x1xf32>
    %cst_299 = arith.constant 3.200000e+01 : f32
    %538 = vector.broadcast %cst_299 : f32 to vector<8x1xf32>
    %539 = arith.divf %537, %538 : vector<8x1xf32>
    %540 = vector.broadcast %532 : vector<8x1xf32> to vector<8x32xf32>
    %541 = arith.subf %524, %540 : vector<8x32xf32>
    %cst_300 = arith.constant 9.99999974E-6 : f32
    %542 = vector.broadcast %cst_300 : f32 to vector<8x1xf32>
    %543 = arith.addf %539, %542 : vector<8x1xf32>
    %544 = math.rsqrt %543 : vector<8x1xf32>
    %545 = vector.broadcast %544 : vector<8x1xf32> to vector<8x32xf32>
    %546 = arith.mulf %541, %545 : vector<8x32xf32>
    %547 = vector.broadcast %526 : vector<1x32xf32> to vector<8x32xf32>
    %548 = arith.mulf %546, %547 : vector<8x32xf32>
    %549 = vector.broadcast %528 : vector<1x32xf32> to vector<8x32xf32>
    %550 = arith.addf %548, %549 : vector<8x32xf32>
    %c2_301 = arith.constant 2 : index
    %c0_302 = arith.constant 0 : index
    %c0_303 = arith.constant 0 : index
    %c0_304 = arith.constant 0 : index
    %551 = vector.load %arg23[%c2_301, %c0_302, %c0_303, %c0_304] : memref<3x2x32x64xf32, #tpu.memory_space<vmem>>, vector<1x1x32x64xf32>
    %552 = vector.shape_cast %551 : vector<1x1x32x64xf32> to vector<32x64xf32>
    %cst_305 = arith.constant dense<0.000000e+00> : vector<8x64xf32>
    %553 = tpu.matmul %550, %552, %cst_305 {dimension_numbers = #tpu.dot_dimension_numbers<[1], [0], [0], [1], [0, 0, 1, 1], [], []>} : vector<8x32xf32>, vector<32x64xf32>, vector<8x64xf32> -> vector<8x64xf32>
    %c2_306 = arith.constant 2 : index
    %c0_307 = arith.constant 0 : index
    %c0_308 = arith.constant 0 : index
    %c0_309 = arith.constant 0 : index
    %554 = vector.load %arg24[%c2_306, %c0_307, %c0_308, %c0_309] : memref<3x2x1x64xf32, #tpu.memory_space<vmem>>, vector<1x1x1x64xf32>
    %555 = vector.shape_cast %554 : vector<1x1x1x64xf32> to vector<1x64xf32>
    %556 = vector.broadcast %555 : vector<1x64xf32> to vector<8x64xf32>
    %557 = arith.addf %553, %556 : vector<8x64xf32>
    %cst_310 = arith.constant 0.000000e+00 : f32
    %558 = vector.broadcast %cst_310 : f32 to vector<8x64xf32>
    %559 = arith.maximumf %557, %558 : vector<8x64xf32>
    %c2_311 = arith.constant 2 : index
    %c0_312 = arith.constant 0 : index
    %c0_313 = arith.constant 0 : index
    %c0_314 = arith.constant 0 : index
    %560 = vector.load %arg25[%c2_311, %c0_312, %c0_313, %c0_314] : memref<3x2x64x32xf32, #tpu.memory_space<vmem>>, vector<1x1x64x32xf32>
    %561 = vector.shape_cast %560 : vector<1x1x64x32xf32> to vector<64x32xf32>
    %cst_315 = arith.constant dense<0.000000e+00> : vector<8x32xf32>
    %562 = tpu.matmul %559, %561, %cst_315 {dimension_numbers = #tpu.dot_dimension_numbers<[1], [0], [0], [1], [0, 0, 1, 1], [], []>} : vector<8x64xf32>, vector<64x32xf32>, vector<8x32xf32> -> vector<8x32xf32>
    %c2_316 = arith.constant 2 : index
    %c0_317 = arith.constant 0 : index
    %c0_318 = arith.constant 0 : index
    %c0_319 = arith.constant 0 : index
    %563 = vector.load %arg26[%c2_316, %c0_317, %c0_318, %c0_319] : memref<3x2x1x32xf32, #tpu.memory_space<vmem>>, vector<1x1x1x32xf32>
    %564 = vector.shape_cast %563 : vector<1x1x1x32xf32> to vector<1x32xf32>
    %565 = vector.broadcast %564 : vector<1x32xf32> to vector<8x32xf32>
    %566 = arith.addf %562, %565 : vector<8x32xf32>
    %567 = arith.addf %550, %566 : vector<8x32xf32>
    %c2_320 = arith.constant 2 : index
    %c0_321 = arith.constant 0 : index
    %c0_322 = arith.constant 0 : index
    %c0_323 = arith.constant 0 : index
    %568 = vector.load %arg21[%c2_320, %c0_321, %c0_322, %c0_323] : memref<3x2x1x32xf32, #tpu.memory_space<vmem>>, vector<1x1x1x32xf32>
    %569 = vector.shape_cast %568 : vector<1x1x1x32xf32> to vector<1x32xf32>
    %c2_324 = arith.constant 2 : index
    %c0_325 = arith.constant 0 : index
    %c0_326 = arith.constant 0 : index
    %c0_327 = arith.constant 0 : index
    %570 = vector.load %arg22[%c2_324, %c0_325, %c0_326, %c0_327] : memref<3x2x1x32xf32, #tpu.memory_space<vmem>>, vector<1x1x1x32xf32>
    %571 = vector.shape_cast %570 : vector<1x1x1x32xf32> to vector<1x32xf32>
    %cst_328 = arith.constant dense<0.000000e+00> : vector<8xf32>
    %572 = vector.multi_reduction <add>, %567, %cst_328 [1] : vector<8x32xf32> to vector<8xf32>
    %573 = vector.shape_cast %572 : vector<8xf32> to vector<8x1xf32>
    %cst_329 = arith.constant 3.200000e+01 : f32
    %574 = vector.broadcast %cst_329 : f32 to vector<8x1xf32>
    %575 = arith.divf %573, %574 : vector<8x1xf32>
    %576 = vector.broadcast %575 : vector<8x1xf32> to vector<8x32xf32>
    %577 = arith.subf %567, %576 : vector<8x32xf32>
    %578 = arith.mulf %577, %577 : vector<8x32xf32>
    %cst_330 = arith.constant dense<0.000000e+00> : vector<8xf32>
    %579 = vector.multi_reduction <add>, %578, %cst_330 [1] : vector<8x32xf32> to vector<8xf32>
    %580 = vector.shape_cast %579 : vector<8xf32> to vector<8x1xf32>
    %cst_331 = arith.constant 3.200000e+01 : f32
    %581 = vector.broadcast %cst_331 : f32 to vector<8x1xf32>
    %582 = arith.divf %580, %581 : vector<8x1xf32>
    %583 = vector.broadcast %575 : vector<8x1xf32> to vector<8x32xf32>
    %584 = arith.subf %567, %583 : vector<8x32xf32>
    %cst_332 = arith.constant 9.99999974E-6 : f32
    %585 = vector.broadcast %cst_332 : f32 to vector<8x1xf32>
    %586 = arith.addf %582, %585 : vector<8x1xf32>
    %587 = math.rsqrt %586 : vector<8x1xf32>
    %588 = vector.broadcast %587 : vector<8x1xf32> to vector<8x32xf32>
    %589 = arith.mulf %584, %588 : vector<8x32xf32>
    %590 = vector.broadcast %569 : vector<1x32xf32> to vector<8x32xf32>
    %591 = arith.mulf %589, %590 : vector<8x32xf32>
    %592 = vector.broadcast %571 : vector<1x32xf32> to vector<8x32xf32>
    %593 = arith.addf %591, %592 : vector<8x32xf32>
    %594 = vector.shape_cast %593 : vector<8x32xf32> to vector<1x8x32xf32>
    %595 = vector.extract_strided_slice %594 {offsets = [0, 2, 0], sizes = [1, 6, 32], strides = [1, 1, 1]} : vector<1x8x32xf32> to vector<1x6x32xf32>
    %c0_333 = arith.constant 0 : index
    %c2_334 = arith.constant 2 : index
    %c0_335 = arith.constant 0 : index
    %596 = vector.load %arg32[%c0_333, %c2_334, %c0_335] : memref<1x8x32xf32, #tpu.memory_space<vmem>>, vector<1x6x32xf32>
    tpu.vector_store %arg32[%c0_333, %c2_334, %c0_335], %595 {strides = array<i32>} : memref<1x8x32xf32, #tpu.memory_space<vmem>>, vector<1x6x32xf32>,
    %597 = vector.extract_strided_slice %594 {offsets = [0, 0, 0], sizes = [1, 2, 32], strides = [1, 1, 1]} : vector<1x8x32xf32> to vector<1x2x32xf32>
    %598 = vector.shape_cast %77 : vector<1x1xf32> to vector<1x1x1xf32>
    %599 = vector.broadcast %598 : vector<1x1x1xf32> to vector<1x2x32xf32>
    %600 = arith.mulf %599, %253 : vector<1x2x32xf32>
    %601 = vector.shape_cast %79 : vector<1x1xf32> to vector<1x1x1xf32>
    %602 = vector.broadcast %601 : vector<1x1x1xf32> to vector<1x2x32xf32>
    %603 = arith.mulf %602, %425 : vector<1x2x32xf32>
    %604 = arith.addf %600, %603 : vector<1x2x32xf32>
    %605 = vector.shape_cast %81 : vector<1x1xf32> to vector<1x1x1xf32>
    %606 = vector.broadcast %605 : vector<1x1x1xf32> to vector<1x2x32xf32>
    %607 = arith.mulf %606, %597 : vector<1x2x32xf32>
    %608 = arith.addf %604, %607 : vector<1x2x32xf32>
    %c0_336 = arith.constant 0 : index
    %c0_337 = arith.constant 0 : index
    %c0_338 = arith.constant 0 : index
    %609 = vector.load %arg30[%c0_336, %c0_337, %c0_338] : memref<1x16x32xf32, #tpu.memory_space<vmem>>, vector<1x2x32xf32>
    tpu.vector_store %arg30[%c0_336, %c0_337, %c0_338], %608 {strides = array<i32>} : memref<1x16x32xf32, #tpu.memory_space<vmem>>, vector<1x2x32xf32>,
    %c0_339 = arith.constant 0 : index
    %c0_340 = arith.constant 0 : index
    %c0_341 = arith.constant 0 : index
    %610 = vector.load %arg31[%c0_339, %c0_340, %c0_341] : memref<1x8x32xf32, #tpu.memory_space<vmem>>, vector<1x2x32xf32>
    tpu.vector_store %arg31[%c0_339, %c0_340, %c0_341], %608 {strides = array<i32>} : memref<1x8x32xf32, #tpu.memory_space<vmem>>, vector<1x2x32xf32>,
    %c0_342 = arith.constant 0 : index
    %c0_343 = arith.constant 0 : index
    %c0_344 = arith.constant 0 : index
    %611 = vector.load %arg32[%c0_342, %c0_343, %c0_344] : memref<1x8x32xf32, #tpu.memory_space<vmem>>, vector<1x2x32xf32>
    tpu.vector_store %arg32[%c0_342, %c0_343, %c0_344], %608 {strides = array<i32>} : memref<1x8x32xf32, #tpu.memory_space<vmem>>, vector<1x2x32xf32>,
    %c0_345 = arith.constant 0 : index
    %c0_346 = arith.constant 0 : index
    %c0_347 = arith.constant 0 : index
    %612 = vector.load %arg30[%c0_345, %c0_346, %c0_347] : memref<1x16x32xf32, #tpu.memory_space<vmem>>, vector<1x16x32xf32>
    %613 = vector.shape_cast %612 : vector<1x16x32xf32> to vector<16x32xf32>
    %c0_348 = arith.constant 0 : index
    %c1_349 = arith.constant 1 : index
    %c0_350 = arith.constant 0 : index
    %c0_351 = arith.constant 0 : index
    %614 = vector.load %arg15[%c0_348, %c1_349, %c0_350, %c0_351] : memref<3x2x32x96xf32, #tpu.memory_space<vmem>>, vector<1x1x32x96xf32>
    %615 = vector.shape_cast %614 : vector<1x1x32x96xf32> to vector<32x96xf32>
    %cst_352 = arith.constant dense<0.000000e+00> : vector<16x96xf32>
    %616 = tpu.matmul %613, %615, %cst_352 {dimension_numbers = #tpu.dot_dimension_numbers<[1], [0], [0], [1], [0, 0, 1, 1], [], []>} : vector<16x32xf32>, vector<32x96xf32>, vector<16x96xf32> -> vector<16x96xf32>
    %c0_353 = arith.constant 0 : index
    %c1_354 = arith.constant 1 : index
    %c0_355 = arith.constant 0 : index
    %c0_356 = arith.constant 0 : index
    %617 = vector.load %arg16[%c0_353, %c1_354, %c0_355, %c0_356] : memref<3x2x1x96xf32, #tpu.memory_space<vmem>>, vector<1x1x1x96xf32>
    %618 = vector.shape_cast %617 : vector<1x1x1x96xf32> to vector<1x96xf32>
    %619 = vector.broadcast %618 : vector<1x96xf32> to vector<16x96xf32>
    %620 = arith.addf %616, %619 : vector<16x96xf32>
    %621 = vector.shape_cast %620 : vector<16x96xf32> to vector<1x16x96xf32>
    %622 = vector.extract_strided_slice %621 {offsets = [0, 0, 0], sizes = [1, 16, 32], strides = [1, 1, 1]} : vector<1x16x96xf32> to vector<1x16x32xf32>
    %623 = vector.extract_strided_slice %621 {offsets = [0, 0, 32], sizes = [1, 16, 32], strides = [1, 1, 1]} : vector<1x16x96xf32> to vector<1x16x32xf32>
    %624 = vector.extract_strided_slice %621 {offsets = [0, 0, 64], sizes = [1, 16, 32], strides = [1, 1, 1]} : vector<1x16x96xf32> to vector<1x16x32xf32>
    %625 = vector.extract_strided_slice %622 {offsets = [0, 0, 0], sizes = [1, 16, 8], strides = [1, 1, 1]} : vector<1x16x32xf32> to vector<1x16x8xf32>
    %626 = vector.extract_strided_slice %623 {offsets = [0, 0, 0], sizes = [1, 16, 8], strides = [1, 1, 1]} : vector<1x16x32xf32> to vector<1x16x8xf32>
    "tpu.trace_start"() <{level = 10 : i32, message = "bqd,bkd->bqk"}> : () -> ()
    %cst_357 = arith.constant dense<0.000000e+00> : vector<1x16x16xf32>
    %627 = tpu.matmul %625, %626, %cst_357 {dimension_numbers = #tpu.dot_dimension_numbers<[2], [2], [1], [1], [0, 0, 0, 1, 1, 1], [0], [0]>} : vector<1x16x8xf32>, vector<1x16x8xf32>, vector<1x16x16xf32> -> vector<1x16x16xf32>
    "tpu.trace_stop"() : () -> ()
    %cst_358 = arith.constant 0.353553385 : f32
    %628 = vector.broadcast %cst_358 : f32 to vector<1x16x16xf32>
    %629 = arith.mulf %627, %628 : vector<1x16x16xf32>
    %630 = vector.broadcast %55 : vector<1x1x16xf32> to vector<1x16x16xf32>
    %631 = arith.addf %629, %630 : vector<1x16x16xf32>
    %cst_359 = arith.constant dense<0xFF800000> : vector<1x16xf32>
    %632 = vector.multi_reduction <maximumf>, %631, %cst_359 [2] : vector<1x16x16xf32> to vector<1x16xf32>
    %633 = vector.shape_cast %632 : vector<1x16xf32> to vector<1x16x1xf32>
    %634 = vector.broadcast %633 : vector<1x16x1xf32> to vector<1x16x16xf32>
    %635 = arith.subf %631, %634 : vector<1x16x16xf32>
    %636 = math.exp %635 : vector<1x16x16xf32>
    %cst_360 = arith.constant dense<0.000000e+00> : vector<1x16xf32>
    %637 = vector.multi_reduction <add>, %636, %cst_360 [2] : vector<1x16x16xf32> to vector<1x16xf32>
    %638 = vector.shape_cast %637 : vector<1x16xf32> to vector<1x16x1xf32>
    %639 = tpu.reciprocal %638 {approx = true} : vector<1x16x1xf32> -> vector<1x16x1xf32>
    %640 = vector.broadcast %639 : vector<1x16x1xf32> to vector<1x16x16xf32>
    %641 = arith.mulf %636, %640 : vector<1x16x16xf32>
    %642 = vector.extract_strided_slice %624 {offsets = [0, 0, 0], sizes = [1, 16, 8], strides = [1, 1, 1]} : vector<1x16x32xf32> to vector<1x16x8xf32>
    "tpu.trace_start"() <{level = 10 : i32, message = "bqk,bkd->bqd"}> : () -> ()
    %cst_361 = arith.constant dense<0.000000e+00> : vector<1x16x8xf32>
    %643 = tpu.matmul %641, %642, %cst_361 {dimension_numbers = #tpu.dot_dimension_numbers<[2], [1], [1], [2], [0, 0, 0, 1, 1, 2], [0], [0]>} : vector<1x16x16xf32>, vector<1x16x8xf32>, vector<1x16x8xf32> -> vector<1x16x8xf32>
    "tpu.trace_stop"() : () -> ()
    %644 = vector.extract_strided_slice %622 {offsets = [0, 0, 8], sizes = [1, 16, 8], strides = [1, 1, 1]} : vector<1x16x32xf32> to vector<1x16x8xf32>
    %645 = vector.extract_strided_slice %623 {offsets = [0, 0, 8], sizes = [1, 16, 8], strides = [1, 1, 1]} : vector<1x16x32xf32> to vector<1x16x8xf32>
    "tpu.trace_start"() <{level = 10 : i32, message = "bqd,bkd->bqk"}> : () -> ()
    %cst_362 = arith.constant dense<0.000000e+00> : vector<1x16x16xf32>
    %646 = tpu.matmul %644, %645, %cst_362 {dimension_numbers = #tpu.dot_dimension_numbers<[2], [2], [1], [1], [0, 0, 0, 1, 1, 1], [0], [0]>} : vector<1x16x8xf32>, vector<1x16x8xf32>, vector<1x16x16xf32> -> vector<1x16x16xf32>
    "tpu.trace_stop"() : () -> ()
    %cst_363 = arith.constant 0.353553385 : f32
    %647 = vector.broadcast %cst_363 : f32 to vector<1x16x16xf32>
    %648 = arith.mulf %646, %647 : vector<1x16x16xf32>
    %649 = vector.broadcast %55 : vector<1x1x16xf32> to vector<1x16x16xf32>
    %650 = arith.addf %648, %649 : vector<1x16x16xf32>
    %cst_364 = arith.constant dense<0xFF800000> : vector<1x16xf32>
    %651 = vector.multi_reduction <maximumf>, %650, %cst_364 [2] : vector<1x16x16xf32> to vector<1x16xf32>
    %652 = vector.shape_cast %651 : vector<1x16xf32> to vector<1x16x1xf32>
    %653 = vector.broadcast %652 : vector<1x16x1xf32> to vector<1x16x16xf32>
    %654 = arith.subf %650, %653 : vector<1x16x16xf32>
    %655 = math.exp %654 : vector<1x16x16xf32>
    %cst_365 = arith.constant dense<0.000000e+00> : vector<1x16xf32>
    %656 = vector.multi_reduction <add>, %655, %cst_365 [2] : vector<1x16x16xf32> to vector<1x16xf32>
    %657 = vector.shape_cast %656 : vector<1x16xf32> to vector<1x16x1xf32>
    %658 = tpu.reciprocal %657 {approx = true} : vector<1x16x1xf32> -> vector<1x16x1xf32>
    %659 = vector.broadcast %658 : vector<1x16x1xf32> to vector<1x16x16xf32>
    %660 = arith.mulf %655, %659 : vector<1x16x16xf32>
    %661 = vector.extract_strided_slice %624 {offsets = [0, 0, 8], sizes = [1, 16, 8], strides = [1, 1, 1]} : vector<1x16x32xf32> to vector<1x16x8xf32>
    "tpu.trace_start"() <{level = 10 : i32, message = "bqk,bkd->bqd"}> : () -> ()
    %cst_366 = arith.constant dense<0.000000e+00> : vector<1x16x8xf32>
    %662 = tpu.matmul %660, %661, %cst_366 {dimension_numbers = #tpu.dot_dimension_numbers<[2], [1], [1], [2], [0, 0, 0, 1, 1, 2], [0], [0]>} : vector<1x16x16xf32>, vector<1x16x8xf32>, vector<1x16x8xf32> -> vector<1x16x8xf32>
    "tpu.trace_stop"() : () -> ()
    %663 = vector.extract_strided_slice %622 {offsets = [0, 0, 16], sizes = [1, 16, 8], strides = [1, 1, 1]} : vector<1x16x32xf32> to vector<1x16x8xf32>
    %664 = vector.extract_strided_slice %623 {offsets = [0, 0, 16], sizes = [1, 16, 8], strides = [1, 1, 1]} : vector<1x16x32xf32> to vector<1x16x8xf32>
    "tpu.trace_start"() <{level = 10 : i32, message = "bqd,bkd->bqk"}> : () -> ()
    %cst_367 = arith.constant dense<0.000000e+00> : vector<1x16x16xf32>
    %665 = tpu.matmul %663, %664, %cst_367 {dimension_numbers = #tpu.dot_dimension_numbers<[2], [2], [1], [1], [0, 0, 0, 1, 1, 1], [0], [0]>} : vector<1x16x8xf32>, vector<1x16x8xf32>, vector<1x16x16xf32> -> vector<1x16x16xf32>
    "tpu.trace_stop"() : () -> ()
    %cst_368 = arith.constant 0.353553385 : f32
    %666 = vector.broadcast %cst_368 : f32 to vector<1x16x16xf32>
    %667 = arith.mulf %665, %666 : vector<1x16x16xf32>
    %668 = vector.broadcast %55 : vector<1x1x16xf32> to vector<1x16x16xf32>
    %669 = arith.addf %667, %668 : vector<1x16x16xf32>
    %cst_369 = arith.constant dense<0xFF800000> : vector<1x16xf32>
    %670 = vector.multi_reduction <maximumf>, %669, %cst_369 [2] : vector<1x16x16xf32> to vector<1x16xf32>
    %671 = vector.shape_cast %670 : vector<1x16xf32> to vector<1x16x1xf32>
    %672 = vector.broadcast %671 : vector<1x16x1xf32> to vector<1x16x16xf32>
    %673 = arith.subf %669, %672 : vector<1x16x16xf32>
    %674 = math.exp %673 : vector<1x16x16xf32>
    %cst_370 = arith.constant dense<0.000000e+00> : vector<1x16xf32>
    %675 = vector.multi_reduction <add>, %674, %cst_370 [2] : vector<1x16x16xf32> to vector<1x16xf32>
    %676 = vector.shape_cast %675 : vector<1x16xf32> to vector<1x16x1xf32>
    %677 = tpu.reciprocal %676 {approx = true} : vector<1x16x1xf32> -> vector<1x16x1xf32>
    %678 = vector.broadcast %677 : vector<1x16x1xf32> to vector<1x16x16xf32>
    %679 = arith.mulf %674, %678 : vector<1x16x16xf32>
    %680 = vector.extract_strided_slice %624 {offsets = [0, 0, 16], sizes = [1, 16, 8], strides = [1, 1, 1]} : vector<1x16x32xf32> to vector<1x16x8xf32>
    "tpu.trace_start"() <{level = 10 : i32, message = "bqk,bkd->bqd"}> : () -> ()
    %cst_371 = arith.constant dense<0.000000e+00> : vector<1x16x8xf32>
    %681 = tpu.matmul %679, %680, %cst_371 {dimension_numbers = #tpu.dot_dimension_numbers<[2], [1], [1], [2], [0, 0, 0, 1, 1, 2], [0], [0]>} : vector<1x16x16xf32>, vector<1x16x8xf32>, vector<1x16x8xf32> -> vector<1x16x8xf32>
    "tpu.trace_stop"() : () -> ()
    %682 = vector.extract_strided_slice %622 {offsets = [0, 0, 24], sizes = [1, 16, 8], strides = [1, 1, 1]} : vector<1x16x32xf32> to vector<1x16x8xf32>
    %683 = vector.extract_strided_slice %623 {offsets = [0, 0, 24], sizes = [1, 16, 8], strides = [1, 1, 1]} : vector<1x16x32xf32> to vector<1x16x8xf32>
    "tpu.trace_start"() <{level = 10 : i32, message = "bqd,bkd->bqk"}> : () -> ()
    %cst_372 = arith.constant dense<0.000000e+00> : vector<1x16x16xf32>
    %684 = tpu.matmul %682, %683, %cst_372 {dimension_numbers = #tpu.dot_dimension_numbers<[2], [2], [1], [1], [0, 0, 0, 1, 1, 1], [0], [0]>} : vector<1x16x8xf32>, vector<1x16x8xf32>, vector<1x16x16xf32> -> vector<1x16x16xf32>
    "tpu.trace_stop"() : () -> ()
    %cst_373 = arith.constant 0.353553385 : f32
    %685 = vector.broadcast %cst_373 : f32 to vector<1x16x16xf32>
    %686 = arith.mulf %684, %685 : vector<1x16x16xf32>
    %687 = vector.broadcast %55 : vector<1x1x16xf32> to vector<1x16x16xf32>
    %688 = arith.addf %686, %687 : vector<1x16x16xf32>
    %cst_374 = arith.constant dense<0xFF800000> : vector<1x16xf32>
    %689 = vector.multi_reduction <maximumf>, %688, %cst_374 [2] : vector<1x16x16xf32> to vector<1x16xf32>
    %690 = vector.shape_cast %689 : vector<1x16xf32> to vector<1x16x1xf32>
    %691 = vector.broadcast %690 : vector<1x16x1xf32> to vector<1x16x16xf32>
    %692 = arith.subf %688, %691 : vector<1x16x16xf32>
    %693 = math.exp %692 : vector<1x16x16xf32>
    %cst_375 = arith.constant dense<0.000000e+00> : vector<1x16xf32>
    %694 = vector.multi_reduction <add>, %693, %cst_375 [2] : vector<1x16x16xf32> to vector<1x16xf32>
    %695 = vector.shape_cast %694 : vector<1x16xf32> to vector<1x16x1xf32>
    %696 = tpu.reciprocal %695 {approx = true} : vector<1x16x1xf32> -> vector<1x16x1xf32>
    %697 = vector.broadcast %696 : vector<1x16x1xf32> to vector<1x16x16xf32>
    %698 = arith.mulf %693, %697 : vector<1x16x16xf32>
    %699 = vector.extract_strided_slice %624 {offsets = [0, 0, 24], sizes = [1, 16, 8], strides = [1, 1, 1]} : vector<1x16x32xf32> to vector<1x16x8xf32>
    "tpu.trace_start"() <{level = 10 : i32, message = "bqk,bkd->bqd"}> : () -> ()
    %cst_376 = arith.constant dense<0.000000e+00> : vector<1x16x8xf32>
    %700 = tpu.matmul %698, %699, %cst_376 {dimension_numbers = #tpu.dot_dimension_numbers<[2], [1], [1], [2], [0, 0, 0, 1, 1, 2], [0], [0]>} : vector<1x16x16xf32>, vector<1x16x8xf32>, vector<1x16x8xf32> -> vector<1x16x8xf32>
    "tpu.trace_stop"() : () -> ()
    %701 = tpu.concatenate %643, %662, %681, %700 in 2 : vector<1x16x8xf32>, vector<1x16x8xf32>, vector<1x16x8xf32>, vector<1x16x8xf32> -> vector<1x16x32xf32>
    %702 = vector.shape_cast %701 : vector<1x16x32xf32> to vector<16x32xf32>
    %c0_377 = arith.constant 0 : index
    %c1_378 = arith.constant 1 : index
    %c0_379 = arith.constant 0 : index
    %c0_380 = arith.constant 0 : index
    %703 = vector.load %arg17[%c0_377, %c1_378, %c0_379, %c0_380] : memref<3x2x32x32xf32, #tpu.memory_space<vmem>>, vector<1x1x32x32xf32>
    %704 = vector.shape_cast %703 : vector<1x1x32x32xf32> to vector<32x32xf32>
    %cst_381 = arith.constant dense<0.000000e+00> : vector<16x32xf32>
    %705 = tpu.matmul %702, %704, %cst_381 {dimension_numbers = #tpu.dot_dimension_numbers<[1], [0], [0], [1], [0, 0, 1, 1], [], []>} : vector<16x32xf32>, vector<32x32xf32>, vector<16x32xf32> -> vector<16x32xf32>
    %c0_382 = arith.constant 0 : index
    %c1_383 = arith.constant 1 : index
    %c0_384 = arith.constant 0 : index
    %c0_385 = arith.constant 0 : index
    %706 = vector.load %arg18[%c0_382, %c1_383, %c0_384, %c0_385] : memref<3x2x1x32xf32, #tpu.memory_space<vmem>>, vector<1x1x1x32xf32>
    %707 = vector.shape_cast %706 : vector<1x1x1x32xf32> to vector<1x32xf32>
    %708 = vector.broadcast %707 : vector<1x32xf32> to vector<16x32xf32>
    %709 = arith.addf %705, %708 : vector<16x32xf32>
    %710 = arith.addf %613, %709 : vector<16x32xf32>
    %c0_386 = arith.constant 0 : index
    %c1_387 = arith.constant 1 : index
    %c0_388 = arith.constant 0 : index
    %c0_389 = arith.constant 0 : index
    %711 = vector.load %arg19[%c0_386, %c1_387, %c0_388, %c0_389] : memref<3x2x1x32xf32, #tpu.memory_space<vmem>>, vector<1x1x1x32xf32>
    %712 = vector.shape_cast %711 : vector<1x1x1x32xf32> to vector<1x32xf32>
    %c0_390 = arith.constant 0 : index
    %c1_391 = arith.constant 1 : index
    %c0_392 = arith.constant 0 : index
    %c0_393 = arith.constant 0 : index
    %713 = vector.load %arg20[%c0_390, %c1_391, %c0_392, %c0_393] : memref<3x2x1x32xf32, #tpu.memory_space<vmem>>, vector<1x1x1x32xf32>
    %714 = vector.shape_cast %713 : vector<1x1x1x32xf32> to vector<1x32xf32>
    %cst_394 = arith.constant dense<0.000000e+00> : vector<16xf32>
    %715 = vector.multi_reduction <add>, %710, %cst_394 [1] : vector<16x32xf32> to vector<16xf32>
    %716 = vector.shape_cast %715 : vector<16xf32> to vector<16x1xf32>
    %cst_395 = arith.constant 3.200000e+01 : f32
    %717 = vector.broadcast %cst_395 : f32 to vector<16x1xf32>
    %718 = arith.divf %716, %717 : vector<16x1xf32>
    %719 = vector.broadcast %718 : vector<16x1xf32> to vector<16x32xf32>
    %720 = arith.subf %710, %719 : vector<16x32xf32>
    %721 = arith.mulf %720, %720 : vector<16x32xf32>
    %cst_396 = arith.constant dense<0.000000e+00> : vector<16xf32>
    %722 = vector.multi_reduction <add>, %721, %cst_396 [1] : vector<16x32xf32> to vector<16xf32>
    %723 = vector.shape_cast %722 : vector<16xf32> to vector<16x1xf32>
    %cst_397 = arith.constant 3.200000e+01 : f32
    %724 = vector.broadcast %cst_397 : f32 to vector<16x1xf32>
    %725 = arith.divf %723, %724 : vector<16x1xf32>
    %726 = vector.broadcast %718 : vector<16x1xf32> to vector<16x32xf32>
    %727 = arith.subf %710, %726 : vector<16x32xf32>
    %cst_398 = arith.constant 9.99999974E-6 : f32
    %728 = vector.broadcast %cst_398 : f32 to vector<16x1xf32>
    %729 = arith.addf %725, %728 : vector<16x1xf32>
    %730 = math.rsqrt %729 : vector<16x1xf32>
    %731 = vector.broadcast %730 : vector<16x1xf32> to vector<16x32xf32>
    %732 = arith.mulf %727, %731 : vector<16x32xf32>
    %733 = vector.broadcast %712 : vector<1x32xf32> to vector<16x32xf32>
    %734 = arith.mulf %732, %733 : vector<16x32xf32>
    %735 = vector.broadcast %714 : vector<1x32xf32> to vector<16x32xf32>
    %736 = arith.addf %734, %735 : vector<16x32xf32>
    %c0_399 = arith.constant 0 : index
    %c1_400 = arith.constant 1 : index
    %c0_401 = arith.constant 0 : index
    %c0_402 = arith.constant 0 : index
    %737 = vector.load %arg23[%c0_399, %c1_400, %c0_401, %c0_402] : memref<3x2x32x64xf32, #tpu.memory_space<vmem>>, vector<1x1x32x64xf32>
    %738 = vector.shape_cast %737 : vector<1x1x32x64xf32> to vector<32x64xf32>
    %cst_403 = arith.constant dense<0.000000e+00> : vector<16x64xf32>
    %739 = tpu.matmul %736, %738, %cst_403 {dimension_numbers = #tpu.dot_dimension_numbers<[1], [0], [0], [1], [0, 0, 1, 1], [], []>} : vector<16x32xf32>, vector<32x64xf32>, vector<16x64xf32> -> vector<16x64xf32>
    %c0_404 = arith.constant 0 : index
    %c1_405 = arith.constant 1 : index
    %c0_406 = arith.constant 0 : index
    %c0_407 = arith.constant 0 : index
    %740 = vector.load %arg24[%c0_404, %c1_405, %c0_406, %c0_407] : memref<3x2x1x64xf32, #tpu.memory_space<vmem>>, vector<1x1x1x64xf32>
    %741 = vector.shape_cast %740 : vector<1x1x1x64xf32> to vector<1x64xf32>
    %742 = vector.broadcast %741 : vector<1x64xf32> to vector<16x64xf32>
    %743 = arith.addf %739, %742 : vector<16x64xf32>
    %cst_408 = arith.constant 0.000000e+00 : f32
    %744 = vector.broadcast %cst_408 : f32 to vector<16x64xf32>
    %745 = arith.maximumf %743, %744 : vector<16x64xf32>
    %c0_409 = arith.constant 0 : index
    %c1_410 = arith.constant 1 : index
    %c0_411 = arith.constant 0 : index
    %c0_412 = arith.constant 0 : index
    %746 = vector.load %arg25[%c0_409, %c1_410, %c0_411, %c0_412] : memref<3x2x64x32xf32, #tpu.memory_space<vmem>>, vector<1x1x64x32xf32>
    %747 = vector.shape_cast %746 : vector<1x1x64x32xf32> to vector<64x32xf32>
    %cst_413 = arith.constant dense<0.000000e+00> : vector<16x32xf32>
    %748 = tpu.matmul %745, %747, %cst_413 {dimension_numbers = #tpu.dot_dimension_numbers<[1], [0], [0], [1], [0, 0, 1, 1], [], []>} : vector<16x64xf32>, vector<64x32xf32>, vector<16x32xf32> -> vector<16x32xf32>
    %c0_414 = arith.constant 0 : index
    %c1_415 = arith.constant 1 : index
    %c0_416 = arith.constant 0 : index
    %c0_417 = arith.constant 0 : index
    %749 = vector.load %arg26[%c0_414, %c1_415, %c0_416, %c0_417] : memref<3x2x1x32xf32, #tpu.memory_space<vmem>>, vector<1x1x1x32xf32>
    %750 = vector.shape_cast %749 : vector<1x1x1x32xf32> to vector<1x32xf32>
    %751 = vector.broadcast %750 : vector<1x32xf32> to vector<16x32xf32>
    %752 = arith.addf %748, %751 : vector<16x32xf32>
    %753 = arith.addf %736, %752 : vector<16x32xf32>
    %c0_418 = arith.constant 0 : index
    %c1_419 = arith.constant 1 : index
    %c0_420 = arith.constant 0 : index
    %c0_421 = arith.constant 0 : index
    %754 = vector.load %arg21[%c0_418, %c1_419, %c0_420, %c0_421] : memref<3x2x1x32xf32, #tpu.memory_space<vmem>>, vector<1x1x1x32xf32>
    %755 = vector.shape_cast %754 : vector<1x1x1x32xf32> to vector<1x32xf32>
    %c0_422 = arith.constant 0 : index
    %c1_423 = arith.constant 1 : index
    %c0_424 = arith.constant 0 : index
    %c0_425 = arith.constant 0 : index
    %756 = vector.load %arg22[%c0_422, %c1_423, %c0_424, %c0_425] : memref<3x2x1x32xf32, #tpu.memory_space<vmem>>, vector<1x1x1x32xf32>
    %757 = vector.shape_cast %756 : vector<1x1x1x32xf32> to vector<1x32xf32>
    %cst_426 = arith.constant dense<0.000000e+00> : vector<16xf32>
    %758 = vector.multi_reduction <add>, %753, %cst_426 [1] : vector<16x32xf32> to vector<16xf32>
    %759 = vector.shape_cast %758 : vector<16xf32> to vector<16x1xf32>
    %cst_427 = arith.constant 3.200000e+01 : f32
    %760 = vector.broadcast %cst_427 : f32 to vector<16x1xf32>
    %761 = arith.divf %759, %760 : vector<16x1xf32>
    %762 = vector.broadcast %761 : vector<16x1xf32> to vector<16x32xf32>
    %763 = arith.subf %753, %762 : vector<16x32xf32>
    %764 = arith.mulf %763, %763 : vector<16x32xf32>
    %cst_428 = arith.constant dense<0.000000e+00> : vector<16xf32>
    %765 = vector.multi_reduction <add>, %764, %cst_428 [1] : vector<16x32xf32> to vector<16xf32>
    %766 = vector.shape_cast %765 : vector<16xf32> to vector<16x1xf32>
    %cst_429 = arith.constant 3.200000e+01 : f32
    %767 = vector.broadcast %cst_429 : f32 to vector<16x1xf32>
    %768 = arith.divf %766, %767 : vector<16x1xf32>
    %769 = vector.broadcast %761 : vector<16x1xf32> to vector<16x32xf32>
    %770 = arith.subf %753, %769 : vector<16x32xf32>
    %cst_430 = arith.constant 9.99999974E-6 : f32
    %771 = vector.broadcast %cst_430 : f32 to vector<16x1xf32>
    %772 = arith.addf %768, %771 : vector<16x1xf32>
    %773 = math.rsqrt %772 : vector<16x1xf32>
    %774 = vector.broadcast %773 : vector<16x1xf32> to vector<16x32xf32>
    %775 = arith.mulf %770, %774 : vector<16x32xf32>
    %776 = vector.broadcast %755 : vector<1x32xf32> to vector<16x32xf32>
    %777 = arith.mulf %775, %776 : vector<16x32xf32>
    %778 = vector.broadcast %757 : vector<1x32xf32> to vector<16x32xf32>
    %779 = arith.addf %777, %778 : vector<16x32xf32>
    %780 = vector.shape_cast %779 : vector<16x32xf32> to vector<1x16x32xf32>
    %781 = vector.extract_strided_slice %780 {offsets = [0, 0, 0], sizes = [1, 2, 32], strides = [1, 1, 1]} : vector<1x16x32xf32> to vector<1x2x32xf32>
    %c0_431 = arith.constant 0 : index
    %c0_432 = arith.constant 0 : index
    %c0_433 = arith.constant 0 : index
    %782 = vector.load %arg31[%c0_431, %c0_432, %c0_433] : memref<1x8x32xf32, #tpu.memory_space<vmem>>, vector<1x8x32xf32>
    %783 = vector.shape_cast %782 : vector<1x8x32xf32> to vector<8x32xf32>
    %c1_434 = arith.constant 1 : index
    %c1_435 = arith.constant 1 : index
    %c0_436 = arith.constant 0 : index
    %c0_437 = arith.constant 0 : index
    %784 = vector.load %arg15[%c1_434, %c1_435, %c0_436, %c0_437] : memref<3x2x32x96xf32, #tpu.memory_space<vmem>>, vector<1x1x32x96xf32>
    %785 = vector.shape_cast %784 : vector<1x1x32x96xf32> to vector<32x96xf32>
    %cst_438 = arith.constant dense<0.000000e+00> : vector<8x96xf32>
    %786 = tpu.matmul %783, %785, %cst_438 {dimension_numbers = #tpu.dot_dimension_numbers<[1], [0], [0], [1], [0, 0, 1, 1], [], []>} : vector<8x32xf32>, vector<32x96xf32>, vector<8x96xf32> -> vector<8x96xf32>
    %c1_439 = arith.constant 1 : index
    %c1_440 = arith.constant 1 : index
    %c0_441 = arith.constant 0 : index
    %c0_442 = arith.constant 0 : index
    %787 = vector.load %arg16[%c1_439, %c1_440, %c0_441, %c0_442] : memref<3x2x1x96xf32, #tpu.memory_space<vmem>>, vector<1x1x1x96xf32>
    %788 = vector.shape_cast %787 : vector<1x1x1x96xf32> to vector<1x96xf32>
    %789 = vector.broadcast %788 : vector<1x96xf32> to vector<8x96xf32>
    %790 = arith.addf %786, %789 : vector<8x96xf32>
    %791 = vector.shape_cast %790 : vector<8x96xf32> to vector<1x8x96xf32>
    %792 = vector.extract_strided_slice %791 {offsets = [0, 0, 0], sizes = [1, 8, 32], strides = [1, 1, 1]} : vector<1x8x96xf32> to vector<1x8x32xf32>
    %793 = vector.extract_strided_slice %791 {offsets = [0, 0, 32], sizes = [1, 8, 32], strides = [1, 1, 1]} : vector<1x8x96xf32> to vector<1x8x32xf32>
    %794 = vector.extract_strided_slice %791 {offsets = [0, 0, 64], sizes = [1, 8, 32], strides = [1, 1, 1]} : vector<1x8x96xf32> to vector<1x8x32xf32>
    %795 = vector.extract_strided_slice %792 {offsets = [0, 0, 0], sizes = [1, 8, 8], strides = [1, 1, 1]} : vector<1x8x32xf32> to vector<1x8x8xf32>
    %796 = vector.extract_strided_slice %793 {offsets = [0, 0, 0], sizes = [1, 8, 8], strides = [1, 1, 1]} : vector<1x8x32xf32> to vector<1x8x8xf32>
    "tpu.trace_start"() <{level = 10 : i32, message = "bqd,bkd->bqk"}> : () -> ()
    %cst_443 = arith.constant dense<0.000000e+00> : vector<1x8x8xf32>
    %797 = tpu.matmul %795, %796, %cst_443 {dimension_numbers = #tpu.dot_dimension_numbers<[2], [2], [1], [1], [0, 0, 0, 1, 1, 1], [0], [0]>} : vector<1x8x8xf32>, vector<1x8x8xf32>, vector<1x8x8xf32> -> vector<1x8x8xf32>
    "tpu.trace_stop"() : () -> ()
    %cst_444 = arith.constant 0.353553385 : f32
    %798 = vector.broadcast %cst_444 : f32 to vector<1x8x8xf32>
    %799 = arith.mulf %797, %798 : vector<1x8x8xf32>
    %800 = vector.broadcast %61 : vector<1x1x8xf32> to vector<1x8x8xf32>
    %801 = arith.addf %799, %800 : vector<1x8x8xf32>
    %cst_445 = arith.constant dense<0xFF800000> : vector<1x8xf32>
    %802 = vector.multi_reduction <maximumf>, %801, %cst_445 [2] : vector<1x8x8xf32> to vector<1x8xf32>
    %803 = vector.shape_cast %802 : vector<1x8xf32> to vector<1x8x1xf32>
    %804 = vector.broadcast %803 : vector<1x8x1xf32> to vector<1x8x8xf32>
    %805 = arith.subf %801, %804 : vector<1x8x8xf32>
    %806 = math.exp %805 : vector<1x8x8xf32>
    %cst_446 = arith.constant dense<0.000000e+00> : vector<1x8xf32>
    %807 = vector.multi_reduction <add>, %806, %cst_446 [2] : vector<1x8x8xf32> to vector<1x8xf32>
    %808 = vector.shape_cast %807 : vector<1x8xf32> to vector<1x8x1xf32>
    %809 = tpu.reciprocal %808 {approx = true} : vector<1x8x1xf32> -> vector<1x8x1xf32>
    %810 = vector.broadcast %809 : vector<1x8x1xf32> to vector<1x8x8xf32>
    %811 = arith.mulf %806, %810 : vector<1x8x8xf32>
    %812 = vector.extract_strided_slice %794 {offsets = [0, 0, 0], sizes = [1, 8, 8], strides = [1, 1, 1]} : vector<1x8x32xf32> to vector<1x8x8xf32>
    "tpu.trace_start"() <{level = 10 : i32, message = "bqk,bkd->bqd"}> : () -> ()
    %cst_447 = arith.constant dense<0.000000e+00> : vector<1x8x8xf32>
    %813 = tpu.matmul %811, %812, %cst_447 {dimension_numbers = #tpu.dot_dimension_numbers<[2], [1], [1], [2], [0, 0, 0, 1, 1, 2], [0], [0]>} : vector<1x8x8xf32>, vector<1x8x8xf32>, vector<1x8x8xf32> -> vector<1x8x8xf32>
    "tpu.trace_stop"() : () -> ()
    %814 = vector.extract_strided_slice %792 {offsets = [0, 0, 8], sizes = [1, 8, 8], strides = [1, 1, 1]} : vector<1x8x32xf32> to vector<1x8x8xf32>
    %815 = vector.extract_strided_slice %793 {offsets = [0, 0, 8], sizes = [1, 8, 8], strides = [1, 1, 1]} : vector<1x8x32xf32> to vector<1x8x8xf32>
    "tpu.trace_start"() <{level = 10 : i32, message = "bqd,bkd->bqk"}> : () -> ()
    %cst_448 = arith.constant dense<0.000000e+00> : vector<1x8x8xf32>
    %816 = tpu.matmul %814, %815, %cst_448 {dimension_numbers = #tpu.dot_dimension_numbers<[2], [2], [1], [1], [0, 0, 0, 1, 1, 1], [0], [0]>} : vector<1x8x8xf32>, vector<1x8x8xf32>, vector<1x8x8xf32> -> vector<1x8x8xf32>
    "tpu.trace_stop"() : () -> ()
    %cst_449 = arith.constant 0.353553385 : f32
    %817 = vector.broadcast %cst_449 : f32 to vector<1x8x8xf32>
    %818 = arith.mulf %816, %817 : vector<1x8x8xf32>
    %819 = vector.broadcast %61 : vector<1x1x8xf32> to vector<1x8x8xf32>
    %820 = arith.addf %818, %819 : vector<1x8x8xf32>
    %cst_450 = arith.constant dense<0xFF800000> : vector<1x8xf32>
    %821 = vector.multi_reduction <maximumf>, %820, %cst_450 [2] : vector<1x8x8xf32> to vector<1x8xf32>
    %822 = vector.shape_cast %821 : vector<1x8xf32> to vector<1x8x1xf32>
    %823 = vector.broadcast %822 : vector<1x8x1xf32> to vector<1x8x8xf32>
    %824 = arith.subf %820, %823 : vector<1x8x8xf32>
    %825 = math.exp %824 : vector<1x8x8xf32>
    %cst_451 = arith.constant dense<0.000000e+00> : vector<1x8xf32>
    %826 = vector.multi_reduction <add>, %825, %cst_451 [2] : vector<1x8x8xf32> to vector<1x8xf32>
    %827 = vector.shape_cast %826 : vector<1x8xf32> to vector<1x8x1xf32>
    %828 = tpu.reciprocal %827 {approx = true} : vector<1x8x1xf32> -> vector<1x8x1xf32>
    %829 = vector.broadcast %828 : vector<1x8x1xf32> to vector<1x8x8xf32>
    %830 = arith.mulf %825, %829 : vector<1x8x8xf32>
    %831 = vector.extract_strided_slice %794 {offsets = [0, 0, 8], sizes = [1, 8, 8], strides = [1, 1, 1]} : vector<1x8x32xf32> to vector<1x8x8xf32>
    "tpu.trace_start"() <{level = 10 : i32, message = "bqk,bkd->bqd"}> : () -> ()
    %cst_452 = arith.constant dense<0.000000e+00> : vector<1x8x8xf32>
    %832 = tpu.matmul %830, %831, %cst_452 {dimension_numbers = #tpu.dot_dimension_numbers<[2], [1], [1], [2], [0, 0, 0, 1, 1, 2], [0], [0]>} : vector<1x8x8xf32>, vector<1x8x8xf32>, vector<1x8x8xf32> -> vector<1x8x8xf32>
    "tpu.trace_stop"() : () -> ()
    %833 = vector.extract_strided_slice %792 {offsets = [0, 0, 16], sizes = [1, 8, 8], strides = [1, 1, 1]} : vector<1x8x32xf32> to vector<1x8x8xf32>
    %834 = vector.extract_strided_slice %793 {offsets = [0, 0, 16], sizes = [1, 8, 8], strides = [1, 1, 1]} : vector<1x8x32xf32> to vector<1x8x8xf32>
    "tpu.trace_start"() <{level = 10 : i32, message = "bqd,bkd->bqk"}> : () -> ()
    %cst_453 = arith.constant dense<0.000000e+00> : vector<1x8x8xf32>
    %835 = tpu.matmul %833, %834, %cst_453 {dimension_numbers = #tpu.dot_dimension_numbers<[2], [2], [1], [1], [0, 0, 0, 1, 1, 1], [0], [0]>} : vector<1x8x8xf32>, vector<1x8x8xf32>, vector<1x8x8xf32> -> vector<1x8x8xf32>
    "tpu.trace_stop"() : () -> ()
    %cst_454 = arith.constant 0.353553385 : f32
    %836 = vector.broadcast %cst_454 : f32 to vector<1x8x8xf32>
    %837 = arith.mulf %835, %836 : vector<1x8x8xf32>
    %838 = vector.broadcast %61 : vector<1x1x8xf32> to vector<1x8x8xf32>
    %839 = arith.addf %837, %838 : vector<1x8x8xf32>
    %cst_455 = arith.constant dense<0xFF800000> : vector<1x8xf32>
    %840 = vector.multi_reduction <maximumf>, %839, %cst_455 [2] : vector<1x8x8xf32> to vector<1x8xf32>
    %841 = vector.shape_cast %840 : vector<1x8xf32> to vector<1x8x1xf32>
    %842 = vector.broadcast %841 : vector<1x8x1xf32> to vector<1x8x8xf32>
    %843 = arith.subf %839, %842 : vector<1x8x8xf32>
    %844 = math.exp %843 : vector<1x8x8xf32>
    %cst_456 = arith.constant dense<0.000000e+00> : vector<1x8xf32>
    %845 = vector.multi_reduction <add>, %844, %cst_456 [2] : vector<1x8x8xf32> to vector<1x8xf32>
    %846 = vector.shape_cast %845 : vector<1x8xf32> to vector<1x8x1xf32>
    %847 = tpu.reciprocal %846 {approx = true} : vector<1x8x1xf32> -> vector<1x8x1xf32>
    %848 = vector.broadcast %847 : vector<1x8x1xf32> to vector<1x8x8xf32>
    %849 = arith.mulf %844, %848 : vector<1x8x8xf32>
    %850 = vector.extract_strided_slice %794 {offsets = [0, 0, 16], sizes = [1, 8, 8], strides = [1, 1, 1]} : vector<1x8x32xf32> to vector<1x8x8xf32>
    "tpu.trace_start"() <{level = 10 : i32, message = "bqk,bkd->bqd"}> : () -> ()
    %cst_457 = arith.constant dense<0.000000e+00> : vector<1x8x8xf32>
    %851 = tpu.matmul %849, %850, %cst_457 {dimension_numbers = #tpu.dot_dimension_numbers<[2], [1], [1], [2], [0, 0, 0, 1, 1, 2], [0], [0]>} : vector<1x8x8xf32>, vector<1x8x8xf32>, vector<1x8x8xf32> -> vector<1x8x8xf32>
    "tpu.trace_stop"() : () -> ()
    %852 = vector.extract_strided_slice %792 {offsets = [0, 0, 24], sizes = [1, 8, 8], strides = [1, 1, 1]} : vector<1x8x32xf32> to vector<1x8x8xf32>
    %853 = vector.extract_strided_slice %793 {offsets = [0, 0, 24], sizes = [1, 8, 8], strides = [1, 1, 1]} : vector<1x8x32xf32> to vector<1x8x8xf32>
    "tpu.trace_start"() <{level = 10 : i32, message = "bqd,bkd->bqk"}> : () -> ()
    %cst_458 = arith.constant dense<0.000000e+00> : vector<1x8x8xf32>
    %854 = tpu.matmul %852, %853, %cst_458 {dimension_numbers = #tpu.dot_dimension_numbers<[2], [2], [1], [1], [0, 0, 0, 1, 1, 1], [0], [0]>} : vector<1x8x8xf32>, vector<1x8x8xf32>, vector<1x8x8xf32> -> vector<1x8x8xf32>
    "tpu.trace_stop"() : () -> ()
    %cst_459 = arith.constant 0.353553385 : f32
    %855 = vector.broadcast %cst_459 : f32 to vector<1x8x8xf32>
    %856 = arith.mulf %854, %855 : vector<1x8x8xf32>
    %857 = vector.broadcast %61 : vector<1x1x8xf32> to vector<1x8x8xf32>
    %858 = arith.addf %856, %857 : vector<1x8x8xf32>
    %cst_460 = arith.constant dense<0xFF800000> : vector<1x8xf32>
    %859 = vector.multi_reduction <maximumf>, %858, %cst_460 [2] : vector<1x8x8xf32> to vector<1x8xf32>
    %860 = vector.shape_cast %859 : vector<1x8xf32> to vector<1x8x1xf32>
    %861 = vector.broadcast %860 : vector<1x8x1xf32> to vector<1x8x8xf32>
    %862 = arith.subf %858, %861 : vector<1x8x8xf32>
    %863 = math.exp %862 : vector<1x8x8xf32>
    %cst_461 = arith.constant dense<0.000000e+00> : vector<1x8xf32>
    %864 = vector.multi_reduction <add>, %863, %cst_461 [2] : vector<1x8x8xf32> to vector<1x8xf32>
    %865 = vector.shape_cast %864 : vector<1x8xf32> to vector<1x8x1xf32>
    %866 = tpu.reciprocal %865 {approx = true} : vector<1x8x1xf32> -> vector<1x8x1xf32>
    %867 = vector.broadcast %866 : vector<1x8x1xf32> to vector<1x8x8xf32>
    %868 = arith.mulf %863, %867 : vector<1x8x8xf32>
    %869 = vector.extract_strided_slice %794 {offsets = [0, 0, 24], sizes = [1, 8, 8], strides = [1, 1, 1]} : vector<1x8x32xf32> to vector<1x8x8xf32>
    "tpu.trace_start"() <{level = 10 : i32, message = "bqk,bkd->bqd"}> : () -> ()
    %cst_462 = arith.constant dense<0.000000e+00> : vector<1x8x8xf32>
    %870 = tpu.matmul %868, %869, %cst_462 {dimension_numbers = #tpu.dot_dimension_numbers<[2], [1], [1], [2], [0, 0, 0, 1, 1, 2], [0], [0]>} : vector<1x8x8xf32>, vector<1x8x8xf32>, vector<1x8x8xf32> -> vector<1x8x8xf32>
    "tpu.trace_stop"() : () -> ()
    %871 = tpu.concatenate %813, %832, %851, %870 in 2 : vector<1x8x8xf32>, vector<1x8x8xf32>, vector<1x8x8xf32>, vector<1x8x8xf32> -> vector<1x8x32xf32>
    %872 = vector.shape_cast %871 : vector<1x8x32xf32> to vector<8x32xf32>
    %c1_463 = arith.constant 1 : index
    %c1_464 = arith.constant 1 : index
    %c0_465 = arith.constant 0 : index
    %c0_466 = arith.constant 0 : index
    %873 = vector.load %arg17[%c1_463, %c1_464, %c0_465, %c0_466] : memref<3x2x32x32xf32, #tpu.memory_space<vmem>>, vector<1x1x32x32xf32>
    %874 = vector.shape_cast %873 : vector<1x1x32x32xf32> to vector<32x32xf32>
    %cst_467 = arith.constant dense<0.000000e+00> : vector<8x32xf32>
    %875 = tpu.matmul %872, %874, %cst_467 {dimension_numbers = #tpu.dot_dimension_numbers<[1], [0], [0], [1], [0, 0, 1, 1], [], []>} : vector<8x32xf32>, vector<32x32xf32>, vector<8x32xf32> -> vector<8x32xf32>
    %c1_468 = arith.constant 1 : index
    %c1_469 = arith.constant 1 : index
    %c0_470 = arith.constant 0 : index
    %c0_471 = arith.constant 0 : index
    %876 = vector.load %arg18[%c1_468, %c1_469, %c0_470, %c0_471] : memref<3x2x1x32xf32, #tpu.memory_space<vmem>>, vector<1x1x1x32xf32>
    %877 = vector.shape_cast %876 : vector<1x1x1x32xf32> to vector<1x32xf32>
    %878 = vector.broadcast %877 : vector<1x32xf32> to vector<8x32xf32>
    %879 = arith.addf %875, %878 : vector<8x32xf32>
    %880 = arith.addf %783, %879 : vector<8x32xf32>
    %c1_472 = arith.constant 1 : index
    %c1_473 = arith.constant 1 : index
    %c0_474 = arith.constant 0 : index
    %c0_475 = arith.constant 0 : index
    %881 = vector.load %arg19[%c1_472, %c1_473, %c0_474, %c0_475] : memref<3x2x1x32xf32, #tpu.memory_space<vmem>>, vector<1x1x1x32xf32>
    %882 = vector.shape_cast %881 : vector<1x1x1x32xf32> to vector<1x32xf32>
    %c1_476 = arith.constant 1 : index
    %c1_477 = arith.constant 1 : index
    %c0_478 = arith.constant 0 : index
    %c0_479 = arith.constant 0 : index
    %883 = vector.load %arg20[%c1_476, %c1_477, %c0_478, %c0_479] : memref<3x2x1x32xf32, #tpu.memory_space<vmem>>, vector<1x1x1x32xf32>
    %884 = vector.shape_cast %883 : vector<1x1x1x32xf32> to vector<1x32xf32>
    %cst_480 = arith.constant dense<0.000000e+00> : vector<8xf32>
    %885 = vector.multi_reduction <add>, %880, %cst_480 [1] : vector<8x32xf32> to vector<8xf32>
    %886 = vector.shape_cast %885 : vector<8xf32> to vector<8x1xf32>
    %cst_481 = arith.constant 3.200000e+01 : f32
    %887 = vector.broadcast %cst_481 : f32 to vector<8x1xf32>
    %888 = arith.divf %886, %887 : vector<8x1xf32>
    %889 = vector.broadcast %888 : vector<8x1xf32> to vector<8x32xf32>
    %890 = arith.subf %880, %889 : vector<8x32xf32>
    %891 = arith.mulf %890, %890 : vector<8x32xf32>
    %cst_482 = arith.constant dense<0.000000e+00> : vector<8xf32>
    %892 = vector.multi_reduction <add>, %891, %cst_482 [1] : vector<8x32xf32> to vector<8xf32>
    %893 = vector.shape_cast %892 : vector<8xf32> to vector<8x1xf32>
    %cst_483 = arith.constant 3.200000e+01 : f32
    %894 = vector.broadcast %cst_483 : f32 to vector<8x1xf32>
    %895 = arith.divf %893, %894 : vector<8x1xf32>
    %896 = vector.broadcast %888 : vector<8x1xf32> to vector<8x32xf32>
    %897 = arith.subf %880, %896 : vector<8x32xf32>
    %cst_484 = arith.constant 9.99999974E-6 : f32
    %898 = vector.broadcast %cst_484 : f32 to vector<8x1xf32>
    %899 = arith.addf %895, %898 : vector<8x1xf32>
    %900 = math.rsqrt %899 : vector<8x1xf32>
    %901 = vector.broadcast %900 : vector<8x1xf32> to vector<8x32xf32>
    %902 = arith.mulf %897, %901 : vector<8x32xf32>
    %903 = vector.broadcast %882 : vector<1x32xf32> to vector<8x32xf32>
    %904 = arith.mulf %902, %903 : vector<8x32xf32>
    %905 = vector.broadcast %884 : vector<1x32xf32> to vector<8x32xf32>
    %906 = arith.addf %904, %905 : vector<8x32xf32>
    %c1_485 = arith.constant 1 : index
    %c1_486 = arith.constant 1 : index
    %c0_487 = arith.constant 0 : index
    %c0_488 = arith.constant 0 : index
    %907 = vector.load %arg23[%c1_485, %c1_486, %c0_487, %c0_488] : memref<3x2x32x64xf32, #tpu.memory_space<vmem>>, vector<1x1x32x64xf32>
    %908 = vector.shape_cast %907 : vector<1x1x32x64xf32> to vector<32x64xf32>
    %cst_489 = arith.constant dense<0.000000e+00> : vector<8x64xf32>
    %909 = tpu.matmul %906, %908, %cst_489 {dimension_numbers = #tpu.dot_dimension_numbers<[1], [0], [0], [1], [0, 0, 1, 1], [], []>} : vector<8x32xf32>, vector<32x64xf32>, vector<8x64xf32> -> vector<8x64xf32>
    %c1_490 = arith.constant 1 : index
    %c1_491 = arith.constant 1 : index
    %c0_492 = arith.constant 0 : index
    %c0_493 = arith.constant 0 : index
    %910 = vector.load %arg24[%c1_490, %c1_491, %c0_492, %c0_493] : memref<3x2x1x64xf32, #tpu.memory_space<vmem>>, vector<1x1x1x64xf32>
    %911 = vector.shape_cast %910 : vector<1x1x1x64xf32> to vector<1x64xf32>
    %912 = vector.broadcast %911 : vector<1x64xf32> to vector<8x64xf32>
    %913 = arith.addf %909, %912 : vector<8x64xf32>
    %cst_494 = arith.constant 0.000000e+00 : f32
    %914 = vector.broadcast %cst_494 : f32 to vector<8x64xf32>
    %915 = arith.maximumf %913, %914 : vector<8x64xf32>
    %c1_495 = arith.constant 1 : index
    %c1_496 = arith.constant 1 : index
    %c0_497 = arith.constant 0 : index
    %c0_498 = arith.constant 0 : index
    %916 = vector.load %arg25[%c1_495, %c1_496, %c0_497, %c0_498] : memref<3x2x64x32xf32, #tpu.memory_space<vmem>>, vector<1x1x64x32xf32>
    %917 = vector.shape_cast %916 : vector<1x1x64x32xf32> to vector<64x32xf32>
    %cst_499 = arith.constant dense<0.000000e+00> : vector<8x32xf32>
    %918 = tpu.matmul %915, %917, %cst_499 {dimension_numbers = #tpu.dot_dimension_numbers<[1], [0], [0], [1], [0, 0, 1, 1], [], []>} : vector<8x64xf32>, vector<64x32xf32>, vector<8x32xf32> -> vector<8x32xf32>
    %c1_500 = arith.constant 1 : index
    %c1_501 = arith.constant 1 : index
    %c0_502 = arith.constant 0 : index
    %c0_503 = arith.constant 0 : index
    %919 = vector.load %arg26[%c1_500, %c1_501, %c0_502, %c0_503] : memref<3x2x1x32xf32, #tpu.memory_space<vmem>>, vector<1x1x1x32xf32>
    %920 = vector.shape_cast %919 : vector<1x1x1x32xf32> to vector<1x32xf32>
    %921 = vector.broadcast %920 : vector<1x32xf32> to vector<8x32xf32>
    %922 = arith.addf %918, %921 : vector<8x32xf32>
    %923 = arith.addf %906, %922 : vector<8x32xf32>
    %c1_504 = arith.constant 1 : index
    %c1_505 = arith.constant 1 : index
    %c0_506 = arith.constant 0 : index
    %c0_507 = arith.constant 0 : index
    %924 = vector.load %arg21[%c1_504, %c1_505, %c0_506, %c0_507] : memref<3x2x1x32xf32, #tpu.memory_space<vmem>>, vector<1x1x1x32xf32>
    %925 = vector.shape_cast %924 : vector<1x1x1x32xf32> to vector<1x32xf32>
    %c1_508 = arith.constant 1 : index
    %c1_509 = arith.constant 1 : index
    %c0_510 = arith.constant 0 : index
    %c0_511 = arith.constant 0 : index
    %926 = vector.load %arg22[%c1_508, %c1_509, %c0_510, %c0_511] : memref<3x2x1x32xf32, #tpu.memory_space<vmem>>, vector<1x1x1x32xf32>
    %927 = vector.shape_cast %926 : vector<1x1x1x32xf32> to vector<1x32xf32>
    %cst_512 = arith.constant dense<0.000000e+00> : vector<8xf32>
    %928 = vector.multi_reduction <add>, %923, %cst_512 [1] : vector<8x32xf32> to vector<8xf32>
    %929 = vector.shape_cast %928 : vector<8xf32> to vector<8x1xf32>
    %cst_513 = arith.constant 3.200000e+01 : f32
    %930 = vector.broadcast %cst_513 : f32 to vector<8x1xf32>
    %931 = arith.divf %929, %930 : vector<8x1xf32>
    %932 = vector.broadcast %931 : vector<8x1xf32> to vector<8x32xf32>
    %933 = arith.subf %923, %932 : vector<8x32xf32>
    %934 = arith.mulf %933, %933 : vector<8x32xf32>
    %cst_514 = arith.constant dense<0.000000e+00> : vector<8xf32>
    %935 = vector.multi_reduction <add>, %934, %cst_514 [1] : vector<8x32xf32> to vector<8xf32>
    %936 = vector.shape_cast %935 : vector<8xf32> to vector<8x1xf32>
    %cst_515 = arith.constant 3.200000e+01 : f32
    %937 = vector.broadcast %cst_515 : f32 to vector<8x1xf32>
    %938 = arith.divf %936, %937 : vector<8x1xf32>
    %939 = vector.broadcast %931 : vector<8x1xf32> to vector<8x32xf32>
    %940 = arith.subf %923, %939 : vector<8x32xf32>
    %cst_516 = arith.constant 9.99999974E-6 : f32
    %941 = vector.broadcast %cst_516 : f32 to vector<8x1xf32>
    %942 = arith.addf %938, %941 : vector<8x1xf32>
    %943 = math.rsqrt %942 : vector<8x1xf32>
    %944 = vector.broadcast %943 : vector<8x1xf32> to vector<8x32xf32>
    %945 = arith.mulf %940, %944 : vector<8x32xf32>
    %946 = vector.broadcast %925 : vector<1x32xf32> to vector<8x32xf32>
    %947 = arith.mulf %945, %946 : vector<8x32xf32>
    %948 = vector.broadcast %927 : vector<1x32xf32> to vector<8x32xf32>
    %949 = arith.addf %947, %948 : vector<8x32xf32>
    %950 = vector.shape_cast %949 : vector<8x32xf32> to vector<1x8x32xf32>
    %951 = vector.extract_strided_slice %950 {offsets = [0, 0, 0], sizes = [1, 2, 32], strides = [1, 1, 1]} : vector<1x8x32xf32> to vector<1x2x32xf32>
    %c0_517 = arith.constant 0 : index
    %c0_518 = arith.constant 0 : index
    %c0_519 = arith.constant 0 : index
    %952 = vector.load %arg32[%c0_517, %c0_518, %c0_519] : memref<1x8x32xf32, #tpu.memory_space<vmem>>, vector<1x8x32xf32>
    %953 = vector.shape_cast %952 : vector<1x8x32xf32> to vector<8x32xf32>
    %c2_520 = arith.constant 2 : index
    %c1_521 = arith.constant 1 : index
    %c0_522 = arith.constant 0 : index
    %c0_523 = arith.constant 0 : index
    %954 = vector.load %arg15[%c2_520, %c1_521, %c0_522, %c0_523] : memref<3x2x32x96xf32, #tpu.memory_space<vmem>>, vector<1x1x32x96xf32>
    %955 = vector.shape_cast %954 : vector<1x1x32x96xf32> to vector<32x96xf32>
    %cst_524 = arith.constant dense<0.000000e+00> : vector<8x96xf32>
    %956 = tpu.matmul %953, %955, %cst_524 {dimension_numbers = #tpu.dot_dimension_numbers<[1], [0], [0], [1], [0, 0, 1, 1], [], []>} : vector<8x32xf32>, vector<32x96xf32>, vector<8x96xf32> -> vector<8x96xf32>
    %c2_525 = arith.constant 2 : index
    %c1_526 = arith.constant 1 : index
    %c0_527 = arith.constant 0 : index
    %c0_528 = arith.constant 0 : index
    %957 = vector.load %arg16[%c2_525, %c1_526, %c0_527, %c0_528] : memref<3x2x1x96xf32, #tpu.memory_space<vmem>>, vector<1x1x1x96xf32>
    %958 = vector.shape_cast %957 : vector<1x1x1x96xf32> to vector<1x96xf32>
    %959 = vector.broadcast %958 : vector<1x96xf32> to vector<8x96xf32>
    %960 = arith.addf %956, %959 : vector<8x96xf32>
    %961 = vector.shape_cast %960 : vector<8x96xf32> to vector<1x8x96xf32>
    %962 = vector.extract_strided_slice %961 {offsets = [0, 0, 0], sizes = [1, 8, 32], strides = [1, 1, 1]} : vector<1x8x96xf32> to vector<1x8x32xf32>
    %963 = vector.extract_strided_slice %961 {offsets = [0, 0, 32], sizes = [1, 8, 32], strides = [1, 1, 1]} : vector<1x8x96xf32> to vector<1x8x32xf32>
    %964 = vector.extract_strided_slice %961 {offsets = [0, 0, 64], sizes = [1, 8, 32], strides = [1, 1, 1]} : vector<1x8x96xf32> to vector<1x8x32xf32>
    %965 = vector.extract_strided_slice %962 {offsets = [0, 0, 0], sizes = [1, 8, 8], strides = [1, 1, 1]} : vector<1x8x32xf32> to vector<1x8x8xf32>
    %966 = vector.extract_strided_slice %963 {offsets = [0, 0, 0], sizes = [1, 8, 8], strides = [1, 1, 1]} : vector<1x8x32xf32> to vector<1x8x8xf32>
    "tpu.trace_start"() <{level = 10 : i32, message = "bqd,bkd->bqk"}> : () -> ()
    %cst_529 = arith.constant dense<0.000000e+00> : vector<1x8x8xf32>
    %967 = tpu.matmul %965, %966, %cst_529 {dimension_numbers = #tpu.dot_dimension_numbers<[2], [2], [1], [1], [0, 0, 0, 1, 1, 1], [0], [0]>} : vector<1x8x8xf32>, vector<1x8x8xf32>, vector<1x8x8xf32> -> vector<1x8x8xf32>
    "tpu.trace_stop"() : () -> ()
    %cst_530 = arith.constant 0.353553385 : f32
    %968 = vector.broadcast %cst_530 : f32 to vector<1x8x8xf32>
    %969 = arith.mulf %967, %968 : vector<1x8x8xf32>
    %970 = vector.broadcast %67 : vector<1x1x8xf32> to vector<1x8x8xf32>
    %971 = arith.addf %969, %970 : vector<1x8x8xf32>
    %cst_531 = arith.constant dense<0xFF800000> : vector<1x8xf32>
    %972 = vector.multi_reduction <maximumf>, %971, %cst_531 [2] : vector<1x8x8xf32> to vector<1x8xf32>
    %973 = vector.shape_cast %972 : vector<1x8xf32> to vector<1x8x1xf32>
    %974 = vector.broadcast %973 : vector<1x8x1xf32> to vector<1x8x8xf32>
    %975 = arith.subf %971, %974 : vector<1x8x8xf32>
    %976 = math.exp %975 : vector<1x8x8xf32>
    %cst_532 = arith.constant dense<0.000000e+00> : vector<1x8xf32>
    %977 = vector.multi_reduction <add>, %976, %cst_532 [2] : vector<1x8x8xf32> to vector<1x8xf32>
    %978 = vector.shape_cast %977 : vector<1x8xf32> to vector<1x8x1xf32>
    %979 = tpu.reciprocal %978 {approx = true} : vector<1x8x1xf32> -> vector<1x8x1xf32>
    %980 = vector.broadcast %979 : vector<1x8x1xf32> to vector<1x8x8xf32>
    %981 = arith.mulf %976, %980 : vector<1x8x8xf32>
    %982 = vector.extract_strided_slice %964 {offsets = [0, 0, 0], sizes = [1, 8, 8], strides = [1, 1, 1]} : vector<1x8x32xf32> to vector<1x8x8xf32>
    "tpu.trace_start"() <{level = 10 : i32, message = "bqk,bkd->bqd"}> : () -> ()
    %cst_533 = arith.constant dense<0.000000e+00> : vector<1x8x8xf32>
    %983 = tpu.matmul %981, %982, %cst_533 {dimension_numbers = #tpu.dot_dimension_numbers<[2], [1], [1], [2], [0, 0, 0, 1, 1, 2], [0], [0]>} : vector<1x8x8xf32>, vector<1x8x8xf32>, vector<1x8x8xf32> -> vector<1x8x8xf32>
    "tpu.trace_stop"() : () -> ()
    %984 = vector.extract_strided_slice %962 {offsets = [0, 0, 8], sizes = [1, 8, 8], strides = [1, 1, 1]} : vector<1x8x32xf32> to vector<1x8x8xf32>
    %985 = vector.extract_strided_slice %963 {offsets = [0, 0, 8], sizes = [1, 8, 8], strides = [1, 1, 1]} : vector<1x8x32xf32> to vector<1x8x8xf32>
    "tpu.trace_start"() <{level = 10 : i32, message = "bqd,bkd->bqk"}> : () -> ()
    %cst_534 = arith.constant dense<0.000000e+00> : vector<1x8x8xf32>
    %986 = tpu.matmul %984, %985, %cst_534 {dimension_numbers = #tpu.dot_dimension_numbers<[2], [2], [1], [1], [0, 0, 0, 1, 1, 1], [0], [0]>} : vector<1x8x8xf32>, vector<1x8x8xf32>, vector<1x8x8xf32> -> vector<1x8x8xf32>
    "tpu.trace_stop"() : () -> ()
    %cst_535 = arith.constant 0.353553385 : f32
    %987 = vector.broadcast %cst_535 : f32 to vector<1x8x8xf32>
    %988 = arith.mulf %986, %987 : vector<1x8x8xf32>
    %989 = vector.broadcast %67 : vector<1x1x8xf32> to vector<1x8x8xf32>
    %990 = arith.addf %988, %989 : vector<1x8x8xf32>
    %cst_536 = arith.constant dense<0xFF800000> : vector<1x8xf32>
    %991 = vector.multi_reduction <maximumf>, %990, %cst_536 [2] : vector<1x8x8xf32> to vector<1x8xf32>
    %992 = vector.shape_cast %991 : vector<1x8xf32> to vector<1x8x1xf32>
    %993 = vector.broadcast %992 : vector<1x8x1xf32> to vector<1x8x8xf32>
    %994 = arith.subf %990, %993 : vector<1x8x8xf32>
    %995 = math.exp %994 : vector<1x8x8xf32>
    %cst_537 = arith.constant dense<0.000000e+00> : vector<1x8xf32>
    %996 = vector.multi_reduction <add>, %995, %cst_537 [2] : vector<1x8x8xf32> to vector<1x8xf32>
    %997 = vector.shape_cast %996 : vector<1x8xf32> to vector<1x8x1xf32>
    %998 = tpu.reciprocal %997 {approx = true} : vector<1x8x1xf32> -> vector<1x8x1xf32>
    %999 = vector.broadcast %998 : vector<1x8x1xf32> to vector<1x8x8xf32>
    %1000 = arith.mulf %995, %999 : vector<1x8x8xf32>
    %1001 = vector.extract_strided_slice %964 {offsets = [0, 0, 8], sizes = [1, 8, 8], strides = [1, 1, 1]} : vector<1x8x32xf32> to vector<1x8x8xf32>
    "tpu.trace_start"() <{level = 10 : i32, message = "bqk,bkd->bqd"}> : () -> ()
    %cst_538 = arith.constant dense<0.000000e+00> : vector<1x8x8xf32>
    %1002 = tpu.matmul %1000, %1001, %cst_538 {dimension_numbers = #tpu.dot_dimension_numbers<[2], [1], [1], [2], [0, 0, 0, 1, 1, 2], [0], [0]>} : vector<1x8x8xf32>, vector<1x8x8xf32>, vector<1x8x8xf32> -> vector<1x8x8xf32>
    "tpu.trace_stop"() : () -> ()
    %1003 = vector.extract_strided_slice %962 {offsets = [0, 0, 16], sizes = [1, 8, 8], strides = [1, 1, 1]} : vector<1x8x32xf32> to vector<1x8x8xf32>
    %1004 = vector.extract_strided_slice %963 {offsets = [0, 0, 16], sizes = [1, 8, 8], strides = [1, 1, 1]} : vector<1x8x32xf32> to vector<1x8x8xf32>
    "tpu.trace_start"() <{level = 10 : i32, message = "bqd,bkd->bqk"}> : () -> ()
    %cst_539 = arith.constant dense<0.000000e+00> : vector<1x8x8xf32>
    %1005 = tpu.matmul %1003, %1004, %cst_539 {dimension_numbers = #tpu.dot_dimension_numbers<[2], [2], [1], [1], [0, 0, 0, 1, 1, 1], [0], [0]>} : vector<1x8x8xf32>, vector<1x8x8xf32>, vector<1x8x8xf32> -> vector<1x8x8xf32>
    "tpu.trace_stop"() : () -> ()
    %cst_540 = arith.constant 0.353553385 : f32
    %1006 = vector.broadcast %cst_540 : f32 to vector<1x8x8xf32>
    %1007 = arith.mulf %1005, %1006 : vector<1x8x8xf32>
    %1008 = vector.broadcast %67 : vector<1x1x8xf32> to vector<1x8x8xf32>
    %1009 = arith.addf %1007, %1008 : vector<1x8x8xf32>
    %cst_541 = arith.constant dense<0xFF800000> : vector<1x8xf32>
    %1010 = vector.multi_reduction <maximumf>, %1009, %cst_541 [2] : vector<1x8x8xf32> to vector<1x8xf32>
    %1011 = vector.shape_cast %1010 : vector<1x8xf32> to vector<1x8x1xf32>
    %1012 = vector.broadcast %1011 : vector<1x8x1xf32> to vector<1x8x8xf32>
    %1013 = arith.subf %1009, %1012 : vector<1x8x8xf32>
    %1014 = math.exp %1013 : vector<1x8x8xf32>
    %cst_542 = arith.constant dense<0.000000e+00> : vector<1x8xf32>
    %1015 = vector.multi_reduction <add>, %1014, %cst_542 [2] : vector<1x8x8xf32> to vector<1x8xf32>
    %1016 = vector.shape_cast %1015 : vector<1x8xf32> to vector<1x8x1xf32>
    %1017 = tpu.reciprocal %1016 {approx = true} : vector<1x8x1xf32> -> vector<1x8x1xf32>
    %1018 = vector.broadcast %1017 : vector<1x8x1xf32> to vector<1x8x8xf32>
    %1019 = arith.mulf %1014, %1018 : vector<1x8x8xf32>
    %1020 = vector.extract_strided_slice %964 {offsets = [0, 0, 16], sizes = [1, 8, 8], strides = [1, 1, 1]} : vector<1x8x32xf32> to vector<1x8x8xf32>
    "tpu.trace_start"() <{level = 10 : i32, message = "bqk,bkd->bqd"}> : () -> ()
    %cst_543 = arith.constant dense<0.000000e+00> : vector<1x8x8xf32>
    %1021 = tpu.matmul %1019, %1020, %cst_543 {dimension_numbers = #tpu.dot_dimension_numbers<[2], [1], [1], [2], [0, 0, 0, 1, 1, 2], [0], [0]>} : vector<1x8x8xf32>, vector<1x8x8xf32>, vector<1x8x8xf32> -> vector<1x8x8xf32>
    "tpu.trace_stop"() : () -> ()
    %1022 = vector.extract_strided_slice %962 {offsets = [0, 0, 24], sizes = [1, 8, 8], strides = [1, 1, 1]} : vector<1x8x32xf32> to vector<1x8x8xf32>
    %1023 = vector.extract_strided_slice %963 {offsets = [0, 0, 24], sizes = [1, 8, 8], strides = [1, 1, 1]} : vector<1x8x32xf32> to vector<1x8x8xf32>
    "tpu.trace_start"() <{level = 10 : i32, message = "bqd,bkd->bqk"}> : () -> ()
    %cst_544 = arith.constant dense<0.000000e+00> : vector<1x8x8xf32>
    %1024 = tpu.matmul %1022, %1023, %cst_544 {dimension_numbers = #tpu.dot_dimension_numbers<[2], [2], [1], [1], [0, 0, 0, 1, 1, 1], [0], [0]>} : vector<1x8x8xf32>, vector<1x8x8xf32>, vector<1x8x8xf32> -> vector<1x8x8xf32>
    "tpu.trace_stop"() : () -> ()
    %cst_545 = arith.constant 0.353553385 : f32
    %1025 = vector.broadcast %cst_545 : f32 to vector<1x8x8xf32>
    %1026 = arith.mulf %1024, %1025 : vector<1x8x8xf32>
    %1027 = vector.broadcast %67 : vector<1x1x8xf32> to vector<1x8x8xf32>
    %1028 = arith.addf %1026, %1027 : vector<1x8x8xf32>
    %cst_546 = arith.constant dense<0xFF800000> : vector<1x8xf32>
    %1029 = vector.multi_reduction <maximumf>, %1028, %cst_546 [2] : vector<1x8x8xf32> to vector<1x8xf32>
    %1030 = vector.shape_cast %1029 : vector<1x8xf32> to vector<1x8x1xf32>
    %1031 = vector.broadcast %1030 : vector<1x8x1xf32> to vector<1x8x8xf32>
    %1032 = arith.subf %1028, %1031 : vector<1x8x8xf32>
    %1033 = math.exp %1032 : vector<1x8x8xf32>
    %cst_547 = arith.constant dense<0.000000e+00> : vector<1x8xf32>
    %1034 = vector.multi_reduction <add>, %1033, %cst_547 [2] : vector<1x8x8xf32> to vector<1x8xf32>
    %1035 = vector.shape_cast %1034 : vector<1x8xf32> to vector<1x8x1xf32>
    %1036 = tpu.reciprocal %1035 {approx = true} : vector<1x8x1xf32> -> vector<1x8x1xf32>
    %1037 = vector.broadcast %1036 : vector<1x8x1xf32> to vector<1x8x8xf32>
    %1038 = arith.mulf %1033, %1037 : vector<1x8x8xf32>
    %1039 = vector.extract_strided_slice %964 {offsets = [0, 0, 24], sizes = [1, 8, 8], strides = [1, 1, 1]} : vector<1x8x32xf32> to vector<1x8x8xf32>
    "tpu.trace_start"() <{level = 10 : i32, message = "bqk,bkd->bqd"}> : () -> ()
    %cst_548 = arith.constant dense<0.000000e+00> : vector<1x8x8xf32>
    %1040 = tpu.matmul %1038, %1039, %cst_548 {dimension_numbers = #tpu.dot_dimension_numbers<[2], [1], [1], [2], [0, 0, 0, 1, 1, 2], [0], [0]>} : vector<1x8x8xf32>, vector<1x8x8xf32>, vector<1x8x8xf32> -> vector<1x8x8xf32>
    "tpu.trace_stop"() : () -> ()
    %1041 = tpu.concatenate %983, %1002, %1021, %1040 in 2 : vector<1x8x8xf32>, vector<1x8x8xf32>, vector<1x8x8xf32>, vector<1x8x8xf32> -> vector<1x8x32xf32>
    %1042 = vector.shape_cast %1041 : vector<1x8x32xf32> to vector<8x32xf32>
    %c2_549 = arith.constant 2 : index
    %c1_550 = arith.constant 1 : index
    %c0_551 = arith.constant 0 : index
    %c0_552 = arith.constant 0 : index
    %1043 = vector.load %arg17[%c2_549, %c1_550, %c0_551, %c0_552] : memref<3x2x32x32xf32, #tpu.memory_space<vmem>>, vector<1x1x32x32xf32>
    %1044 = vector.shape_cast %1043 : vector<1x1x32x32xf32> to vector<32x32xf32>
    %cst_553 = arith.constant dense<0.000000e+00> : vector<8x32xf32>
    %1045 = tpu.matmul %1042, %1044, %cst_553 {dimension_numbers = #tpu.dot_dimension_numbers<[1], [0], [0], [1], [0, 0, 1, 1], [], []>} : vector<8x32xf32>, vector<32x32xf32>, vector<8x32xf32> -> vector<8x32xf32>
    %c2_554 = arith.constant 2 : index
    %c1_555 = arith.constant 1 : index
    %c0_556 = arith.constant 0 : index
    %c0_557 = arith.constant 0 : index
    %1046 = vector.load %arg18[%c2_554, %c1_555, %c0_556, %c0_557] : memref<3x2x1x32xf32, #tpu.memory_space<vmem>>, vector<1x1x1x32xf32>
    %1047 = vector.shape_cast %1046 : vector<1x1x1x32xf32> to vector<1x32xf32>
    %1048 = vector.broadcast %1047 : vector<1x32xf32> to vector<8x32xf32>
    %1049 = arith.addf %1045, %1048 : vector<8x32xf32>
    %1050 = arith.addf %953, %1049 : vector<8x32xf32>
    %c2_558 = arith.constant 2 : index
    %c1_559 = arith.constant 1 : index
    %c0_560 = arith.constant 0 : index
    %c0_561 = arith.constant 0 : index
    %1051 = vector.load %arg19[%c2_558, %c1_559, %c0_560, %c0_561] : memref<3x2x1x32xf32, #tpu.memory_space<vmem>>, vector<1x1x1x32xf32>
    %1052 = vector.shape_cast %1051 : vector<1x1x1x32xf32> to vector<1x32xf32>
    %c2_562 = arith.constant 2 : index
    %c1_563 = arith.constant 1 : index
    %c0_564 = arith.constant 0 : index
    %c0_565 = arith.constant 0 : index
    %1053 = vector.load %arg20[%c2_562, %c1_563, %c0_564, %c0_565] : memref<3x2x1x32xf32, #tpu.memory_space<vmem>>, vector<1x1x1x32xf32>
    %1054 = vector.shape_cast %1053 : vector<1x1x1x32xf32> to vector<1x32xf32>
    %cst_566 = arith.constant dense<0.000000e+00> : vector<8xf32>
    %1055 = vector.multi_reduction <add>, %1050, %cst_566 [1] : vector<8x32xf32> to vector<8xf32>
    %1056 = vector.shape_cast %1055 : vector<8xf32> to vector<8x1xf32>
    %cst_567 = arith.constant 3.200000e+01 : f32
    %1057 = vector.broadcast %cst_567 : f32 to vector<8x1xf32>
    %1058 = arith.divf %1056, %1057 : vector<8x1xf32>
    %1059 = vector.broadcast %1058 : vector<8x1xf32> to vector<8x32xf32>
    %1060 = arith.subf %1050, %1059 : vector<8x32xf32>
    %1061 = arith.mulf %1060, %1060 : vector<8x32xf32>
    %cst_568 = arith.constant dense<0.000000e+00> : vector<8xf32>
    %1062 = vector.multi_reduction <add>, %1061, %cst_568 [1] : vector<8x32xf32> to vector<8xf32>
    %1063 = vector.shape_cast %1062 : vector<8xf32> to vector<8x1xf32>
    %cst_569 = arith.constant 3.200000e+01 : f32
    %1064 = vector.broadcast %cst_569 : f32 to vector<8x1xf32>
    %1065 = arith.divf %1063, %1064 : vector<8x1xf32>
    %1066 = vector.broadcast %1058 : vector<8x1xf32> to vector<8x32xf32>
    %1067 = arith.subf %1050, %1066 : vector<8x32xf32>
    %cst_570 = arith.constant 9.99999974E-6 : f32
    %1068 = vector.broadcast %cst_570 : f32 to vector<8x1xf32>
    %1069 = arith.addf %1065, %1068 : vector<8x1xf32>
    %1070 = math.rsqrt %1069 : vector<8x1xf32>
    %1071 = vector.broadcast %1070 : vector<8x1xf32> to vector<8x32xf32>
    %1072 = arith.mulf %1067, %1071 : vector<8x32xf32>
    %1073 = vector.broadcast %1052 : vector<1x32xf32> to vector<8x32xf32>
    %1074 = arith.mulf %1072, %1073 : vector<8x32xf32>
    %1075 = vector.broadcast %1054 : vector<1x32xf32> to vector<8x32xf32>
    %1076 = arith.addf %1074, %1075 : vector<8x32xf32>
    %c2_571 = arith.constant 2 : index
    %c1_572 = arith.constant 1 : index
    %c0_573 = arith.constant 0 : index
    %c0_574 = arith.constant 0 : index
    %1077 = vector.load %arg23[%c2_571, %c1_572, %c0_573, %c0_574] : memref<3x2x32x64xf32, #tpu.memory_space<vmem>>, vector<1x1x32x64xf32>
    %1078 = vector.shape_cast %1077 : vector<1x1x32x64xf32> to vector<32x64xf32>
    %cst_575 = arith.constant dense<0.000000e+00> : vector<8x64xf32>
    %1079 = tpu.matmul %1076, %1078, %cst_575 {dimension_numbers = #tpu.dot_dimension_numbers<[1], [0], [0], [1], [0, 0, 1, 1], [], []>} : vector<8x32xf32>, vector<32x64xf32>, vector<8x64xf32> -> vector<8x64xf32>
    %c2_576 = arith.constant 2 : index
    %c1_577 = arith.constant 1 : index
    %c0_578 = arith.constant 0 : index
    %c0_579 = arith.constant 0 : index
    %1080 = vector.load %arg24[%c2_576, %c1_577, %c0_578, %c0_579] : memref<3x2x1x64xf32, #tpu.memory_space<vmem>>, vector<1x1x1x64xf32>
    %1081 = vector.shape_cast %1080 : vector<1x1x1x64xf32> to vector<1x64xf32>
    %1082 = vector.broadcast %1081 : vector<1x64xf32> to vector<8x64xf32>
    %1083 = arith.addf %1079, %1082 : vector<8x64xf32>
    %cst_580 = arith.constant 0.000000e+00 : f32
    %1084 = vector.broadcast %cst_580 : f32 to vector<8x64xf32>
    %1085 = arith.maximumf %1083, %1084 : vector<8x64xf32>
    %c2_581 = arith.constant 2 : index
    %c1_582 = arith.constant 1 : index
    %c0_583 = arith.constant 0 : index
    %c0_584 = arith.constant 0 : index
    %1086 = vector.load %arg25[%c2_581, %c1_582, %c0_583, %c0_584] : memref<3x2x64x32xf32, #tpu.memory_space<vmem>>, vector<1x1x64x32xf32>
    %1087 = vector.shape_cast %1086 : vector<1x1x64x32xf32> to vector<64x32xf32>
    %cst_585 = arith.constant dense<0.000000e+00> : vector<8x32xf32>
    %1088 = tpu.matmul %1085, %1087, %cst_585 {dimension_numbers = #tpu.dot_dimension_numbers<[1], [0], [0], [1], [0, 0, 1, 1], [], []>} : vector<8x64xf32>, vector<64x32xf32>, vector<8x32xf32> -> vector<8x32xf32>
    %c2_586 = arith.constant 2 : index
    %c1_587 = arith.constant 1 : index
    %c0_588 = arith.constant 0 : index
    %c0_589 = arith.constant 0 : index
    %1089 = vector.load %arg26[%c2_586, %c1_587, %c0_588, %c0_589] : memref<3x2x1x32xf32, #tpu.memory_space<vmem>>, vector<1x1x1x32xf32>
    %1090 = vector.shape_cast %1089 : vector<1x1x1x32xf32> to vector<1x32xf32>
    %1091 = vector.broadcast %1090 : vector<1x32xf32> to vector<8x32xf32>
    %1092 = arith.addf %1088, %1091 : vector<8x32xf32>
    %1093 = arith.addf %1076, %1092 : vector<8x32xf32>
    %c2_590 = arith.constant 2 : index
    %c1_591 = arith.constant 1 : index
    %c0_592 = arith.constant 0 : index
    %c0_593 = arith.constant 0 : index
    %1094 = vector.load %arg21[%c2_590, %c1_591, %c0_592, %c0_593] : memref<3x2x1x32xf32, #tpu.memory_space<vmem>>, vector<1x1x1x32xf32>
    %1095 = vector.shape_cast %1094 : vector<1x1x1x32xf32> to vector<1x32xf32>
    %c2_594 = arith.constant 2 : index
    %c1_595 = arith.constant 1 : index
    %c0_596 = arith.constant 0 : index
    %c0_597 = arith.constant 0 : index
    %1096 = vector.load %arg22[%c2_594, %c1_595, %c0_596, %c0_597] : memref<3x2x1x32xf32, #tpu.memory_space<vmem>>, vector<1x1x1x32xf32>
    %1097 = vector.shape_cast %1096 : vector<1x1x1x32xf32> to vector<1x32xf32>
    %cst_598 = arith.constant dense<0.000000e+00> : vector<8xf32>
    %1098 = vector.multi_reduction <add>, %1093, %cst_598 [1] : vector<8x32xf32> to vector<8xf32>
    %1099 = vector.shape_cast %1098 : vector<8xf32> to vector<8x1xf32>
    %cst_599 = arith.constant 3.200000e+01 : f32
    %1100 = vector.broadcast %cst_599 : f32 to vector<8x1xf32>
    %1101 = arith.divf %1099, %1100 : vector<8x1xf32>
    %1102 = vector.broadcast %1101 : vector<8x1xf32> to vector<8x32xf32>
    %1103 = arith.subf %1093, %1102 : vector<8x32xf32>
    %1104 = arith.mulf %1103, %1103 : vector<8x32xf32>
    %cst_600 = arith.constant dense<0.000000e+00> : vector<8xf32>
    %1105 = vector.multi_reduction <add>, %1104, %cst_600 [1] : vector<8x32xf32> to vector<8xf32>
    %1106 = vector.shape_cast %1105 : vector<8xf32> to vector<8x1xf32>
    %cst_601 = arith.constant 3.200000e+01 : f32
    %1107 = vector.broadcast %cst_601 : f32 to vector<8x1xf32>
    %1108 = arith.divf %1106, %1107 : vector<8x1xf32>
    %1109 = vector.broadcast %1101 : vector<8x1xf32> to vector<8x32xf32>
    %1110 = arith.subf %1093, %1109 : vector<8x32xf32>
    %cst_602 = arith.constant 9.99999974E-6 : f32
    %1111 = vector.broadcast %cst_602 : f32 to vector<8x1xf32>
    %1112 = arith.addf %1108, %1111 : vector<8x1xf32>
    %1113 = math.rsqrt %1112 : vector<8x1xf32>
    %1114 = vector.broadcast %1113 : vector<8x1xf32> to vector<8x32xf32>
    %1115 = arith.mulf %1110, %1114 : vector<8x32xf32>
    %1116 = vector.broadcast %1095 : vector<1x32xf32> to vector<8x32xf32>
    %1117 = arith.mulf %1115, %1116 : vector<8x32xf32>
    %1118 = vector.broadcast %1097 : vector<1x32xf32> to vector<8x32xf32>
    %1119 = arith.addf %1117, %1118 : vector<8x32xf32>
    %1120 = vector.shape_cast %1119 : vector<8x32xf32> to vector<1x8x32xf32>
    %1121 = vector.extract_strided_slice %1120 {offsets = [0, 0, 0], sizes = [1, 2, 32], strides = [1, 1, 1]} : vector<1x8x32xf32> to vector<1x2x32xf32>
    %1122 = vector.shape_cast %77 : vector<1x1xf32> to vector<1x1x1xf32>
    %1123 = vector.broadcast %1122 : vector<1x1x1xf32> to vector<1x2x32xf32>
    %1124 = arith.mulf %1123, %781 : vector<1x2x32xf32>
    %1125 = vector.shape_cast %79 : vector<1x1xf32> to vector<1x1x1xf32>
    %1126 = vector.broadcast %1125 : vector<1x1x1xf32> to vector<1x2x32xf32>
    %1127 = arith.mulf %1126, %951 : vector<1x2x32xf32>
    %1128 = arith.addf %1124, %1127 : vector<1x2x32xf32>
    %1129 = vector.shape_cast %81 : vector<1x1xf32> to vector<1x1x1xf32>
    %1130 = vector.broadcast %1129 : vector<1x1x1xf32> to vector<1x2x32xf32>
    %1131 = arith.mulf %1130, %1121 : vector<1x2x32xf32>
    %1132 = arith.addf %1128, %1131 : vector<1x2x32xf32>
    %1133 = vector.extract_strided_slice %1132 {offsets = [0, 0, 0], sizes = [1, 1, 32], strides = [1, 1, 1]} : vector<1x2x32xf32> to vector<1x1x32xf32>
    %1134 = vector.shape_cast %1133 : vector<1x1x32xf32> to vector<1x32xf32>
    %c0_603 = arith.constant 0 : index
    %c0_604 = arith.constant 0 : index
    %1135 = vector.load %arg27[%c0_603, %c0_604] : memref<32x128xf32, #tpu.memory_space<vmem>>, vector<32x128xf32>
    %cst_605 = arith.constant dense<0.000000e+00> : vector<1x128xf32>
    %1136 = tpu.matmul %1134, %1135, %cst_605 {dimension_numbers = #tpu.dot_dimension_numbers<[1], [0], [0], [1], [0, 0, 1, 1], [], []>} : vector<1x32xf32>, vector<32x128xf32>, vector<1x128xf32> -> vector<1x128xf32>
    %c0_606 = arith.constant 0 : index
    %c0_607 = arith.constant 0 : index
    %1137 = vector.load %arg28[%c0_606, %c0_607] : memref<1x128xf32, #tpu.memory_space<vmem>>, vector<1x128xf32>
    %1138 = arith.addf %1136, %1137 : vector<1x128xf32>
    %1139 = vector.shape_cast %1138 : vector<1x128xf32> to vector<1x1x128xf32>
    %c0_608 = arith.constant 0 : index
    %c0_609 = arith.constant 0 : index
    %c0_610 = arith.constant 0 : index
    %1140 = vector.load %arg29[%c0_608, %c0_609, %c0_610] : memref<1x1x128xf32, #tpu.memory_space<vmem>>, vector<1x1x128xf32>
    tpu.vector_store %arg29[%c0_608, %c0_609, %c0_610], %1139 {strides = array<i32>} : memref<1x1x128xf32, #tpu.memory_space<vmem>>, vector<1x1x128xf32>,
    return
  }
  func.func @transform_0(%arg0: i32) -> (i32, i32, i32) {
    %c0_i32 = arith.constant 0 : i32
    %c0_i32_0 = arith.constant 0 : i32
    %c0_i32_1 = arith.constant 0 : i32
    return %arg0, %c0_i32, %c0_i32_0 : i32, i32, i32
  }
  func.func @transform_1(%arg0: i32) -> (i32, i32, i32) {
    %c0_i32 = arith.constant 0 : i32
    %c0_i32_0 = arith.constant 0 : i32
    %c0_i32_1 = arith.constant 0 : i32
    return %arg0, %c0_i32, %c0_i32_0 : i32, i32, i32
  }
  func.func @transform_2(%arg0: i32) -> (i32, i32, i32) {
    %c0_i32 = arith.constant 0 : i32
    %c0_i32_0 = arith.constant 0 : i32
    %c0_i32_1 = arith.constant 0 : i32
    return %arg0, %c0_i32, %c0_i32_0 : i32, i32, i32
  }
  func.func @transform_3(%arg0: i32) -> (i32, i32) {
    %c0_i32 = arith.constant 0 : i32
    %c0_i32_0 = arith.constant 0 : i32
    %c0_i32_1 = arith.constant 0 : i32
    return %c0_i32, %c0_i32_0 : i32, i32
  }
  func.func @transform_4(%arg0: i32) -> (i32, i32) {
    %c0_i32 = arith.constant 0 : i32
    %c0_i32_0 = arith.constant 0 : i32
    %c0_i32_1 = arith.constant 0 : i32
    return %c0_i32, %c0_i32_0 : i32, i32
  }
  func.func @transform_5(%arg0: i32) -> (i32, i32) {
    %c0_i32 = arith.constant 0 : i32
    %c0_i32_0 = arith.constant 0 : i32
    %c0_i32_1 = arith.constant 0 : i32
    return %c0_i32, %c0_i32_0 : i32, i32
  }
  func.func @transform_6(%arg0: i32) -> (i32, i32) {
    %c0_i32 = arith.constant 0 : i32
    %c0_i32_0 = arith.constant 0 : i32
    %c0_i32_1 = arith.constant 0 : i32
    return %c0_i32, %c0_i32_0 : i32, i32
  }
  func.func @transform_7(%arg0: i32) -> (i32, i32, i32) {
    %c0_i32 = arith.constant 0 : i32
    %c0_i32_0 = arith.constant 0 : i32
    %c0_i32_1 = arith.constant 0 : i32
    %c0_i32_2 = arith.constant 0 : i32
    return %c0_i32, %c0_i32_0, %c0_i32_1 : i32, i32, i32
  }
  func.func @transform_8(%arg0: i32) -> (i32, i32, i32) {
    %c0_i32 = arith.constant 0 : i32
    %c0_i32_0 = arith.constant 0 : i32
    %c0_i32_1 = arith.constant 0 : i32
    %c0_i32_2 = arith.constant 0 : i32
    return %c0_i32, %c0_i32_0, %c0_i32_1 : i32, i32, i32
  }
  func.func @transform_9(%arg0: i32) -> (i32, i32, i32) {
    %c0_i32 = arith.constant 0 : i32
    %c0_i32_0 = arith.constant 0 : i32
    %c0_i32_1 = arith.constant 0 : i32
    %c0_i32_2 = arith.constant 0 : i32
    return %c0_i32, %c0_i32_0, %c0_i32_1 : i32, i32, i32
  }
  func.func @transform_10(%arg0: i32) -> (i32, i32, i32) {
    %c0_i32 = arith.constant 0 : i32
    %c0_i32_0 = arith.constant 0 : i32
    %c0_i32_1 = arith.constant 0 : i32
    %c0_i32_2 = arith.constant 0 : i32
    return %c0_i32, %c0_i32_0, %c0_i32_1 : i32, i32, i32
  }
  func.func @transform_11(%arg0: i32) -> (i32, i32, i32) {
    %c0_i32 = arith.constant 0 : i32
    %c0_i32_0 = arith.constant 0 : i32
    %c0_i32_1 = arith.constant 0 : i32
    %c0_i32_2 = arith.constant 0 : i32
    return %c0_i32, %c0_i32_0, %c0_i32_1 : i32, i32, i32
  }
  func.func @transform_12(%arg0: i32) -> (i32, i32, i32) {
    %c0_i32 = arith.constant 0 : i32
    %c0_i32_0 = arith.constant 0 : i32
    %c0_i32_1 = arith.constant 0 : i32
    %c0_i32_2 = arith.constant 0 : i32
    return %c0_i32, %c0_i32_0, %c0_i32_1 : i32, i32, i32
  }
  func.func @transform_13(%arg0: i32) -> (i32, i32) {
    %c0_i32 = arith.constant 0 : i32
    %c0_i32_0 = arith.constant 0 : i32
    %c0_i32_1 = arith.constant 0 : i32
    return %c0_i32, %c0_i32_0 : i32, i32
  }
  func.func @transform_14(%arg0: i32) -> (i32, i32, i32, i32) {
    %c0_i32 = arith.constant 0 : i32
    %c0_i32_0 = arith.constant 0 : i32
    %c0_i32_1 = arith.constant 0 : i32
    %c0_i32_2 = arith.constant 0 : i32
    %c0_i32_3 = arith.constant 0 : i32
    return %c0_i32, %c0_i32_0, %c0_i32_1, %c0_i32_2 : i32, i32, i32, i32
  }
  func.func @transform_15(%arg0: i32) -> (i32, i32, i32, i32) {
    %c0_i32 = arith.constant 0 : i32
    %c0_i32_0 = arith.constant 0 : i32
    %c0_i32_1 = arith.constant 0 : i32
    %c0_i32_2 = arith.constant 0 : i32
    %c0_i32_3 = arith.constant 0 : i32
    return %c0_i32, %c0_i32_0, %c0_i32_1, %c0_i32_2 : i32, i32, i32, i32
  }
  func.func @transform_16(%arg0: i32) -> (i32, i32, i32, i32) {
    %c0_i32 = arith.constant 0 : i32
    %c0_i32_0 = arith.constant 0 : i32
    %c0_i32_1 = arith.constant 0 : i32
    %c0_i32_2 = arith.constant 0 : i32
    %c0_i32_3 = arith.constant 0 : i32
    return %c0_i32, %c0_i32_0, %c0_i32_1, %c0_i32_2 : i32, i32, i32, i32
  }
  func.func @transform_17(%arg0: i32) -> (i32, i32, i32, i32) {
    %c0_i32 = arith.constant 0 : i32
    %c0_i32_0 = arith.constant 0 : i32
    %c0_i32_1 = arith.constant 0 : i32
    %c0_i32_2 = arith.constant 0 : i32
    %c0_i32_3 = arith.constant 0 : i32
    return %c0_i32, %c0_i32_0, %c0_i32_1, %c0_i32_2 : i32, i32, i32, i32
  }
  func.func @transform_18(%arg0: i32) -> (i32, i32, i32, i32) {
    %c0_i32 = arith.constant 0 : i32
    %c0_i32_0 = arith.constant 0 : i32
    %c0_i32_1 = arith.constant 0 : i32
    %c0_i32_2 = arith.constant 0 : i32
    %c0_i32_3 = arith.constant 0 : i32
    return %c0_i32, %c0_i32_0, %c0_i32_1, %c0_i32_2 : i32, i32, i32, i32
  }
  func.func @transform_19(%arg0: i32) -> (i32, i32, i32, i32) {
    %c0_i32 = arith.constant 0 : i32
    %c0_i32_0 = arith.constant 0 : i32
    %c0_i32_1 = arith.constant 0 : i32
    %c0_i32_2 = arith.constant 0 : i32
    %c0_i32_3 = arith.constant 0 : i32
    return %c0_i32, %c0_i32_0, %c0_i32_1, %c0_i32_2 : i32, i32, i32, i32
  }
  func.func @transform_20(%arg0: i32) -> (i32, i32, i32, i32) {
    %c0_i32 = arith.constant 0 : i32
    %c0_i32_0 = arith.constant 0 : i32
    %c0_i32_1 = arith.constant 0 : i32
    %c0_i32_2 = arith.constant 0 : i32
    %c0_i32_3 = arith.constant 0 : i32
    return %c0_i32, %c0_i32_0, %c0_i32_1, %c0_i32_2 : i32, i32, i32, i32
  }
  func.func @transform_21(%arg0: i32) -> (i32, i32, i32, i32) {
    %c0_i32 = arith.constant 0 : i32
    %c0_i32_0 = arith.constant 0 : i32
    %c0_i32_1 = arith.constant 0 : i32
    %c0_i32_2 = arith.constant 0 : i32
    %c0_i32_3 = arith.constant 0 : i32
    return %c0_i32, %c0_i32_0, %c0_i32_1, %c0_i32_2 : i32, i32, i32, i32
  }
  func.func @transform_22(%arg0: i32) -> (i32, i32, i32, i32) {
    %c0_i32 = arith.constant 0 : i32
    %c0_i32_0 = arith.constant 0 : i32
    %c0_i32_1 = arith.constant 0 : i32
    %c0_i32_2 = arith.constant 0 : i32
    %c0_i32_3 = arith.constant 0 : i32
    return %c0_i32, %c0_i32_0, %c0_i32_1, %c0_i32_2 : i32, i32, i32, i32
  }
  func.func @transform_23(%arg0: i32) -> (i32, i32, i32, i32) {
    %c0_i32 = arith.constant 0 : i32
    %c0_i32_0 = arith.constant 0 : i32
    %c0_i32_1 = arith.constant 0 : i32
    %c0_i32_2 = arith.constant 0 : i32
    %c0_i32_3 = arith.constant 0 : i32
    return %c0_i32, %c0_i32_0, %c0_i32_1, %c0_i32_2 : i32, i32, i32, i32
  }
  func.func @transform_24(%arg0: i32) -> (i32, i32, i32, i32) {
    %c0_i32 = arith.constant 0 : i32
    %c0_i32_0 = arith.constant 0 : i32
    %c0_i32_1 = arith.constant 0 : i32
    %c0_i32_2 = arith.constant 0 : i32
    %c0_i32_3 = arith.constant 0 : i32
    return %c0_i32, %c0_i32_0, %c0_i32_1, %c0_i32_2 : i32, i32, i32, i32
  }
  func.func @transform_25(%arg0: i32) -> (i32, i32, i32, i32) {
    %c0_i32 = arith.constant 0 : i32
    %c0_i32_0 = arith.constant 0 : i32
    %c0_i32_1 = arith.constant 0 : i32
    %c0_i32_2 = arith.constant 0 : i32
    %c0_i32_3 = arith.constant 0 : i32
    return %c0_i32, %c0_i32_0, %c0_i32_1, %c0_i32_2 : i32, i32, i32, i32
  }
  func.func @transform_26(%arg0: i32) -> (i32, i32) {
    %c0_i32 = arith.constant 0 : i32
    %c0_i32_0 = arith.constant 0 : i32
    %c0_i32_1 = arith.constant 0 : i32
    return %c0_i32, %c0_i32_0 : i32, i32
  }
  func.func @transform_27(%arg0: i32) -> (i32, i32) {
    %c0_i32 = arith.constant 0 : i32
    %c0_i32_0 = arith.constant 0 : i32
    %c0_i32_1 = arith.constant 0 : i32
    return %c0_i32, %c0_i32_0 : i32, i32
  }
  func.func @transform_28(%arg0: i32) -> (i32, i32, i32) {
    %c0_i32 = arith.constant 0 : i32
    %c0_i32_0 = arith.constant 0 : i32
    %c0_i32_1 = arith.constant 0 : i32
    return %arg0, %c0_i32, %c0_i32_0 : i32, i32, i32
  }
}

</mosaic_0001>

<llo_original>
// kernel: forward.1
$region0: #{forward.1}
  #allocation0 [shape = 'u32[]', space=smem, size = 0x4, offset = 0x4, fixed_abs, tag = 'smem constant byte address 0x4 - core index']
  #allocation1 [shape = 'u32[144,128]{1,0:T(1,128)}', space=vmem, size = 0x12000, scoped, tag = 'internal scratch']
  #allocation2 [shape = 'f32[1,16,32]{2,1,0:T(8,128)}', space=vmem, size = 0x2000, scoped, tag = 'scratch operand']
  #allocation3 [shape = 'f32[1,8,32]{2,1,0:T(8,128)}', space=vmem, size = 0x1000, scoped, tag = 'scratch operand']
  #allocation4 [shape = 'f32[1,8,32]{2,1,0:T(8,128)}', space=vmem, size = 0x1000, scoped, tag = 'scratch operand']
  %s0 = inlined_call_operand.vmem [shape: f32[2,8,48], index: 0, kind: input, shape index: {}]
  %s1 = inlined_call_operand.vmem [shape: f32[2,4,24], index: 1, kind: input, shape index: {}]
  %s2 = inlined_call_operand.vmem [shape: f32[2,3,32], index: 2, kind: input, shape index: {}]
  %s3 = inlined_call_operand.vmem [shape: f32[48,32], index: 3, kind: input, shape index: {}]
  %s4 = inlined_call_operand.vmem [shape: f32[1,32], index: 4, kind: input, shape index: {}]
  %s5 = inlined_call_operand.vmem [shape: f32[24,32], index: 5, kind: input, shape index: {}]
  %s6 = inlined_call_operand.vmem [shape: f32[1,32], index: 6, kind: input, shape index: {}]
  %s7 = inlined_call_operand.vmem [shape: f32[1,8,32], index: 7, kind: input, shape index: {}]
  %s8 = inlined_call_operand.vmem [shape: f32[1,4,32], index: 8, kind: input, shape index: {}]
  %s9 = inlined_call_operand.vmem [shape: f32[1,3,32], index: 9, kind: input, shape index: {}]
  %s10 = inlined_call_operand.vmem [shape: f32[1,2,32], index: 10, kind: input, shape index: {}]
  %s11 = inlined_call_operand.vmem [shape: f32[1,2,32], index: 11, kind: input, shape index: {}]
  %s12 = inlined_call_operand.vmem [shape: f32[1,2,32], index: 12, kind: input, shape index: {}]
  %s13 = inlined_call_operand.vmem [shape: f32[1,3], index: 13, kind: input, shape index: {}]
  %s14 = inlined_call_operand.vmem [shape: f32[3,2,32,96], index: 14, kind: input, shape index: {}]
  %s15 = inlined_call_operand.vmem [shape: f32[3,2,1,96], index: 15, kind: input, shape index: {}]
  %s16 = inlined_call_operand.vmem [shape: f32[3,2,32,32], index: 16, kind: input, shape index: {}]
  %s17 = inlined_call_operand.vmem [shape: f32[3,2,1,32], index: 17, kind: input, shape index: {}]
  %s18 = inlined_call_operand.vmem [shape: f32[3,2,1,32], index: 18, kind: input, shape index: {}]
  %s19 = inlined_call_operand.vmem [shape: f32[3,2,1,32], index: 19, kind: input, shape index: {}]
  %s20 = inlined_call_operand.vmem [shape: f32[3,2,1,32], index: 20, kind: input, shape index: {}]
  %s21 = inlined_call_operand.vmem [shape: f32[3,2,1,32], index: 21, kind: input, shape index: {}]
  %s22 = inlined_call_operand.vmem [shape: f32[3,2,32,64], index: 22, kind: input, shape index: {}]
  %s23 = inlined_call_operand.vmem [shape: f32[3,2,1,64], index: 23, kind: input, shape index: {}]
  %s24 = inlined_call_operand.vmem [shape: f32[3,2,64,32], index: 24, kind: input, shape index: {}]
  %s25 = inlined_call_operand.vmem [shape: f32[3,2,1,32], index: 25, kind: input, shape index: {}]
  %s26 = inlined_call_operand.vmem [shape: f32[32,128], index: 26, kind: input, shape index: {}]
  %s27 = inlined_call_operand.vmem [shape: f32[1,128], index: 27, kind: input, shape index: {}]
  %s28 = inlined_call_operand.vmem [shape: f32[2,1,128], index: 28, kind: output, shape index: {}]
  %s29 = sld [smem:[#allocation0]]
  $region145: #{forward.1} parent=0
    _
  %s31 = ssub.s32 1, %s29
  %s32 = scalar_select 0, %s31, %s29
  loop: start=0, step=1, limit=4
  $region2: #{forward.1} parent=0 // loop_pre_header
    _
  $region3: #{forward.1} parent=0 // loop_header
    %s34 = sphi 0, %s38
    %p35 = scmp.ge.s32.totalorder %s34, 4
    %s44 = sphi 0, %s46
    %s47 = sphi 0, %s44
    %s48 = sphi 0, %s47
    %s64 = sphi 0, %s48
    %s70 = sphi 0, %s72
    %s73 = sphi 0, %s70
    %s74 = sphi 0, %s73
    %s90 = sphi 0, %s74
    %s96 = sphi 0, %s98
    %s99 = sphi 0, %s96
    %s100 = sphi 0, %s99
    %s116 = sphi 0, %s100
    %s120 = sphi 0, %s120
    %s122 = sphi 0, %s120
    %s123 = sphi 0, %s122
    %s137 = sphi 0, %s123
    %s141 = sphi 0, %s141
    %s143 = sphi 0, %s141
    %s144 = sphi 0, %s143
    %s158 = sphi 0, %s144
    %s162 = sphi 0, %s162
    %s164 = sphi 0, %s162
    %s165 = sphi 0, %s164
    %s179 = sphi 0, %s165
    %s183 = sphi 0, %s183
    %s185 = sphi 0, %s183
    %s186 = sphi 0, %s185
    %s200 = sphi 0, %s186
    %s204 = sphi 0, %s204
    %s206 = sphi 0, %s204
    %s207 = sphi 0, %s206
    %s221 = sphi 0, %s207
    %s225 = sphi 0, %s225
    %s227 = sphi 0, %s225
    %s228 = sphi 0, %s227
    %s242 = sphi 0, %s228
    %s246 = sphi 0, %s246
    %s248 = sphi 0, %s246
    %s249 = sphi 0, %s248
    %s263 = sphi 0, %s249
    %s267 = sphi 0, %s267
    %s269 = sphi 0, %s267
    %s270 = sphi 0, %s269
    %s284 = sphi 0, %s270
    %s288 = sphi 0, %s288
    %s290 = sphi 0, %s288
    %s291 = sphi 0, %s290
    %s305 = sphi 0, %s291
    %s309 = sphi 0, %s309
    %s311 = sphi 0, %s309
    %s312 = sphi 0, %s311
    %s326 = sphi 0, %s312
    %s330 = sphi 0, %s330
    %s332 = sphi 0, %s330
    %s333 = sphi 0, %s332
    %s347 = sphi 0, %s333
    %s351 = sphi 0, %s351
    %s353 = sphi 0, %s351
    %s354 = sphi 0, %s353
    %s368 = sphi 0, %s354
    %s372 = sphi 0, %s372
    %s374 = sphi 0, %s372
    %s375 = sphi 0, %s374
    %s389 = sphi 0, %s375
    %s393 = sphi 0, %s393
    %s395 = sphi 0, %s393
    %s396 = sphi 0, %s395
    %s410 = sphi 0, %s396
    %s414 = sphi 0, %s414
    %s416 = sphi 0, %s414
    %s417 = sphi 0, %s416
    %s431 = sphi 0, %s417
    %s435 = sphi 0, %s435
    %s437 = sphi 0, %s435
    %s438 = sphi 0, %s437
    %s452 = sphi 0, %s438
    %s456 = sphi 0, %s456
    %s458 = sphi 0, %s456
    %s459 = sphi 0, %s458
    %s473 = sphi 0, %s459
    %s477 = sphi 0, %s477
    %s479 = sphi 0, %s477
    %s480 = sphi 0, %s479
    %s494 = sphi 0, %s480
    %s498 = sphi 0, %s498
    %s500 = sphi 0, %s498
    %s501 = sphi 0, %s500
    %s515 = sphi 0, %s501
    %s519 = sphi 0, %s519
    %s521 = sphi 0, %s519
    %s522 = sphi 0, %s521
    %s536 = sphi 0, %s522
    %s540 = sphi 0, %s540
    %s542 = sphi 0, %s540
    %s543 = sphi 0, %s542
    %s557 = sphi 0, %s543
    %s561 = sphi 0, %s561
    %s563 = sphi 0, %s561
    %s564 = sphi 0, %s563
    %s578 = sphi 0, %s564
    %s582 = sphi 0, %s582
    %s584 = sphi 0, %s582
    %s585 = sphi 0, %s584
    %s599 = sphi 0, %s585
    %s603 = sphi 0, %s603
    %s605 = sphi 0, %s603
    %s606 = sphi 0, %s605
    %s620 = sphi 0, %s606
    %s624 = sphi 0, %s624
    %s626 = sphi 0, %s624
    %s627 = sphi 0, %s626
    %s641 = sphi 0, %s627
    %s647 = sphi 0, %s649
    %s650 = sphi 0, %s647
    %s651 = sphi 0, %s650
    %s667 = sphi 0, %s651
  $region4: #{forward.1} parent=0 // loop_header_branch
    %37 = sbr.rel (%p35) target = $region8
  $region5: #{forward.1} parent=0 // loop_body
    %s39 = ssub.s32 %s34, 1
    %s40 = ssub.s32 %s34, 2
    %s41 = sadd.s32 %s34, 1
    %s42 = ssub.s32 %s34, %s41
    %p43 = scmp.eq.s32.totalorder %s42, 0
    %s45 = sadd.s32 %s44, 1
    %s46 = scalar_select %p43, %s44, %s45
    %p49 = pneg %p43
    %p50 = scmp.eq.s32.totalorder %s34, 1
    %p51 = por %p49, %p50
    %p52 = scmp.ne.s32.totalorder %s44, %s47
    %p53 = scmp.eq.s32.totalorder %s34, 0
    %p54 = por %p52, %p53
    %p55 = scmp.ne.s32.totalorder %s44, %s47
    %p56 = scmp.eq.s32.totalorder %s39, 1
    %p57 = por %p55, %p56
    %p58 = scmp.ne.s32.totalorder %s47, %s48
    %p59 = scmp.eq.s32.totalorder %s39, 0
    %p60 = por %p58, %p59
    %p61 = scmp.ne.s32.totalorder %s47, %s48
    %p62 = scmp.eq.s32.totalorder %s40, 1
    %p63 = por %p61, %p62
    %p65 = scmp.ne.s32.totalorder %s48, %s64
    %p66 = scmp.eq.s32.totalorder %s40, 0
    %p67 = por %p65, %p66
    %s68 = ssub.s32 %s34, %s41
    %p69 = scmp.eq.s32.totalorder %s68, 0
    %s71 = sadd.s32 %s70, 1
    %s72 = scalar_select %p69, %s70, %s71
    %p75 = pneg %p69
    %p76 = scmp.eq.s32.totalorder %s34, 1
    %p77 = por %p75, %p76
    %p78 = scmp.ne.s32.totalorder %s70, %s73
    %p79 = scmp.eq.s32.totalorder %s34, 0
    %p80 = por %p78, %p79
    %p81 = scmp.ne.s32.totalorder %s70, %s73
    %p82 = scmp.eq.s32.totalorder %s39, 1
    %p83 = por %p81, %p82
    %p84 = scmp.ne.s32.totalorder %s73, %s74
    %p85 = scmp.eq.s32.totalorder %s39, 0
    %p86 = por %p84, %p85
    %p87 = scmp.ne.s32.totalorder %s73, %s74
    %p88 = scmp.eq.s32.totalorder %s40, 1
    %p89 = por %p87, %p88
    %p91 = scmp.ne.s32.totalorder %s74, %s90
    %p92 = scmp.eq.s32.totalorder %s40, 0
    %p93 = por %p91, %p92
    %s94 = ssub.s32 %s34, %s41
    %p95 = scmp.eq.s32.totalorder %s94, 0
    %s97 = sadd.s32 %s96, 1
    %s98 = scalar_select %p95, %s96, %s97
    %p101 = pneg %p95
    %p102 = scmp.eq.s32.totalorder %s34, 1
    %p103 = por %p101, %p102
    %p104 = scmp.ne.s32.totalorder %s96, %s99
    %p105 = scmp.eq.s32.totalorder %s34, 0
    %p106 = por %p104, %p105
    %p107 = scmp.ne.s32.totalorder %s96, %s99
    %p108 = scmp.eq.s32.totalorder %s39, 1
    %p109 = por %p107, %p108
    %p110 = scmp.ne.s32.totalorder %s99, %s100
    %p111 = scmp.eq.s32.totalorder %s39, 0
    %p112 = por %p110, %p111
    %p113 = scmp.ne.s32.totalorder %s99, %s100
    %p114 = scmp.eq.s32.totalorder %s40, 1
    %p115 = por %p113, %p114
    %p117 = scmp.ne.s32.totalorder %s100, %s116
    %p118 = scmp.eq.s32.totalorder %s40, 0
    %p119 = por %p117, %p118
    %s121 = sadd.s32 %s120, 1
    %p124 = scmp.eq.s32.totalorder %s34, 1
    %p125 = scmp.ne.s32.totalorder %s120, %s122
    %p126 = scmp.eq.s32.totalorder %s34, 0
    %p127 = por %p125, %p126
    %p128 = scmp.ne.s32.totalorder %s120, %s122
    %p129 = scmp.eq.s32.totalorder %s39, 1
    %p130 = por %p128, %p129
    %p131 = scmp.ne.s32.totalorder %s122, %s123
    %p132 = scmp.eq.s32.totalorder %s39, 0
    %p133 = por %p131, %p132
    %p134 = scmp.ne.s32.totalorder %s122, %s123
    %p135 = scmp.eq.s32.totalorder %s40, 1
    %p136 = por %p134, %p135
    %p138 = scmp.ne.s32.totalorder %s123, %s137
    %p139 = scmp.eq.s32.totalorder %s40, 0
    %p140 = por %p138, %p139
    %s142 = sadd.s32 %s141, 1
    %p145 = scmp.eq.s32.totalorder %s34, 1
    %p146 = scmp.ne.s32.totalorder %s141, %s143
    %p147 = scmp.eq.s32.totalorder %s34, 0
    %p148 = por %p146, %p147
    %p149 = scmp.ne.s32.totalorder %s141, %s143
    %p150 = scmp.eq.s32.totalorder %s39, 1
    %p151 = por %p149, %p150
    %p152 = scmp.ne.s32.totalorder %s143, %s144
    %p153 = scmp.eq.s32.totalorder %s39, 0
    %p154 = por %p152, %p153
    %p155 = scmp.ne.s32.totalorder %s143, %s144
    %p156 = scmp.eq.s32.totalorder %s40, 1
    %p157 = por %p155, %p156
    %p159 = scmp.ne.s32.totalorder %s144, %s158
    %p160 = scmp.eq.s32.totalorder %s40, 0
    %p161 = por %p159, %p160
    %s163 = sadd.s32 %s162, 1
    %p166 = scmp.eq.s32.totalorder %s34, 1
    %p167 = scmp.ne.s32.totalorder %s162, %s164
    %p168 = scmp.eq.s32.totalorder %s34, 0
    %p169 = por %p167, %p168
    %p170 = scmp.ne.s32.totalorder %s162, %s164
    %p171 = scmp.eq.s32.totalorder %s39, 1
    %p172 = por %p170, %p171
    %p173 = scmp.ne.s32.totalorder %s164, %s165
    %p174 = scmp.eq.s32.totalorder %s39, 0
    %p175 = por %p173, %p174
    %p176 = scmp.ne.s32.totalorder %s164, %s165
    %p177 = scmp.eq.s32.totalorder %s40, 1
    %p178 = por %p176, %p177
    %p180 = scmp.ne.s32.totalorder %s165, %s179
    %p181 = scmp.eq.s32.totalorder %s40, 0
    %p182 = por %p180, %p181
    %s184 = sadd.s32 %s183, 1
    %p187 = scmp.eq.s32.totalorder %s34, 1
    %p188 = scmp.ne.s32.totalorder %s183, %s185
    %p189 = scmp.eq.s32.totalorder %s34, 0
    %p190 = por %p188, %p189
    %p191 = scmp.ne.s32.totalorder %s183, %s185
    %p192 = scmp.eq.s32.totalorder %s39, 1
    %p193 = por %p191, %p192
    %p194 = scmp.ne.s32.totalorder %s185, %s186
    %p195 = scmp.eq.s32.totalorder %s39, 0
    %p196 = por %p194, %p195
    %p197 = scmp.ne.s32.totalorder %s185, %s186
    %p198 = scmp.eq.s32.totalorder %s40, 1
    %p199 = por %p197, %p198
    %p201 = scmp.ne.s32.totalorder %s186, %s200
    %p202 = scmp.eq.s32.totalorder %s40, 0
    %p203 = por %p201, %p202
    %s205 = sadd.s32 %s204, 1
    %p208 = scmp.eq.s32.totalorder %s34, 1
    %p209 = scmp.ne.s32.totalorder %s204, %s206
    %p210 = scmp.eq.s32.totalorder %s34, 0
    %p211 = por %p209, %p210
    %p212 = scmp.ne.s32.totalorder %s204, %s206
    %p213 = scmp.eq.s32.totalorder %s39, 1
    %p214 = por %p212, %p213
    %p215 = scmp.ne.s32.totalorder %s206, %s207
    %p216 = scmp.eq.s32.totalorder %s39, 0
    %p217 = por %p215, %p216
    %p218 = scmp.ne.s32.totalorder %s206, %s207
    %p219 = scmp.eq.s32.totalorder %s40, 1
    %p220 = por %p218, %p219
    %p222 = scmp.ne.s32.totalorder %s207, %s221
    %p223 = scmp.eq.s32.totalorder %s40, 0
    %p224 = por %p222, %p223
    %s226 = sadd.s32 %s225, 1
    %p229 = scmp.eq.s32.totalorder %s34, 1
    %p230 = scmp.ne.s32.totalorder %s225, %s227
    %p231 = scmp.eq.s32.totalorder %s34, 0
    %p232 = por %p230, %p231
    %p233 = scmp.ne.s32.totalorder %s225, %s227
    %p234 = scmp.eq.s32.totalorder %s39, 1
    %p235 = por %p233, %p234
    %p236 = scmp.ne.s32.totalorder %s227, %s228
    %p237 = scmp.eq.s32.totalorder %s39, 0
    %p238 = por %p236, %p237
    %p239 = scmp.ne.s32.totalorder %s227, %s228
    %p240 = scmp.eq.s32.totalorder %s40, 1
    %p241 = por %p239, %p240
    %p243 = scmp.ne.s32.totalorder %s228, %s242
    %p244 = scmp.eq.s32.totalorder %s40, 0
    %p245 = por %p243, %p244
    %s247 = sadd.s32 %s246, 1
    %p250 = scmp.eq.s32.totalorder %s34, 1
    %p251 = scmp.ne.s32.totalorder %s246, %s248
    %p252 = scmp.eq.s32.totalorder %s34, 0
    %p253 = por %p251, %p252
    %p254 = scmp.ne.s32.totalorder %s246, %s248
    %p255 = scmp.eq.s32.totalorder %s39, 1
    %p256 = por %p254, %p255
    %p257 = scmp.ne.s32.totalorder %s248, %s249
    %p258 = scmp.eq.s32.totalorder %s39, 0
    %p259 = por %p257, %p258
    %p260 = scmp.ne.s32.totalorder %s248, %s249
    %p261 = scmp.eq.s32.totalorder %s40, 1
    %p262 = por %p260, %p261
    %p264 = scmp.ne.s32.totalorder %s249, %s263
    %p265 = scmp.eq.s32.totalorder %s40, 0
    %p266 = por %p264, %p265
    %s268 = sadd.s32 %s267, 1
    %p271 = scmp.eq.s32.totalorder %s34, 1
    %p272 = scmp.ne.s32.totalorder %s267, %s269
    %p273 = scmp.eq.s32.totalorder %s34, 0
    %p274 = por %p272, %p273
    %p275 = scmp.ne.s32.totalorder %s267, %s269
    %p276 = scmp.eq.s32.totalorder %s39, 1
    %p277 = por %p275, %p276
    %p278 = scmp.ne.s32.totalorder %s269, %s270
    %p279 = scmp.eq.s32.totalorder %s39, 0
    %p280 = por %p278, %p279
    %p281 = scmp.ne.s32.totalorder %s269, %s270
    %p282 = scmp.eq.s32.totalorder %s40, 1
    %p283 = por %p281, %p282
    %p285 = scmp.ne.s32.totalorder %s270, %s284
    %p286 = scmp.eq.s32.totalorder %s40, 0
    %p287 = por %p285, %p286
    %s289 = sadd.s32 %s288, 1
    %p292 = scmp.eq.s32.totalorder %s34, 1
    %p293 = scmp.ne.s32.totalorder %s288, %s290
    %p294 = scmp.eq.s32.totalorder %s34, 0
    %p295 = por %p293, %p294
    %p296 = scmp.ne.s32.totalorder %s288, %s290
    %p297 = scmp.eq.s32.totalorder %s39, 1
    %p298 = por %p296, %p297
    %p299 = scmp.ne.s32.totalorder %s290, %s291
    %p300 = scmp.eq.s32.totalorder %s39, 0
    %p301 = por %p299, %p300
    %p302 = scmp.ne.s32.totalorder %s290, %s291
    %p303 = scmp.eq.s32.totalorder %s40, 1
    %p304 = por %p302, %p303
    %p306 = scmp.ne.s32.totalorder %s291, %s305
    %p307 = scmp.eq.s32.totalorder %s40, 0
    %p308 = por %p306, %p307
    %s310 = sadd.s32 %s309, 1
    %p313 = scmp.eq.s32.totalorder %s34, 1
    %p314 = scmp.ne.s32.totalorder %s309, %s311
    %p315 = scmp.eq.s32.totalorder %s34, 0
    %p316 = por %p314, %p315
    %p317 = scmp.ne.s32.totalorder %s309, %s311
    %p318 = scmp.eq.s32.totalorder %s39, 1
    %p319 = por %p317, %p318
    %p320 = scmp.ne.s32.totalorder %s311, %s312
    %p321 = scmp.eq.s32.totalorder %s39, 0
    %p322 = por %p320, %p321
    %p323 = scmp.ne.s32.totalorder %s311, %s312
    %p324 = scmp.eq.s32.totalorder %s40, 1
    %p325 = por %p323, %p324
    %p327 = scmp.ne.s32.totalorder %s312, %s326
    %p328 = scmp.eq.s32.totalorder %s40, 0
    %p329 = por %p327, %p328
    %s331 = sadd.s32 %s330, 1
    %p334 = scmp.eq.s32.totalorder %s34, 1
    %p335 = scmp.ne.s32.totalorder %s330, %s332
    %p336 = scmp.eq.s32.totalorder %s34, 0
    %p337 = por %p335, %p336
    %p338 = scmp.ne.s32.totalorder %s330, %s332
    %p339 = scmp.eq.s32.totalorder %s39, 1
    %p340 = por %p338, %p339
    %p341 = scmp.ne.s32.totalorder %s332, %s333
    %p342 = scmp.eq.s32.totalorder %s39, 0
    %p343 = por %p341, %p342
    %p344 = scmp.ne.s32.totalorder %s332, %s333
    %p345 = scmp.eq.s32.totalorder %s40, 1
    %p346 = por %p344, %p345
    %p348 = scmp.ne.s32.totalorder %s333, %s347
    %p349 = scmp.eq.s32.totalorder %s40, 0
    %p350 = por %p348, %p349
    %s352 = sadd.s32 %s351, 1
    %p355 = scmp.eq.s32.totalorder %s34, 1
    %p356 = scmp.ne.s32.totalorder %s351, %s353
    %p357 = scmp.eq.s32.totalorder %s34, 0
    %p358 = por %p356, %p357
    %p359 = scmp.ne.s32.totalorder %s351, %s353
    %p360 = scmp.eq.s32.totalorder %s39, 1
    %p361 = por %p359, %p360
    %p362 = scmp.ne.s32.totalorder %s353, %s354
    %p363 = scmp.eq.s32.totalorder %s39, 0
    %p364 = por %p362, %p363
    %p365 = scmp.ne.s32.totalorder %s353, %s354
    %p366 = scmp.eq.s32.totalorder %s40, 1
    %p367 = por %p365, %p366
    %p369 = scmp.ne.s32.totalorder %s354, %s368
    %p370 = scmp.eq.s32.totalorder %s40, 0
    %p371 = por %p369, %p370
    %s373 = sadd.s32 %s372, 1
    %p376 = scmp.eq.s32.totalorder %s34, 1
    %p377 = scmp.ne.s32.totalorder %s372, %s374
    %p378 = scmp.eq.s32.totalorder %s34, 0
    %p379 = por %p377, %p378
    %p380 = scmp.ne.s32.totalorder %s372, %s374
    %p381 = scmp.eq.s32.totalorder %s39, 1
    %p382 = por %p380, %p381
    %p383 = scmp.ne.s32.totalorder %s374, %s375
    %p384 = scmp.eq.s32.totalorder %s39, 0
    %p385 = por %p383, %p384
    %p386 = scmp.ne.s32.totalorder %s374, %s375
    %p387 = scmp.eq.s32.totalorder %s40, 1
    %p388 = por %p386, %p387
    %p390 = scmp.ne.s32.totalorder %s375, %s389
    %p391 = scmp.eq.s32.totalorder %s40, 0
    %p392 = por %p390, %p391
    %s394 = sadd.s32 %s393, 1
    %p397 = scmp.eq.s32.totalorder %s34, 1
    %p398 = scmp.ne.s32.totalorder %s393, %s395
    %p399 = scmp.eq.s32.totalorder %s34, 0
    %p400 = por %p398, %p399
    %p401 = scmp.ne.s32.totalorder %s393, %s395
    %p402 = scmp.eq.s32.totalorder %s39, 1
    %p403 = por %p401, %p402
    %p404 = scmp.ne.s32.totalorder %s395, %s396
    %p405 = scmp.eq.s32.totalorder %s39, 0
    %p406 = por %p404, %p405
    %p407 = scmp.ne.s32.totalorder %s395, %s396
    %p408 = scmp.eq.s32.totalorder %s40, 1
    %p409 = por %p407, %p408
    %p411 = scmp.ne.s32.totalorder %s396, %s410
    %p412 = scmp.eq.s32.totalorder %s40, 0
    %p413 = por %p411, %p412
    %s415 = sadd.s32 %s414, 1
    %p418 = scmp.eq.s32.totalorder %s34, 1
    %p419 = scmp.ne.s32.totalorder %s414, %s416
    %p420 = scmp.eq.s32.totalorder %s34, 0
    %p421 = por %p419, %p420
    %p422 = scmp.ne.s32.totalorder %s414, %s416
    %p423 = scmp.eq.s32.totalorder %s39, 1
    %p424 = por %p422, %p423
    %p425 = scmp.ne.s32.totalorder %s416, %s417
    %p426 = scmp.eq.s32.totalorder %s39, 0
    %p427 = por %p425, %p426
    %p428 = scmp.ne.s32.totalorder %s416, %s417
    %p429 = scmp.eq.s32.totalorder %s40, 1
    %p430 = por %p428, %p429
    %p432 = scmp.ne.s32.totalorder %s417, %s431
    %p433 = scmp.eq.s32.totalorder %s40, 0
    %p434 = por %p432, %p433
    %s436 = sadd.s32 %s435, 1
    %p439 = scmp.eq.s32.totalorder %s34, 1
    %p440 = scmp.ne.s32.totalorder %s435, %s437
    %p441 = scmp.eq.s32.totalorder %s34, 0
    %p442 = por %p440, %p441
    %p443 = scmp.ne.s32.totalorder %s435, %s437
    %p444 = scmp.eq.s32.totalorder %s39, 1
    %p445 = por %p443, %p444
    %p446 = scmp.ne.s32.totalorder %s437, %s438
    %p447 = scmp.eq.s32.totalorder %s39, 0
    %p448 = por %p446, %p447
    %p449 = scmp.ne.s32.totalorder %s437, %s438
    %p450 = scmp.eq.s32.totalorder %s40, 1
    %p451 = por %p449, %p450
    %p453 = scmp.ne.s32.totalorder %s438, %s452
    %p454 = scmp.eq.s32.totalorder %s40, 0
    %p455 = por %p453, %p454
    %s457 = sadd.s32 %s456, 1
    %p460 = scmp.eq.s32.totalorder %s34, 1
    %p461 = scmp.ne.s32.totalorder %s456, %s458
    %p462 = scmp.eq.s32.totalorder %s34, 0
    %p463 = por %p461, %p462
    %p464 = scmp.ne.s32.totalorder %s456, %s458
    %p465 = scmp.eq.s32.totalorder %s39, 1
    %p466 = por %p464, %p465
    %p467 = scmp.ne.s32.totalorder %s458, %s459
    %p468 = scmp.eq.s32.totalorder %s39, 0
    %p469 = por %p467, %p468
    %p470 = scmp.ne.s32.totalorder %s458, %s459
    %p471 = scmp.eq.s32.totalorder %s40, 1
    %p472 = por %p470, %p471
    %p474 = scmp.ne.s32.totalorder %s459, %s473
    %p475 = scmp.eq.s32.totalorder %s40, 0
    %p476 = por %p474, %p475
    %s478 = sadd.s32 %s477, 1
    %p481 = scmp.eq.s32.totalorder %s34, 1
    %p482 = scmp.ne.s32.totalorder %s477, %s479
    %p483 = scmp.eq.s32.totalorder %s34, 0
    %p484 = por %p482, %p483
    %p485 = scmp.ne.s32.totalorder %s477, %s479
    %p486 = scmp.eq.s32.totalorder %s39, 1
    %p487 = por %p485, %p486
    %p488 = scmp.ne.s32.totalorder %s479, %s480
    %p489 = scmp.eq.s32.totalorder %s39, 0
    %p490 = por %p488, %p489
    %p491 = scmp.ne.s32.totalorder %s479, %s480
    %p492 = scmp.eq.s32.totalorder %s40, 1
    %p493 = por %p491, %p492
    %p495 = scmp.ne.s32.totalorder %s480, %s494
    %p496 = scmp.eq.s32.totalorder %s40, 0
    %p497 = por %p495, %p496
    %s499 = sadd.s32 %s498, 1
    %p502 = scmp.eq.s32.totalorder %s34, 1
    %p503 = scmp.ne.s32.totalorder %s498, %s500
    %p504 = scmp.eq.s32.totalorder %s34, 0
    %p505 = por %p503, %p504
    %p506 = scmp.ne.s32.totalorder %s498, %s500
    %p507 = scmp.eq.s32.totalorder %s39, 1
    %p508 = por %p506, %p507
    %p509 = scmp.ne.s32.totalorder %s500, %s501
    %p510 = scmp.eq.s32.totalorder %s39, 0
    %p511 = por %p509, %p510
    %p512 = scmp.ne.s32.totalorder %s500, %s501
    %p513 = scmp.eq.s32.totalorder %s40, 1
    %p514 = por %p512, %p513
    %p516 = scmp.ne.s32.totalorder %s501, %s515
    %p517 = scmp.eq.s32.totalorder %s40, 0
    %p518 = por %p516, %p517
    %s520 = sadd.s32 %s519, 1
    %p523 = scmp.eq.s32.totalorder %s34, 1
    %p524 = scmp.ne.s32.totalorder %s519, %s521
    %p525 = scmp.eq.s32.totalorder %s34, 0
    %p526 = por %p524, %p525
    %p527 = scmp.ne.s32.totalorder %s519, %s521
    %p528 = scmp.eq.s32.totalorder %s39, 1
    %p529 = por %p527, %p528
    %p530 = scmp.ne.s32.totalorder %s521, %s522
    %p531 = scmp.eq.s32.totalorder %s39, 0
    %p532 = por %p530, %p531
    %p533 = scmp.ne.s32.totalorder %s521, %s522
    %p534 = scmp.eq.s32.totalorder %s40, 1
    %p535 = por %p533, %p534
    %p537 = scmp.ne.s32.totalorder %s522, %s536
    %p538 = scmp.eq.s32.totalorder %s40, 0
    %p539 = por %p537, %p538
    %s541 = sadd.s32 %s540, 1
    %p544 = scmp.eq.s32.totalorder %s34, 1
    %p545 = scmp.ne.s32.totalorder %s540, %s542
    %p546 = scmp.eq.s32.totalorder %s34, 0
    %p547 = por %p545, %p546
    %p548 = scmp.ne.s32.totalorder %s540, %s542
    %p549 = scmp.eq.s32.totalorder %s39, 1
    %p550 = por %p548, %p549
    %p551 = scmp.ne.s32.totalorder %s542, %s543
    %p552 = scmp.eq.s32.totalorder %s39, 0
    %p553 = por %p551, %p552
    %p554 = scmp.ne.s32.totalorder %s542, %s543
    %p555 = scmp.eq.s32.totalorder %s40, 1
    %p556 = por %p554, %p555
    %p558 = scmp.ne.s32.totalorder %s543, %s557
    %p559 = scmp.eq.s32.totalorder %s40, 0
    %p560 = por %p558, %p559
    %s562 = sadd.s32 %s561, 1
    %p565 = scmp.eq.s32.totalorder %s34, 1
    %p566 = scmp.ne.s32.totalorder %s561, %s563
    %p567 = scmp.eq.s32.totalorder %s34, 0
    %p568 = por %p566, %p567
    %p569 = scmp.ne.s32.totalorder %s561, %s563
    %p570 = scmp.eq.s32.totalorder %s39, 1
    %p571 = por %p569, %p570
    %p572 = scmp.ne.s32.totalorder %s563, %s564
    %p573 = scmp.eq.s32.totalorder %s39, 0
    %p574 = por %p572, %p573
    %p575 = scmp.ne.s32.totalorder %s563, %s564
    %p576 = scmp.eq.s32.totalorder %s40, 1
    %p577 = por %p575, %p576
    %p579 = scmp.ne.s32.totalorder %s564, %s578
    %p580 = scmp.eq.s32.totalorder %s40, 0
    %p581 = por %p579, %p580
    %s583 = sadd.s32 %s582, 1
    %p586 = scmp.eq.s32.totalorder %s34, 1
    %p587 = scmp.ne.s32.totalorder %s582, %s584
    %p588 = scmp.eq.s32.totalorder %s34, 0
    %p589 = por %p587, %p588
    %p590 = scmp.ne.s32.totalorder %s582, %s584
    %p591 = scmp.eq.s32.totalorder %s39, 1
    %p592 = por %p590, %p591
    %p593 = scmp.ne.s32.totalorder %s584, %s585
    %p594 = scmp.eq.s32.totalorder %s39, 0
    %p595 = por %p593, %p594
    %p596 = scmp.ne.s32.totalorder %s584, %s585
    %p597 = scmp.eq.s32.totalorder %s40, 1
    %p598 = por %p596, %p597
    %p600 = scmp.ne.s32.totalorder %s585, %s599
    %p601 = scmp.eq.s32.totalorder %s40, 0
    %p602 = por %p600, %p601
    %s604 = sadd.s32 %s603, 1
    %p607 = scmp.eq.s32.totalorder %s34, 1
    %p608 = scmp.ne.s32.totalorder %s603, %s605
    %p609 = scmp.eq.s32.totalorder %s34, 0
    %p610 = por %p608, %p609
    %p611 = scmp.ne.s32.totalorder %s603, %s605
    %p612 = scmp.eq.s32.totalorder %s39, 1
    %p613 = por %p611, %p612
    %p614 = scmp.ne.s32.totalorder %s605, %s606
    %p615 = scmp.eq.s32.totalorder %s39, 0
    %p616 = por %p614, %p615
    %p617 = scmp.ne.s32.totalorder %s605, %s606
    %p618 = scmp.eq.s32.totalorder %s40, 1
    %p619 = por %p617, %p618
    %p621 = scmp.ne.s32.totalorder %s606, %s620
    %p622 = scmp.eq.s32.totalorder %s40, 0
    %p623 = por %p621, %p622
    %s625 = sadd.s32 %s624, 1
    %p628 = scmp.eq.s32.totalorder %s34, 1
    %p629 = scmp.ne.s32.totalorder %s624, %s626
    %p630 = scmp.eq.s32.totalorder %s34, 0
    %p631 = por %p629, %p630
    %p632 = scmp.ne.s32.totalorder %s624, %s626
    %p633 = scmp.eq.s32.totalorder %s39, 1
    %p634 = por %p632, %p633
    %p635 = scmp.ne.s32.totalorder %s626, %s627
    %p636 = scmp.eq.s32.totalorder %s39, 0
    %p637 = por %p635, %p636
    %p638 = scmp.ne.s32.totalorder %s626, %s627
    %p639 = scmp.eq.s32.totalorder %s40, 1
    %p640 = por %p638, %p639
    %p642 = scmp.ne.s32.totalorder %s627, %s641
    %p643 = scmp.eq.s32.totalorder %s40, 0
    %p644 = por %p642, %p643
    %s645 = ssub.s32 %s34, %s41
    %p646 = scmp.eq.s32.totalorder %s645, 0
    %s648 = sadd.s32 %s647, 1
    %s649 = scalar_select %p646, %s647, %s648
    %p652 = pneg %p646
    %p653 = scmp.eq.s32.totalorder %s34, 1
    %p654 = por %p652, %p653
    %p655 = scmp.ne.s32.totalorder %s647, %s650
    %p656 = scmp.eq.s32.totalorder %s34, 0
    %p657 = por %p655, %p656
    %p658 = scmp.ne.s32.totalorder %s647, %s650
    %p659 = scmp.eq.s32.totalorder %s39, 1
    %p660 = por %p658, %p659
    %p661 = scmp.ne.s32.totalorder %s650, %s651
    %p662 = scmp.eq.s32.totalorder %s39, 0
    %p663 = por %p661, %p662
    %p664 = scmp.ne.s32.totalorder %s650, %s651
    %p665 = scmp.eq.s32.totalorder %s40, 1
    %p666 = por %p664, %p665
    %p668 = scmp.ne.s32.totalorder %s651, %s667
    %p669 = scmp.eq.s32.totalorder %s40, 0
    %p670 = por %p668, %p669
    %p671 = scmp.le.s32.totalorder 1, %s34
    %p672 = scmp.lt.s32.totalorder %s34, 3
    %p673 = pnand %p671, %p672
    %p674 = pneg %p673
    // Predicated region
    $region9: #{forward.1} parent=5 // pred_check
      _
    $region10: #{forward.1} parent=5 // pred_check_branch
      %676 = sbr.rel (%p673) target = $region12
    $region11: #{forward.1} parent=5 // pred_region
      %s677 = ssub.s32 %s34, 1
      // Predicated region
      $region13: #{forward.1} parent=11 // pred_check
        %p678 = pneg %p133
      $region14: #{forward.1} parent=11 // pred_check_branch
        %680 = sbr.rel (%p678) target = $region16
      $region15: #{forward.1} parent=11 // pred_region
        _
      $region16: #{forward.1} parent=11 // pred_fallthru
        _
      // Predicated region
      $region17: #{forward.1} parent=11 // pred_check
        %p681 = pneg %p154
      $region18: #{forward.1} parent=11 // pred_check_branch
        %683 = sbr.rel (%p681) target = $region20
      $region19: #{forward.1} parent=11 // pred_region
        _
      $region20: #{forward.1} parent=11 // pred_fallthru
        _
      // Predicated region
      $region21: #{forward.1} parent=11 // pred_check
        %p684 = pneg %p175
      $region22: #{forward.1} parent=11 // pred_check_branch
        %686 = sbr.rel (%p684) target = $region24
      $region23: #{forward.1} parent=11 // pred_region
        _
      $region24: #{forward.1} parent=11 // pred_fallthru
        _
      // Predicated region
      $region25: #{forward.1} parent=11 // pred_check
        %p687 = pneg %p196
      $region26: #{forward.1} parent=11 // pred_check_branch
        %689 = sbr.rel (%p687) target = $region28
      $region27: #{forward.1} parent=11 // pred_region
        _
      $region28: #{forward.1} parent=11 // pred_fallthru
        _
      // Predicated region
      $region29: #{forward.1} parent=11 // pred_check
        %p690 = pneg %p217
      $region30: #{forward.1} parent=11 // pred_check_branch
        %692 = sbr.rel (%p690) target = $region32
      $region31: #{forward.1} parent=11 // pred_region
        _
      $region32: #{forward.1} parent=11 // pred_fallthru
        _
      // Predicated region
      $region33: #{forward.1} parent=11 // pred_check
        %p693 = pneg %p238
      $region34: #{forward.1} parent=11 // pred_check_branch
        %695 = sbr.rel (%p693) target = $region36
      $region35: #{forward.1} parent=11 // pred_region
        _
      $region36: #{forward.1} parent=11 // pred_fallthru
        _
      // Predicated region
      $region37: #{forward.1} parent=11 // pred_check
        %p696 = pneg %p259
      $region38: #{forward.1} parent=11 // pred_check_branch
        %698 = sbr.rel (%p696) target = $region40
      $region39: #{forward.1} parent=11 // pred_region
        _
      $region40: #{forward.1} parent=11 // pred_fallthru
        _
      // Predicated region
      $region41: #{forward.1} parent=11 // pred_check
        %p699 = pneg %p280
      $region42: #{forward.1} parent=11 // pred_check_branch
        %701 = sbr.rel (%p699) target = $region44
      $region43: #{forward.1} parent=11 // pred_region
        _
      $region44: #{forward.1} parent=11 // pred_fallthru
        _
      // Predicated region
      $region45: #{forward.1} parent=11 // pred_check
        %p702 = pneg %p301
      $region46: #{forward.1} parent=11 // pred_check_branch
        %704 = sbr.rel (%p702) target = $region48
      $region47: #{forward.1} parent=11 // pred_region
        _
      $region48: #{forward.1} parent=11 // pred_fallthru
        _
      // Predicated region
      $region49: #{forward.1} parent=11 // pred_check
        %p705 = pneg %p322
      $region50: #{forward.1} parent=11 // pred_check_branch
        %707 = sbr.rel (%p705) target = $region52
      $region51: #{forward.1} parent=11 // pred_region
        _
      $region52: #{forward.1} parent=11 // pred_fallthru
        _
      // Predicated region
      $region53: #{forward.1} parent=11 // pred_check
        %p708 = pneg %p343
      $region54: #{forward.1} parent=11 // pred_check_branch
        %710 = sbr.rel (%p708) target = $region56
      $region55: #{forward.1} parent=11 // pred_region
        _
      $region56: #{forward.1} parent=11 // pred_fallthru
        _
      // Predicated region
      $region57: #{forward.1} parent=11 // pred_check
        %p711 = pneg %p364
      $region58: #{forward.1} parent=11 // pred_check_branch
        %713 = sbr.rel (%p711) target = $region60
      $region59: #{forward.1} parent=11 // pred_region
        _
      $region60: #{forward.1} parent=11 // pred_fallthru
        _
      // Predicated region
      $region61: #{forward.1} parent=11 // pred_check
        %p714 = pneg %p385
      $region62: #{forward.1} parent=11 // pred_check_branch
        %716 = sbr.rel (%p714) target = $region64
      $region63: #{forward.1} parent=11 // pred_region
        _
      $region64: #{forward.1} parent=11 // pred_fallthru
        _
      // Predicated region
      $region65: #{forward.1} parent=11 // pred_check
        %p717 = pneg %p406
      $region66: #{forward.1} parent=11 // pred_check_branch
        %719 = sbr.rel (%p717) target = $region68
      $region67: #{forward.1} parent=11 // pred_region
        _
      $region68: #{forward.1} parent=11 // pred_fallthru
        _
      // Predicated region
      $region69: #{forward.1} parent=11 // pred_check
        %p720 = pneg %p427
      $region70: #{forward.1} parent=11 // pred_check_branch
        %722 = sbr.rel (%p720) target = $region72
      $region71: #{forward.1} parent=11 // pred_region
        _
      $region72: #{forward.1} parent=11 // pred_fallthru
        _
      // Predicated region
      $region73: #{forward.1} parent=11 // pred_check
        %p723 = pneg %p448
      $region74: #{forward.1} parent=11 // pred_check_branch
        %725 = sbr.rel (%p723) target = $region76
      $region75: #{forward.1} parent=11 // pred_region
        _
      $region76: #{forward.1} parent=11 // pred_fallthru
        _
      // Predicated region
      $region77: #{forward.1} parent=11 // pred_check
        %p726 = pneg %p469
      $region78: #{forward.1} parent=11 // pred_check_branch
        %728 = sbr.rel (%p726) target = $region80
      $region79: #{forward.1} parent=11 // pred_region
        _
      $region80: #{forward.1} parent=11 // pred_fallthru
        _
      // Predicated region
      $region81: #{forward.1} parent=11 // pred_check
        %p729 = pneg %p490
      $region82: #{forward.1} parent=11 // pred_check_branch
        %731 = sbr.rel (%p729) target = $region84
      $region83: #{forward.1} parent=11 // pred_region
        _
      $region84: #{forward.1} parent=11 // pred_fallthru
        _
      // Predicated region
      $region85: #{forward.1} parent=11 // pred_check
        %p732 = pneg %p511
      $region86: #{forward.1} parent=11 // pred_check_branch
        %734 = sbr.rel (%p732) target = $region88
      $region87: #{forward.1} parent=11 // pred_region
        _
      $region88: #{forward.1} parent=11 // pred_fallthru
        _
      // Predicated region
      $region89: #{forward.1} parent=11 // pred_check
        %p735 = pneg %p532
      $region90: #{forward.1} parent=11 // pred_check_branch
        %737 = sbr.rel (%p735) target = $region92
      $region91: #{forward.1} parent=11 // pred_region
        _
      $region92: #{forward.1} parent=11 // pred_fallthru
        _
      // Predicated region
      $region93: #{forward.1} parent=11 // pred_check
        %p738 = pneg %p553
      $region94: #{forward.1} parent=11 // pred_check_branch
        %740 = sbr.rel (%p738) target = $region96
      $region95: #{forward.1} parent=11 // pred_region
        _
      $region96: #{forward.1} parent=11 // pred_fallthru
        _
      // Predicated region
      $region97: #{forward.1} parent=11 // pred_check
        %p741 = pneg %p574
      $region98: #{forward.1} parent=11 // pred_check_branch
        %743 = sbr.rel (%p741) target = $region100
      $region99: #{forward.1} parent=11 // pred_region
        _
      $region100: #{forward.1} parent=11 // pred_fallthru
        _
      // Predicated region
      $region101: #{forward.1} parent=11 // pred_check
        %p744 = pneg %p595
      $region102: #{forward.1} parent=11 // pred_check_branch
        %746 = sbr.rel (%p744) target = $region104
      $region103: #{forward.1} parent=11 // pred_region
        _
      $region104: #{forward.1} parent=11 // pred_fallthru
        _
      // Predicated region
      $region105: #{forward.1} parent=11 // pred_check
        %p747 = pneg %p616
      $region106: #{forward.1} parent=11 // pred_check_branch
        %749 = sbr.rel (%p747) target = $region108
      $region107: #{forward.1} parent=11 // pred_region
        _
      $region108: #{forward.1} parent=11 // pred_fallthru
        _
      // Predicated region
      $region109: #{forward.1} parent=11 // pred_check
        %p750 = pneg %p637
      $region110: #{forward.1} parent=11 // pred_check_branch
        %752 = sbr.rel (%p750) target = $region112
      $region111: #{forward.1} parent=11 // pred_region
        _
      $region112: #{forward.1} parent=11 // pred_fallthru
        _
    $region12: #{forward.1} parent=5 // pred_fallthru
      _
    %p753 = scmp.lt.s32.totalorder %s34, 2
    // Predicated region
    $region113: #{forward.1} parent=5 // pred_check
      %p754 = pneg %p753
    $region114: #{forward.1} parent=5 // pred_check_branch
      %756 = sbr.rel (%p754) target = $region116
    $region115: #{forward.1} parent=5 // pred_region
      // Predicated region
      $region117: #{forward.1} parent=115 // pred_check
        %p757 = pneg %p54
      $region118: #{forward.1} parent=115 // pred_check_branch
        %759 = sbr.rel (%p757) target = $region120
      $region119: #{forward.1} parent=115 // pred_region
        %p760 = scmp.lt.s32.totalorder %s34, 1
        %s761 = scalar_select %p760, %s34, 1
        %s762 = smul.addr %s761, 8
        %s763 = scalar_lea.vmem %s0, %s762
      $region120: #{forward.1} parent=115 // pred_fallthru
        _
      // Predicated region
      $region121: #{forward.1} parent=115 // pred_check
        %p764 = pneg %p80
      $region122: #{forward.1} parent=115 // pred_check_branch
        %766 = sbr.rel (%p764) target = $region124
      $region123: #{forward.1} parent=115 // pred_region
        %p767 = scmp.lt.s32.totalorder %s34, 1
        %s768 = scalar_select %p767, %s34, 1
        %s769 = smul.addr %s768, 4
        %s770 = scalar_lea.vmem %s1, %s769
      $region124: #{forward.1} parent=115 // pred_fallthru
        _
      // Predicated region
      $region125: #{forward.1} parent=115 // pred_check
        %p771 = pneg %p106
      $region126: #{forward.1} parent=115 // pred_check_branch
        %773 = sbr.rel (%p771) target = $region128
      $region127: #{forward.1} parent=115 // pred_region
        %p774 = scmp.lt.s32.totalorder %s34, 1
        %s775 = scalar_select %p774, %s34, 1
        %s776 = smul.addr %s775, 4
        %s777 = scalar_lea.vmem %s2, %s776
      $region128: #{forward.1} parent=115 // pred_fallthru
        _
    $region116: #{forward.1} parent=5 // pred_fallthru
      _
    %p778 = scmp.le.s32.totalorder 1, %s34
    %p779 = scmp.lt.s32.totalorder %s34, 3
    %p780 = pnand %p778, %p779
    %p781 = pneg %p780
    // Predicated region
    $region129: #{forward.1} parent=5 // pred_check
      _
    $region130: #{forward.1} parent=5 // pred_check_branch
      %783 = sbr.rel (%p780) target = $region132
    $region131: #{forward.1} parent=5 // pred_region
      %s784 = ssub.s32 %s34, 1
      %p785 = scmp.lt.s32.totalorder %s39, 1
      %s786 = scalar_select %p785, %s39, 1
      %s787 = smul.addr %s786, 8
      %s788 = scalar_lea.vmem %s0, %s787
      %p789 = pneg %p60
      %p790 = pneg %p57
      %p791 = scmp.lt.s32.totalorder %s39, 1
      %s792 = scalar_select %p791, %s39, 1
      %s793 = smul.addr %s792, 4
      %s794 = scalar_lea.vmem %s1, %s793
      %p795 = pneg %p86
      %p796 = pneg %p83
      %p797 = scmp.lt.s32.totalorder %s39, 1
      %s798 = scalar_select %p797, %s39, 1
      %s799 = smul.addr %s798, 4
      %s800 = scalar_lea.vmem %s2, %s799
      %p801 = pneg %p112
      %p802 = pneg %p109
      %p803 = pneg %p133
      %p804 = pneg %p130
      %p805 = pneg %p154
      %p806 = pneg %p151
      %p807 = pneg %p175
      %p808 = pneg %p172
      %p809 = pneg %p196
      %p810 = pneg %p193
      %p811 = pneg %p217
      %p812 = pneg %p214
      %p813 = pneg %p238
      %p814 = pneg %p235
      %p815 = pneg %p259
      %p816 = pneg %p256
      %p817 = pneg %p280
      %p818 = pneg %p277
      %p819 = pneg %p301
      %p820 = pneg %p298
      %p821 = pneg %p322
      %p822 = pneg %p319
      %p823 = pneg %p343
      %p824 = pneg %p340
      %p825 = pneg %p364
      %p826 = pneg %p361
      %p827 = pneg %p385
      %p828 = pneg %p382
      %p829 = pneg %p406
      %p830 = pneg %p403
      %p831 = pneg %p427
      %p832 = pneg %p424
      %p833 = pneg %p448
      %p834 = pneg %p445
      %p835 = pneg %p469
      %p836 = pneg %p466
      %p837 = pneg %p490
      %p838 = pneg %p487
      %p839 = pneg %p511
      %p840 = pneg %p508
      %p841 = pneg %p532
      %p842 = pneg %p529
      %p843 = pneg %p553
      %p844 = pneg %p550
      %p845 = pneg %p574
      %p846 = pneg %p571
      %p847 = pneg %p595
      %p848 = pneg %p592
      %p849 = pneg %p616
      %p850 = pneg %p613
      %p851 = pneg %p637
      %p852 = pneg %p634
      %p853 = pneg %p663
      %p854 = pneg %p660
      %p855 = scmp.lt.s32.totalorder %s39, 1
      %s856 = scalar_select %p855, %s39, 1
      %s857 = scalar_lea.vmem %s28, %s856
      %p858 = scmp.lt.s32.totalorder %s39, 1
      %s859 = scalar_select %p858, %s39, 1
      %s860 = smul.addr %s859, 8
      %s861 = scalar_lea.vmem %s0, %s860
      %p862 = scmp.lt.s32.totalorder %s39, 1
      %s863 = scalar_select %p862, %s39, 1
      %s864 = smul.addr %s863, 4
      %s865 = scalar_lea.vmem %s1, %s864
      %p866 = scmp.lt.s32.totalorder %s39, 1
      %s867 = scalar_select %p866, %s39, 1
      %s868 = smul.addr %s867, 4
      %s869 = scalar_lea.vmem %s2, %s868
      %p870 = scmp.lt.s32.totalorder %s39, 1
      %s871 = scalar_select %p870, %s39, 1
      %s872 = scalar_lea.vmem %s28, %s871
      %v873 = vld [vmem:[%s861] sm:$0xff]
      %v874 = vld [vmem:[%s3] sm:$0xff]
      %v875 = vld [vmem:[%s3 + $0x8] sm:$0xff]
      %v876 = vld [vmem:[%s3 + $0x10] sm:$0xff]
      %v877 = vld [vmem:[%s3 + $0x18] sm:$0xff]
      %v878 = vld [vmem:[%s3 + $0x20] sm:$0xff]
      %v879 = vld [vmem:[%s3 + $0x28] sm:$0xff]
      %v880 = vld [vmem:[%s4] sm:$0x1]
      %v882 = vlaneseq
      %v883 = vshrl.u32 %v882, 7
      %v884 = vsub.s32 0, %v883
      %v885 = vrot.slane %v880, %v884
      %vm887 = vcmask 392192
      %v889 = vsel %vm887, %v873, 0
      %891 = vmatprep.subr.mxu0 0.0
      %892 = vmatpush1.msra.mxu0 %v874
      %893 = vmatprep.subr.mxu0 0.0
      %894 = vmatpush1.msra.mxu0 %v875
      %895 = vmatprep.subr.mxu0 0.0
      %896 = vmatpush1.msra.mxu0 %v876
      %897 = vmatprep.subr.mxu0 0.0
      %898 = vmatpush1.msra.mxu0 %v877
      %899 = vmatprep.subr.mxu0 0.0
      %900 = vmatpush1.msra.mxu0 %v878
      %901 = vmatprep.subr.mxu0 0.0
      %902 = vmatpush1.msra.mxu0 %v879
      %903 = vmatprep.subr.mxu0 0.0
      %904 = vmatpush1.msra.mxu0 0.0
      %905 = vmatprep.subr.mxu0 0.0
      %906 = vmatpush1.msra.mxu0 0.0
      %907 = vmatprep.subr.mxu0 0.0
      %908 = vmatpush1.msra.mxu0 0.0
      %909 = vmatprep.subr.mxu0 0.0
      %910 = vmatpush1.msra.mxu0 0.0
      %911 = vmatprep.subr.mxu0 0.0
      %912 = vmatpush1.msra.mxu0 0.0
      %913 = vmatprep.subr.mxu0 0.0
      %914 = vmatpush1.msra.mxu0 0.0
      %915 = vmatprep.subr.mxu0 0.0
      %916 = vmatpush1.msra.mxu0 0.0
      %917 = vmatprep.subr.mxu0 0.0
      %918 = vmatpush1.msra.mxu0 0.0
      %919 = vmatprep.subr.mxu0 0.0
      %920 = vmatpush1.msra.mxu0 0.0
      %921 = vmatprep.subr.mxu0 0.0
      %922 = vmatpush1.msra.mxu0 0.0
      %923 = vmatprep.subr.mxu0 0.0
      %924 = vmatpush1.msra.mxu0 0.0
      %925 = vmatprep.subr.mxu0 0.0
      %926 = vmatpush1.msra.mxu0 0.0
      %927 = vmatprep.subr.mxu0 0.0
      %928 = vmatpush1.msra.mxu0 0.0
      %929 = vmatprep.subr.mxu0 0.0
      %930 = vmatpush1.msra.mxu0 0.0
      %931 = vmatprep.subr.mxu0 0.0
      %932 = vmatpush1.msra.mxu0 0.0
      %933 = vmatprep.subr.mxu0 0.0
      %934 = vmatpush1.msra.mxu0 0.0
      %935 = vmatprep.subr.mxu0 0.0
      %936 = vmatpush1.msra.mxu0 0.0
      %937 = vmatprep.subr.mxu0 0.0
      %938 = vmatpush1.msra.mxu0 0.0
      %939 = vmatprep.subr.mxu0 0.0
      %940 = vmatpush1.msra.mxu0 0.0
      %941 = vmatprep.subr.mxu0 0.0
      %942 = vmatpush1.msra.mxu0 0.0
      %943 = vmatprep.subr.mxu0 0.0
      %944 = vmatpush1.msra.mxu0 0.0
      %945 = vmatprep.subr.mxu0 0.0
      %946 = vmatpush1.msra.mxu0 0.0
      %947 = vmatprep.subr.mxu0 0.0
      %948 = vmatpush1.msra.mxu0 0.0
      %949 = vmatprep.subr.mxu0 0.0
      %950 = vmatpush1.msra.mxu0 0.0
      %951 = vmatprep.subr.mxu0 0.0
      %952 = vmatpush1.msra.mxu0 0.0
      %953 = vmatprep.subr.mxu0 0.0
      %954 = vmatpush1.msra.mxu0 0.0
      %955 = vmatprep.mubr.f32.mxu0 0.0
      %956 = vmatmul.mubr.f32.gmra.mrb[0].mxu0 %v889
      %v957 = vpop.f32.mrb[0].mxu0
      %v958 = vadd.f32 %v885, %v957
      %v959 = vpop.f32.mrb[0].mxu0
      %960 = vdwg.mxu0
      %v961 = vld [vmem:[%s7] sm:$0xff]
      %v962 = vadd.f32 %v958, %v961
      %v963 = vld [vmem:[%s10] sm:$0x3]
      %vm964 = vcmask 254976
      %965 = vst.msk [vmem:[#allocation2] sm:$0x3] %vm964, %v963
      %vm966 = vcmask 261120
      %967 = vst.msk [vmem:[#allocation2 + $0x2] sm:$0xff] %vm966, %v962
      %vm968 = vcmask 259072
      %969 = vst.msk [vmem:[#allocation2 + $0xa] sm:$0x3f] %vm968, 0.0
      %v970 = vld [vmem:[%s865] sm:$0xf]
      %v971 = vld [vmem:[%s5] sm:$0xff]
      %v972 = vld [vmem:[%s5 + $0x8] sm:$0xff]
      %v973 = vld [vmem:[%s5 + $0x10] sm:$0xff]
      %v974 = vld [vmem:[%s6] sm:$0x1]
      %v976 = vlaneseq
      %v977 = vshrl.u32 %v976, 7
      %v978 = vsub.s32 0, %v977
      %v979 = vrot.slane %v974, %v978
      %vm981 = vcmask 195584
      %v983 = vsel %vm981, %v970, 0
      %985 = vmatprep.subr.mxu0 0.0
      %986 = vmatpush1.msra.mxu0 %v971
      %987 = vmatprep.subr.mxu0 0.0
      %988 = vmatpush1.msra.mxu0 %v972
      %989 = vmatprep.subr.mxu0 0.0
      %990 = vmatpush1.msra.mxu0 %v973
      %991 = vmatprep.subr.mxu0 0.0
      %992 = vmatpush1.msra.mxu0 0.0
      %993 = vmatprep.subr.mxu0 0.0
      %994 = vmatpush1.msra.mxu0 0.0
      %995 = vmatprep.subr.mxu0 0.0
      %996 = vmatpush1.msra.mxu0 0.0
      %997 = vmatprep.subr.mxu0 0.0
      %998 = vmatpush1.msra.mxu0 0.0
      %999 = vmatprep.subr.mxu0 0.0
      %1000 = vmatpush1.msra.mxu0 0.0
      %1001 = vmatprep.subr.mxu0 0.0
      %1002 = vmatpush1.msra.mxu0 0.0
      %1003 = vmatprep.subr.mxu0 0.0
      %1004 = vmatpush1.msra.mxu0 0.0
      %1005 = vmatprep.subr.mxu0 0.0
      %1006 = vmatpush1.msra.mxu0 0.0
      %1007 = vmatprep.subr.mxu0 0.0
      %1008 = vmatpush1.msra.mxu0 0.0
      %1009 = vmatprep.subr.mxu0 0.0
      %1010 = vmatpush1.msra.mxu0 0.0
      %1011 = vmatprep.subr.mxu0 0.0
      %1012 = vmatpush1.msra.mxu0 0.0
      %1013 = vmatprep.subr.mxu0 0.0
      %1014 = vmatpush1.msra.mxu0 0.0
      %1015 = vmatprep.subr.mxu0 0.0
      %1016 = vmatpush1.msra.mxu0 0.0
      %1017 = vmatprep.subr.mxu0 0.0
      %1018 = vmatpush1.msra.mxu0 0.0
      %1019 = vmatprep.subr.mxu0 0.0
      %1020 = vmatpush1.msra.mxu0 0.0
      %1021 = vmatprep.subr.mxu0 0.0
      %1022 = vmatpush1.msra.mxu0 0.0
      %1023 = vmatprep.subr.mxu0 0.0
      %1024 = vmatpush1.msra.mxu0 0.0
      %1025 = vmatprep.subr.mxu0 0.0
      %1026 = vmatpush1.msra.mxu0 0.0
      %1027 = vmatprep.subr.mxu0 0.0
      %1028 = vmatpush1.msra.mxu0 0.0
      %1029 = vmatprep.subr.mxu0 0.0
      %1030 = vmatpush1.msra.mxu0 0.0
      %1031 = vmatprep.subr.mxu0 0.0
      %1032 = vmatpush1.msra.mxu0 0.0
      %1033 = vmatprep.subr.mxu0 0.0
      %1034 = vmatpush1.msra.mxu0 0.0
      %1035 = vmatprep.subr.mxu0 0.0
      %1036 = vmatpush1.msra.mxu0 0.0
      %1037 = vmatprep.subr.mxu0 0.0
      %1038 = vmatpush1.msra.mxu0 0.0
      %1039 = vmatprep.subr.mxu0 0.0
      %1040 = vmatpush1.msra.mxu0 0.0
      %1041 = vmatprep.subr.mxu0 0.0
      %1042 = vmatpush1.msra.mxu0 0.0
      %1043 = vmatprep.subr.mxu0 0.0
      %1044 = vmatpush1.msra.mxu0 0.0
      %1045 = vmatprep.subr.mxu0 0.0
      %1046 = vmatpush1.msra.mxu0 0.0
      %1047 = vmatprep.subr.mxu0 0.0
      %1048 = vmatpush1.msra.mxu0 0.0
      %1049 = vmatprep.mubr.f32.mxu0 0.0
      %1050 = vmatmul.mubr.f32.gmra.mrb[0].mxu0 %v983
      %v1051 = vpop.f32.mrb[0].mxu0
      %v1052 = vadd.f32 %v979, %v1051
      %v1053 = vpop.f32.mrb[0].mxu0
      %1054 = vdwg.mxu0
      %v1055 = vld [vmem:[%s8] sm:$0xf]
      %v1056 = vadd.f32 %v1052, %v1055
      %v1057 = vld [vmem:[%s11] sm:$0x3]
      %1058 = vst.msk [vmem:[#allocation3] sm:$0x3] %vm964, %v1057
      %vm1059 = vcmask 257024
      %1060 = vst.msk [vmem:[#allocation3 + $0x2] sm:$0xf] %vm1059, %v1056
      %1061 = vst.msk [vmem:[#allocation3 + $0x6] sm:$0x3] %vm964, 0.0
      %v1062 = vld [vmem:[%s869] sm:$0x7]
      %v1063 = vld [vmem:[%s9] sm:$0x7]
      %v1064 = vadd.f32 %v1062, %v1063
      %v1065 = vld [vmem:[%s12] sm:$0x3]
      %1066 = vst.msk [vmem:[#allocation4] sm:$0x3] %vm964, %v1065
      %vm1067 = vcmask 256000
      %1068 = vst.msk [vmem:[#allocation4 + $0x2] sm:$0x7] %vm1067, %v1064
      %1069 = vst.msk [vmem:[#allocation4 + $0x5] sm:$0x7] %vm1067, 0.0
      %v1070 = vlaneseq
      %v1071 = vand.u32 %v1070, 127
      %vm1072 = vcmp.lt.s32.totalorder %v1071, 10
      %v1073 = vsel %vm1072, 0.0, -1e+30
      %vm1074 = vcmp.lt.s32.totalorder %v1071, 6
      %v1075 = vsel %vm1074, 0.0, -1e+30
      %vm1076 = vcmp.lt.s32.totalorder %v1071, 5
      %v1077 = vsel %vm1076, 0.0, -1e+30
      %v1078 = vld [vmem:[%s13] sm:$0x1]
      %1080 = vrot.lane.b32.xlu0 %v1078, 127
      %v1081 = vpop.permute.xlu0 %1080
      %v1083 = vadd.f32 %v1078, %v1081
      %1084 = vrot.lane.b32.xlu0 %v1078, 126
      %v1085 = vpop.permute.xlu0 %1084
      %v1087 = vadd.f32 %v1083, %v1085
      %v1088 = vrcp.pop %v1087
      %v1089 = vmul.f32 1.0, %v1088
      %v1090 = vmul.f32 %v1078, %v1089
      %1092 = vrot.lane.b32.xlu0 %v1089, 1
      %v1093 = vpop.permute.xlu0 %1092
      %v1095 = vmul.f32 %v1078, %v1093
      %1096 = vrot.lane.b32.xlu0 %v1089, 2
      %v1097 = vpop.permute.xlu0 %1096
      %v1099 = vmul.f32 %v1078, %v1097
      %v1100 = vld [vmem:[#allocation2] sm:$0xff]
      %v1101 = vld [vmem:[#allocation2 + $0x8] sm:$0xff]
      %v1102 = vld [vmem:[%s14] sm:$0xff]
      %v1103 = vld [vmem:[%s14 + $0x8] sm:$0xff]
      %v1104 = vld [vmem:[%s14 + $0x10] sm:$0xff]
      %v1105 = vld [vmem:[%s14 + $0x18] sm:$0xff]
      %v1106 = vld [vmem:[%s15] sm:$0x1]
      %v1108 = vlaneseq
      %v1109 = vshrl.u32 %v1108, 7
      %v1110 = vsub.s32 0, %v1109
      %v1111 = vrot.slane %v1106, %v1110
      %v1114 = vsel %vm966, %v1100, 0
      %v1117 = vsel %vm966, %v1101, 0
      %1119 = vmatprep.subr.mxu0 0.0
      %1120 = vmatpush1.msra.mxu0 %v1102
      %1121 = vmatprep.subr.mxu0 0.0
      %1122 = vmatpush1.msra.mxu0 %v1103
      %1123 = vmatprep.subr.mxu0 0.0
      %1124 = vmatpush1.msra.mxu0 %v1104
      %1125 = vmatprep.subr.mxu0 0.0
      %1126 = vmatpush1.msra.mxu0 %v1105
      %1127 = vmatprep.subr.mxu0 0.0
      %1128 = vmatpush1.msra.mxu0 0.0
      %1129 = vmatprep.subr.mxu0 0.0
      %1130 = vmatpush1.msra.mxu0 0.0
      %1131 = vmatprep.subr.mxu0 0.0
      %1132 = vmatpush1.msra.mxu0 0.0
      %1133 = vmatprep.subr.mxu0 0.0
      %1134 = vmatpush1.msra.mxu0 0.0
      %1135 = vmatprep.subr.mxu0 0.0
      %1136 = vmatpush1.msra.mxu0 0.0
      %1137 = vmatprep.subr.mxu0 0.0
      %1138 = vmatpush1.msra.mxu0 0.0
      %1139 = vmatprep.subr.mxu0 0.0
      %1140 = vmatpush1.msra.mxu0 0.0
      %1141 = vmatprep.subr.mxu0 0.0
      %1142 = vmatpush1.msra.mxu0 0.0
      %1143 = vmatprep.subr.mxu0 0.0
      %1144 = vmatpush1.msra.mxu0 0.0
      %1145 = vmatprep.subr.mxu0 0.0
      %1146 = vmatpush1.msra.mxu0 0.0
      %1147 = vmatprep.subr.mxu0 0.0
      %1148 = vmatpush1.msra.mxu0 0.0
      %1149 = vmatprep.subr.mxu0 0.0
      %1150 = vmatpush1.msra.mxu0 0.0
      %1151 = vmatprep.subr.mxu0 0.0
      %1152 = vmatpush1.msra.mxu0 0.0
      %1153 = vmatprep.subr.mxu0 0.0
      %1154 = vmatpush1.msra.mxu0 0.0
      %1155 = vmatprep.subr.mxu0 0.0
      %1156 = vmatpush1.msra.mxu0 0.0
      %1157 = vmatprep.subr.mxu0 0.0
      %1158 = vmatpush1.msra.mxu0 0.0
      %1159 = vmatprep.subr.mxu0 0.0
      %1160 = vmatpush1.msra.mxu0 0.0
      %1161 = vmatprep.subr.mxu0 0.0
      %1162 = vmatpush1.msra.mxu0 0.0
      %1163 = vmatprep.subr.mxu0 0.0
      %1164 = vmatpush1.msra.mxu0 0.0
      %1165 = vmatprep.subr.mxu0 0.0
      %1166 = vmatpush1.msra.mxu0 0.0
      %1167 = vmatprep.subr.mxu0 0.0
      %1168 = vmatpush1.msra.mxu0 0.0
      %1169 = vmatprep.subr.mxu0 0.0
      %1170 = vmatpush1.msra.mxu0 0.0
      %1171 = vmatprep.subr.mxu0 0.0
      %1172 = vmatpush1.msra.mxu0 0.0
      %1173 = vmatprep.subr.mxu0 0.0
      %1174 = vmatpush1.msra.mxu0 0.0
      %1175 = vmatprep.subr.mxu0 0.0
      %1176 = vmatpush1.msra.mxu0 0.0
      %1177 = vmatprep.subr.mxu0 0.0
      %1178 = vmatpush1.msra.mxu0 0.0
      %1179 = vmatprep.subr.mxu0 0.0
      %1180 = vmatpush1.msra.mxu0 0.0
      %1181 = vmatprep.subr.mxu0 0.0
      %1182 = vmatpush1.msra.mxu0 0.0
      %1183 = vmatprep.mubr.f32.mxu0 0.0
      %1184 = vmatmul.mubr.f32.gmra.mrb[0].mxu0 %v1114
      %v1185 = vpop.f32.mrb[0].mxu0
      %v1186 = vadd.f32 %v1111, %v1185
      %v1187 = vpop.f32.mrb[0].mxu0
      %1188 = vmatprep.mubr.f32.mxu0 0.0
      %1189 = vmatmul.mubr.f32.gmra.mrb[0].mxu0 %v1117
      %v1190 = vpop.f32.mrb[0].mxu0
      %v1191 = vadd.f32 %v1111, %v1190
      %v1192 = vpop.f32.mrb[0].mxu0
      %1193 = vdwg.mxu0
      %1196 = vrot.lane.b32.xlu0 %v1186, 96
      %v1197 = vpop.permute.xlu0 %1196
      %1198 = vrot.lane.b32.xlu0 %v1191, 96
      %v1199 = vpop.permute.xlu0 %1198
      %vm1200 = vcmask 64512
      %v1201 = vsel %vm1200, %v1186, 0
      %v1203 = vsel %vm1200, %v1191, 0
      %v1205 = vsel %vm1200, %v1197, 0
      %v1207 = vsel %vm1200, %v1199, 0
      %1209 = vmatprep.subr.mxu0 0.0
      %1210 = vmatpush1.xpose.msra.mxu0 %v1205
      %1211 = vmatprep.subr.mxu0 0.0
      %1212 = vmatpush1.xpose.msra.mxu0 %v1207
      %1213 = vmatprep.subr.mxu0 0.0
      %1214 = vmatpush1.xpose.msra.mxu0 0.0
      %1215 = vmatprep.subr.mxu0 0.0
      %1216 = vmatpush1.xpose.msra.mxu0 0.0
      %1217 = vmatprep.subr.mxu0 0.0
      %1218 = vmatpush1.xpose.msra.mxu0 0.0
      %1219 = vmatprep.subr.mxu0 0.0
      %1220 = vmatpush1.xpose.msra.mxu0 0.0
      %1221 = vmatprep.subr.mxu0 0.0
      %1222 = vmatpush1.xpose.msra.mxu0 0.0
      %1223 = vmatprep.subr.mxu0 0.0
      %1224 = vmatpush1.xpose.msra.mxu0 0.0
      %1225 = vmatprep.subr.mxu0 0.0
      %1226 = vmatpush1.xpose.msra.mxu0 0.0
      %1227 = vmatprep.subr.mxu0 0.0
      %1228 = vmatpush1.xpose.msra.mxu0 0.0
      %1229 = vmatprep.subr.mxu0 0.0
      %1230 = vmatpush1.xpose.msra.mxu0 0.0
      %1231 = vmatprep.subr.mxu0 0.0
      %1232 = vmatpush1.xpose.msra.mxu0 0.0
      %1233 = vmatprep.subr.mxu0 0.0
      %1234 = vmatpush1.xpose.msra.mxu0 0.0
      %1235 = vmatprep.subr.mxu0 0.0
      %1236 = vmatpush1.xpose.msra.mxu0 0.0
      %1237 = vmatprep.subr.mxu0 0.0
      %1238 = vmatpush1.xpose.msra.mxu0 0.0
      %1239 = vmatprep.subr.mxu0 0.0
      %1240 = vmatpush1.xpose.msra.mxu0 0.0
      %1241 = vmatprep.subr.mxu0 0.0
      %1242 = vmatpush1.xpose.msra.mxu0 0.0
      %1243 = vmatprep.subr.mxu0 0.0
      %1244 = vmatpush1.xpose.msra.mxu0 0.0
      %1245 = vmatprep.subr.mxu0 0.0
      %1246 = vmatpush1.xpose.msra.mxu0 0.0
      %1247 = vmatprep.subr.mxu0 0.0
      %1248 = vmatpush1.xpose.msra.mxu0 0.0
      %1249 = vmatprep.subr.mxu0 0.0
      %1250 = vmatpush1.xpose.msra.mxu0 0.0
      %1251 = vmatprep.subr.mxu0 0.0
      %1252 = vmatpush1.xpose.msra.mxu0 0.0
      %1253 = vmatprep.subr.mxu0 0.0
      %1254 = vmatpush1.xpose.msra.mxu0 0.0
      %1255 = vmatprep.subr.mxu0 0.0
      %1256 = vmatpush1.xpose.msra.mxu0 0.0
      %1257 = vmatprep.subr.mxu0 0.0
      %1258 = vmatpush1.xpose.msra.mxu0 0.0
      %1259 = vmatprep.subr.mxu0 0.0
      %1260 = vmatpush1.xpose.msra.mxu0 0.0
      %1261 = vmatprep.subr.mxu0 0.0
      %1262 = vmatpush1.xpose.msra.mxu0 0.0
      %1263 = vmatprep.subr.mxu0 0.0
      %1264 = vmatpush1.xpose.msra.mxu0 0.0
      %1265 = vmatprep.subr.mxu0 0.0
      %1266 = vmatpush1.xpose.msra.mxu0 0.0
      %1267 = vmatprep.subr.mxu0 0.0
      %1268 = vmatpush1.xpose.msra.mxu0 0.0
      %1269 = vmatprep.subr.mxu0 0.0
      %1270 = vmatpush1.xpose.msra.mxu0 0.0
      %1271 = vmatprep.subr.mxu0 0.0
      %1272 = vmatpush1.xpose.msra.mxu0 0.0
      %1273 = vmatprep.mubr.f32.mxu0 0.0
      %1274 = vmatmul.mubr.f32.gmra.mrb[0].mxu0 %v1201
      %v1275 = vpop.f32.mrb[0].mxu0
      %v1276 = vadd.f32 0.0, %v1275
      %v1277 = vpop.f32.mrb[0].mxu0
      %1278 = vmatprep.mubr.f32.mxu0 0.0
      %1279 = vmatmul.mubr.f32.gmra.mrb[0].mxu0 %v1203
      %v1280 = vpop.f32.mrb[0].mxu0
      %v1281 = vadd.f32 0.0, %v1280
      %v1282 = vpop.f32.mrb[0].mxu0
      %1283 = vdwg.mxu0
      %v1284 = vmul.f32 %v1276, 0.35355338
      %v1285 = vmul.f32 %v1281, 0.35355338
      %v1286 = vadd.f32 %v1284, %v1073
      %v1287 = vadd.f32 %v1285, %v1073
      %vm1288 = vcmask 130048
      %v1289 = vsel %vm1288, %v1286, -inf
      %1290 = vmax.xlane.f32.xlu0 %v1289
      %v1291 = vpop.xlane.xlu0 %1290
      %v1292 = vsel %vm1288, %v1287, -inf
      %1293 = vmax.xlane.f32.xlu0 %v1292
      %v1294 = vpop.xlane.xlu0 %1293
      %v1295 = vsub.f32 %v1286, %v1291
      %v1296 = vsub.f32 %v1287, %v1294
      %v1297 = vmul.f32 %v1295, 1.442695
      %v1298 = vpow.pop %v1297
      %v1299 = vmul.f32 %v1296, 1.442695
      %v1300 = vpow.pop %v1299
      %v1301 = vsel %vm1288, %v1298, 0.0
      %1302 = vadd.xlane.f32.xlu0 %v1301
      %v1303 = vpop.xlane.xlu0 %1302
      %v1304 = vsel %vm1288, %v1300, 0.0
      %1305 = vadd.xlane.f32.xlu0 %v1304
      %v1306 = vpop.xlane.xlu0 %1305
      %v1307 = vrcp.pop %v1303
      %v1308 = vrcp.pop %v1306
      %v1309 = vmul.f32 %v1298, %v1307
      %v1310 = vmul.f32 %v1300, %v1308
      %1311 = vrot.lane.b32.xlu0 %v1186, 64
      %v1312 = vpop.permute.xlu0 %1311
      %1313 = vrot.lane.b32.xlu0 %v1191, 64
      %v1314 = vpop.permute.xlu0 %1313
      %v1318 = vsel %vm1288, %v1309, 0
      %v1321 = vsel %vm1288, %v1310, 0
      %1323 = vmatprep.subr.mxu0 0.0
      %1324 = vmatpush1.msra.mxu0 %v1312
      %1325 = vmatprep.subr.mxu0 0.0
      %1326 = vmatpush1.msra.mxu0 %v1314
      %1327 = vmatprep.subr.mxu0 0.0
      %1328 = vmatpush1.msra.mxu0 0.0
      %1329 = vmatprep.subr.mxu0 0.0
      %1330 = vmatpush1.msra.mxu0 0.0
      %1331 = vmatprep.subr.mxu0 0.0
      %1332 = vmatpush1.msra.mxu0 0.0
      %1333 = vmatprep.subr.mxu0 0.0
      %1334 = vmatpush1.msra.mxu0 0.0
      %1335 = vmatprep.subr.mxu0 0.0
      %1336 = vmatpush1.msra.mxu0 0.0
      %1337 = vmatprep.subr.mxu0 0.0
      %1338 = vmatpush1.msra.mxu0 0.0
      %1339 = vmatprep.subr.mxu0 0.0
      %1340 = vmatpush1.msra.mxu0 0.0
      %1341 = vmatprep.subr.mxu0 0.0
      %1342 = vmatpush1.msra.mxu0 0.0
      %1343 = vmatprep.subr.mxu0 0.0
      %1344 = vmatpush1.msra.mxu0 0.0
      %1345 = vmatprep.subr.mxu0 0.0
      %1346 = vmatpush1.msra.mxu0 0.0
      %1347 = vmatprep.subr.mxu0 0.0
      %1348 = vmatpush1.msra.mxu0 0.0
      %1349 = vmatprep.subr.mxu0 0.0
      %1350 = vmatpush1.msra.mxu0 0.0
      %1351 = vmatprep.subr.mxu0 0.0
      %1352 = vmatpush1.msra.mxu0 0.0
      %1353 = vmatprep.subr.mxu0 0.0
      %1354 = vmatpush1.msra.mxu0 0.0
      %1355 = vmatprep.subr.mxu0 0.0
      %1356 = vmatpush1.msra.mxu0 0.0
      %1357 = vmatprep.subr.mxu0 0.0
      %1358 = vmatpush1.msra.mxu0 0.0
      %1359 = vmatprep.subr.mxu0 0.0
      %1360 = vmatpush1.msra.mxu0 0.0
      %1361 = vmatprep.subr.mxu0 0.0
      %1362 = vmatpush1.msra.mxu0 0.0
      %1363 = vmatprep.subr.mxu0 0.0
      %1364 = vmatpush1.msra.mxu0 0.0
      %1365 = vmatprep.subr.mxu0 0.0
      %1366 = vmatpush1.msra.mxu0 0.0
      %1367 = vmatprep.subr.mxu0 0.0
      %1368 = vmatpush1.msra.mxu0 0.0
      %1369 = vmatprep.subr.mxu0 0.0
      %1370 = vmatpush1.msra.mxu0 0.0
      %1371 = vmatprep.subr.mxu0 0.0
      %1372 = vmatpush1.msra.mxu0 0.0
      %1373 = vmatprep.subr.mxu0 0.0
      %1374 = vmatpush1.msra.mxu0 0.0
      %1375 = vmatprep.subr.mxu0 0.0
      %1376 = vmatpush1.msra.mxu0 0.0
      %1377 = vmatprep.subr.mxu0 0.0
      %1378 = vmatpush1.msra.mxu0 0.0
      %1379 = vmatprep.subr.mxu0 0.0
      %1380 = vmatpush1.msra.mxu0 0.0
      %1381 = vmatprep.subr.mxu0 0.0
      %1382 = vmatpush1.msra.mxu0 0.0
      %1383 = vmatprep.subr.mxu0 0.0
      %1384 = vmatpush1.msra.mxu0 0.0
      %1385 = vmatprep.subr.mxu0 0.0
      %1386 = vmatpush1.msra.mxu0 0.0
      %1387 = vmatprep.mubr.f32.mxu0 0.0
      %1388 = vmatmul.mubr.f32.gmra.mrb[0].mxu0 %v1318
      %v1389 = vpop.f32.mrb[0].mxu0
      %v1390 = vadd.f32 0.0, %v1389
      %v1391 = vpop.f32.mrb[0].mxu0
      %1392 = vmatprep.mubr.f32.mxu0 0.0
      %1393 = vmatmul.mubr.f32.gmra.mrb[0].mxu0 %v1321
      %v1394 = vpop.f32.mrb[0].mxu0
      %v1395 = vadd.f32 0.0, %v1394
      %v1396 = vpop.f32.mrb[0].mxu0
      %1397 = vdwg.mxu0
      %1398 = vrot.lane.b32.xlu0 %v1186, 120
      %v1399 = vpop.permute.xlu0 %1398
      %1400 = vrot.lane.b32.xlu0 %v1191, 120
      %v1401 = vpop.permute.xlu0 %1400
      %1402 = vrot.lane.b32.xlu0 %v1186, 88
      %v1403 = vpop.permute.xlu0 %1402
      %1404 = vrot.lane.b32.xlu0 %v1191, 88
      %v1405 = vpop.permute.xlu0 %1404
      %v1406 = vsel %vm1200, %v1399, 0
      %v1408 = vsel %vm1200, %v1401, 0
      %v1410 = vsel %vm1200, %v1403, 0
      %v1412 = vsel %vm1200, %v1405, 0
      %1414 = vmatprep.subr.mxu0 0.0
      %1415 = vmatpush1.xpose.msra.mxu0 %v1410
      %1416 = vmatprep.subr.mxu0 0.0
      %1417 = vmatpush1.xpose.msra.mxu0 %v1412
      %1418 = vmatprep.subr.mxu0 0.0
      %1419 = vmatpush1.xpose.msra.mxu0 0.0
      %1420 = vmatprep.subr.mxu0 0.0
      %1421 = vmatpush1.xpose.msra.mxu0 0.0
      %1422 = vmatprep.subr.mxu0 0.0
      %1423 = vmatpush1.xpose.msra.mxu0 0.0
      %1424 = vmatprep.subr.mxu0 0.0
      %1425 = vmatpush1.xpose.msra.mxu0 0.0
      %1426 = vmatprep.subr.mxu0 0.0
      %1427 = vmatpush1.xpose.msra.mxu0 0.0
      %1428 = vmatprep.subr.mxu0 0.0
      %1429 = vmatpush1.xpose.msra.mxu0 0.0
      %1430 = vmatprep.subr.mxu0 0.0
      %1431 = vmatpush1.xpose.msra.mxu0 0.0
      %1432 = vmatprep.subr.mxu0 0.0
      %1433 = vmatpush1.xpose.msra.mxu0 0.0
      %1434 = vmatprep.subr.mxu0 0.0
      %1435 = vmatpush1.xpose.msra.mxu0 0.0
      %1436 = vmatprep.subr.mxu0 0.0
      %1437 = vmatpush1.xpose.msra.mxu0 0.0
      %1438 = vmatprep.subr.mxu0 0.0
      %1439 = vmatpush1.xpose.msra.mxu0 0.0
      %1440 = vmatprep.subr.mxu0 0.0
      %1441 = vmatpush1.xpose.msra.mxu0 0.0
      %1442 = vmatprep.subr.mxu0 0.0
      %1443 = vmatpush1.xpose.msra.mxu0 0.0
      %1444 = vmatprep.subr.mxu0 0.0
      %1445 = vmatpush1.xpose.msra.mxu0 0.0
      %1446 = vmatprep.subr.mxu0 0.0
      %1447 = vmatpush1.xpose.msra.mxu0 0.0
      %1448 = vmatprep.subr.mxu0 0.0
      %1449 = vmatpush1.xpose.msra.mxu0 0.0
      %1450 = vmatprep.subr.mxu0 0.0
      %1451 = vmatpush1.xpose.msra.mxu0 0.0
      %1452 = vmatprep.subr.mxu0 0.0
      %1453 = vmatpush1.xpose.msra.mxu0 0.0
      %1454 = vmatprep.subr.mxu0 0.0
      %1455 = vmatpush1.xpose.msra.mxu0 0.0
      %1456 = vmatprep.subr.mxu0 0.0
      %1457 = vmatpush1.xpose.msra.mxu0 0.0
      %1458 = vmatprep.subr.mxu0 0.0
      %1459 = vmatpush1.xpose.msra.mxu0 0.0
      %1460 = vmatprep.subr.mxu0 0.0
      %1461 = vmatpush1.xpose.msra.mxu0 0.0
      %1462 = vmatprep.subr.mxu0 0.0
      %1463 = vmatpush1.xpose.msra.mxu0 0.0
      %1464 = vmatprep.subr.mxu0 0.0
      %1465 = vmatpush1.xpose.msra.mxu0 0.0
      %1466 = vmatprep.subr.mxu0 0.0
      %1467 = vmatpush1.xpose.msra.mxu0 0.0
      %1468 = vmatprep.subr.mxu0 0.0
      %1469 = vmatpush1.xpose.msra.mxu0 0.0
      %1470 = vmatprep.subr.mxu0 0.0
      %1471 = vmatpush1.xpose.msra.mxu0 0.0
      %1472 = vmatprep.subr.mxu0 0.0
      %1473 = vmatpush1.xpose.msra.mxu0 0.0
      %1474 = vmatprep.subr.mxu0 0.0
      %1475 = vmatpush1.xpose.msra.mxu0 0.0
      %1476 = vmatprep.subr.mxu0 0.0
      %1477 = vmatpush1.xpose.msra.mxu0 0.0
      %1478 = vmatprep.mubr.f32.mxu0 0.0
      %1479 = vmatmul.mubr.f32.gmra.mrb[0].mxu0 %v1406
      %v1480 = vpop.f32.mrb[0].mxu0
      %v1481 = vadd.f32 0.0, %v1480
      %v1482 = vpop.f32.mrb[0].mxu0
      %1483 = vmatprep.mubr.f32.mxu0 0.0
      %1484 = vmatmul.mubr.f32.gmra.mrb[0].mxu0 %v1408
      %v1485 = vpop.f32.mrb[0].mxu0
      %v1486 = vadd.f32 0.0, %v1485
      %v1487 = vpop.f32.mrb[0].mxu0
      %1488 = vdwg.mxu0
      %v1489 = vmul.f32 %v1481, 0.35355338
      %v1490 = vmul.f32 %v1486, 0.35355338
      %v1491 = vadd.f32 %v1489, %v1073
      %v1492 = vadd.f32 %v1490, %v1073
      %v1493 = vsel %vm1288, %v1491, -inf
      %1494 = vmax.xlane.f32.xlu0 %v1493
      %v1495 = vpop.xlane.xlu0 %1494
      %v1496 = vsel %vm1288, %v1492, -inf
      %1497 = vmax.xlane.f32.xlu0 %v1496
      %v1498 = vpop.xlane.xlu0 %1497
      %v1499 = vsub.f32 %v1491, %v1495
      %v1500 = vsub.f32 %v1492, %v1498
      %v1501 = vmul.f32 %v1499, 1.442695
      %v1502 = vpow.pop %v1501
      %v1503 = vmul.f32 %v1500, 1.442695
      %v1504 = vpow.pop %v1503
      %v1505 = vsel %vm1288, %v1502, 0.0
      %1506 = vadd.xlane.f32.xlu0 %v1505
      %v1507 = vpop.xlane.xlu0 %1506
      %v1508 = vsel %vm1288, %v1504, 0.0
      %1509 = vadd.xlane.f32.xlu0 %v1508
      %v1510 = vpop.xlane.xlu0 %1509
      %v1511 = vrcp.pop %v1507
      %v1512 = vrcp.pop %v1510
      %v1513 = vmul.f32 %v1502, %v1511
      %v1514 = vmul.f32 %v1504, %v1512
      %1515 = vrot.lane.b32.xlu0 %v1186, 56
      %v1516 = vpop.permute.xlu0 %1515
      %1517 = vrot.lane.b32.xlu0 %v1191, 56
      %v1518 = vpop.permute.xlu0 %1517
      %v1522 = vsel %vm1288, %v1513, 0
      %v1525 = vsel %vm1288, %v1514, 0
      %1527 = vmatprep.subr.mxu0 0.0
      %1528 = vmatpush1.msra.mxu0 %v1516
      %1529 = vmatprep.subr.mxu0 0.0
      %1530 = vmatpush1.msra.mxu0 %v1518
      %1531 = vmatprep.subr.mxu0 0.0
      %1532 = vmatpush1.msra.mxu0 0.0
      %1533 = vmatprep.subr.mxu0 0.0
      %1534 = vmatpush1.msra.mxu0 0.0
      %1535 = vmatprep.subr.mxu0 0.0
      %1536 = vmatpush1.msra.mxu0 0.0
      %1537 = vmatprep.subr.mxu0 0.0
      %1538 = vmatpush1.msra.mxu0 0.0
      %1539 = vmatprep.subr.mxu0 0.0
      %1540 = vmatpush1.msra.mxu0 0.0
      %1541 = vmatprep.subr.mxu0 0.0
      %1542 = vmatpush1.msra.mxu0 0.0
      %1543 = vmatprep.subr.mxu0 0.0
      %1544 = vmatpush1.msra.mxu0 0.0
      %1545 = vmatprep.subr.mxu0 0.0
      %1546 = vmatpush1.msra.mxu0 0.0
      %1547 = vmatprep.subr.mxu0 0.0
      %1548 = vmatpush1.msra.mxu0 0.0
      %1549 = vmatprep.subr.mxu0 0.0
      %1550 = vmatpush1.msra.mxu0 0.0
      %1551 = vmatprep.subr.mxu0 0.0
      %1552 = vmatpush1.msra.mxu0 0.0
      %1553 = vmatprep.subr.mxu0 0.0
      %1554 = vmatpush1.msra.mxu0 0.0
      %1555 = vmatprep.subr.mxu0 0.0
      %1556 = vmatpush1.msra.mxu0 0.0
      %1557 = vmatprep.subr.mxu0 0.0
      %1558 = vmatpush1.msra.mxu0 0.0
      %1559 = vmatprep.subr.mxu0 0.0
      %1560 = vmatpush1.msra.mxu0 0.0
      %1561 = vmatprep.subr.mxu0 0.0
      %1562 = vmatpush1.msra.mxu0 0.0
      %1563 = vmatprep.subr.mxu0 0.0
      %1564 = vmatpush1.msra.mxu0 0.0
      %1565 = vmatprep.subr.mxu0 0.0
      %1566 = vmatpush1.msra.mxu0 0.0
      %1567 = vmatprep.subr.mxu0 0.0
      %1568 = vmatpush1.msra.mxu0 0.0
      %1569 = vmatprep.subr.mxu0 0.0
      %1570 = vmatpush1.msra.mxu0 0.0
      %1571 = vmatprep.subr.mxu0 0.0
      %1572 = vmatpush1.msra.mxu0 0.0
      %1573 = vmatprep.subr.mxu0 0.0
      %1574 = vmatpush1.msra.mxu0 0.0
      %1575 = vmatprep.subr.mxu0 0.0
      %1576 = vmatpush1.msra.mxu0 0.0
      %1577 = vmatprep.subr.mxu0 0.0
      %1578 = vmatpush1.msra.mxu0 0.0
      %1579 = vmatprep.subr.mxu0 0.0
      %1580 = vmatpush1.msra.mxu0 0.0
      %1581 = vmatprep.subr.mxu0 0.0
      %1582 = vmatpush1.msra.mxu0 0.0
      %1583 = vmatprep.subr.mxu0 0.0
      %1584 = vmatpush1.msra.mxu0 0.0
      %1585 = vmatprep.subr.mxu0 0.0
      %1586 = vmatpush1.msra.mxu0 0.0
      %1587 = vmatprep.subr.mxu0 0.0
      %1588 = vmatpush1.msra.mxu0 0.0
      %1589 = vmatprep.subr.mxu0 0.0
      %1590 = vmatpush1.msra.mxu0 0.0
      %1591 = vmatprep.mubr.f32.mxu0 0.0
      %1592 = vmatmul.mubr.f32.gmra.mrb[0].mxu0 %v1522
      %v1593 = vpop.f32.mrb[0].mxu0
      %v1594 = vadd.f32 0.0, %v1593
      %v1595 = vpop.f32.mrb[0].mxu0
      %1596 = vmatprep.mubr.f32.mxu0 0.0
      %1597 = vmatmul.mubr.f32.gmra.mrb[0].mxu0 %v1525
      %v1598 = vpop.f32.mrb[0].mxu0
      %v1599 = vadd.f32 0.0, %v1598
      %v1600 = vpop.f32.mrb[0].mxu0
      %1601 = vdwg.mxu0
      %1602 = vrot.lane.b32.xlu0 %v1186, 112
      %v1603 = vpop.permute.xlu0 %1602
      %1604 = vrot.lane.b32.xlu0 %v1191, 112
      %v1605 = vpop.permute.xlu0 %1604
      %1606 = vrot.lane.b32.xlu0 %v1186, 80
      %v1607 = vpop.permute.xlu0 %1606
      %1608 = vrot.lane.b32.xlu0 %v1191, 80
      %v1609 = vpop.permute.xlu0 %1608
      %v1610 = vsel %vm1200, %v1603, 0
      %v1612 = vsel %vm1200, %v1605, 0
      %v1614 = vsel %vm1200, %v1607, 0
      %v1616 = vsel %vm1200, %v1609, 0
      %1618 = vmatprep.subr.mxu0 0.0
      %1619 = vmatpush1.xpose.msra.mxu0 %v1614
      %1620 = vmatprep.subr.mxu0 0.0
      %1621 = vmatpush1.xpose.msra.mxu0 %v1616
      %1622 = vmatprep.subr.mxu0 0.0
      %1623 = vmatpush1.xpose.msra.mxu0 0.0
      %1624 = vmatprep.subr.mxu0 0.0
      %1625 = vmatpush1.xpose.msra.mxu0 0.0
      %1626 = vmatprep.subr.mxu0 0.0
      %1627 = vmatpush1.xpose.msra.mxu0 0.0
      %1628 = vmatprep.subr.mxu0 0.0
      %1629 = vmatpush1.xpose.msra.mxu0 0.0
      %1630 = vmatprep.subr.mxu0 0.0
      %1631 = vmatpush1.xpose.msra.mxu0 0.0
      %1632 = vmatprep.subr.mxu0 0.0
      %1633 = vmatpush1.xpose.msra.mxu0 0.0
      %1634 = vmatprep.subr.mxu0 0.0
      %1635 = vmatpush1.xpose.msra.mxu0 0.0
      %1636 = vmatprep.subr.mxu0 0.0
      %1637 = vmatpush1.xpose.msra.mxu0 0.0
      %1638 = vmatprep.subr.mxu0 0.0
      %1639 = vmatpush1.xpose.msra.mxu0 0.0
      %1640 = vmatprep.subr.mxu0 0.0
      %1641 = vmatpush1.xpose.msra.mxu0 0.0
      %1642 = vmatprep.subr.mxu0 0.0
      %1643 = vmatpush1.xpose.msra.mxu0 0.0
      %1644 = vmatprep.subr.mxu0 0.0
      %1645 = vmatpush1.xpose.msra.mxu0 0.0
      %1646 = vmatprep.subr.mxu0 0.0
      %1647 = vmatpush1.xpose.msra.mxu0 0.0
      %1648 = vmatprep.subr.mxu0 0.0
      %1649 = vmatpush1.xpose.msra.mxu0 0.0
      %1650 = vmatprep.subr.mxu0 0.0
      %1651 = vmatpush1.xpose.msra.mxu0 0.0
      %1652 = vmatprep.subr.mxu0 0.0
      %1653 = vmatpush1.xpose.msra.mxu0 0.0
      %1654 = vmatprep.subr.mxu0 0.0
      %1655 = vmatpush1.xpose.msra.mxu0 0.0
      %1656 = vmatprep.subr.mxu0 0.0
      %1657 = vmatpush1.xpose.msra.mxu0 0.0
      %1658 = vmatprep.subr.mxu0 0.0
      %1659 = vmatpush1.xpose.msra.mxu0 0.0
      %1660 = vmatprep.subr.mxu0 0.0
      %1661 = vmatpush1.xpose.msra.mxu0 0.0
      %1662 = vmatprep.subr.mxu0 0.0
      %1663 = vmatpush1.xpose.msra.mxu0 0.0
      %1664 = vmatprep.subr.mxu0 0.0
      %1665 = vmatpush1.xpose.msra.mxu0 0.0
      %1666 = vmatprep.subr.mxu0 0.0
      %1667 = vmatpush1.xpose.msra.mxu0 0.0
      %1668 = vmatprep.subr.mxu0 0.0
      %1669 = vmatpush1.xpose.msra.mxu0 0.0
      %1670 = vmatprep.subr.mxu0 0.0
      %1671 = vmatpush1.xpose.msra.mxu0 0.0
      %1672 = vmatprep.subr.mxu0 0.0
      %1673 = vmatpush1.xpose.msra.mxu0 0.0
      %1674 = vmatprep.subr.mxu0 0.0
      %1675 = vmatpush1.xpose.msra.mxu0 0.0
      %1676 = vmatprep.subr.mxu0 0.0
      %1677 = vmatpush1.xpose.msra.mxu0 0.0
      %1678 = vmatprep.subr.mxu0 0.0
      %1679 = vmatpush1.xpose.msra.mxu0 0.0
      %1680 = vmatprep.subr.mxu0 0.0
      %1681 = vmatpush1.xpose.msra.mxu0 0.0
      %1682 = vmatprep.mubr.f32.mxu0 0.0
      %1683 = vmatmul.mubr.f32.gmra.mrb[0].mxu0 %v1610
      %v1684 = vpop.f32.mrb[0].mxu0
      %v1685 = vadd.f32 0.0, %v1684
      %v1686 = vpop.f32.mrb[0].mxu0
      %1687 = vmatprep.mubr.f32.mxu0 0.0
      %1688 = vmatmul.mubr.f32.gmra.mrb[0].mxu0 %v1612
      %v1689 = vpop.f32.mrb[0].mxu0
      %v1690 = vadd.f32 0.0, %v1689
      %v1691 = vpop.f32.mrb[0].mxu0
      %1692 = vdwg.mxu0
      %v1693 = vmul.f32 %v1685, 0.35355338
      %v1694 = vmul.f32 %v1690, 0.35355338
      %v1695 = vadd.f32 %v1693, %v1073
      %v1696 = vadd.f32 %v1694, %v1073
      %v1697 = vsel %vm1288, %v1695, -inf
      %1698 = vmax.xlane.f32.xlu0 %v1697
      %v1699 = vpop.xlane.xlu0 %1698
      %v1700 = vsel %vm1288, %v1696, -inf
      %1701 = vmax.xlane.f32.xlu0 %v1700
      %v1702 = vpop.xlane.xlu0 %1701
      %v1703 = vsub.f32 %v1695, %v1699
      %v1704 = vsub.f32 %v1696, %v1702
      %v1705 = vmul.f32 %v1703, 1.442695
      %v1706 = vpow.pop %v1705
      %v1707 = vmul.f32 %v1704, 1.442695
      %v1708 = vpow.pop %v1707
      %v1709 = vsel %vm1288, %v1706, 0.0
      %1710 = vadd.xlane.f32.xlu0 %v1709
      %v1711 = vpop.xlane.xlu0 %1710
      %v1712 = vsel %vm1288, %v1708, 0.0
      %1713 = vadd.xlane.f32.xlu0 %v1712
      %v1714 = vpop.xlane.xlu0 %1713
      %v1715 = vrcp.pop %v1711
      %v1716 = vrcp.pop %v1714
      %v1717 = vmul.f32 %v1706, %v1715
      %v1718 = vmul.f32 %v1708, %v1716
      %1719 = vrot.lane.b32.xlu0 %v1186, 48
      %v1720 = vpop.permute.xlu0 %1719
      %1721 = vrot.lane.b32.xlu0 %v1191, 48
      %v1722 = vpop.permute.xlu0 %1721
      %v1726 = vsel %vm1288, %v1717, 0
      %v1729 = vsel %vm1288, %v1718, 0
      %1731 = vmatprep.subr.mxu0 0.0
      %1732 = vmatpush1.msra.mxu0 %v1720
      %1733 = vmatprep.subr.mxu0 0.0
      %1734 = vmatpush1.msra.mxu0 %v1722
      %1735 = vmatprep.subr.mxu0 0.0
      %1736 = vmatpush1.msra.mxu0 0.0
      %1737 = vmatprep.subr.mxu0 0.0
      %1738 = vmatpush1.msra.mxu0 0.0
      %1739 = vmatprep.subr.mxu0 0.0
      %1740 = vmatpush1.msra.mxu0 0.0
      %1741 = vmatprep.subr.mxu0 0.0
      %1742 = vmatpush1.msra.mxu0 0.0
      %1743 = vmatprep.subr.mxu0 0.0
      %1744 = vmatpush1.msra.mxu0 0.0
      %1745 = vmatprep.subr.mxu0 0.0
      %1746 = vmatpush1.msra.mxu0 0.0
      %1747 = vmatprep.subr.mxu0 0.0
      %1748 = vmatpush1.msra.mxu0 0.0
      %1749 = vmatprep.subr.mxu0 0.0
      %1750 = vmatpush1.msra.mxu0 0.0
      %1751 = vmatprep.subr.mxu0 0.0
      %1752 = vmatpush1.msra.mxu0 0.0
      %1753 = vmatprep.subr.mxu0 0.0
      %1754 = vmatpush1.msra.mxu0 0.0
      %1755 = vmatprep.subr.mxu0 0.0
      %1756 = vmatpush1.msra.mxu0 0.0
      %1757 = vmatprep.subr.mxu0 0.0
      %1758 = vmatpush1.msra.mxu0 0.0
      %1759 = vmatprep.subr.mxu0 0.0
      %1760 = vmatpush1.msra.mxu0 0.0
      %1761 = vmatprep.subr.mxu0 0.0
      %1762 = vmatpush1.msra.mxu0 0.0
      %1763 = vmatprep.subr.mxu0 0.0
      %1764 = vmatpush1.msra.mxu0 0.0
      %1765 = vmatprep.subr.mxu0 0.0
      %1766 = vmatpush1.msra.mxu0 0.0
      %1767 = vmatprep.subr.mxu0 0.0
      %1768 = vmatpush1.msra.mxu0 0.0
      %1769 = vmatprep.subr.mxu0 0.0
      %1770 = vmatpush1.msra.mxu0 0.0
      %1771 = vmatprep.subr.mxu0 0.0
      %1772 = vmatpush1.msra.mxu0 0.0
      %1773 = vmatprep.subr.mxu0 0.0
      %1774 = vmatpush1.msra.mxu0 0.0
      %1775 = vmatprep.subr.mxu0 0.0
      %1776 = vmatpush1.msra.mxu0 0.0
      %1777 = vmatprep.subr.mxu0 0.0
      %1778 = vmatpush1.msra.mxu0 0.0
      %1779 = vmatprep.subr.mxu0 0.0
      %1780 = vmatpush1.msra.mxu0 0.0
      %1781 = vmatprep.subr.mxu0 0.0
      %1782 = vmatpush1.msra.mxu0 0.0
      %1783 = vmatprep.subr.mxu0 0.0
      %1784 = vmatpush1.msra.mxu0 0.0
      %1785 = vmatprep.subr.mxu0 0.0
      %1786 = vmatpush1.msra.mxu0 0.0
      %1787 = vmatprep.subr.mxu0 0.0
      %1788 = vmatpush1.msra.mxu0 0.0
      %1789 = vmatprep.subr.mxu0 0.0
      %1790 = vmatpush1.msra.mxu0 0.0
      %1791 = vmatprep.subr.mxu0 0.0
      %1792 = vmatpush1.msra.mxu0 0.0
      %1793 = vmatprep.subr.mxu0 0.0
      %1794 = vmatpush1.msra.mxu0 0.0
      %1795 = vmatprep.mubr.f32.mxu0 0.0
      %1796 = vmatmul.mubr.f32.gmra.mrb[0].mxu0 %v1726
      %v1797 = vpop.f32.mrb[0].mxu0
      %v1798 = vadd.f32 0.0, %v1797
      %v1799 = vpop.f32.mrb[0].mxu0
      %1800 = vmatprep.mubr.f32.mxu0 0.0
      %1801 = vmatmul.mubr.f32.gmra.mrb[0].mxu0 %v1729
      %v1802 = vpop.f32.mrb[0].mxu0
      %v1803 = vadd.f32 0.0, %v1802
      %v1804 = vpop.f32.mrb[0].mxu0
      %1805 = vdwg.mxu0
      %1806 = vrot.lane.b32.xlu0 %v1186, 104
      %v1807 = vpop.permute.xlu0 %1806
      %1808 = vrot.lane.b32.xlu0 %v1191, 104
      %v1809 = vpop.permute.xlu0 %1808
      %1810 = vrot.lane.b32.xlu0 %v1186, 72
      %v1811 = vpop.permute.xlu0 %1810
      %1812 = vrot.lane.b32.xlu0 %v1191, 72
      %v1813 = vpop.permute.xlu0 %1812
      %v1814 = vsel %vm1200, %v1807, 0
      %v1816 = vsel %vm1200, %v1809, 0
      %v1818 = vsel %vm1200, %v1811, 0
      %v1820 = vsel %vm1200, %v1813, 0
      %1822 = vmatprep.subr.mxu0 0.0
      %1823 = vmatpush1.xpose.msra.mxu0 %v1818
      %1824 = vmatprep.subr.mxu0 0.0
      %1825 = vmatpush1.xpose.msra.mxu0 %v1820
      %1826 = vmatprep.subr.mxu0 0.0
      %1827 = vmatpush1.xpose.msra.mxu0 0.0
      %1828 = vmatprep.subr.mxu0 0.0
      %1829 = vmatpush1.xpose.msra.mxu0 0.0
      %1830 = vmatprep.subr.mxu0 0.0
      %1831 = vmatpush1.xpose.msra.mxu0 0.0
      %1832 = vmatprep.subr.mxu0 0.0
      %1833 = vmatpush1.xpose.msra.mxu0 0.0
      %1834 = vmatprep.subr.mxu0 0.0
      %1835 = vmatpush1.xpose.msra.mxu0 0.0
      %1836 = vmatprep.subr.mxu0 0.0
      %1837 = vmatpush1.xpose.msra.mxu0 0.0
      %1838 = vmatprep.subr.mxu0 0.0
      %1839 = vmatpush1.xpose.msra.mxu0 0.0
      %1840 = vmatprep.subr.mxu0 0.0
      %1841 = vmatpush1.xpose.msra.mxu0 0.0
      %1842 = vmatprep.subr.mxu0 0.0
      %1843 = vmatpush1.xpose.msra.mxu0 0.0
      %1844 = vmatprep.subr.mxu0 0.0
      %1845 = vmatpush1.xpose.msra.mxu0 0.0
      %1846 = vmatprep.subr.mxu0 0.0
      %1847 = vmatpush1.xpose.msra.mxu0 0.0
      %1848 = vmatprep.subr.mxu0 0.0
      %1849 = vmatpush1.xpose.msra.mxu0 0.0
      %1850 = vmatprep.subr.mxu0 0.0
      %1851 = vmatpush1.xpose.msra.mxu0 0.0
      %1852 = vmatprep.subr.mxu0 0.0
      %1853 = vmatpush1.xpose.msra.mxu0 0.0
      %1854 = vmatprep.subr.mxu0 0.0
      %1855 = vmatpush1.xpose.msra.mxu0 0.0
      %1856 = vmatprep.subr.mxu0 0.0
      %1857 = vmatpush1.xpose.msra.mxu0 0.0
      %1858 = vmatprep.subr.mxu0 0.0
      %1859 = vmatpush1.xpose.msra.mxu0 0.0
      %1860 = vmatprep.subr.mxu0 0.0
      %1861 = vmatpush1.xpose.msra.mxu0 0.0
      %1862 = vmatprep.subr.mxu0 0.0
      %1863 = vmatpush1.xpose.msra.mxu0 0.0
      %1864 = vmatprep.subr.mxu0 0.0
      %1865 = vmatpush1.xpose.msra.mxu0 0.0
      %1866 = vmatprep.subr.mxu0 0.0
      %1867 = vmatpush1.xpose.msra.mxu0 0.0
      %1868 = vmatprep.subr.mxu0 0.0
      %1869 = vmatpush1.xpose.msra.mxu0 0.0
      %1870 = vmatprep.subr.mxu0 0.0
      %1871 = vmatpush1.xpose.msra.mxu0 0.0
      %1872 = vmatprep.subr.mxu0 0.0
      %1873 = vmatpush1.xpose.msra.mxu0 0.0
      %1874 = vmatprep.subr.mxu0 0.0
      %1875 = vmatpush1.xpose.msra.mxu0 0.0
      %1876 = vmatprep.subr.mxu0 0.0
      %1877 = vmatpush1.xpose.msra.mxu0 0.0
      %1878 = vmatprep.subr.mxu0 0.0
      %1879 = vmatpush1.xpose.msra.mxu0 0.0
      %1880 = vmatprep.subr.mxu0 0.0
      %1881 = vmatpush1.xpose.msra.mxu0 0.0
      %1882 = vmatprep.subr.mxu0 0.0
      %1883 = vmatpush1.xpose.msra.mxu0 0.0
      %1884 = vmatprep.subr.mxu0 0.0
      %1885 = vmatpush1.xpose.msra.mxu0 0.0
      %1886 = vmatprep.mubr.f32.mxu0 0.0
      %1887 = vmatmul.mubr.f32.gmra.mrb[0].mxu0 %v1814
      %v1888 = vpop.f32.mrb[0].mxu0
      %v1889 = vadd.f32 0.0, %v1888
      %v1890 = vpop.f32.mrb[0].mxu0
      %1891 = vmatprep.mubr.f32.mxu0 0.0
      %1892 = vmatmul.mubr.f32.gmra.mrb[0].mxu0 %v1816
      %v1893 = vpop.f32.mrb[0].mxu0
      %v1894 = vadd.f32 0.0, %v1893
      %v1895 = vpop.f32.mrb[0].mxu0
      %1896 = vdwg.mxu0
      %v1897 = vmul.f32 %v1889, 0.35355338
      %v1898 = vmul.f32 %v1894, 0.35355338
      %v1899 = vadd.f32 %v1897, %v1073
      %v1900 = vadd.f32 %v1898, %v1073
      %v1901 = vsel %vm1288, %v1899, -inf
      %1902 = vmax.xlane.f32.xlu0 %v1901
      %v1903 = vpop.xlane.xlu0 %1902
      %v1904 = vsel %vm1288, %v1900, -inf
      %1905 = vmax.xlane.f32.xlu0 %v1904
      %v1906 = vpop.xlane.xlu0 %1905
      %v1907 = vsub.f32 %v1899, %v1903
      %v1908 = vsub.f32 %v1900, %v1906
      %v1909 = vmul.f32 %v1907, 1.442695
      %v1910 = vpow.pop %v1909
      %v1911 = vmul.f32 %v1908, 1.442695
      %v1912 = vpow.pop %v1911
      %v1913 = vsel %vm1288, %v1910, 0.0
      %1914 = vadd.xlane.f32.xlu0 %v1913
      %v1915 = vpop.xlane.xlu0 %1914
      %v1916 = vsel %vm1288, %v1912, 0.0
      %1917 = vadd.xlane.f32.xlu0 %v1916
      %v1918 = vpop.xlane.xlu0 %1917
      %v1919 = vrcp.pop %v1915
      %v1920 = vrcp.pop %v1918
      %v1921 = vmul.f32 %v1910, %v1919
      %v1922 = vmul.f32 %v1912, %v1920
      %1923 = vrot.lane.b32.xlu0 %v1186, 40
      %v1924 = vpop.permute.xlu0 %1923
      %1925 = vrot.lane.b32.xlu0 %v1191, 40
      %v1926 = vpop.permute.xlu0 %1925
      %v1930 = vsel %vm1288, %v1921, 0
      %v1933 = vsel %vm1288, %v1922, 0
      %1935 = vmatprep.subr.mxu0 0.0
      %1936 = vmatpush1.msra.mxu0 %v1924
      %1937 = vmatprep.subr.mxu0 0.0
      %1938 = vmatpush1.msra.mxu0 %v1926
      %1939 = vmatprep.subr.mxu0 0.0
      %1940 = vmatpush1.msra.mxu0 0.0
      %1941 = vmatprep.subr.mxu0 0.0
      %1942 = vmatpush1.msra.mxu0 0.0
      %1943 = vmatprep.subr.mxu0 0.0
      %1944 = vmatpush1.msra.mxu0 0.0
      %1945 = vmatprep.subr.mxu0 0.0
      %1946 = vmatpush1.msra.mxu0 0.0
      %1947 = vmatprep.subr.mxu0 0.0
      %1948 = vmatpush1.msra.mxu0 0.0
      %1949 = vmatprep.subr.mxu0 0.0
      %1950 = vmatpush1.msra.mxu0 0.0
      %1951 = vmatprep.subr.mxu0 0.0
      %1952 = vmatpush1.msra.mxu0 0.0
      %1953 = vmatprep.subr.mxu0 0.0
      %1954 = vmatpush1.msra.mxu0 0.0
      %1955 = vmatprep.subr.mxu0 0.0
      %1956 = vmatpush1.msra.mxu0 0.0
      %1957 = vmatprep.subr.mxu0 0.0
      %1958 = vmatpush1.msra.mxu0 0.0
      %1959 = vmatprep.subr.mxu0 0.0
      %1960 = vmatpush1.msra.mxu0 0.0
      %1961 = vmatprep.subr.mxu0 0.0
      %1962 = vmatpush1.msra.mxu0 0.0
      %1963 = vmatprep.subr.mxu0 0.0
      %1964 = vmatpush1.msra.mxu0 0.0
      %1965 = vmatprep.subr.mxu0 0.0
      %1966 = vmatpush1.msra.mxu0 0.0
      %1967 = vmatprep.subr.mxu0 0.0
      %1968 = vmatpush1.msra.mxu0 0.0
      %1969 = vmatprep.subr.mxu0 0.0
      %1970 = vmatpush1.msra.mxu0 0.0
      %1971 = vmatprep.subr.mxu0 0.0
      %1972 = vmatpush1.msra.mxu0 0.0
      %1973 = vmatprep.subr.mxu0 0.0
      %1974 = vmatpush1.msra.mxu0 0.0
      %1975 = vmatprep.subr.mxu0 0.0
      %1976 = vmatpush1.msra.mxu0 0.0
      %1977 = vmatprep.subr.mxu0 0.0
      %1978 = vmatpush1.msra.mxu0 0.0
      %1979 = vmatprep.subr.mxu0 0.0
      %1980 = vmatpush1.msra.mxu0 0.0
      %1981 = vmatprep.subr.mxu0 0.0
      %1982 = vmatpush1.msra.mxu0 0.0
      %1983 = vmatprep.subr.mxu0 0.0
      %1984 = vmatpush1.msra.mxu0 0.0
      %1985 = vmatprep.subr.mxu0 0.0
      %1986 = vmatpush1.msra.mxu0 0.0
      %1987 = vmatprep.subr.mxu0 0.0
      %1988 = vmatpush1.msra.mxu0 0.0
      %1989 = vmatprep.subr.mxu0 0.0
      %1990 = vmatpush1.msra.mxu0 0.0
      %1991 = vmatprep.subr.mxu0 0.0
      %1992 = vmatpush1.msra.mxu0 0.0
      %1993 = vmatprep.subr.mxu0 0.0
      %1994 = vmatpush1.msra.mxu0 0.0
      %1995 = vmatprep.subr.mxu0 0.0
      %1996 = vmatpush1.msra.mxu0 0.0
      %1997 = vmatprep.subr.mxu0 0.0
      %1998 = vmatpush1.msra.mxu0 0.0
      %1999 = vmatprep.mubr.f32.mxu0 0.0
      %2000 = vmatmul.mubr.f32.gmra.mrb[0].mxu0 %v1930
      %v2001 = vpop.f32.mrb[0].mxu0
      %v2002 = vadd.f32 0.0, %v2001
      %v2003 = vpop.f32.mrb[0].mxu0
      %2004 = vmatprep.mubr.f32.mxu0 0.0
      %2005 = vmatmul.mubr.f32.gmra.mrb[0].mxu0 %v1933
      %v2006 = vpop.f32.mrb[0].mxu0
      %v2007 = vadd.f32 0.0, %v2006
      %v2008 = vpop.f32.mrb[0].mxu0
      %2009 = vdwg.mxu0
      %2012 = vrot.lane.b32.xlu0 %v1594, 8
      %v2013 = vpop.permute.xlu0 %2012
      %2014 = vrot.lane.b32.xlu0 %v1599, 8
      %v2015 = vpop.permute.xlu0 %2014
      %2020 = vrot.lane.b32.xlu0 %v1798, 16
      %v2021 = vpop.permute.xlu0 %2020
      %2022 = vrot.lane.b32.xlu0 %v1803, 16
      %v2023 = vpop.permute.xlu0 %2022
      %2028 = vrot.lane.b32.xlu0 %v2002, 24
      %v2029 = vpop.permute.xlu0 %2028
      %2030 = vrot.lane.b32.xlu0 %v2007, 24
      %v2031 = vpop.permute.xlu0 %2030
      %v2034 = vsel %vm1200, %v1390, %v2013
      %v2035 = vsel %vm1200, %v1395, %v2015
      %v2036 = vsel %vm1288, %v2034, %v2021
      %v2037 = vsel %vm1288, %v2035, %v2023
      %v2038 = vsel %vm981, %v2036, %v2029
      %v2039 = vsel %vm981, %v2037, %v2031
      %v2040 = vld [vmem:[%s16] sm:$0xff]
      %v2041 = vld [vmem:[%s16 + $0x8] sm:$0xff]
      %v2042 = vld [vmem:[%s16 + $0x10] sm:$0xff]
      %v2043 = vld [vmem:[%s16 + $0x18] sm:$0xff]
      %v2044 = vld [vmem:[%s17] sm:$0x1]
      %v2046 = vlaneseq
      %v2047 = vshrl.u32 %v2046, 7
      %v2048 = vsub.s32 0, %v2047
      %v2049 = vrot.slane %v2044, %v2048
      %v2052 = vsel %vm966, %v2038, 0
      %v2055 = vsel %vm966, %v2039, 0
      %2057 = vmatprep.subr.mxu0 0.0
      %2058 = vmatpush1.msra.mxu0 %v2040
      %2059 = vmatprep.subr.mxu0 0.0
      %2060 = vmatpush1.msra.mxu0 %v2041
      %2061 = vmatprep.subr.mxu0 0.0
      %2062 = vmatpush1.msra.mxu0 %v2042
      %2063 = vmatprep.subr.mxu0 0.0
      %2064 = vmatpush1.msra.mxu0 %v2043
      %2065 = vmatprep.subr.mxu0 0.0
      %2066 = vmatpush1.msra.mxu0 0.0
      %2067 = vmatprep.subr.mxu0 0.0
      %2068 = vmatpush1.msra.mxu0 0.0
      %2069 = vmatprep.subr.mxu0 0.0
      %2070 = vmatpush1.msra.mxu0 0.0
      %2071 = vmatprep.subr.mxu0 0.0
      %2072 = vmatpush1.msra.mxu0 0.0
      %2073 = vmatprep.subr.mxu0 0.0
      %2074 = vmatpush1.msra.mxu0 0.0
      %2075 = vmatprep.subr.mxu0 0.0
      %2076 = vmatpush1.msra.mxu0 0.0
      %2077 = vmatprep.subr.mxu0 0.0
      %2078 = vmatpush1.msra.mxu0 0.0
      %2079 = vmatprep.subr.mxu0 0.0
      %2080 = vmatpush1.msra.mxu0 0.0
      %2081 = vmatprep.subr.mxu0 0.0
      %2082 = vmatpush1.msra.mxu0 0.0
      %2083 = vmatprep.subr.mxu0 0.0
      %2084 = vmatpush1.msra.mxu0 0.0
      %2085 = vmatprep.subr.mxu0 0.0
      %2086 = vmatpush1.msra.mxu0 0.0
      %2087 = vmatprep.subr.mxu0 0.0
      %2088 = vmatpush1.msra.mxu0 0.0
      %2089 = vmatprep.subr.mxu0 0.0
      %2090 = vmatpush1.msra.mxu0 0.0
      %2091 = vmatprep.subr.mxu0 0.0
      %2092 = vmatpush1.msra.mxu0 0.0
      %2093 = vmatprep.subr.mxu0 0.0
      %2094 = vmatpush1.msra.mxu0 0.0
      %2095 = vmatprep.subr.mxu0 0.0
      %2096 = vmatpush1.msra.mxu0 0.0
      %2097 = vmatprep.subr.mxu0 0.0
      %2098 = vmatpush1.msra.mxu0 0.0
      %2099 = vmatprep.subr.mxu0 0.0
      %2100 = vmatpush1.msra.mxu0 0.0
      %2101 = vmatprep.subr.mxu0 0.0
      %2102 = vmatpush1.msra.mxu0 0.0
      %2103 = vmatprep.subr.mxu0 0.0
      %2104 = vmatpush1.msra.mxu0 0.0
      %2105 = vmatprep.subr.mxu0 0.0
      %2106 = vmatpush1.msra.mxu0 0.0
      %2107 = vmatprep.subr.mxu0 0.0
      %2108 = vmatpush1.msra.mxu0 0.0
      %2109 = vmatprep.subr.mxu0 0.0
      %2110 = vmatpush1.msra.mxu0 0.0
      %2111 = vmatprep.subr.mxu0 0.0
      %2112 = vmatpush1.msra.mxu0 0.0
      %2113 = vmatprep.subr.mxu0 0.0
      %2114 = vmatpush1.msra.mxu0 0.0
      %2115 = vmatprep.subr.mxu0 0.0
      %2116 = vmatpush1.msra.mxu0 0.0
      %2117 = vmatprep.subr.mxu0 0.0
      %2118 = vmatpush1.msra.mxu0 0.0
      %2119 = vmatprep.subr.mxu0 0.0
      %2120 = vmatpush1.msra.mxu0 0.0
      %2121 = vmatprep.mubr.f32.mxu0 0.0
      %2122 = vmatmul.mubr.f32.gmra.mrb[0].mxu0 %v2052
      %v2123 = vpop.f32.mrb[0].mxu0
      %v2124 = vadd.f32 %v2049, %v2123
      %v2125 = vpop.f32.mrb[0].mxu0
      %2126 = vmatprep.mubr.f32.mxu0 0.0
      %2127 = vmatmul.mubr.f32.gmra.mrb[0].mxu0 %v2055
      %v2128 = vpop.f32.mrb[0].mxu0
      %v2129 = vadd.f32 %v2049, %v2128
      %v2130 = vpop.f32.mrb[0].mxu0
      %2131 = vdwg.mxu0
      %v2132 = vadd.f32 %v1100, %v2124
      %v2133 = vadd.f32 %v1101, %v2129
      %v2134 = vld [vmem:[%s18] sm:$0x1]
      %v2135 = vld [vmem:[%s19] sm:$0x1]
      %v2136 = vsel %vm966, %v2132, 0.0
      %2137 = vadd.xlane.f32.xlu0 %v2136
      %v2138 = vpop.xlane.xlu0 %2137
      %v2139 = vsel %vm966, %v2133, 0.0
      %2140 = vadd.xlane.f32.xlu0 %v2139
      %v2141 = vpop.xlane.xlu0 %2140
      %v2142 = vrcp.pop 32.0
      %v2143 = vmul.f32 %v2138, %v2142
      %v2144 = vmul.f32 %v2141, %v2142
      %v2145 = vsub.f32 %v2132, %v2143
      %v2146 = vsub.f32 %v2133, %v2144
      %v2147 = vmul.f32 %v2145, %v2145
      %v2148 = vmul.f32 %v2146, %v2146
      %v2149 = vsel %vm966, %v2147, 0.0
      %2150 = vadd.xlane.f32.xlu0 %v2149
      %v2151 = vpop.xlane.xlu0 %2150
      %v2152 = vsel %vm966, %v2148, 0.0
      %2153 = vadd.xlane.f32.xlu0 %v2152
      %v2154 = vpop.xlane.xlu0 %2153
      %v2155 = vmul.f32 %v2151, %v2142
      %v2156 = vmul.f32 %v2154, %v2142
      %v2157 = vadd.f32 %v2155, 1e-05
      %v2158 = vadd.f32 %v2156, 1e-05
      %v2159 = vrsqrt.pop %v2157
      %v2160 = vrsqrt.pop %v2158
      %v2161 = vmul.f32 %v2145, %v2159
      %v2162 = vmul.f32 %v2146, %v2160
      %v2164 = vlaneseq
      %v2165 = vshrl.u32 %v2164, 7
      %v2166 = vsub.s32 0, %v2165
      %v2167 = vrot.slane %v2134, %v2166
      %v2169 = vmul.f32 %v2161, %v2167
      %v2170 = vmul.f32 %v2162, %v2167
      %v2172 = vlaneseq
      %v2173 = vshrl.u32 %v2172, 7
      %v2174 = vsub.s32 0, %v2173
      %v2175 = vrot.slane %v2135, %v2174
      %v2177 = vadd.f32 %v2169, %v2175
      %v2178 = vadd.f32 %v2170, %v2175
      %v2179 = vld [vmem:[%s22] sm:$0xff]
      %v2180 = vld [vmem:[%s22 + $0x8] sm:$0xff]
      %v2181 = vld [vmem:[%s22 + $0x10] sm:$0xff]
      %v2182 = vld [vmem:[%s22 + $0x18] sm:$0xff]
      %v2183 = vld [vmem:[%s23] sm:$0x1]
      %v2185 = vlaneseq
      %v2186 = vshrl.u32 %v2185, 7
      %v2187 = vsub.s32 0, %v2186
      %v2188 = vrot.slane %v2183, %v2187
      %v2191 = vsel %vm966, %v2177, 0
      %v2194 = vsel %vm966, %v2178, 0
      %2196 = vmatprep.subr.mxu0 0.0
      %2197 = vmatpush1.msra.mxu0 %v2179
      %2198 = vmatprep.subr.mxu0 0.0
      %2199 = vmatpush1.msra.mxu0 %v2180
      %2200 = vmatprep.subr.mxu0 0.0
      %2201 = vmatpush1.msra.mxu0 %v2181
      %2202 = vmatprep.subr.mxu0 0.0
      %2203 = vmatpush1.msra.mxu0 %v2182
      %2204 = vmatprep.subr.mxu0 0.0
      %2205 = vmatpush1.msra.mxu0 0.0
      %2206 = vmatprep.subr.mxu0 0.0
      %2207 = vmatpush1.msra.mxu0 0.0
      %2208 = vmatprep.subr.mxu0 0.0
      %2209 = vmatpush1.msra.mxu0 0.0
      %2210 = vmatprep.subr.mxu0 0.0
      %2211 = vmatpush1.msra.mxu0 0.0
      %2212 = vmatprep.subr.mxu0 0.0
      %2213 = vmatpush1.msra.mxu0 0.0
      %2214 = vmatprep.subr.mxu0 0.0
      %2215 = vmatpush1.msra.mxu0 0.0
      %2216 = vmatprep.subr.mxu0 0.0
      %2217 = vmatpush1.msra.mxu0 0.0
      %2218 = vmatprep.subr.mxu0 0.0
      %2219 = vmatpush1.msra.mxu0 0.0
      %2220 = vmatprep.subr.mxu0 0.0
      %2221 = vmatpush1.msra.mxu0 0.0
      %2222 = vmatprep.subr.mxu0 0.0
      %2223 = vmatpush1.msra.mxu0 0.0
      %2224 = vmatprep.subr.mxu0 0.0
      %2225 = vmatpush1.msra.mxu0 0.0
      %2226 = vmatprep.subr.mxu0 0.0
      %2227 = vmatpush1.msra.mxu0 0.0
      %2228 = vmatprep.subr.mxu0 0.0
      %2229 = vmatpush1.msra.mxu0 0.0
      %2230 = vmatprep.subr.mxu0 0.0
      %2231 = vmatpush1.msra.mxu0 0.0
      %2232 = vmatprep.subr.mxu0 0.0
      %2233 = vmatpush1.msra.mxu0 0.0
      %2234 = vmatprep.subr.mxu0 0.0
      %2235 = vmatpush1.msra.mxu0 0.0
      %2236 = vmatprep.subr.mxu0 0.0
      %2237 = vmatpush1.msra.mxu0 0.0
      %2238 = vmatprep.subr.mxu0 0.0
      %2239 = vmatpush1.msra.mxu0 0.0
      %2240 = vmatprep.subr.mxu0 0.0
      %2241 = vmatpush1.msra.mxu0 0.0
      %2242 = vmatprep.subr.mxu0 0.0
      %2243 = vmatpush1.msra.mxu0 0.0
      %2244 = vmatprep.subr.mxu0 0.0
      %2245 = vmatpush1.msra.mxu0 0.0
      %2246 = vmatprep.subr.mxu0 0.0
      %2247 = vmatpush1.msra.mxu0 0.0
      %2248 = vmatprep.subr.mxu0 0.0
      %2249 = vmatpush1.msra.mxu0 0.0
      %2250 = vmatprep.subr.mxu0 0.0
      %2251 = vmatpush1.msra.mxu0 0.0
      %2252 = vmatprep.subr.mxu0 0.0
      %2253 = vmatpush1.msra.mxu0 0.0
      %2254 = vmatprep.subr.mxu0 0.0
      %2255 = vmatpush1.msra.mxu0 0.0
      %2256 = vmatprep.subr.mxu0 0.0
      %2257 = vmatpush1.msra.mxu0 0.0
      %2258 = vmatprep.subr.mxu0 0.0
      %2259 = vmatpush1.msra.mxu0 0.0
      %2260 = vmatprep.mubr.f32.mxu0 0.0
      %2261 = vmatmul.mubr.f32.gmra.mrb[0].mxu0 %v2191
      %v2262 = vpop.f32.mrb[0].mxu0
      %v2263 = vadd.f32 %v2188, %v2262
      %v2264 = vpop.f32.mrb[0].mxu0
      %2265 = vmatprep.mubr.f32.mxu0 0.0
      %2266 = vmatmul.mubr.f32.gmra.mrb[0].mxu0 %v2194
      %v2267 = vpop.f32.mrb[0].mxu0
      %v2268 = vadd.f32 %v2188, %v2267
      %v2269 = vpop.f32.mrb[0].mxu0
      %2270 = vdwg.mxu0
      %v2271 = vmax.f32 %v2263, 0.0
      %v2272 = vmax.f32 %v2268, 0.0
      %v2273 = vld [vmem:[%s24] sm:$0xff]
      %v2274 = vld [vmem:[%s24 + $0x8] sm:$0xff]
      %v2275 = vld [vmem:[%s24 + $0x10] sm:$0xff]
      %v2276 = vld [vmem:[%s24 + $0x18] sm:$0xff]
      %v2277 = vld [vmem:[%s24 + $0x20] sm:$0xff]
      %v2278 = vld [vmem:[%s24 + $0x28] sm:$0xff]
      %v2279 = vld [vmem:[%s24 + $0x30] sm:$0xff]
      %v2280 = vld [vmem:[%s24 + $0x38] sm:$0xff]
      %v2281 = vld [vmem:[%s25] sm:$0x1]
      %v2283 = vlaneseq
      %v2284 = vshrl.u32 %v2283, 7
      %v2285 = vsub.s32 0, %v2284
      %v2286 = vrot.slane %v2281, %v2285
      %vm2288 = vcmask 523264
      %v2290 = vsel %vm2288, %v2271, 0
      %v2293 = vsel %vm2288, %v2272, 0
      %2295 = vmatprep.subr.mxu0 0.0
      %2296 = vmatpush1.msra.mxu0 %v2273
      %2297 = vmatprep.subr.mxu0 0.0
      %2298 = vmatpush1.msra.mxu0 %v2274
      %2299 = vmatprep.subr.mxu0 0.0
      %2300 = vmatpush1.msra.mxu0 %v2275
      %2301 = vmatprep.subr.mxu0 0.0
      %2302 = vmatpush1.msra.mxu0 %v2276
      %2303 = vmatprep.subr.mxu0 0.0
      %2304 = vmatpush1.msra.mxu0 %v2277
      %2305 = vmatprep.subr.mxu0 0.0
      %2306 = vmatpush1.msra.mxu0 %v2278
      %2307 = vmatprep.subr.mxu0 0.0
      %2308 = vmatpush1.msra.mxu0 %v2279
      %2309 = vmatprep.subr.mxu0 0.0
      %2310 = vmatpush1.msra.mxu0 %v2280
      %2311 = vmatprep.subr.mxu0 0.0
      %2312 = vmatpush1.msra.mxu0 0.0
      %2313 = vmatprep.subr.mxu0 0.0
      %2314 = vmatpush1.msra.mxu0 0.0
      %2315 = vmatprep.subr.mxu0 0.0
      %2316 = vmatpush1.msra.mxu0 0.0
      %2317 = vmatprep.subr.mxu0 0.0
      %2318 = vmatpush1.msra.mxu0 0.0
      %2319 = vmatprep.subr.mxu0 0.0
      %2320 = vmatpush1.msra.mxu0 0.0
      %2321 = vmatprep.subr.mxu0 0.0
      %2322 = vmatpush1.msra.mxu0 0.0
      %2323 = vmatprep.subr.mxu0 0.0
      %2324 = vmatpush1.msra.mxu0 0.0
      %2325 = vmatprep.subr.mxu0 0.0
      %2326 = vmatpush1.msra.mxu0 0.0
      %2327 = vmatprep.subr.mxu0 0.0
      %2328 = vmatpush1.msra.mxu0 0.0
      %2329 = vmatprep.subr.mxu0 0.0
      %2330 = vmatpush1.msra.mxu0 0.0
      %2331 = vmatprep.subr.mxu0 0.0
      %2332 = vmatpush1.msra.mxu0 0.0
      %2333 = vmatprep.subr.mxu0 0.0
      %2334 = vmatpush1.msra.mxu0 0.0
      %2335 = vmatprep.subr.mxu0 0.0
      %2336 = vmatpush1.msra.mxu0 0.0
      %2337 = vmatprep.subr.mxu0 0.0
      %2338 = vmatpush1.msra.mxu0 0.0
      %2339 = vmatprep.subr.mxu0 0.0
      %2340 = vmatpush1.msra.mxu0 0.0
      %2341 = vmatprep.subr.mxu0 0.0
      %2342 = vmatpush1.msra.mxu0 0.0
      %2343 = vmatprep.subr.mxu0 0.0
      %2344 = vmatpush1.msra.mxu0 0.0
      %2345 = vmatprep.subr.mxu0 0.0
      %2346 = vmatpush1.msra.mxu0 0.0
      %2347 = vmatprep.subr.mxu0 0.0
      %2348 = vmatpush1.msra.mxu0 0.0
      %2349 = vmatprep.subr.mxu0 0.0
      %2350 = vmatpush1.msra.mxu0 0.0
      %2351 = vmatprep.subr.mxu0 0.0
      %2352 = vmatpush1.msra.mxu0 0.0
      %2353 = vmatprep.subr.mxu0 0.0
      %2354 = vmatpush1.msra.mxu0 0.0
      %2355 = vmatprep.subr.mxu0 0.0
      %2356 = vmatpush1.msra.mxu0 0.0
      %2357 = vmatprep.subr.mxu0 0.0
      %2358 = vmatpush1.msra.mxu0 0.0
      %2359 = vmatprep.mubr.f32.mxu0 0.0
      %2360 = vmatmul.mubr.f32.gmra.mrb[0].mxu0 %v2290
      %v2361 = vpop.f32.mrb[0].mxu0
      %v2362 = vadd.f32 %v2286, %v2361
      %v2363 = vpop.f32.mrb[0].mxu0
      %2364 = vmatprep.mubr.f32.mxu0 0.0
      %2365 = vmatmul.mubr.f32.gmra.mrb[0].mxu0 %v2293
      %v2366 = vpop.f32.mrb[0].mxu0
      %v2367 = vadd.f32 %v2286, %v2366
      %v2368 = vpop.f32.mrb[0].mxu0
      %2369 = vdwg.mxu0
      %v2370 = vadd.f32 %v2177, %v2362
      %v2371 = vadd.f32 %v2178, %v2367
      %v2372 = vld [vmem:[%s20] sm:$0x1]
      %v2373 = vld [vmem:[%s21] sm:$0x1]
      %v2374 = vsel %vm966, %v2370, 0.0
      %2375 = vadd.xlane.f32.xlu0 %v2374
      %v2376 = vpop.xlane.xlu0 %2375
      %v2377 = vsel %vm966, %v2371, 0.0
      %2378 = vadd.xlane.f32.xlu0 %v2377
      %v2379 = vpop.xlane.xlu0 %2378
      %v2380 = vmul.f32 %v2376, %v2142
      %v2381 = vmul.f32 %v2379, %v2142
      %v2382 = vsub.f32 %v2370, %v2380
      %v2383 = vsub.f32 %v2371, %v2381
      %v2384 = vmul.f32 %v2382, %v2382
      %v2385 = vmul.f32 %v2383, %v2383
      %v2386 = vsel %vm966, %v2384, 0.0
      %2387 = vadd.xlane.f32.xlu0 %v2386
      %v2388 = vpop.xlane.xlu0 %2387
      %v2389 = vsel %vm966, %v2385, 0.0
      %2390 = vadd.xlane.f32.xlu0 %v2389
      %v2391 = vpop.xlane.xlu0 %2390
      %v2392 = vmul.f32 %v2388, %v2142
      %v2393 = vmul.f32 %v2391, %v2142
      %v2394 = vadd.f32 %v2392, 1e-05
      %v2395 = vadd.f32 %v2393, 1e-05
      %v2396 = vrsqrt.pop %v2394
      %v2397 = vrsqrt.pop %v2395
      %v2398 = vmul.f32 %v2382, %v2396
      %v2399 = vmul.f32 %v2383, %v2397
      %v2401 = vlaneseq
      %v2402 = vshrl.u32 %v2401, 7
      %v2403 = vsub.s32 0, %v2402
      %v2404 = vrot.slane %v2372, %v2403
      %v2406 = vmul.f32 %v2398, %v2404
      %v2407 = vmul.f32 %v2399, %v2404
      %v2409 = vlaneseq
      %v2410 = vshrl.u32 %v2409, 7
      %v2411 = vsub.s32 0, %v2410
      %v2412 = vrot.slane %v2373, %v2411
      %v2414 = vadd.f32 %v2406, %v2412
      %v2415 = vadd.f32 %v2407, %v2412
      %vm2416 = vcmask 261122
      %2417 = vst.msk [vmem:[#allocation2] sm:$0xfc] %vm2416, %v2414
      %2418 = vst.msk [vmem:[#allocation2 + $0x8] sm:$0xff] %vm966, %v2415
      %v2419 = vld [vmem:[#allocation3] sm:$0xff]
      %s2420 = scalar_lea.vmem %s14, 64
      %v2421 = vld [vmem:[%s2420] sm:$0xff]
      %v2422 = vld [vmem:[%s2420 + $0x8] sm:$0xff]
      %v2423 = vld [vmem:[%s2420 + $0x10] sm:$0xff]
      %v2424 = vld [vmem:[%s2420 + $0x18] sm:$0xff]
      %s2425 = scalar_lea.vmem %s15, 2
      %v2426 = vld [vmem:[%s2425] sm:$0x1]
      %v2428 = vlaneseq
      %v2429 = vshrl.u32 %v2428, 7
      %v2430 = vsub.s32 0, %v2429
      %v2431 = vrot.slane %v2426, %v2430
      %v2434 = vsel %vm966, %v2419, 0
      %2436 = vmatprep.subr.mxu0 0.0
      %2437 = vmatpush1.msra.mxu0 %v2421
      %2438 = vmatprep.subr.mxu0 0.0
      %2439 = vmatpush1.msra.mxu0 %v2422
      %2440 = vmatprep.subr.mxu0 0.0
      %2441 = vmatpush1.msra.mxu0 %v2423
      %2442 = vmatprep.subr.mxu0 0.0
      %2443 = vmatpush1.msra.mxu0 %v2424
      %2444 = vmatprep.subr.mxu0 0.0
      %2445 = vmatpush1.msra.mxu0 0.0
      %2446 = vmatprep.subr.mxu0 0.0
      %2447 = vmatpush1.msra.mxu0 0.0
      %2448 = vmatprep.subr.mxu0 0.0
      %2449 = vmatpush1.msra.mxu0 0.0
      %2450 = vmatprep.subr.mxu0 0.0
      %2451 = vmatpush1.msra.mxu0 0.0
      %2452 = vmatprep.subr.mxu0 0.0
      %2453 = vmatpush1.msra.mxu0 0.0
      %2454 = vmatprep.subr.mxu0 0.0
      %2455 = vmatpush1.msra.mxu0 0.0
      %2456 = vmatprep.subr.mxu0 0.0
      %2457 = vmatpush1.msra.mxu0 0.0
      %2458 = vmatprep.subr.mxu0 0.0
      %2459 = vmatpush1.msra.mxu0 0.0
      %2460 = vmatprep.subr.mxu0 0.0
      %2461 = vmatpush1.msra.mxu0 0.0
      %2462 = vmatprep.subr.mxu0 0.0
      %2463 = vmatpush1.msra.mxu0 0.0
      %2464 = vmatprep.subr.mxu0 0.0
      %2465 = vmatpush1.msra.mxu0 0.0
      %2466 = vmatprep.subr.mxu0 0.0
      %2467 = vmatpush1.msra.mxu0 0.0
      %2468 = vmatprep.subr.mxu0 0.0
      %2469 = vmatpush1.msra.mxu0 0.0
      %2470 = vmatprep.subr.mxu0 0.0
      %2471 = vmatpush1.msra.mxu0 0.0
      %2472 = vmatprep.subr.mxu0 0.0
      %2473 = vmatpush1.msra.mxu0 0.0
      %2474 = vmatprep.subr.mxu0 0.0
      %2475 = vmatpush1.msra.mxu0 0.0
      %2476 = vmatprep.subr.mxu0 0.0
      %2477 = vmatpush1.msra.mxu0 0.0
      %2478 = vmatprep.subr.mxu0 0.0
      %2479 = vmatpush1.msra.mxu0 0.0
      %2480 = vmatprep.subr.mxu0 0.0
      %2481 = vmatpush1.msra.mxu0 0.0
      %2482 = vmatprep.subr.mxu0 0.0
      %2483 = vmatpush1.msra.mxu0 0.0
      %2484 = vmatprep.subr.mxu0 0.0
      %2485 = vmatpush1.msra.mxu0 0.0
      %2486 = vmatprep.subr.mxu0 0.0
      %2487 = vmatpush1.msra.mxu0 0.0
      %2488 = vmatprep.subr.mxu0 0.0
      %2489 = vmatpush1.msra.mxu0 0.0
      %2490 = vmatprep.subr.mxu0 0.0
      %2491 = vmatpush1.msra.mxu0 0.0
      %2492 = vmatprep.subr.mxu0 0.0
      %2493 = vmatpush1.msra.mxu0 0.0
      %2494 = vmatprep.subr.mxu0 0.0
      %2495 = vmatpush1.msra.mxu0 0.0
      %2496 = vmatprep.subr.mxu0 0.0
      %2497 = vmatpush1.msra.mxu0 0.0
      %2498 = vmatprep.subr.mxu0 0.0
      %2499 = vmatpush1.msra.mxu0 0.0
      %2500 = vmatprep.mubr.f32.mxu0 0.0
      %2501 = vmatmul.mubr.f32.gmra.mrb[0].mxu0 %v2434
      %v2502 = vpop.f32.mrb[0].mxu0
      %v2503 = vadd.f32 %v2431, %v2502
      %v2504 = vpop.f32.mrb[0].mxu0
      %2505 = vdwg.mxu0
      %2507 = vrot.lane.b32.xlu0 %v2503, 96
      %v2508 = vpop.permute.xlu0 %2507
      %v2509 = vsel %vm1200, %v2503, 0
      %v2511 = vsel %vm1200, %v2508, 0
      %2513 = vmatprep.subr.mxu0 0.0
      %2514 = vmatpush1.xpose.msra.mxu0 %v2511
      %2515 = vmatprep.subr.mxu0 0.0
      %2516 = vmatpush1.xpose.msra.mxu0 0.0
      %2517 = vmatprep.subr.mxu0 0.0
      %2518 = vmatpush1.xpose.msra.mxu0 0.0
      %2519 = vmatprep.subr.mxu0 0.0
      %2520 = vmatpush1.xpose.msra.mxu0 0.0
      %2521 = vmatprep.subr.mxu0 0.0
      %2522 = vmatpush1.xpose.msra.mxu0 0.0
      %2523 = vmatprep.subr.mxu0 0.0
      %2524 = vmatpush1.xpose.msra.mxu0 0.0
      %2525 = vmatprep.subr.mxu0 0.0
      %2526 = vmatpush1.xpose.msra.mxu0 0.0
      %2527 = vmatprep.subr.mxu0 0.0
      %2528 = vmatpush1.xpose.msra.mxu0 0.0
      %2529 = vmatprep.subr.mxu0 0.0
      %2530 = vmatpush1.xpose.msra.mxu0 0.0
      %2531 = vmatprep.subr.mxu0 0.0
      %2532 = vmatpush1.xpose.msra.mxu0 0.0
      %2533 = vmatprep.subr.mxu0 0.0
      %2534 = vmatpush1.xpose.msra.mxu0 0.0
      %2535 = vmatprep.subr.mxu0 0.0
      %2536 = vmatpush1.xpose.msra.mxu0 0.0
      %2537 = vmatprep.subr.mxu0 0.0
      %2538 = vmatpush1.xpose.msra.mxu0 0.0
      %2539 = vmatprep.subr.mxu0 0.0
      %2540 = vmatpush1.xpose.msra.mxu0 0.0
      %2541 = vmatprep.subr.mxu0 0.0
      %2542 = vmatpush1.xpose.msra.mxu0 0.0
      %2543 = vmatprep.subr.mxu0 0.0
      %2544 = vmatpush1.xpose.msra.mxu0 0.0
      %2545 = vmatprep.subr.mxu0 0.0
      %2546 = vmatpush1.xpose.msra.mxu0 0.0
      %2547 = vmatprep.subr.mxu0 0.0
      %2548 = vmatpush1.xpose.msra.mxu0 0.0
      %2549 = vmatprep.subr.mxu0 0.0
      %2550 = vmatpush1.xpose.msra.mxu0 0.0
      %2551 = vmatprep.subr.mxu0 0.0
      %2552 = vmatpush1.xpose.msra.mxu0 0.0
      %2553 = vmatprep.subr.mxu0 0.0
      %2554 = vmatpush1.xpose.msra.mxu0 0.0
      %2555 = vmatprep.subr.mxu0 0.0
      %2556 = vmatpush1.xpose.msra.mxu0 0.0
      %2557 = vmatprep.subr.mxu0 0.0
      %2558 = vmatpush1.xpose.msra.mxu0 0.0
      %2559 = vmatprep.subr.mxu0 0.0
      %2560 = vmatpush1.xpose.msra.mxu0 0.0
      %2561 = vmatprep.subr.mxu0 0.0
      %2562 = vmatpush1.xpose.msra.mxu0 0.0
      %2563 = vmatprep.subr.mxu0 0.0
      %2564 = vmatpush1.xpose.msra.mxu0 0.0
      %2565 = vmatprep.subr.mxu0 0.0
      %2566 = vmatpush1.xpose.msra.mxu0 0.0
      %2567 = vmatprep.subr.mxu0 0.0
      %2568 = vmatpush1.xpose.msra.mxu0 0.0
      %2569 = vmatprep.subr.mxu0 0.0
      %2570 = vmatpush1.xpose.msra.mxu0 0.0
      %2571 = vmatprep.subr.mxu0 0.0
      %2572 = vmatpush1.xpose.msra.mxu0 0.0
      %2573 = vmatprep.subr.mxu0 0.0
      %2574 = vmatpush1.xpose.msra.mxu0 0.0
      %2575 = vmatprep.subr.mxu0 0.0
      %2576 = vmatpush1.xpose.msra.mxu0 0.0
      %2577 = vmatprep.mubr.f32.mxu0 0.0
      %2578 = vmatmul.mubr.f32.gmra.mrb[0].mxu0 %v2509
      %v2579 = vpop.f32.mrb[0].mxu0
      %v2580 = vadd.f32 0.0, %v2579
      %v2581 = vpop.f32.mrb[0].mxu0
      %2582 = vdwg.mxu0
      %v2583 = vmul.f32 %v2580, 0.35355338
      %v2584 = vadd.f32 %v2583, %v1075
      %v2585 = vsel %vm1200, %v2584, -inf
      %2586 = vmax.xlane.f32.xlu0 %v2585
      %v2587 = vpop.xlane.xlu0 %2586
      %v2588 = vsub.f32 %v2584, %v2587
      %v2589 = vmul.f32 %v2588, 1.442695
      %v2590 = vpow.pop %v2589
      %v2591 = vsel %vm1200, %v2590, 0.0
      %2592 = vadd.xlane.f32.xlu0 %v2591
      %v2593 = vpop.xlane.xlu0 %2592
      %v2594 = vrcp.pop %v2593
      %v2595 = vmul.f32 %v2590, %v2594
      %2596 = vrot.lane.b32.xlu0 %v2503, 64
      %v2597 = vpop.permute.xlu0 %2596
      %v2600 = vsel %vm1200, %v2595, 0
      %2602 = vmatprep.subr.mxu0 0.0
      %2603 = vmatpush1.msra.mxu0 %v2597
      %2604 = vmatprep.subr.mxu0 0.0
      %2605 = vmatpush1.msra.mxu0 0.0
      %2606 = vmatprep.subr.mxu0 0.0
      %2607 = vmatpush1.msra.mxu0 0.0
      %2608 = vmatprep.subr.mxu0 0.0
      %2609 = vmatpush1.msra.mxu0 0.0
      %2610 = vmatprep.subr.mxu0 0.0
      %2611 = vmatpush1.msra.mxu0 0.0
      %2612 = vmatprep.subr.mxu0 0.0
      %2613 = vmatpush1.msra.mxu0 0.0
      %2614 = vmatprep.subr.mxu0 0.0
      %2615 = vmatpush1.msra.mxu0 0.0
      %2616 = vmatprep.subr.mxu0 0.0
      %2617 = vmatpush1.msra.mxu0 0.0
      %2618 = vmatprep.subr.mxu0 0.0
      %2619 = vmatpush1.msra.mxu0 0.0
      %2620 = vmatprep.subr.mxu0 0.0
      %2621 = vmatpush1.msra.mxu0 0.0
      %2622 = vmatprep.subr.mxu0 0.0
      %2623 = vmatpush1.msra.mxu0 0.0
      %2624 = vmatprep.subr.mxu0 0.0
      %2625 = vmatpush1.msra.mxu0 0.0
      %2626 = vmatprep.subr.mxu0 0.0
      %2627 = vmatpush1.msra.mxu0 0.0
      %2628 = vmatprep.subr.mxu0 0.0
      %2629 = vmatpush1.msra.mxu0 0.0
      %2630 = vmatprep.subr.mxu0 0.0
      %2631 = vmatpush1.msra.mxu0 0.0
      %2632 = vmatprep.subr.mxu0 0.0
      %2633 = vmatpush1.msra.mxu0 0.0
      %2634 = vmatprep.subr.mxu0 0.0
      %2635 = vmatpush1.msra.mxu0 0.0
      %2636 = vmatprep.subr.mxu0 0.0
      %2637 = vmatpush1.msra.mxu0 0.0
      %2638 = vmatprep.subr.mxu0 0.0
      %2639 = vmatpush1.msra.mxu0 0.0
      %2640 = vmatprep.subr.mxu0 0.0
      %2641 = vmatpush1.msra.mxu0 0.0
      %2642 = vmatprep.subr.mxu0 0.0
      %2643 = vmatpush1.msra.mxu0 0.0
      %2644 = vmatprep.subr.mxu0 0.0
      %2645 = vmatpush1.msra.mxu0 0.0
      %2646 = vmatprep.subr.mxu0 0.0
      %2647 = vmatpush1.msra.mxu0 0.0
      %2648 = vmatprep.subr.mxu0 0.0
      %2649 = vmatpush1.msra.mxu0 0.0
      %2650 = vmatprep.subr.mxu0 0.0
      %2651 = vmatpush1.msra.mxu0 0.0
      %2652 = vmatprep.subr.mxu0 0.0
      %2653 = vmatpush1.msra.mxu0 0.0
      %2654 = vmatprep.subr.mxu0 0.0
      %2655 = vmatpush1.msra.mxu0 0.0
      %2656 = vmatprep.subr.mxu0 0.0
      %2657 = vmatpush1.msra.mxu0 0.0
      %2658 = vmatprep.subr.mxu0 0.0
      %2659 = vmatpush1.msra.mxu0 0.0
      %2660 = vmatprep.subr.mxu0 0.0
      %2661 = vmatpush1.msra.mxu0 0.0
      %2662 = vmatprep.subr.mxu0 0.0
      %2663 = vmatpush1.msra.mxu0 0.0
      %2664 = vmatprep.subr.mxu0 0.0
      %2665 = vmatpush1.msra.mxu0 0.0
      %2666 = vmatprep.mubr.f32.mxu0 0.0
      %2667 = vmatmul.mubr.f32.gmra.mrb[0].mxu0 %v2600
      %v2668 = vpop.f32.mrb[0].mxu0
      %v2669 = vadd.f32 0.0, %v2668
      %v2670 = vpop.f32.mrb[0].mxu0
      %2671 = vdwg.mxu0
      %2672 = vrot.lane.b32.xlu0 %v2503, 120
      %v2673 = vpop.permute.xlu0 %2672
      %2674 = vrot.lane.b32.xlu0 %v2503, 88
      %v2675 = vpop.permute.xlu0 %2674
      %v2676 = vsel %vm1200, %v2673, 0
      %v2678 = vsel %vm1200, %v2675, 0
      %2680 = vmatprep.subr.mxu0 0.0
      %2681 = vmatpush1.xpose.msra.mxu0 %v2678
      %2682 = vmatprep.subr.mxu0 0.0
      %2683 = vmatpush1.xpose.msra.mxu0 0.0
      %2684 = vmatprep.subr.mxu0 0.0
      %2685 = vmatpush1.xpose.msra.mxu0 0.0
      %2686 = vmatprep.subr.mxu0 0.0
      %2687 = vmatpush1.xpose.msra.mxu0 0.0
      %2688 = vmatprep.subr.mxu0 0.0
      %2689 = vmatpush1.xpose.msra.mxu0 0.0
      %2690 = vmatprep.subr.mxu0 0.0
      %2691 = vmatpush1.xpose.msra.mxu0 0.0
      %2692 = vmatprep.subr.mxu0 0.0
      %2693 = vmatpush1.xpose.msra.mxu0 0.0
      %2694 = vmatprep.subr.mxu0 0.0
      %2695 = vmatpush1.xpose.msra.mxu0 0.0
      %2696 = vmatprep.subr.mxu0 0.0
      %2697 = vmatpush1.xpose.msra.mxu0 0.0
      %2698 = vmatprep.subr.mxu0 0.0
      %2699 = vmatpush1.xpose.msra.mxu0 0.0
      %2700 = vmatprep.subr.mxu0 0.0
      %2701 = vmatpush1.xpose.msra.mxu0 0.0
      %2702 = vmatprep.subr.mxu0 0.0
      %2703 = vmatpush1.xpose.msra.mxu0 0.0
      %2704 = vmatprep.subr.mxu0 0.0
      %2705 = vmatpush1.xpose.msra.mxu0 0.0
      %2706 = vmatprep.subr.mxu0 0.0
      %2707 = vmatpush1.xpose.msra.mxu0 0.0
      %2708 = vmatprep.subr.mxu0 0.0
      %2709 = vmatpush1.xpose.msra.mxu0 0.0
      %2710 = vmatprep.subr.mxu0 0.0
      %2711 = vmatpush1.xpose.msra.mxu0 0.0
      %2712 = vmatprep.subr.mxu0 0.0
      %2713 = vmatpush1.xpose.msra.mxu0 0.0
      %2714 = vmatprep.subr.mxu0 0.0
      %2715 = vmatpush1.xpose.msra.mxu0 0.0
      %2716 = vmatprep.subr.mxu0 0.0
      %2717 = vmatpush1.xpose.msra.mxu0 0.0
      %2718 = vmatprep.subr.mxu0 0.0
      %2719 = vmatpush1.xpose.msra.mxu0 0.0
      %2720 = vmatprep.subr.mxu0 0.0
      %2721 = vmatpush1.xpose.msra.mxu0 0.0
      %2722 = vmatprep.subr.mxu0 0.0
      %2723 = vmatpush1.xpose.msra.mxu0 0.0
      %2724 = vmatprep.subr.mxu0 0.0
      %2725 = vmatpush1.xpose.msra.mxu0 0.0
      %2726 = vmatprep.subr.mxu0 0.0
      %2727 = vmatpush1.xpose.msra.mxu0 0.0
      %2728 = vmatprep.subr.mxu0 0.0
      %2729 = vmatpush1.xpose.msra.mxu0 0.0
      %2730 = vmatprep.subr.mxu0 0.0
      %2731 = vmatpush1.xpose.msra.mxu0 0.0
      %2732 = vmatprep.subr.mxu0 0.0
      %2733 = vmatpush1.xpose.msra.mxu0 0.0
      %2734 = vmatprep.subr.mxu0 0.0
      %2735 = vmatpush1.xpose.msra.mxu0 0.0
      %2736 = vmatprep.subr.mxu0 0.0
      %2737 = vmatpush1.xpose.msra.mxu0 0.0
      %2738 = vmatprep.subr.mxu0 0.0
      %2739 = vmatpush1.xpose.msra.mxu0 0.0
      %2740 = vmatprep.subr.mxu0 0.0
      %2741 = vmatpush1.xpose.msra.mxu0 0.0
      %2742 = vmatprep.subr.mxu0 0.0
      %2743 = vmatpush1.xpose.msra.mxu0 0.0
      %2744 = vmatprep.mubr.f32.mxu0 0.0
      %2745 = vmatmul.mubr.f32.gmra.mrb[0].mxu0 %v2676
      %v2746 = vpop.f32.mrb[0].mxu0
      %v2747 = vadd.f32 0.0, %v2746
      %v2748 = vpop.f32.mrb[0].mxu0
      %2749 = vdwg.mxu0
      %v2750 = vmul.f32 %v2747, 0.35355338
      %v2751 = vadd.f32 %v2750, %v1075
      %v2752 = vsel %vm1200, %v2751, -inf
      %2753 = vmax.xlane.f32.xlu0 %v2752
      %v2754 = vpop.xlane.xlu0 %2753
      %v2755 = vsub.f32 %v2751, %v2754
      %v2756 = vmul.f32 %v2755, 1.442695
      %v2757 = vpow.pop %v2756
      %v2758 = vsel %vm1200, %v2757, 0.0
      %2759 = vadd.xlane.f32.xlu0 %v2758
      %v2760 = vpop.xlane.xlu0 %2759
      %v2761 = vrcp.pop %v2760
      %v2762 = vmul.f32 %v2757, %v2761
      %2763 = vrot.lane.b32.xlu0 %v2503, 56
      %v2764 = vpop.permute.xlu0 %2763
      %v2767 = vsel %vm1200, %v2762, 0
      %2769 = vmatprep.subr.mxu0 0.0
      %2770 = vmatpush1.msra.mxu0 %v2764
      %2771 = vmatprep.subr.mxu0 0.0
      %2772 = vmatpush1.msra.mxu0 0.0
      %2773 = vmatprep.subr.mxu0 0.0
      %2774 = vmatpush1.msra.mxu0 0.0
      %2775 = vmatprep.subr.mxu0 0.0
      %2776 = vmatpush1.msra.mxu0 0.0
      %2777 = vmatprep.subr.mxu0 0.0
      %2778 = vmatpush1.msra.mxu0 0.0
      %2779 = vmatprep.subr.mxu0 0.0
      %2780 = vmatpush1.msra.mxu0 0.0
      %2781 = vmatprep.subr.mxu0 0.0
      %2782 = vmatpush1.msra.mxu0 0.0
      %2783 = vmatprep.subr.mxu0 0.0
      %2784 = vmatpush1.msra.mxu0 0.0
      %2785 = vmatprep.subr.mxu0 0.0
      %2786 = vmatpush1.msra.mxu0 0.0
      %2787 = vmatprep.subr.mxu0 0.0
      %2788 = vmatpush1.msra.mxu0 0.0
      %2789 = vmatprep.subr.mxu0 0.0
      %2790 = vmatpush1.msra.mxu0 0.0
      %2791 = vmatprep.subr.mxu0 0.0
      %2792 = vmatpush1.msra.mxu0 0.0
      %2793 = vmatprep.subr.mxu0 0.0
      %2794 = vmatpush1.msra.mxu0 0.0
      %2795 = vmatprep.subr.mxu0 0.0
      %2796 = vmatpush1.msra.mxu0 0.0
      %2797 = vmatprep.subr.mxu0 0.0
      %2798 = vmatpush1.msra.mxu0 0.0
      %2799 = vmatprep.subr.mxu0 0.0
      %2800 = vmatpush1.msra.mxu0 0.0
      %2801 = vmatprep.subr.mxu0 0.0
      %2802 = vmatpush1.msra.mxu0 0.0
      %2803 = vmatprep.subr.mxu0 0.0
      %2804 = vmatpush1.msra.mxu0 0.0
      %2805 = vmatprep.subr.mxu0 0.0
      %2806 = vmatpush1.msra.mxu0 0.0
      %2807 = vmatprep.subr.mxu0 0.0
      %2808 = vmatpush1.msra.mxu0 0.0
      %2809 = vmatprep.subr.mxu0 0.0
      %2810 = vmatpush1.msra.mxu0 0.0
      %2811 = vmatprep.subr.mxu0 0.0
      %2812 = vmatpush1.msra.mxu0 0.0
      %2813 = vmatprep.subr.mxu0 0.0
      %2814 = vmatpush1.msra.mxu0 0.0
      %2815 = vmatprep.subr.mxu0 0.0
      %2816 = vmatpush1.msra.mxu0 0.0
      %2817 = vmatprep.subr.mxu0 0.0
      %2818 = vmatpush1.msra.mxu0 0.0
      %2819 = vmatprep.subr.mxu0 0.0
      %2820 = vmatpush1.msra.mxu0 0.0
      %2821 = vmatprep.subr.mxu0 0.0
      %2822 = vmatpush1.msra.mxu0 0.0
      %2823 = vmatprep.subr.mxu0 0.0
      %2824 = vmatpush1.msra.mxu0 0.0
      %2825 = vmatprep.subr.mxu0 0.0
      %2826 = vmatpush1.msra.mxu0 0.0
      %2827 = vmatprep.subr.mxu0 0.0
      %2828 = vmatpush1.msra.mxu0 0.0
      %2829 = vmatprep.subr.mxu0 0.0
      %2830 = vmatpush1.msra.mxu0 0.0
      %2831 = vmatprep.subr.mxu0 0.0
      %2832 = vmatpush1.msra.mxu0 0.0
      %2833 = vmatprep.mubr.f32.mxu0 0.0
      %2834 = vmatmul.mubr.f32.gmra.mrb[0].mxu0 %v2767
      %v2835 = vpop.f32.mrb[0].mxu0
      %v2836 = vadd.f32 0.0, %v2835
      %v2837 = vpop.f32.mrb[0].mxu0
      %2838 = vdwg.mxu0
      %2839 = vrot.lane.b32.xlu0 %v2503, 112
      %v2840 = vpop.permute.xlu0 %2839
      %2841 = vrot.lane.b32.xlu0 %v2503, 80
      %v2842 = vpop.permute.xlu0 %2841
      %v2843 = vsel %vm1200, %v2840, 0
      %v2845 = vsel %vm1200, %v2842, 0
      %2847 = vmatprep.subr.mxu0 0.0
      %2848 = vmatpush1.xpose.msra.mxu0 %v2845
      %2849 = vmatprep.subr.mxu0 0.0
      %2850 = vmatpush1.xpose.msra.mxu0 0.0
      %2851 = vmatprep.subr.mxu0 0.0
      %2852 = vmatpush1.xpose.msra.mxu0 0.0
      %2853 = vmatprep.subr.mxu0 0.0
      %2854 = vmatpush1.xpose.msra.mxu0 0.0
      %2855 = vmatprep.subr.mxu0 0.0
      %2856 = vmatpush1.xpose.msra.mxu0 0.0
      %2857 = vmatprep.subr.mxu0 0.0
      %2858 = vmatpush1.xpose.msra.mxu0 0.0
      %2859 = vmatprep.subr.mxu0 0.0
      %2860 = vmatpush1.xpose.msra.mxu0 0.0
      %2861 = vmatprep.subr.mxu0 0.0
      %2862 = vmatpush1.xpose.msra.mxu0 0.0
      %2863 = vmatprep.subr.mxu0 0.0
      %2864 = vmatpush1.xpose.msra.mxu0 0.0
      %2865 = vmatprep.subr.mxu0 0.0
      %2866 = vmatpush1.xpose.msra.mxu0 0.0
      %2867 = vmatprep.subr.mxu0 0.0
      %2868 = vmatpush1.xpose.msra.mxu0 0.0
      %2869 = vmatprep.subr.mxu0 0.0
      %2870 = vmatpush1.xpose.msra.mxu0 0.0
      %2871 = vmatprep.subr.mxu0 0.0
      %2872 = vmatpush1.xpose.msra.mxu0 0.0
      %2873 = vmatprep.subr.mxu0 0.0
      %2874 = vmatpush1.xpose.msra.mxu0 0.0
      %2875 = vmatprep.subr.mxu0 0.0
      %2876 = vmatpush1.xpose.msra.mxu0 0.0
      %2877 = vmatprep.subr.mxu0 0.0
      %2878 = vmatpush1.xpose.msra.mxu0 0.0
      %2879 = vmatprep.subr.mxu0 0.0
      %2880 = vmatpush1.xpose.msra.mxu0 0.0
      %2881 = vmatprep.subr.mxu0 0.0
      %2882 = vmatpush1.xpose.msra.mxu0 0.0
      %2883 = vmatprep.subr.mxu0 0.0
      %2884 = vmatpush1.xpose.msra.mxu0 0.0
      %2885 = vmatprep.subr.mxu0 0.0
      %2886 = vmatpush1.xpose.msra.mxu0 0.0
      %2887 = vmatprep.subr.mxu0 0.0
      %2888 = vmatpush1.xpose.msra.mxu0 0.0
      %2889 = vmatprep.subr.mxu0 0.0
      %2890 = vmatpush1.xpose.msra.mxu0 0.0
      %2891 = vmatprep.subr.mxu0 0.0
      %2892 = vmatpush1.xpose.msra.mxu0 0.0
      %2893 = vmatprep.subr.mxu0 0.0
      %2894 = vmatpush1.xpose.msra.mxu0 0.0
      %2895 = vmatprep.subr.mxu0 0.0
      %2896 = vmatpush1.xpose.msra.mxu0 0.0
      %2897 = vmatprep.subr.mxu0 0.0
      %2898 = vmatpush1.xpose.msra.mxu0 0.0
      %2899 = vmatprep.subr.mxu0 0.0
      %2900 = vmatpush1.xpose.msra.mxu0 0.0
      %2901 = vmatprep.subr.mxu0 0.0
      %2902 = vmatpush1.xpose.msra.mxu0 0.0
      %2903 = vmatprep.subr.mxu0 0.0
      %2904 = vmatpush1.xpose.msra.mxu0 0.0
      %2905 = vmatprep.subr.mxu0 0.0
      %2906 = vmatpush1.xpose.msra.mxu0 0.0
      %2907 = vmatprep.subr.mxu0 0.0
      %2908 = vmatpush1.xpose.msra.mxu0 0.0
      %2909 = vmatprep.subr.mxu0 0.0
      %2910 = vmatpush1.xpose.msra.mxu0 0.0
      %2911 = vmatprep.mubr.f32.mxu0 0.0
      %2912 = vmatmul.mubr.f32.gmra.mrb[0].mxu0 %v2843
      %v2913 = vpop.f32.mrb[0].mxu0
      %v2914 = vadd.f32 0.0, %v2913
      %v2915 = vpop.f32.mrb[0].mxu0
      %2916 = vdwg.mxu0
      %v2917 = vmul.f32 %v2914, 0.35355338
      %v2918 = vadd.f32 %v2917, %v1075
      %v2919 = vsel %vm1200, %v2918, -inf
      %2920 = vmax.xlane.f32.xlu0 %v2919
      %v2921 = vpop.xlane.xlu0 %2920
      %v2922 = vsub.f32 %v2918, %v2921
      %v2923 = vmul.f32 %v2922, 1.442695
      %v2924 = vpow.pop %v2923
      %v2925 = vsel %vm1200, %v2924, 0.0
      %2926 = vadd.xlane.f32.xlu0 %v2925
      %v2927 = vpop.xlane.xlu0 %2926
      %v2928 = vrcp.pop %v2927
      %v2929 = vmul.f32 %v2924, %v2928
      %2930 = vrot.lane.b32.xlu0 %v2503, 48
      %v2931 = vpop.permute.xlu0 %2930
      %v2934 = vsel %vm1200, %v2929, 0
      %2936 = vmatprep.subr.mxu0 0.0
      %2937 = vmatpush1.msra.mxu0 %v2931
      %2938 = vmatprep.subr.mxu0 0.0
      %2939 = vmatpush1.msra.mxu0 0.0
      %2940 = vmatprep.subr.mxu0 0.0
      %2941 = vmatpush1.msra.mxu0 0.0
      %2942 = vmatprep.subr.mxu0 0.0
      %2943 = vmatpush1.msra.mxu0 0.0
      %2944 = vmatprep.subr.mxu0 0.0
      %2945 = vmatpush1.msra.mxu0 0.0
      %2946 = vmatprep.subr.mxu0 0.0
      %2947 = vmatpush1.msra.mxu0 0.0
      %2948 = vmatprep.subr.mxu0 0.0
      %2949 = vmatpush1.msra.mxu0 0.0
      %2950 = vmatprep.subr.mxu0 0.0
      %2951 = vmatpush1.msra.mxu0 0.0
      %2952 = vmatprep.subr.mxu0 0.0
      %2953 = vmatpush1.msra.mxu0 0.0
      %2954 = vmatprep.subr.mxu0 0.0
      %2955 = vmatpush1.msra.mxu0 0.0
      %2956 = vmatprep.subr.mxu0 0.0
      %2957 = vmatpush1.msra.mxu0 0.0
      %2958 = vmatprep.subr.mxu0 0.0
      %2959 = vmatpush1.msra.mxu0 0.0
      %2960 = vmatprep.subr.mxu0 0.0
      %2961 = vmatpush1.msra.mxu0 0.0
      %2962 = vmatprep.subr.mxu0 0.0
      %2963 = vmatpush1.msra.mxu0 0.0
      %2964 = vmatprep.subr.mxu0 0.0
      %2965 = vmatpush1.msra.mxu0 0.0
      %2966 = vmatprep.subr.mxu0 0.0
      %2967 = vmatpush1.msra.mxu0 0.0
      %2968 = vmatprep.subr.mxu0 0.0
      %2969 = vmatpush1.msra.mxu0 0.0
      %2970 = vmatprep.subr.mxu0 0.0
      %2971 = vmatpush1.msra.mxu0 0.0
      %2972 = vmatprep.subr.mxu0 0.0
      %2973 = vmatpush1.msra.mxu0 0.0
      %2974 = vmatprep.subr.mxu0 0.0
      %2975 = vmatpush1.msra.mxu0 0.0
      %2976 = vmatprep.subr.mxu0 0.0
      %2977 = vmatpush1.msra.mxu0 0.0
      %2978 = vmatprep.subr.mxu0 0.0
      %2979 = vmatpush1.msra.mxu0 0.0
      %2980 = vmatprep.subr.mxu0 0.0
      %2981 = vmatpush1.msra.mxu0 0.0
      %2982 = vmatprep.subr.mxu0 0.0
      %2983 = vmatpush1.msra.mxu0 0.0
      %2984 = vmatprep.subr.mxu0 0.0
      %2985 = vmatpush1.msra.mxu0 0.0
      %2986 = vmatprep.subr.mxu0 0.0
      %2987 = vmatpush1.msra.mxu0 0.0
      %2988 = vmatprep.subr.mxu0 0.0
      %2989 = vmatpush1.msra.mxu0 0.0
      %2990 = vmatprep.subr.mxu0 0.0
      %2991 = vmatpush1.msra.mxu0 0.0
      %2992 = vmatprep.subr.mxu0 0.0
      %2993 = vmatpush1.msra.mxu0 0.0
      %2994 = vmatprep.subr.mxu0 0.0
      %2995 = vmatpush1.msra.mxu0 0.0
      %2996 = vmatprep.subr.mxu0 0.0
      %2997 = vmatpush1.msra.mxu0 0.0
      %2998 = vmatprep.subr.mxu0 0.0
      %2999 = vmatpush1.msra.mxu0 0.0
      %3000 = vmatprep.mubr.f32.mxu0 0.0
      %3001 = vmatmul.mubr.f32.gmra.mrb[0].mxu0 %v2934
      %v3002 = vpop.f32.mrb[0].mxu0
      %v3003 = vadd.f32 0.0, %v3002
      %v3004 = vpop.f32.mrb[0].mxu0
      %3005 = vdwg.mxu0
      %3006 = vrot.lane.b32.xlu0 %v2503, 104
      %v3007 = vpop.permute.xlu0 %3006
      %3008 = vrot.lane.b32.xlu0 %v2503, 72
      %v3009 = vpop.permute.xlu0 %3008
      %v3010 = vsel %vm1200, %v3007, 0
      %v3012 = vsel %vm1200, %v3009, 0
      %3014 = vmatprep.subr.mxu0 0.0
      %3015 = vmatpush1.xpose.msra.mxu0 %v3012
      %3016 = vmatprep.subr.mxu0 0.0
      %3017 = vmatpush1.xpose.msra.mxu0 0.0
      %3018 = vmatprep.subr.mxu0 0.0
      %3019 = vmatpush1.xpose.msra.mxu0 0.0
      %3020 = vmatprep.subr.mxu0 0.0
      %3021 = vmatpush1.xpose.msra.mxu0 0.0
      %3022 = vmatprep.subr.mxu0 0.0
      %3023 = vmatpush1.xpose.msra.mxu0 0.0
      %3024 = vmatprep.subr.mxu0 0.0
      %3025 = vmatpush1.xpose.msra.mxu0 0.0
      %3026 = vmatprep.subr.mxu0 0.0
      %3027 = vmatpush1.xpose.msra.mxu0 0.0
      %3028 = vmatprep.subr.mxu0 0.0
      %3029 = vmatpush1.xpose.msra.mxu0 0.0
      %3030 = vmatprep.subr.mxu0 0.0
      %3031 = vmatpush1.xpose.msra.mxu0 0.0
      %3032 = vmatprep.subr.mxu0 0.0
      %3033 = vmatpush1.xpose.msra.mxu0 0.0
      %3034 = vmatprep.subr.mxu0 0.0
      %3035 = vmatpush1.xpose.msra.mxu0 0.0
      %3036 = vmatprep.subr.mxu0 0.0
      %3037 = vmatpush1.xpose.msra.mxu0 0.0
      %3038 = vmatprep.subr.mxu0 0.0
      %3039 = vmatpush1.xpose.msra.mxu0 0.0
      %3040 = vmatprep.subr.mxu0 0.0
      %3041 = vmatpush1.xpose.msra.mxu0 0.0
      %3042 = vmatprep.subr.mxu0 0.0
      %3043 = vmatpush1.xpose.msra.mxu0 0.0
      %3044 = vmatprep.subr.mxu0 0.0
      %3045 = vmatpush1.xpose.msra.mxu0 0.0
      %3046 = vmatprep.subr.mxu0 0.0
      %3047 = vmatpush1.xpose.msra.mxu0 0.0
      %3048 = vmatprep.subr.mxu0 0.0
      %3049 = vmatpush1.xpose.msra.mxu0 0.0
      %3050 = vmatprep.subr.mxu0 0.0
      %3051 = vmatpush1.xpose.msra.mxu0 0.0
      %3052 = vmatprep.subr.mxu0 0.0
      %3053 = vmatpush1.xpose.msra.mxu0 0.0
      %3054 = vmatprep.subr.mxu0 0.0
      %3055 = vmatpush1.xpose.msra.mxu0 0.0
      %3056 = vmatprep.subr.mxu0 0.0
      %3057 = vmatpush1.xpose.msra.mxu0 0.0
      %3058 = vmatprep.subr.mxu0 0.0
      %3059 = vmatpush1.xpose.msra.mxu0 0.0
      %3060 = vmatprep.subr.mxu0 0.0
      %3061 = vmatpush1.xpose.msra.mxu0 0.0
      %3062 = vmatprep.subr.mxu0 0.0
      %3063 = vmatpush1.xpose.msra.mxu0 0.0
      %3064 = vmatprep.subr.mxu0 0.0
      %3065 = vmatpush1.xpose.msra.mxu0 0.0
      %3066 = vmatprep.subr.mxu0 0.0
      %3067 = vmatpush1.xpose.msra.mxu0 0.0
      %3068 = vmatprep.subr.mxu0 0.0
      %3069 = vmatpush1.xpose.msra.mxu0 0.0
      %3070 = vmatprep.subr.mxu0 0.0
      %3071 = vmatpush1.xpose.msra.mxu0 0.0
      %3072 = vmatprep.subr.mxu0 0.0
      %3073 = vmatpush1.xpose.msra.mxu0 0.0
      %3074 = vmatprep.subr.mxu0 0.0
      %3075 = vmatpush1.xpose.msra.mxu0 0.0
      %3076 = vmatprep.subr.mxu0 0.0
      %3077 = vmatpush1.xpose.msra.mxu0 0.0
      %3078 = vmatprep.mubr.f32.mxu0 0.0
      %3079 = vmatmul.mubr.f32.gmra.mrb[0].mxu0 %v3010
      %v3080 = vpop.f32.mrb[0].mxu0
      %v3081 = vadd.f32 0.0, %v3080
      %v3082 = vpop.f32.mrb[0].mxu0
      %3083 = vdwg.mxu0
      %v3084 = vmul.f32 %v3081, 0.35355338
      %v3085 = vadd.f32 %v3084, %v1075
      %v3086 = vsel %vm1200, %v3085, -inf
      %3087 = vmax.xlane.f32.xlu0 %v3086
      %v3088 = vpop.xlane.xlu0 %3087
      %v3089 = vsub.f32 %v3085, %v3088
      %v3090 = vmul.f32 %v3089, 1.442695
      %v3091 = vpow.pop %v3090
      %v3092 = vsel %vm1200, %v3091, 0.0
      %3093 = vadd.xlane.f32.xlu0 %v3092
      %v3094 = vpop.xlane.xlu0 %3093
      %v3095 = vrcp.pop %v3094
      %v3096 = vmul.f32 %v3091, %v3095
      %3097 = vrot.lane.b32.xlu0 %v2503, 40
      %v3098 = vpop.permute.xlu0 %3097
      %v3101 = vsel %vm1200, %v3096, 0
      %3103 = vmatprep.subr.mxu0 0.0
      %3104 = vmatpush1.msra.mxu0 %v3098
      %3105 = vmatprep.subr.mxu0 0.0
      %3106 = vmatpush1.msra.mxu0 0.0
      %3107 = vmatprep.subr.mxu0 0.0
      %3108 = vmatpush1.msra.mxu0 0.0
      %3109 = vmatprep.subr.mxu0 0.0
      %3110 = vmatpush1.msra.mxu0 0.0
      %3111 = vmatprep.subr.mxu0 0.0
      %3112 = vmatpush1.msra.mxu0 0.0
      %3113 = vmatprep.subr.mxu0 0.0
      %3114 = vmatpush1.msra.mxu0 0.0
      %3115 = vmatprep.subr.mxu0 0.0
      %3116 = vmatpush1.msra.mxu0 0.0
      %3117 = vmatprep.subr.mxu0 0.0
      %3118 = vmatpush1.msra.mxu0 0.0
      %3119 = vmatprep.subr.mxu0 0.0
      %3120 = vmatpush1.msra.mxu0 0.0
      %3121 = vmatprep.subr.mxu0 0.0
      %3122 = vmatpush1.msra.mxu0 0.0
      %3123 = vmatprep.subr.mxu0 0.0
      %3124 = vmatpush1.msra.mxu0 0.0
      %3125 = vmatprep.subr.mxu0 0.0
      %3126 = vmatpush1.msra.mxu0 0.0
      %3127 = vmatprep.subr.mxu0 0.0
      %3128 = vmatpush1.msra.mxu0 0.0
      %3129 = vmatprep.subr.mxu0 0.0
      %3130 = vmatpush1.msra.mxu0 0.0
      %3131 = vmatprep.subr.mxu0 0.0
      %3132 = vmatpush1.msra.mxu0 0.0
      %3133 = vmatprep.subr.mxu0 0.0
      %3134 = vmatpush1.msra.mxu0 0.0
      %3135 = vmatprep.subr.mxu0 0.0
      %3136 = vmatpush1.msra.mxu0 0.0
      %3137 = vmatprep.subr.mxu0 0.0
      %3138 = vmatpush1.msra.mxu0 0.0
      %3139 = vmatprep.subr.mxu0 0.0
      %3140 = vmatpush1.msra.mxu0 0.0
      %3141 = vmatprep.subr.mxu0 0.0
      %3142 = vmatpush1.msra.mxu0 0.0
      %3143 = vmatprep.subr.mxu0 0.0
      %3144 = vmatpush1.msra.mxu0 0.0
      %3145 = vmatprep.subr.mxu0 0.0
      %3146 = vmatpush1.msra.mxu0 0.0
      %3147 = vmatprep.subr.mxu0 0.0
      %3148 = vmatpush1.msra.mxu0 0.0
      %3149 = vmatprep.subr.mxu0 0.0
      %3150 = vmatpush1.msra.mxu0 0.0
      %3151 = vmatprep.subr.mxu0 0.0
      %3152 = vmatpush1.msra.mxu0 0.0
      %3153 = vmatprep.subr.mxu0 0.0
      %3154 = vmatpush1.msra.mxu0 0.0
      %3155 = vmatprep.subr.mxu0 0.0
      %3156 = vmatpush1.msra.mxu0 0.0
      %3157 = vmatprep.subr.mxu0 0.0
      %3158 = vmatpush1.msra.mxu0 0.0
      %3159 = vmatprep.subr.mxu0 0.0
      %3160 = vmatpush1.msra.mxu0 0.0
      %3161 = vmatprep.subr.mxu0 0.0
      %3162 = vmatpush1.msra.mxu0 0.0
      %3163 = vmatprep.subr.mxu0 0.0
      %3164 = vmatpush1.msra.mxu0 0.0
      %3165 = vmatprep.subr.mxu0 0.0
      %3166 = vmatpush1.msra.mxu0 0.0
      %3167 = vmatprep.mubr.f32.mxu0 0.0
      %3168 = vmatmul.mubr.f32.gmra.mrb[0].mxu0 %v3101
      %v3169 = vpop.f32.mrb[0].mxu0
      %v3170 = vadd.f32 0.0, %v3169
      %v3171 = vpop.f32.mrb[0].mxu0
      %3172 = vdwg.mxu0
      %3174 = vrot.lane.b32.xlu0 %v2836, 8
      %v3175 = vpop.permute.xlu0 %3174
      %3178 = vrot.lane.b32.xlu0 %v3003, 16
      %v3179 = vpop.permute.xlu0 %3178
      %3182 = vrot.lane.b32.xlu0 %v3170, 24
      %v3183 = vpop.permute.xlu0 %3182
      %v3185 = vsel %vm1200, %v2669, %v3175
      %v3186 = vsel %vm1288, %v3185, %v3179
      %v3187 = vsel %vm981, %v3186, %v3183
      %s3188 = scalar_lea.vmem %s16, 64
      %v3189 = vld [vmem:[%s3188] sm:$0xff]
      %v3190 = vld [vmem:[%s3188 + $0x8] sm:$0xff]
      %v3191 = vld [vmem:[%s3188 + $0x10] sm:$0xff]
      %v3192 = vld [vmem:[%s3188 + $0x18] sm:$0xff]
      %s3193 = scalar_lea.vmem %s17, 2
      %v3194 = vld [vmem:[%s3193] sm:$0x1]
      %v3196 = vlaneseq
      %v3197 = vshrl.u32 %v3196, 7
      %v3198 = vsub.s32 0, %v3197
      %v3199 = vrot.slane %v3194, %v3198
      %v3202 = vsel %vm966, %v3187, 0
      %3204 = vmatprep.subr.mxu0 0.0
      %3205 = vmatpush1.msra.mxu0 %v3189
      %3206 = vmatprep.subr.mxu0 0.0
      %3207 = vmatpush1.msra.mxu0 %v3190
      %3208 = vmatprep.subr.mxu0 0.0
      %3209 = vmatpush1.msra.mxu0 %v3191
      %3210 = vmatprep.subr.mxu0 0.0
      %3211 = vmatpush1.msra.mxu0 %v3192
      %3212 = vmatprep.subr.mxu0 0.0
      %3213 = vmatpush1.msra.mxu0 0.0
      %3214 = vmatprep.subr.mxu0 0.0
      %3215 = vmatpush1.msra.mxu0 0.0
      %3216 = vmatprep.subr.mxu0 0.0
      %3217 = vmatpush1.msra.mxu0 0.0
      %3218 = vmatprep.subr.mxu0 0.0
      %3219 = vmatpush1.msra.mxu0 0.0
      %3220 = vmatprep.subr.mxu0 0.0
      %3221 = vmatpush1.msra.mxu0 0.0
      %3222 = vmatprep.subr.mxu0 0.0
      %3223 = vmatpush1.msra.mxu0 0.0
      %3224 = vmatprep.subr.mxu0 0.0
      %3225 = vmatpush1.msra.mxu0 0.0
      %3226 = vmatprep.subr.mxu0 0.0
      %3227 = vmatpush1.msra.mxu0 0.0
      %3228 = vmatprep.subr.mxu0 0.0
      %3229 = vmatpush1.msra.mxu0 0.0
      %3230 = vmatprep.subr.mxu0 0.0
      %3231 = vmatpush1.msra.mxu0 0.0
      %3232 = vmatprep.subr.mxu0 0.0
      %3233 = vmatpush1.msra.mxu0 0.0
      %3234 = vmatprep.subr.mxu0 0.0
      %3235 = vmatpush1.msra.mxu0 0.0
      %3236 = vmatprep.subr.mxu0 0.0
      %3237 = vmatpush1.msra.mxu0 0.0
      %3238 = vmatprep.subr.mxu0 0.0
      %3239 = vmatpush1.msra.mxu0 0.0
      %3240 = vmatprep.subr.mxu0 0.0
      %3241 = vmatpush1.msra.mxu0 0.0
      %3242 = vmatprep.subr.mxu0 0.0
      %3243 = vmatpush1.msra.mxu0 0.0
      %3244 = vmatprep.subr.mxu0 0.0
      %3245 = vmatpush1.msra.mxu0 0.0
      %3246 = vmatprep.subr.mxu0 0.0
      %3247 = vmatpush1.msra.mxu0 0.0
      %3248 = vmatprep.subr.mxu0 0.0
      %3249 = vmatpush1.msra.mxu0 0.0
      %3250 = vmatprep.subr.mxu0 0.0
      %3251 = vmatpush1.msra.mxu0 0.0
      %3252 = vmatprep.subr.mxu0 0.0
      %3253 = vmatpush1.msra.mxu0 0.0
      %3254 = vmatprep.subr.mxu0 0.0
      %3255 = vmatpush1.msra.mxu0 0.0
      %3256 = vmatprep.subr.mxu0 0.0
      %3257 = vmatpush1.msra.mxu0 0.0
      %3258 = vmatprep.subr.mxu0 0.0
      %3259 = vmatpush1.msra.mxu0 0.0
      %3260 = vmatprep.subr.mxu0 0.0
      %3261 = vmatpush1.msra.mxu0 0.0
      %3262 = vmatprep.subr.mxu0 0.0
      %3263 = vmatpush1.msra.mxu0 0.0
      %3264 = vmatprep.subr.mxu0 0.0
      %3265 = vmatpush1.msra.mxu0 0.0
      %3266 = vmatprep.subr.mxu0 0.0
      %3267 = vmatpush1.msra.mxu0 0.0
      %3268 = vmatprep.mubr.f32.mxu0 0.0
      %3269 = vmatmul.mubr.f32.gmra.mrb[0].mxu0 %v3202
      %v3270 = vpop.f32.mrb[0].mxu0
      %v3271 = vadd.f32 %v3199, %v3270
      %v3272 = vpop.f32.mrb[0].mxu0
      %3273 = vdwg.mxu0
      %v3274 = vadd.f32 %v2419, %v3271
      %s3275 = scalar_lea.vmem %s18, 2
      %v3276 = vld [vmem:[%s3275] sm:$0x1]
      %s3277 = scalar_lea.vmem %s19, 2
      %v3278 = vld [vmem:[%s3277] sm:$0x1]
      %v3279 = vsel %vm966, %v3274, 0.0
      %3280 = vadd.xlane.f32.xlu0 %v3279
      %v3281 = vpop.xlane.xlu0 %3280
      %v3282 = vmul.f32 %v3281, %v2142
      %v3283 = vsub.f32 %v3274, %v3282
      %v3284 = vmul.f32 %v3283, %v3283
      %v3285 = vsel %vm966, %v3284, 0.0
      %3286 = vadd.xlane.f32.xlu0 %v3285
      %v3287 = vpop.xlane.xlu0 %3286
      %v3288 = vmul.f32 %v3287, %v2142
      %v3289 = vadd.f32 %v3288, 1e-05
      %v3290 = vrsqrt.pop %v3289
      %v3291 = vmul.f32 %v3283, %v3290
      %v3293 = vlaneseq
      %v3294 = vshrl.u32 %v3293, 7
      %v3295 = vsub.s32 0, %v3294
      %v3296 = vrot.slane %v3276, %v3295
      %v3298 = vmul.f32 %v3291, %v3296
      %v3300 = vlaneseq
      %v3301 = vshrl.u32 %v3300, 7
      %v3302 = vsub.s32 0, %v3301
      %v3303 = vrot.slane %v3278, %v3302
      %v3305 = vadd.f32 %v3298, %v3303
      %s3306 = scalar_lea.vmem %s22, 64
      %v3307 = vld [vmem:[%s3306] sm:$0xff]
      %v3308 = vld [vmem:[%s3306 + $0x8] sm:$0xff]
      %v3309 = vld [vmem:[%s3306 + $0x10] sm:$0xff]
      %v3310 = vld [vmem:[%s3306 + $0x18] sm:$0xff]
      %s3311 = scalar_lea.vmem %s23, 2
      %v3312 = vld [vmem:[%s3311] sm:$0x1]
      %v3314 = vlaneseq
      %v3315 = vshrl.u32 %v3314, 7
      %v3316 = vsub.s32 0, %v3315
      %v3317 = vrot.slane %v3312, %v3316
      %v3320 = vsel %vm966, %v3305, 0
      %3322 = vmatprep.subr.mxu0 0.0
      %3323 = vmatpush1.msra.mxu0 %v3307
      %3324 = vmatprep.subr.mxu0 0.0
      %3325 = vmatpush1.msra.mxu0 %v3308
      %3326 = vmatprep.subr.mxu0 0.0
      %3327 = vmatpush1.msra.mxu0 %v3309
      %3328 = vmatprep.subr.mxu0 0.0
      %3329 = vmatpush1.msra.mxu0 %v3310
      %3330 = vmatprep.subr.mxu0 0.0
      %3331 = vmatpush1.msra.mxu0 0.0
      %3332 = vmatprep.subr.mxu0 0.0
      %3333 = vmatpush1.msra.mxu0 0.0
      %3334 = vmatprep.subr.mxu0 0.0
      %3335 = vmatpush1.msra.mxu0 0.0
      %3336 = vmatprep.subr.mxu0 0.0
      %3337 = vmatpush1.msra.mxu0 0.0
      %3338 = vmatprep.subr.mxu0 0.0
      %3339 = vmatpush1.msra.mxu0 0.0
      %3340 = vmatprep.subr.mxu0 0.0
      %3341 = vmatpush1.msra.mxu0 0.0
      %3342 = vmatprep.subr.mxu0 0.0
      %3343 = vmatpush1.msra.mxu0 0.0
      %3344 = vmatprep.subr.mxu0 0.0
      %3345 = vmatpush1.msra.mxu0 0.0
      %3346 = vmatprep.subr.mxu0 0.0
      %3347 = vmatpush1.msra.mxu0 0.0
      %3348 = vmatprep.subr.mxu0 0.0
      %3349 = vmatpush1.msra.mxu0 0.0
      %3350 = vmatprep.subr.mxu0 0.0
      %3351 = vmatpush1.msra.mxu0 0.0
      %3352 = vmatprep.subr.mxu0 0.0
      %3353 = vmatpush1.msra.mxu0 0.0
      %3354 = vmatprep.subr.mxu0 0.0
      %3355 = vmatpush1.msra.mxu0 0.0
      %3356 = vmatprep.subr.mxu0 0.0
      %3357 = vmatpush1.msra.mxu0 0.0
      %3358 = vmatprep.subr.mxu0 0.0
      %3359 = vmatpush1.msra.mxu0 0.0
      %3360 = vmatprep.subr.mxu0 0.0
      %3361 = vmatpush1.msra.mxu0 0.0
      %3362 = vmatprep.subr.mxu0 0.0
      %3363 = vmatpush1.msra.mxu0 0.0
      %3364 = vmatprep.subr.mxu0 0.0
      %3365 = vmatpush1.msra.mxu0 0.0
      %3366 = vmatprep.subr.mxu0 0.0
      %3367 = vmatpush1.msra.mxu0 0.0
      %3368 = vmatprep.subr.mxu0 0.0
      %3369 = vmatpush1.msra.mxu0 0.0
      %3370 = vmatprep.subr.mxu0 0.0
      %3371 = vmatpush1.msra.mxu0 0.0
      %3372 = vmatprep.subr.mxu0 0.0
      %3373 = vmatpush1.msra.mxu0 0.0
      %3374 = vmatprep.subr.mxu0 0.0
      %3375 = vmatpush1.msra.mxu0 0.0
      %3376 = vmatprep.subr.mxu0 0.0
      %3377 = vmatpush1.msra.mxu0 0.0
      %3378 = vmatprep.subr.mxu0 0.0
      %3379 = vmatpush1.msra.mxu0 0.0
      %3380 = vmatprep.subr.mxu0 0.0
      %3381 = vmatpush1.msra.mxu0 0.0
      %3382 = vmatprep.subr.mxu0 0.0
      %3383 = vmatpush1.msra.mxu0 0.0
      %3384 = vmatprep.subr.mxu0 0.0
      %3385 = vmatpush1.msra.mxu0 0.0
      %3386 = vmatprep.mubr.f32.mxu0 0.0
      %3387 = vmatmul.mubr.f32.gmra.mrb[0].mxu0 %v3320
      %v3388 = vpop.f32.mrb[0].mxu0
      %v3389 = vadd.f32 %v3317, %v3388
      %v3390 = vpop.f32.mrb[0].mxu0
      %3391 = vdwg.mxu0
      %v3392 = vmax.f32 %v3389, 0.0
      %s3393 = scalar_lea.vmem %s24, 128
      %v3394 = vld [vmem:[%s3393] sm:$0xff]
      %v3395 = vld [vmem:[%s3393 + $0x8] sm:$0xff]
      %v3396 = vld [vmem:[%s3393 + $0x10] sm:$0xff]
      %v3397 = vld [vmem:[%s3393 + $0x18] sm:$0xff]
      %v3398 = vld [vmem:[%s3393 + $0x20] sm:$0xff]
      %v3399 = vld [vmem:[%s3393 + $0x28] sm:$0xff]
      %v3400 = vld [vmem:[%s3393 + $0x30] sm:$0xff]
      %v3401 = vld [vmem:[%s3393 + $0x38] sm:$0xff]
      %s3402 = scalar_lea.vmem %s25, 2
      %v3403 = vld [vmem:[%s3402] sm:$0x1]
      %v3405 = vlaneseq
      %v3406 = vshrl.u32 %v3405, 7
      %v3407 = vsub.s32 0, %v3406
      %v3408 = vrot.slane %v3403, %v3407
      %v3411 = vsel %vm2288, %v3392, 0
      %3413 = vmatprep.subr.mxu0 0.0
      %3414 = vmatpush1.msra.mxu0 %v3394
      %3415 = vmatprep.subr.mxu0 0.0
      %3416 = vmatpush1.msra.mxu0 %v3395
      %3417 = vmatprep.subr.mxu0 0.0
      %3418 = vmatpush1.msra.mxu0 %v3396
      %3419 = vmatprep.subr.mxu0 0.0
      %3420 = vmatpush1.msra.mxu0 %v3397
      %3421 = vmatprep.subr.mxu0 0.0
      %3422 = vmatpush1.msra.mxu0 %v3398
      %3423 = vmatprep.subr.mxu0 0.0
      %3424 = vmatpush1.msra.mxu0 %v3399
      %3425 = vmatprep.subr.mxu0 0.0
      %3426 = vmatpush1.msra.mxu0 %v3400
      %3427 = vmatprep.subr.mxu0 0.0
      %3428 = vmatpush1.msra.mxu0 %v3401
      %3429 = vmatprep.subr.mxu0 0.0
      %3430 = vmatpush1.msra.mxu0 0.0
      %3431 = vmatprep.subr.mxu0 0.0
      %3432 = vmatpush1.msra.mxu0 0.0
      %3433 = vmatprep.subr.mxu0 0.0
      %3434 = vmatpush1.msra.mxu0 0.0
      %3435 = vmatprep.subr.mxu0 0.0
      %3436 = vmatpush1.msra.mxu0 0.0
      %3437 = vmatprep.subr.mxu0 0.0
      %3438 = vmatpush1.msra.mxu0 0.0
      %3439 = vmatprep.subr.mxu0 0.0
      %3440 = vmatpush1.msra.mxu0 0.0
      %3441 = vmatprep.subr.mxu0 0.0
      %3442 = vmatpush1.msra.mxu0 0.0
      %3443 = vmatprep.subr.mxu0 0.0
      %3444 = vmatpush1.msra.mxu0 0.0
      %3445 = vmatprep.subr.mxu0 0.0
      %3446 = vmatpush1.msra.mxu0 0.0
      %3447 = vmatprep.subr.mxu0 0.0
      %3448 = vmatpush1.msra.mxu0 0.0
      %3449 = vmatprep.subr.mxu0 0.0
      %3450 = vmatpush1.msra.mxu0 0.0
      %3451 = vmatprep.subr.mxu0 0.0
      %3452 = vmatpush1.msra.mxu0 0.0
      %3453 = vmatprep.subr.mxu0 0.0
      %3454 = vmatpush1.msra.mxu0 0.0
      %3455 = vmatprep.subr.mxu0 0.0
      %3456 = vmatpush1.msra.mxu0 0.0
      %3457 = vmatprep.subr.mxu0 0.0
      %3458 = vmatpush1.msra.mxu0 0.0
      %3459 = vmatprep.subr.mxu0 0.0
      %3460 = vmatpush1.msra.mxu0 0.0
      %3461 = vmatprep.subr.mxu0 0.0
      %3462 = vmatpush1.msra.mxu0 0.0
      %3463 = vmatprep.subr.mxu0 0.0
      %3464 = vmatpush1.msra.mxu0 0.0
      %3465 = vmatprep.subr.mxu0 0.0
      %3466 = vmatpush1.msra.mxu0 0.0
      %3467 = vmatprep.subr.mxu0 0.0
      %3468 = vmatpush1.msra.mxu0 0.0
      %3469 = vmatprep.subr.mxu0 0.0
      %3470 = vmatpush1.msra.mxu0 0.0
      %3471 = vmatprep.subr.mxu0 0.0
      %3472 = vmatpush1.msra.mxu0 0.0
      %3473 = vmatprep.subr.mxu0 0.0
      %3474 = vmatpush1.msra.mxu0 0.0
      %3475 = vmatprep.subr.mxu0 0.0
      %3476 = vmatpush1.msra.mxu0 0.0
      %3477 = vmatprep.mubr.f32.mxu0 0.0
      %3478 = vmatmul.mubr.f32.gmra.mrb[0].mxu0 %v3411
      %v3479 = vpop.f32.mrb[0].mxu0
      %v3480 = vadd.f32 %v3408, %v3479
      %v3481 = vpop.f32.mrb[0].mxu0
      %3482 = vdwg.mxu0
      %v3483 = vadd.f32 %v3305, %v3480
      %s3484 = scalar_lea.vmem %s20, 2
      %v3485 = vld [vmem:[%s3484] sm:$0x1]
      %s3486 = scalar_lea.vmem %s21, 2
      %v3487 = vld [vmem:[%s3486] sm:$0x1]
      %v3488 = vsel %vm966, %v3483, 0.0
      %3489 = vadd.xlane.f32.xlu0 %v3488
      %v3490 = vpop.xlane.xlu0 %3489
      %v3491 = vmul.f32 %v3490, %v2142
      %v3492 = vsub.f32 %v3483, %v3491
      %v3493 = vmul.f32 %v3492, %v3492
      %v3494 = vsel %vm966, %v3493, 0.0
      %3495 = vadd.xlane.f32.xlu0 %v3494
      %v3496 = vpop.xlane.xlu0 %3495
      %v3497 = vmul.f32 %v3496, %v2142
      %v3498 = vadd.f32 %v3497, 1e-05
      %v3499 = vrsqrt.pop %v3498
      %v3500 = vmul.f32 %v3492, %v3499
      %v3502 = vlaneseq
      %v3503 = vshrl.u32 %v3502, 7
      %v3504 = vsub.s32 0, %v3503
      %v3505 = vrot.slane %v3485, %v3504
      %v3507 = vmul.f32 %v3500, %v3505
      %v3509 = vlaneseq
      %v3510 = vshrl.u32 %v3509, 7
      %v3511 = vsub.s32 0, %v3510
      %v3512 = vrot.slane %v3487, %v3511
      %v3514 = vadd.f32 %v3507, %v3512
      %3515 = vst.msk [vmem:[#allocation3] sm:$0xfc] %vm2416, %v3514
      %v3516 = vld [vmem:[#allocation4] sm:$0xff]
      %s3517 = scalar_lea.vmem %s14, 128
      %v3518 = vld [vmem:[%s3517] sm:$0xff]
      %v3519 = vld [vmem:[%s3517 + $0x8] sm:$0xff]
      %v3520 = vld [vmem:[%s3517 + $0x10] sm:$0xff]
      %v3521 = vld [vmem:[%s3517 + $0x18] sm:$0xff]
      %s3522 = scalar_lea.vmem %s15, 4
      %v3523 = vld [vmem:[%s3522] sm:$0x1]
      %v3525 = vlaneseq
      %v3526 = vshrl.u32 %v3525, 7
      %v3527 = vsub.s32 0, %v3526
      %v3528 = vrot.slane %v3523, %v3527
      %v3531 = vsel %vm966, %v3516, 0
      %3533 = vmatprep.subr.mxu0 0.0
      %3534 = vmatpush1.msra.mxu0 %v3518
      %3535 = vmatprep.subr.mxu0 0.0
      %3536 = vmatpush1.msra.mxu0 %v3519
      %3537 = vmatprep.subr.mxu0 0.0
      %3538 = vmatpush1.msra.mxu0 %v3520
      %3539 = vmatprep.subr.mxu0 0.0
      %3540 = vmatpush1.msra.mxu0 %v3521
      %3541 = vmatprep.subr.mxu0 0.0
      %3542 = vmatpush1.msra.mxu0 0.0
      %3543 = vmatprep.subr.mxu0 0.0
      %3544 = vmatpush1.msra.mxu0 0.0
      %3545 = vmatprep.subr.mxu0 0.0
      %3546 = vmatpush1.msra.mxu0 0.0
      %3547 = vmatprep.subr.mxu0 0.0
      %3548 = vmatpush1.msra.mxu0 0.0
      %3549 = vmatprep.subr.mxu0 0.0
      %3550 = vmatpush1.msra.mxu0 0.0
      %3551 = vmatprep.subr.mxu0 0.0
      %3552 = vmatpush1.msra.mxu0 0.0
      %3553 = vmatprep.subr.mxu0 0.0
      %3554 = vmatpush1.msra.mxu0 0.0
      %3555 = vmatprep.subr.mxu0 0.0
      %3556 = vmatpush1.msra.mxu0 0.0
      %3557 = vmatprep.subr.mxu0 0.0
      %3558 = vmatpush1.msra.mxu0 0.0
      %3559 = vmatprep.subr.mxu0 0.0
      %3560 = vmatpush1.msra.mxu0 0.0
      %3561 = vmatprep.subr.mxu0 0.0
      %3562 = vmatpush1.msra.mxu0 0.0
      %3563 = vmatprep.subr.mxu0 0.0
      %3564 = vmatpush1.msra.mxu0 0.0
      %3565 = vmatprep.subr.mxu0 0.0
      %3566 = vmatpush1.msra.mxu0 0.0
      %3567 = vmatprep.subr.mxu0 0.0
      %3568 = vmatpush1.msra.mxu0 0.0
      %3569 = vmatprep.subr.mxu0 0.0
      %3570 = vmatpush1.msra.mxu0 0.0
      %3571 = vmatprep.subr.mxu0 0.0
      %3572 = vmatpush1.msra.mxu0 0.0
      %3573 = vmatprep.subr.mxu0 0.0
      %3574 = vmatpush1.msra.mxu0 0.0
      %3575 = vmatprep.subr.mxu0 0.0
      %3576 = vmatpush1.msra.mxu0 0.0
      %3577 = vmatprep.subr.mxu0 0.0
      %3578 = vmatpush1.msra.mxu0 0.0
      %3579 = vmatprep.subr.mxu0 0.0
      %3580 = vmatpush1.msra.mxu0 0.0
      %3581 = vmatprep.subr.mxu0 0.0
      %3582 = vmatpush1.msra.mxu0 0.0
      %3583 = vmatprep.subr.mxu0 0.0
      %3584 = vmatpush1.msra.mxu0 0.0
      %3585 = vmatprep.subr.mxu0 0.0
      %3586 = vmatpush1.msra.mxu0 0.0
      %3587 = vmatprep.subr.mxu0 0.0
      %3588 = vmatpush1.msra.mxu0 0.0
      %3589 = vmatprep.subr.mxu0 0.0
      %3590 = vmatpush1.msra.mxu0 0.0
      %3591 = vmatprep.subr.mxu0 0.0
      %3592 = vmatpush1.msra.mxu0 0.0
      %3593 = vmatprep.subr.mxu0 0.0
      %3594 = vmatpush1.msra.mxu0 0.0
      %3595 = vmatprep.subr.mxu0 0.0
      %3596 = vmatpush1.msra.mxu0 0.0
      %3597 = vmatprep.mubr.f32.mxu0 0.0
      %3598 = vmatmul.mubr.f32.gmra.mrb[0].mxu0 %v3531
      %v3599 = vpop.f32.mrb[0].mxu0
      %v3600 = vadd.f32 %v3528, %v3599
      %v3601 = vpop.f32.mrb[0].mxu0
      %3602 = vdwg.mxu0
      %3604 = vrot.lane.b32.xlu0 %v3600, 96
      %v3605 = vpop.permute.xlu0 %3604
      %v3606 = vsel %vm1200, %v3600, 0
      %v3608 = vsel %vm1200, %v3605, 0
      %3610 = vmatprep.subr.mxu0 0.0
      %3611 = vmatpush1.xpose.msra.mxu0 %v3608
      %3612 = vmatprep.subr.mxu0 0.0
      %3613 = vmatpush1.xpose.msra.mxu0 0.0
      %3614 = vmatprep.subr.mxu0 0.0
      %3615 = vmatpush1.xpose.msra.mxu0 0.0
      %3616 = vmatprep.subr.mxu0 0.0
      %3617 = vmatpush1.xpose.msra.mxu0 0.0
      %3618 = vmatprep.subr.mxu0 0.0
      %3619 = vmatpush1.xpose.msra.mxu0 0.0
      %3620 = vmatprep.subr.mxu0 0.0
      %3621 = vmatpush1.xpose.msra.mxu0 0.0
      %3622 = vmatprep.subr.mxu0 0.0
      %3623 = vmatpush1.xpose.msra.mxu0 0.0
      %3624 = vmatprep.subr.mxu0 0.0
      %3625 = vmatpush1.xpose.msra.mxu0 0.0
      %3626 = vmatprep.subr.mxu0 0.0
      %3627 = vmatpush1.xpose.msra.mxu0 0.0
      %3628 = vmatprep.subr.mxu0 0.0
      %3629 = vmatpush1.xpose.msra.mxu0 0.0
      %3630 = vmatprep.subr.mxu0 0.0
      %3631 = vmatpush1.xpose.msra.mxu0 0.0
      %3632 = vmatprep.subr.mxu0 0.0
      %3633 = vmatpush1.xpose.msra.mxu0 0.0
      %3634 = vmatprep.subr.mxu0 0.0
      %3635 = vmatpush1.xpose.msra.mxu0 0.0
      %3636 = vmatprep.subr.mxu0 0.0
      %3637 = vmatpush1.xpose.msra.mxu0 0.0
      %3638 = vmatprep.subr.mxu0 0.0
      %3639 = vmatpush1.xpose.msra.mxu0 0.0
      %3640 = vmatprep.subr.mxu0 0.0
      %3641 = vmatpush1.xpose.msra.mxu0 0.0
      %3642 = vmatprep.subr.mxu0 0.0
      %3643 = vmatpush1.xpose.msra.mxu0 0.0
      %3644 = vmatprep.subr.mxu0 0.0
      %3645 = vmatpush1.xpose.msra.mxu0 0.0
      %3646 = vmatprep.subr.mxu0 0.0
      %3647 = vmatpush1.xpose.msra.mxu0 0.0
      %3648 = vmatprep.subr.mxu0 0.0
      %3649 = vmatpush1.xpose.msra.mxu0 0.0
      %3650 = vmatprep.subr.mxu0 0.0
      %3651 = vmatpush1.xpose.msra.mxu0 0.0
      %3652 = vmatprep.subr.mxu0 0.0
      %3653 = vmatpush1.xpose.msra.mxu0 0.0
      %3654 = vmatprep.subr.mxu0 0.0
      %3655 = vmatpush1.xpose.msra.mxu0 0.0
      %3656 = vmatprep.subr.mxu0 0.0
      %3657 = vmatpush1.xpose.msra.mxu0 0.0
      %3658 = vmatprep.subr.mxu0 0.0
      %3659 = vmatpush1.xpose.msra.mxu0 0.0
      %3660 = vmatprep.subr.mxu0 0.0
      %3661 = vmatpush1.xpose.msra.mxu0 0.0
      %3662 = vmatprep.subr.mxu0 0.0
      %3663 = vmatpush1.xpose.msra.mxu0 0.0
      %3664 = vmatprep.subr.mxu0 0.0
      %3665 = vmatpush1.xpose.msra.mxu0 0.0
      %3666 = vmatprep.subr.mxu0 0.0
      %3667 = vmatpush1.xpose.msra.mxu0 0.0
      %3668 = vmatprep.subr.mxu0 0.0
      %3669 = vmatpush1.xpose.msra.mxu0 0.0
      %3670 = vmatprep.subr.mxu0 0.0
      %3671 = vmatpush1.xpose.msra.mxu0 0.0
      %3672 = vmatprep.subr.mxu0 0.0
      %3673 = vmatpush1.xpose.msra.mxu0 0.0
      %3674 = vmatprep.mubr.f32.mxu0 0.0
      %3675 = vmatmul.mubr.f32.gmra.mrb[0].mxu0 %v3606
      %v3676 = vpop.f32.mrb[0].mxu0
      %v3677 = vadd.f32 0.0, %v3676
      %v3678 = vpop.f32.mrb[0].mxu0
      %3679 = vdwg.mxu0
      %v3680 = vmul.f32 %v3677, 0.35355338
      %v3681 = vadd.f32 %v3680, %v1077
      %v3682 = vsel %vm1200, %v3681, -inf
      %3683 = vmax.xlane.f32.xlu0 %v3682
      %v3684 = vpop.xlane.xlu0 %3683
      %v3685 = vsub.f32 %v3681, %v3684
      %v3686 = vmul.f32 %v3685, 1.442695
      %v3687 = vpow.pop %v3686
      %v3688 = vsel %vm1200, %v3687, 0.0
      %3689 = vadd.xlane.f32.xlu0 %v3688
      %v3690 = vpop.xlane.xlu0 %3689
      %v3691 = vrcp.pop %v3690
      %v3692 = vmul.f32 %v3687, %v3691
      %3693 = vrot.lane.b32.xlu0 %v3600, 64
      %v3694 = vpop.permute.xlu0 %3693
      %v3697 = vsel %vm1200, %v3692, 0
      %3699 = vmatprep.subr.mxu0 0.0
      %3700 = vmatpush1.msra.mxu0 %v3694
      %3701 = vmatprep.subr.mxu0 0.0
      %3702 = vmatpush1.msra.mxu0 0.0
      %3703 = vmatprep.subr.mxu0 0.0
      %3704 = vmatpush1.msra.mxu0 0.0
      %3705 = vmatprep.subr.mxu0 0.0
      %3706 = vmatpush1.msra.mxu0 0.0
      %3707 = vmatprep.subr.mxu0 0.0
      %3708 = vmatpush1.msra.mxu0 0.0
      %3709 = vmatprep.subr.mxu0 0.0
      %3710 = vmatpush1.msra.mxu0 0.0
      %3711 = vmatprep.subr.mxu0 0.0
      %3712 = vmatpush1.msra.mxu0 0.0
      %3713 = vmatprep.subr.mxu0 0.0
      %3714 = vmatpush1.msra.mxu0 0.0
      %3715 = vmatprep.subr.mxu0 0.0
      %3716 = vmatpush1.msra.mxu0 0.0
      %3717 = vmatprep.subr.mxu0 0.0
      %3718 = vmatpush1.msra.mxu0 0.0
      %3719 = vmatprep.subr.mxu0 0.0
      %3720 = vmatpush1.msra.mxu0 0.0
      %3721 = vmatprep.subr.mxu0 0.0
      %3722 = vmatpush1.msra.mxu0 0.0
      %3723 = vmatprep.subr.mxu0 0.0
      %3724 = vmatpush1.msra.mxu0 0.0
      %3725 = vmatprep.subr.mxu0 0.0
      %3726 = vmatpush1.msra.mxu0 0.0
      %3727 = vmatprep.subr.mxu0 0.0
      %3728 = vmatpush1.msra.mxu0 0.0
      %3729 = vmatprep.subr.mxu0 0.0
      %3730 = vmatpush1.msra.mxu0 0.0
      %3731 = vmatprep.subr.mxu0 0.0
      %3732 = vmatpush1.msra.mxu0 0.0
      %3733 = vmatprep.subr.mxu0 0.0
      %3734 = vmatpush1.msra.mxu0 0.0
      %3735 = vmatprep.subr.mxu0 0.0
      %3736 = vmatpush1.msra.mxu0 0.0
      %3737 = vmatprep.subr.mxu0 0.0
      %3738 = vmatpush1.msra.mxu0 0.0
      %3739 = vmatprep.subr.mxu0 0.0
      %3740 = vmatpush1.msra.mxu0 0.0
      %3741 = vmatprep.subr.mxu0 0.0
      %3742 = vmatpush1.msra.mxu0 0.0
      %3743 = vmatprep.subr.mxu0 0.0
      %3744 = vmatpush1.msra.mxu0 0.0
      %3745 = vmatprep.subr.mxu0 0.0
      %3746 = vmatpush1.msra.mxu0 0.0
      %3747 = vmatprep.subr.mxu0 0.0
      %3748 = vmatpush1.msra.mxu0 0.0
      %3749 = vmatprep.subr.mxu0 0.0
      %3750 = vmatpush1.msra.mxu0 0.0
      %3751 = vmatprep.subr.mxu0 0.0
      %3752 = vmatpush1.msra.mxu0 0.0
      %3753 = vmatprep.subr.mxu0 0.0
      %3754 = vmatpush1.msra.mxu0 0.0
      %3755 = vmatprep.subr.mxu0 0.0
      %3756 = vmatpush1.msra.mxu0 0.0
      %3757 = vmatprep.subr.mxu0 0.0
      %3758 = vmatpush1.msra.mxu0 0.0
      %3759 = vmatprep.subr.mxu0 0.0
      %3760 = vmatpush1.msra.mxu0 0.0
      %3761 = vmatprep.subr.mxu0 0.0
      %3762 = vmatpush1.msra.mxu0 0.0
      %3763 = vmatprep.mubr.f32.mxu0 0.0
      %3764 = vmatmul.mubr.f32.gmra.mrb[0].mxu0 %v3697
      %v3765 = vpop.f32.mrb[0].mxu0
      %v3766 = vadd.f32 0.0, %v3765
      %v3767 = vpop.f32.mrb[0].mxu0
      %3768 = vdwg.mxu0
      %3769 = vrot.lane.b32.xlu0 %v3600, 120
      %v3770 = vpop.permute.xlu0 %3769
      %3771 = vrot.lane.b32.xlu0 %v3600, 88
      %v3772 = vpop.permute.xlu0 %3771
      %v3773 = vsel %vm1200, %v3770, 0
      %v3775 = vsel %vm1200, %v3772, 0
      %3777 = vmatprep.subr.mxu0 0.0
      %3778 = vmatpush1.xpose.msra.mxu0 %v3775
      %3779 = vmatprep.subr.mxu0 0.0
      %3780 = vmatpush1.xpose.msra.mxu0 0.0
      %3781 = vmatprep.subr.mxu0 0.0
      %3782 = vmatpush1.xpose.msra.mxu0 0.0
      %3783 = vmatprep.subr.mxu0 0.0
      %3784 = vmatpush1.xpose.msra.mxu0 0.0
      %3785 = vmatprep.subr.mxu0 0.0
      %3786 = vmatpush1.xpose.msra.mxu0 0.0
      %3787 = vmatprep.subr.mxu0 0.0
      %3788 = vmatpush1.xpose.msra.mxu0 0.0
      %3789 = vmatprep.subr.mxu0 0.0
      %3790 = vmatpush1.xpose.msra.mxu0 0.0
      %3791 = vmatprep.subr.mxu0 0.0
      %3792 = vmatpush1.xpose.msra.mxu0 0.0
      %3793 = vmatprep.subr.mxu0 0.0
      %3794 = vmatpush1.xpose.msra.mxu0 0.0
      %3795 = vmatprep.subr.mxu0 0.0
      %3796 = vmatpush1.xpose.msra.mxu0 0.0
      %3797 = vmatprep.subr.mxu0 0.0
      %3798 = vmatpush1.xpose.msra.mxu0 0.0
      %3799 = vmatprep.subr.mxu0 0.0
      %3800 = vmatpush1.xpose.msra.mxu0 0.0
      %3801 = vmatprep.subr.mxu0 0.0
      %3802 = vmatpush1.xpose.msra.mxu0 0.0
      %3803 = vmatprep.subr.mxu0 0.0
      %3804 = vmatpush1.xpose.msra.mxu0 0.0
      %3805 = vmatprep.subr.mxu0 0.0
      %3806 = vmatpush1.xpose.msra.mxu0 0.0
      %3807 = vmatprep.subr.mxu0 0.0
      %3808 = vmatpush1.xpose.msra.mxu0 0.0
      %3809 = vmatprep.subr.mxu0 0.0
      %3810 = vmatpush1.xpose.msra.mxu0 0.0
      %3811 = vmatprep.subr.mxu0 0.0
      %3812 = vmatpush1.xpose.msra.mxu0 0.0
      %3813 = vmatprep.subr.mxu0 0.0
      %3814 = vmatpush1.xpose.msra.mxu0 0.0
      %3815 = vmatprep.subr.mxu0 0.0
      %3816 = vmatpush1.xpose.msra.mxu0 0.0
      %3817 = vmatprep.subr.mxu0 0.0
      %3818 = vmatpush1.xpose.msra.mxu0 0.0
      %3819 = vmatprep.subr.mxu0 0.0
      %3820 = vmatpush1.xpose.msra.mxu0 0.0
      %3821 = vmatprep.subr.mxu0 0.0
      %3822 = vmatpush1.xpose.msra.mxu0 0.0
      %3823 = vmatprep.subr.mxu0 0.0
      %3824 = vmatpush1.xpose.msra.mxu0 0.0
      %3825 = vmatprep.subr.mxu0 0.0
      %3826 = vmatpush1.xpose.msra.mxu0 0.0
      %3827 = vmatprep.subr.mxu0 0.0
      %3828 = vmatpush1.xpose.msra.mxu0 0.0
      %3829 = vmatprep.subr.mxu0 0.0
      %3830 = vmatpush1.xpose.msra.mxu0 0.0
      %3831 = vmatprep.subr.mxu0 0.0
      %3832 = vmatpush1.xpose.msra.mxu0 0.0
      %3833 = vmatprep.subr.mxu0 0.0
      %3834 = vmatpush1.xpose.msra.mxu0 0.0
      %3835 = vmatprep.subr.mxu0 0.0
      %3836 = vmatpush1.xpose.msra.mxu0 0.0
      %3837 = vmatprep.subr.mxu0 0.0
      %3838 = vmatpush1.xpose.msra.mxu0 0.0
      %3839 = vmatprep.subr.mxu0 0.0
      %3840 = vmatpush1.xpose.msra.mxu0 0.0
      %3841 = vmatprep.mubr.f32.mxu0 0.0
      %3842 = vmatmul.mubr.f32.gmra.mrb[0].mxu0 %v3773
      %v3843 = vpop.f32.mrb[0].mxu0
      %v3844 = vadd.f32 0.0, %v3843
      %v3845 = vpop.f32.mrb[0].mxu0
      %3846 = vdwg.mxu0
      %v3847 = vmul.f32 %v3844, 0.35355338
      %v3848 = vadd.f32 %v3847, %v1077
      %v3849 = vsel %vm1200, %v3848, -inf
      %3850 = vmax.xlane.f32.xlu0 %v3849
      %v3851 = vpop.xlane.xlu0 %3850
      %v3852 = vsub.f32 %v3848, %v3851
      %v3853 = vmul.f32 %v3852, 1.442695
      %v3854 = vpow.pop %v3853
      %v3855 = vsel %vm1200, %v3854, 0.0
      %3856 = vadd.xlane.f32.xlu0 %v3855
      %v3857 = vpop.xlane.xlu0 %3856
      %v3858 = vrcp.pop %v3857
      %v3859 = vmul.f32 %v3854, %v3858
      %3860 = vrot.lane.b32.xlu0 %v3600, 56
      %v3861 = vpop.permute.xlu0 %3860
      %v3864 = vsel %vm1200, %v3859, 0
      %3866 = vmatprep.subr.mxu0 0.0
      %3867 = vmatpush1.msra.mxu0 %v3861
      %3868 = vmatprep.subr.mxu0 0.0
      %3869 = vmatpush1.msra.mxu0 0.0
      %3870 = vmatprep.subr.mxu0 0.0
      %3871 = vmatpush1.msra.mxu0 0.0
      %3872 = vmatprep.subr.mxu0 0.0
      %3873 = vmatpush1.msra.mxu0 0.0
      %3874 = vmatprep.subr.mxu0 0.0
      %3875 = vmatpush1.msra.mxu0 0.0
      %3876 = vmatprep.subr.mxu0 0.0
      %3877 = vmatpush1.msra.mxu0 0.0
      %3878 = vmatprep.subr.mxu0 0.0
      %3879 = vmatpush1.msra.mxu0 0.0
      %3880 = vmatprep.subr.mxu0 0.0
      %3881 = vmatpush1.msra.mxu0 0.0
      %3882 = vmatprep.subr.mxu0 0.0
      %3883 = vmatpush1.msra.mxu0 0.0
      %3884 = vmatprep.subr.mxu0 0.0
      %3885 = vmatpush1.msra.mxu0 0.0
      %3886 = vmatprep.subr.mxu0 0.0
      %3887 = vmatpush1.msra.mxu0 0.0
      %3888 = vmatprep.subr.mxu0 0.0
      %3889 = vmatpush1.msra.mxu0 0.0
      %3890 = vmatprep.subr.mxu0 0.0
      %3891 = vmatpush1.msra.mxu0 0.0
      %3892 = vmatprep.subr.mxu0 0.0
      %3893 = vmatpush1.msra.mxu0 0.0
      %3894 = vmatprep.subr.mxu0 0.0
      %3895 = vmatpush1.msra.mxu0 0.0
      %3896 = vmatprep.subr.mxu0 0.0
      %3897 = vmatpush1.msra.mxu0 0.0
      %3898 = vmatprep.subr.mxu0 0.0
      %3899 = vmatpush1.msra.mxu0 0.0
      %3900 = vmatprep.subr.mxu0 0.0
      %3901 = vmatpush1.msra.mxu0 0.0
      %3902 = vmatprep.subr.mxu0 0.0
      %3903 = vmatpush1.msra.mxu0 0.0
      %3904 = vmatprep.subr.mxu0 0.0
      %3905 = vmatpush1.msra.mxu0 0.0
      %3906 = vmatprep.subr.mxu0 0.0
      %3907 = vmatpush1.msra.mxu0 0.0
      %3908 = vmatprep.subr.mxu0 0.0
      %3909 = vmatpush1.msra.mxu0 0.0
      %3910 = vmatprep.subr.mxu0 0.0
      %3911 = vmatpush1.msra.mxu0 0.0
      %3912 = vmatprep.subr.mxu0 0.0
      %3913 = vmatpush1.msra.mxu0 0.0
      %3914 = vmatprep.subr.mxu0 0.0
      %3915 = vmatpush1.msra.mxu0 0.0
      %3916 = vmatprep.subr.mxu0 0.0
      %3917 = vmatpush1.msra.mxu0 0.0
      %3918 = vmatprep.subr.mxu0 0.0
      %3919 = vmatpush1.msra.mxu0 0.0
      %3920 = vmatprep.subr.mxu0 0.0
      %3921 = vmatpush1.msra.mxu0 0.0
      %3922 = vmatprep.subr.mxu0 0.0
      %3923 = vmatpush1.msra.mxu0 0.0
      %3924 = vmatprep.subr.mxu0 0.0
      %3925 = vmatpush1.msra.mxu0 0.0
      %3926 = vmatprep.subr.mxu0 0.0
      %3927 = vmatpush1.msra.mxu0 0.0
      %3928 = vmatprep.subr.mxu0 0.0
      %3929 = vmatpush1.msra.mxu0 0.0
      %3930 = vmatprep.mubr.f32.mxu0 0.0
      %3931 = vmatmul.mubr.f32.gmra.mrb[0].mxu0 %v3864
      %v3932 = vpop.f32.mrb[0].mxu0
      %v3933 = vadd.f32 0.0, %v3932
      %v3934 = vpop.f32.mrb[0].mxu0
      %3935 = vdwg.mxu0
      %3936 = vrot.lane.b32.xlu0 %v3600, 112
      %v3937 = vpop.permute.xlu0 %3936
      %3938 = vrot.lane.b32.xlu0 %v3600, 80
      %v3939 = vpop.permute.xlu0 %3938
      %v3940 = vsel %vm1200, %v3937, 0
      %v3942 = vsel %vm1200, %v3939, 0
      %3944 = vmatprep.subr.mxu0 0.0
      %3945 = vmatpush1.xpose.msra.mxu0 %v3942
      %3946 = vmatprep.subr.mxu0 0.0
      %3947 = vmatpush1.xpose.msra.mxu0 0.0
      %3948 = vmatprep.subr.mxu0 0.0
      %3949 = vmatpush1.xpose.msra.mxu0 0.0
      %3950 = vmatprep.subr.mxu0 0.0
      %3951 = vmatpush1.xpose.msra.mxu0 0.0
      %3952 = vmatprep.subr.mxu0 0.0
      %3953 = vmatpush1.xpose.msra.mxu0 0.0
      %3954 = vmatprep.subr.mxu0 0.0
      %3955 = vmatpush1.xpose.msra.mxu0 0.0
      %3956 = vmatprep.subr.mxu0 0.0
      %3957 = vmatpush1.xpose.msra.mxu0 0.0
      %3958 = vmatprep.subr.mxu0 0.0
      %3959 = vmatpush1.xpose.msra.mxu0 0.0
      %3960 = vmatprep.subr.mxu0 0.0
      %3961 = vmatpush1.xpose.msra.mxu0 0.0
      %3962 = vmatprep.subr.mxu0 0.0
      %3963 = vmatpush1.xpose.msra.mxu0 0.0
      %3964 = vmatprep.subr.mxu0 0.0
      %3965 = vmatpush1.xpose.msra.mxu0 0.0
      %3966 = vmatprep.subr.mxu0 0.0
      %3967 = vmatpush1.xpose.msra.mxu0 0.0
      %3968 = vmatprep.subr.mxu0 0.0
      %3969 = vmatpush1.xpose.msra.mxu0 0.0
      %3970 = vmatprep.subr.mxu0 0.0
      %3971 = vmatpush1.xpose.msra.mxu0 0.0
      %3972 = vmatprep.subr.mxu0 0.0
      %3973 = vmatpush1.xpose.msra.mxu0 0.0
      %3974 = vmatprep.subr.mxu0 0.0
      %3975 = vmatpush1.xpose.msra.mxu0 0.0
      %3976 = vmatprep.subr.mxu0 0.0
      %3977 = vmatpush1.xpose.msra.mxu0 0.0
      %3978 = vmatprep.subr.mxu0 0.0
      %3979 = vmatpush1.xpose.msra.mxu0 0.0
      %3980 = vmatprep.subr.mxu0 0.0
      %3981 = vmatpush1.xpose.msra.mxu0 0.0
      %3982 = vmatprep.subr.mxu0 0.0
      %3983 = vmatpush1.xpose.msra.mxu0 0.0
      %3984 = vmatprep.subr.mxu0 0.0
      %3985 = vmatpush1.xpose.msra.mxu0 0.0
      %3986 = vmatprep.subr.mxu0 0.0
      %3987 = vmatpush1.xpose.msra.mxu0 0.0
      %3988 = vmatprep.subr.mxu0 0.0
      %3989 = vmatpush1.xpose.msra.mxu0 0.0
      %3990 = vmatprep.subr.mxu0 0.0
      %3991 = vmatpush1.xpose.msra.mxu0 0.0
      %3992 = vmatprep.subr.mxu0 0.0
      %3993 = vmatpush1.xpose.msra.mxu0 0.0
      %3994 = vmatprep.subr.mxu0 0.0
      %3995 = vmatpush1.xpose.msra.mxu0 0.0
      %3996 = vmatprep.subr.mxu0 0.0
      %3997 = vmatpush1.xpose.msra.mxu0 0.0
      %3998 = vmatprep.subr.mxu0 0.0
      %3999 = vmatpush1.xpose.msra.mxu0 0.0
      %4000 = vmatprep.subr.mxu0 0.0
      %4001 = vmatpush1.xpose.msra.mxu0 0.0
      %4002 = vmatprep.subr.mxu0 0.0
      %4003 = vmatpush1.xpose.msra.mxu0 0.0
      %4004 = vmatprep.subr.mxu0 0.0
      %4005 = vmatpush1.xpose.msra.mxu0 0.0
      %4006 = vmatprep.subr.mxu0 0.0
      %4007 = vmatpush1.xpose.msra.mxu0 0.0
      %4008 = vmatprep.mubr.f32.mxu0 0.0
      %4009 = vmatmul.mubr.f32.gmra.mrb[0].mxu0 %v3940
      %v4010 = vpop.f32.mrb[0].mxu0
      %v4011 = vadd.f32 0.0, %v4010
      %v4012 = vpop.f32.mrb[0].mxu0
      %4013 = vdwg.mxu0
      %v4014 = vmul.f32 %v4011, 0.35355338
      %v4015 = vadd.f32 %v4014, %v1077
      %v4016 = vsel %vm1200, %v4015, -inf
      %4017 = vmax.xlane.f32.xlu0 %v4016
      %v4018 = vpop.xlane.xlu0 %4017
      %v4019 = vsub.f32 %v4015, %v4018
      %v4020 = vmul.f32 %v4019, 1.442695
      %v4021 = vpow.pop %v4020
      %v4022 = vsel %vm1200, %v4021, 0.0
      %4023 = vadd.xlane.f32.xlu0 %v4022
      %v4024 = vpop.xlane.xlu0 %4023
      %v4025 = vrcp.pop %v4024
      %v4026 = vmul.f32 %v4021, %v4025
      %4027 = vrot.lane.b32.xlu0 %v3600, 48
      %v4028 = vpop.permute.xlu0 %4027
      %v4031 = vsel %vm1200, %v4026, 0
      %4033 = vmatprep.subr.mxu0 0.0
      %4034 = vmatpush1.msra.mxu0 %v4028
      %4035 = vmatprep.subr.mxu0 0.0
      %4036 = vmatpush1.msra.mxu0 0.0
      %4037 = vmatprep.subr.mxu0 0.0
      %4038 = vmatpush1.msra.mxu0 0.0
      %4039 = vmatprep.subr.mxu0 0.0
      %4040 = vmatpush1.msra.mxu0 0.0
      %4041 = vmatprep.subr.mxu0 0.0
      %4042 = vmatpush1.msra.mxu0 0.0
      %4043 = vmatprep.subr.mxu0 0.0
      %4044 = vmatpush1.msra.mxu0 0.0
      %4045 = vmatprep.subr.mxu0 0.0
      %4046 = vmatpush1.msra.mxu0 0.0
      %4047 = vmatprep.subr.mxu0 0.0
      %4048 = vmatpush1.msra.mxu0 0.0
      %4049 = vmatprep.subr.mxu0 0.0
      %4050 = vmatpush1.msra.mxu0 0.0
      %4051 = vmatprep.subr.mxu0 0.0
      %4052 = vmatpush1.msra.mxu0 0.0
      %4053 = vmatprep.subr.mxu0 0.0
      %4054 = vmatpush1.msra.mxu0 0.0
      %4055 = vmatprep.subr.mxu0 0.0
      %4056 = vmatpush1.msra.mxu0 0.0
      %4057 = vmatprep.subr.mxu0 0.0
      %4058 = vmatpush1.msra.mxu0 0.0
      %4059 = vmatprep.subr.mxu0 0.0
      %4060 = vmatpush1.msra.mxu0 0.0
      %4061 = vmatprep.subr.mxu0 0.0
      %4062 = vmatpush1.msra.mxu0 0.0
      %4063 = vmatprep.subr.mxu0 0.0
      %4064 = vmatpush1.msra.mxu0 0.0
      %4065 = vmatprep.subr.mxu0 0.0
      %4066 = vmatpush1.msra.mxu0 0.0
      %4067 = vmatprep.subr.mxu0 0.0
      %4068 = vmatpush1.msra.mxu0 0.0
      %4069 = vmatprep.subr.mxu0 0.0
      %4070 = vmatpush1.msra.mxu0 0.0
      %4071 = vmatprep.subr.mxu0 0.0
      %4072 = vmatpush1.msra.mxu0 0.0
      %4073 = vmatprep.subr.mxu0 0.0
      %4074 = vmatpush1.msra.mxu0 0.0
      %4075 = vmatprep.subr.mxu0 0.0
      %4076 = vmatpush1.msra.mxu0 0.0
      %4077 = vmatprep.subr.mxu0 0.0
      %4078 = vmatpush1.msra.mxu0 0.0
      %4079 = vmatprep.subr.mxu0 0.0
      %4080 = vmatpush1.msra.mxu0 0.0
      %4081 = vmatprep.subr.mxu0 0.0
      %4082 = vmatpush1.msra.mxu0 0.0
      %4083 = vmatprep.subr.mxu0 0.0
      %4084 = vmatpush1.msra.mxu0 0.0
      %4085 = vmatprep.subr.mxu0 0.0
      %4086 = vmatpush1.msra.mxu0 0.0
      %4087 = vmatprep.subr.mxu0 0.0
      %4088 = vmatpush1.msra.mxu0 0.0
      %4089 = vmatprep.subr.mxu0 0.0
      %4090 = vmatpush1.msra.mxu0 0.0
      %4091 = vmatprep.subr.mxu0 0.0
      %4092 = vmatpush1.msra.mxu0 0.0
      %4093 = vmatprep.subr.mxu0 0.0
      %4094 = vmatpush1.msra.mxu0 0.0
      %4095 = vmatprep.subr.mxu0 0.0
      %4096 = vmatpush1.msra.mxu0 0.0
      %4097 = vmatprep.mubr.f32.mxu0 0.0
      %4098 = vmatmul.mubr.f32.gmra.mrb[0].mxu0 %v4031
      %v4099 = vpop.f32.mrb[0].mxu0
      %v4100 = vadd.f32 0.0, %v4099
      %v4101 = vpop.f32.mrb[0].mxu0
      %4102 = vdwg.mxu0
      %4103 = vrot.lane.b32.xlu0 %v3600, 104
      %v4104 = vpop.permute.xlu0 %4103
      %4105 = vrot.lane.b32.xlu0 %v3600, 72
      %v4106 = vpop.permute.xlu0 %4105
      %v4107 = vsel %vm1200, %v4104, 0
      %v4109 = vsel %vm1200, %v4106, 0
      %4111 = vmatprep.subr.mxu0 0.0
      %4112 = vmatpush1.xpose.msra.mxu0 %v4109
      %4113 = vmatprep.subr.mxu0 0.0
      %4114 = vmatpush1.xpose.msra.mxu0 0.0
      %4115 = vmatprep.subr.mxu0 0.0
      %4116 = vmatpush1.xpose.msra.mxu0 0.0
      %4117 = vmatprep.subr.mxu0 0.0
      %4118 = vmatpush1.xpose.msra.mxu0 0.0
      %4119 = vmatprep.subr.mxu0 0.0
      %4120 = vmatpush1.xpose.msra.mxu0 0.0
      %4121 = vmatprep.subr.mxu0 0.0
      %4122 = vmatpush1.xpose.msra.mxu0 0.0
      %4123 = vmatprep.subr.mxu0 0.0
      %4124 = vmatpush1.xpose.msra.mxu0 0.0
      %4125 = vmatprep.subr.mxu0 0.0
      %4126 = vmatpush1.xpose.msra.mxu0 0.0
      %4127 = vmatprep.subr.mxu0 0.0
      %4128 = vmatpush1.xpose.msra.mxu0 0.0
      %4129 = vmatprep.subr.mxu0 0.0
      %4130 = vmatpush1.xpose.msra.mxu0 0.0
      %4131 = vmatprep.subr.mxu0 0.0
      %4132 = vmatpush1.xpose.msra.mxu0 0.0
      %4133 = vmatprep.subr.mxu0 0.0
      %4134 = vmatpush1.xpose.msra.mxu0 0.0
      %4135 = vmatprep.subr.mxu0 0.0
      %4136 = vmatpush1.xpose.msra.mxu0 0.0
      %4137 = vmatprep.subr.mxu0 0.0
      %4138 = vmatpush1.xpose.msra.mxu0 0.0
      %4139 = vmatprep.subr.mxu0 0.0
      %4140 = vmatpush1.xpose.msra.mxu0 0.0
      %4141 = vmatprep.subr.mxu0 0.0
      %4142 = vmatpush1.xpose.msra.mxu0 0.0
      %4143 = vmatprep.subr.mxu0 0.0
      %4144 = vmatpush1.xpose.msra.mxu0 0.0
      %4145 = vmatprep.subr.mxu0 0.0
      %4146 = vmatpush1.xpose.msra.mxu0 0.0
      %4147 = vmatprep.subr.mxu0 0.0
      %4148 = vmatpush1.xpose.msra.mxu0 0.0
      %4149 = vmatprep.subr.mxu0 0.0
      %4150 = vmatpush1.xpose.msra.mxu0 0.0
      %4151 = vmatprep.subr.mxu0 0.0
      %4152 = vmatpush1.xpose.msra.mxu0 0.0
      %4153 = vmatprep.subr.mxu0 0.0
      %4154 = vmatpush1.xpose.msra.mxu0 0.0
      %4155 = vmatprep.subr.mxu0 0.0
      %4156 = vmatpush1.xpose.msra.mxu0 0.0
      %4157 = vmatprep.subr.mxu0 0.0
      %4158 = vmatpush1.xpose.msra.mxu0 0.0
      %4159 = vmatprep.subr.mxu0 0.0
      %4160 = vmatpush1.xpose.msra.mxu0 0.0
      %4161 = vmatprep.subr.mxu0 0.0
      %4162 = vmatpush1.xpose.msra.mxu0 0.0
      %4163 = vmatprep.subr.mxu0 0.0
      %4164 = vmatpush1.xpose.msra.mxu0 0.0
      %4165 = vmatprep.subr.mxu0 0.0
      %4166 = vmatpush1.xpose.msra.mxu0 0.0
      %4167 = vmatprep.subr.mxu0 0.0
      %4168 = vmatpush1.xpose.msra.mxu0 0.0
      %4169 = vmatprep.subr.mxu0 0.0
      %4170 = vmatpush1.xpose.msra.mxu0 0.0
      %4171 = vmatprep.subr.mxu0 0.0
      %4172 = vmatpush1.xpose.msra.mxu0 0.0
      %4173 = vmatprep.subr.mxu0 0.0
      %4174 = vmatpush1.xpose.msra.mxu0 0.0
      %4175 = vmatprep.mubr.f32.mxu0 0.0
      %4176 = vmatmul.mubr.f32.gmra.mrb[0].mxu0 %v4107
      %v4177 = vpop.f32.mrb[0].mxu0
      %v4178 = vadd.f32 0.0, %v4177
      %v4179 = vpop.f32.mrb[0].mxu0
      %4180 = vdwg.mxu0
      %v4181 = vmul.f32 %v4178, 0.35355338
      %v4182 = vadd.f32 %v4181, %v1077
      %v4183 = vsel %vm1200, %v4182, -inf
      %4184 = vmax.xlane.f32.xlu0 %v4183
      %v4185 = vpop.xlane.xlu0 %4184
      %v4186 = vsub.f32 %v4182, %v4185
      %v4187 = vmul.f32 %v4186, 1.442695
      %v4188 = vpow.pop %v4187
      %v4189 = vsel %vm1200, %v4188, 0.0
      %4190 = vadd.xlane.f32.xlu0 %v4189
      %v4191 = vpop.xlane.xlu0 %4190
      %v4192 = vrcp.pop %v4191
      %v4193 = vmul.f32 %v4188, %v4192
      %4194 = vrot.lane.b32.xlu0 %v3600, 40
      %v4195 = vpop.permute.xlu0 %4194
      %v4198 = vsel %vm1200, %v4193, 0
      %4200 = vmatprep.subr.mxu0 0.0
      %4201 = vmatpush1.msra.mxu0 %v4195
      %4202 = vmatprep.subr.mxu0 0.0
      %4203 = vmatpush1.msra.mxu0 0.0
      %4204 = vmatprep.subr.mxu0 0.0
      %4205 = vmatpush1.msra.mxu0 0.0
      %4206 = vmatprep.subr.mxu0 0.0
      %4207 = vmatpush1.msra.mxu0 0.0
      %4208 = vmatprep.subr.mxu0 0.0
      %4209 = vmatpush1.msra.mxu0 0.0
      %4210 = vmatprep.subr.mxu0 0.0
      %4211 = vmatpush1.msra.mxu0 0.0
      %4212 = vmatprep.subr.mxu0 0.0
      %4213 = vmatpush1.msra.mxu0 0.0
      %4214 = vmatprep.subr.mxu0 0.0
      %4215 = vmatpush1.msra.mxu0 0.0
      %4216 = vmatprep.subr.mxu0 0.0
      %4217 = vmatpush1.msra.mxu0 0.0
      %4218 = vmatprep.subr.mxu0 0.0
      %4219 = vmatpush1.msra.mxu0 0.0
      %4220 = vmatprep.subr.mxu0 0.0
      %4221 = vmatpush1.msra.mxu0 0.0
      %4222 = vmatprep.subr.mxu0 0.0
      %4223 = vmatpush1.msra.mxu0 0.0
      %4224 = vmatprep.subr.mxu0 0.0
      %4225 = vmatpush1.msra.mxu0 0.0
      %4226 = vmatprep.subr.mxu0 0.0
      %4227 = vmatpush1.msra.mxu0 0.0
      %4228 = vmatprep.subr.mxu0 0.0
      %4229 = vmatpush1.msra.mxu0 0.0
      %4230 = vmatprep.subr.mxu0 0.0
      %4231 = vmatpush1.msra.mxu0 0.0
      %4232 = vmatprep.subr.mxu0 0.0
      %4233 = vmatpush1.msra.mxu0 0.0
      %4234 = vmatprep.subr.mxu0 0.0
      %4235 = vmatpush1.msra.mxu0 0.0
      %4236 = vmatprep.subr.mxu0 0.0
      %4237 = vmatpush1.msra.mxu0 0.0
      %4238 = vmatprep.subr.mxu0 0.0
      %4239 = vmatpush1.msra.mxu0 0.0
      %4240 = vmatprep.subr.mxu0 0.0
      %4241 = vmatpush1.msra.mxu0 0.0
      %4242 = vmatprep.subr.mxu0 0.0
      %4243 = vmatpush1.msra.mxu0 0.0
      %4244 = vmatprep.subr.mxu0 0.0
      %4245 = vmatpush1.msra.mxu0 0.0
      %4246 = vmatprep.subr.mxu0 0.0
      %4247 = vmatpush1.msra.mxu0 0.0
      %4248 = vmatprep.subr.mxu0 0.0
      %4249 = vmatpush1.msra.mxu0 0.0
      %4250 = vmatprep.subr.mxu0 0.0
      %4251 = vmatpush1.msra.mxu0 0.0
      %4252 = vmatprep.subr.mxu0 0.0
      %4253 = vmatpush1.msra.mxu0 0.0
      %4254 = vmatprep.subr.mxu0 0.0
      %4255 = vmatpush1.msra.mxu0 0.0
      %4256 = vmatprep.subr.mxu0 0.0
      %4257 = vmatpush1.msra.mxu0 0.0
      %4258 = vmatprep.subr.mxu0 0.0
      %4259 = vmatpush1.msra.mxu0 0.0
      %4260 = vmatprep.subr.mxu0 0.0
      %4261 = vmatpush1.msra.mxu0 0.0
      %4262 = vmatprep.subr.mxu0 0.0
      %4263 = vmatpush1.msra.mxu0 0.0
      %4264 = vmatprep.mubr.f32.mxu0 0.0
      %4265 = vmatmul.mubr.f32.gmra.mrb[0].mxu0 %v4198
      %v4266 = vpop.f32.mrb[0].mxu0
      %v4267 = vadd.f32 0.0, %v4266
      %v4268 = vpop.f32.mrb[0].mxu0
      %4269 = vdwg.mxu0
      %4271 = vrot.lane.b32.xlu0 %v3933, 8
      %v4272 = vpop.permute.xlu0 %4271
      %4275 = vrot.lane.b32.xlu0 %v4100, 16
      %v4276 = vpop.permute.xlu0 %4275
      %4279 = vrot.lane.b32.xlu0 %v4267, 24
      %v4280 = vpop.permute.xlu0 %4279
      %v4282 = vsel %vm1200, %v3766, %v4272
      %v4283 = vsel %vm1288, %v4282, %v4276
      %v4284 = vsel %vm981, %v4283, %v4280
      %s4285 = scalar_lea.vmem %s16, 128
      %v4286 = vld [vmem:[%s4285] sm:$0xff]
      %v4287 = vld [vmem:[%s4285 + $0x8] sm:$0xff]
      %v4288 = vld [vmem:[%s4285 + $0x10] sm:$0xff]
      %v4289 = vld [vmem:[%s4285 + $0x18] sm:$0xff]
      %s4290 = scalar_lea.vmem %s17, 4
      %v4291 = vld [vmem:[%s4290] sm:$0x1]
      %v4293 = vlaneseq
      %v4294 = vshrl.u32 %v4293, 7
      %v4295 = vsub.s32 0, %v4294
      %v4296 = vrot.slane %v4291, %v4295
      %v4299 = vsel %vm966, %v4284, 0
      %4301 = vmatprep.subr.mxu0 0.0
      %4302 = vmatpush1.msra.mxu0 %v4286
      %4303 = vmatprep.subr.mxu0 0.0
      %4304 = vmatpush1.msra.mxu0 %v4287
      %4305 = vmatprep.subr.mxu0 0.0
      %4306 = vmatpush1.msra.mxu0 %v4288
      %4307 = vmatprep.subr.mxu0 0.0
      %4308 = vmatpush1.msra.mxu0 %v4289
      %4309 = vmatprep.subr.mxu0 0.0
      %4310 = vmatpush1.msra.mxu0 0.0
      %4311 = vmatprep.subr.mxu0 0.0
      %4312 = vmatpush1.msra.mxu0 0.0
      %4313 = vmatprep.subr.mxu0 0.0
      %4314 = vmatpush1.msra.mxu0 0.0
      %4315 = vmatprep.subr.mxu0 0.0
      %4316 = vmatpush1.msra.mxu0 0.0
      %4317 = vmatprep.subr.mxu0 0.0
      %4318 = vmatpush1.msra.mxu0 0.0
      %4319 = vmatprep.subr.mxu0 0.0
      %4320 = vmatpush1.msra.mxu0 0.0
      %4321 = vmatprep.subr.mxu0 0.0
      %4322 = vmatpush1.msra.mxu0 0.0
      %4323 = vmatprep.subr.mxu0 0.0
      %4324 = vmatpush1.msra.mxu0 0.0
      %4325 = vmatprep.subr.mxu0 0.0
      %4326 = vmatpush1.msra.mxu0 0.0
      %4327 = vmatprep.subr.mxu0 0.0
      %4328 = vmatpush1.msra.mxu0 0.0
      %4329 = vmatprep.subr.mxu0 0.0
      %4330 = vmatpush1.msra.mxu0 0.0
      %4331 = vmatprep.subr.mxu0 0.0
      %4332 = vmatpush1.msra.mxu0 0.0
      %4333 = vmatprep.subr.mxu0 0.0
      %4334 = vmatpush1.msra.mxu0 0.0
      %4335 = vmatprep.subr.mxu0 0.0
      %4336 = vmatpush1.msra.mxu0 0.0
      %4337 = vmatprep.subr.mxu0 0.0
      %4338 = vmatpush1.msra.mxu0 0.0
      %4339 = vmatprep.subr.mxu0 0.0
      %4340 = vmatpush1.msra.mxu0 0.0
      %4341 = vmatprep.subr.mxu0 0.0
      %4342 = vmatpush1.msra.mxu0 0.0
      %4343 = vmatprep.subr.mxu0 0.0
      %4344 = vmatpush1.msra.mxu0 0.0
      %4345 = vmatprep.subr.mxu0 0.0
      %4346 = vmatpush1.msra.mxu0 0.0
      %4347 = vmatprep.subr.mxu0 0.0
      %4348 = vmatpush1.msra.mxu0 0.0
      %4349 = vmatprep.subr.mxu0 0.0
      %4350 = vmatpush1.msra.mxu0 0.0
      %4351 = vmatprep.subr.mxu0 0.0
      %4352 = vmatpush1.msra.mxu0 0.0
      %4353 = vmatprep.subr.mxu0 0.0
      %4354 = vmatpush1.msra.mxu0 0.0
      %4355 = vmatprep.subr.mxu0 0.0
      %4356 = vmatpush1.msra.mxu0 0.0
      %4357 = vmatprep.subr.mxu0 0.0
      %4358 = vmatpush1.msra.mxu0 0.0
      %4359 = vmatprep.subr.mxu0 0.0
      %4360 = vmatpush1.msra.mxu0 0.0
      %4361 = vmatprep.subr.mxu0 0.0
      %4362 = vmatpush1.msra.mxu0 0.0
      %4363 = vmatprep.subr.mxu0 0.0
      %4364 = vmatpush1.msra.mxu0 0.0
      %4365 = vmatprep.mubr.f32.mxu0 0.0
      %4366 = vmatmul.mubr.f32.gmra.mrb[0].mxu0 %v4299
      %v4367 = vpop.f32.mrb[0].mxu0
      %v4368 = vadd.f32 %v4296, %v4367
      %v4369 = vpop.f32.mrb[0].mxu0
      %4370 = vdwg.mxu0
      %v4371 = vadd.f32 %v3516, %v4368
      %s4372 = scalar_lea.vmem %s18, 4
      %v4373 = vld [vmem:[%s4372] sm:$0x1]
      %s4374 = scalar_lea.vmem %s19, 4
      %v4375 = vld [vmem:[%s4374] sm:$0x1]
      %v4376 = vsel %vm966, %v4371, 0.0
      %4377 = vadd.xlane.f32.xlu0 %v4376
      %v4378 = vpop.xlane.xlu0 %4377
      %v4379 = vmul.f32 %v4378, %v2142
      %v4380 = vsub.f32 %v4371, %v4379
      %v4381 = vmul.f32 %v4380, %v4380
      %v4382 = vsel %vm966, %v4381, 0.0
      %4383 = vadd.xlane.f32.xlu0 %v4382
      %v4384 = vpop.xlane.xlu0 %4383
      %v4385 = vmul.f32 %v4384, %v2142
      %v4386 = vadd.f32 %v4385, 1e-05
      %v4387 = vrsqrt.pop %v4386
      %v4388 = vmul.f32 %v4380, %v4387
      %v4390 = vlaneseq
      %v4391 = vshrl.u32 %v4390, 7
      %v4392 = vsub.s32 0, %v4391
      %v4393 = vrot.slane %v4373, %v4392
      %v4395 = vmul.f32 %v4388, %v4393
      %v4397 = vlaneseq
      %v4398 = vshrl.u32 %v4397, 7
      %v4399 = vsub.s32 0, %v4398
      %v4400 = vrot.slane %v4375, %v4399
      %v4402 = vadd.f32 %v4395, %v4400
      %s4403 = scalar_lea.vmem %s22, 128
      %v4404 = vld [vmem:[%s4403] sm:$0xff]
      %v4405 = vld [vmem:[%s4403 + $0x8] sm:$0xff]
      %v4406 = vld [vmem:[%s4403 + $0x10] sm:$0xff]
      %v4407 = vld [vmem:[%s4403 + $0x18] sm:$0xff]
      %s4408 = scalar_lea.vmem %s23, 4
      %v4409 = vld [vmem:[%s4408] sm:$0x1]
      %v4411 = vlaneseq
      %v4412 = vshrl.u32 %v4411, 7
      %v4413 = vsub.s32 0, %v4412
      %v4414 = vrot.slane %v4409, %v4413
      %v4417 = vsel %vm966, %v4402, 0
      %4419 = vmatprep.subr.mxu0 0.0
      %4420 = vmatpush1.msra.mxu0 %v4404
      %4421 = vmatprep.subr.mxu0 0.0
      %4422 = vmatpush1.msra.mxu0 %v4405
      %4423 = vmatprep.subr.mxu0 0.0
      %4424 = vmatpush1.msra.mxu0 %v4406
      %4425 = vmatprep.subr.mxu0 0.0
      %4426 = vmatpush1.msra.mxu0 %v4407
      %4427 = vmatprep.subr.mxu0 0.0
      %4428 = vmatpush1.msra.mxu0 0.0
      %4429 = vmatprep.subr.mxu0 0.0
      %4430 = vmatpush1.msra.mxu0 0.0
      %4431 = vmatprep.subr.mxu0 0.0
      %4432 = vmatpush1.msra.mxu0 0.0
      %4433 = vmatprep.subr.mxu0 0.0
      %4434 = vmatpush1.msra.mxu0 0.0
      %4435 = vmatprep.subr.mxu0 0.0
      %4436 = vmatpush1.msra.mxu0 0.0
      %4437 = vmatprep.subr.mxu0 0.0
      %4438 = vmatpush1.msra.mxu0 0.0
      %4439 = vmatprep.subr.mxu0 0.0
      %4440 = vmatpush1.msra.mxu0 0.0
      %4441 = vmatprep.subr.mxu0 0.0
      %4442 = vmatpush1.msra.mxu0 0.0
      %4443 = vmatprep.subr.mxu0 0.0
      %4444 = vmatpush1.msra.mxu0 0.0
      %4445 = vmatprep.subr.mxu0 0.0
      %4446 = vmatpush1.msra.mxu0 0.0
      %4447 = vmatprep.subr.mxu0 0.0
      %4448 = vmatpush1.msra.mxu0 0.0
      %4449 = vmatprep.subr.mxu0 0.0
      %4450 = vmatpush1.msra.mxu0 0.0
      %4451 = vmatprep.subr.mxu0 0.0
      %4452 = vmatpush1.msra.mxu0 0.0
      %4453 = vmatprep.subr.mxu0 0.0
      %4454 = vmatpush1.msra.mxu0 0.0
      %4455 = vmatprep.subr.mxu0 0.0
      %4456 = vmatpush1.msra.mxu0 0.0
      %4457 = vmatprep.subr.mxu0 0.0
      %4458 = vmatpush1.msra.mxu0 0.0
      %4459 = vmatprep.subr.mxu0 0.0
      %4460 = vmatpush1.msra.mxu0 0.0
      %4461 = vmatprep.subr.mxu0 0.0
      %4462 = vmatpush1.msra.mxu0 0.0
      %4463 = vmatprep.subr.mxu0 0.0
      %4464 = vmatpush1.msra.mxu0 0.0
      %4465 = vmatprep.subr.mxu0 0.0
      %4466 = vmatpush1.msra.mxu0 0.0
      %4467 = vmatprep.subr.mxu0 0.0
      %4468 = vmatpush1.msra.mxu0 0.0
      %4469 = vmatprep.subr.mxu0 0.0
      %4470 = vmatpush1.msra.mxu0 0.0
      %4471 = vmatprep.subr.mxu0 0.0
      %4472 = vmatpush1.msra.mxu0 0.0
      %4473 = vmatprep.subr.mxu0 0.0
      %4474 = vmatpush1.msra.mxu0 0.0
      %4475 = vmatprep.subr.mxu0 0.0
      %4476 = vmatpush1.msra.mxu0 0.0
      %4477 = vmatprep.subr.mxu0 0.0
      %4478 = vmatpush1.msra.mxu0 0.0
      %4479 = vmatprep.subr.mxu0 0.0
      %4480 = vmatpush1.msra.mxu0 0.0
      %4481 = vmatprep.subr.mxu0 0.0
      %4482 = vmatpush1.msra.mxu0 0.0
      %4483 = vmatprep.mubr.f32.mxu0 0.0
      %4484 = vmatmul.mubr.f32.gmra.mrb[0].mxu0 %v4417
      %v4485 = vpop.f32.mrb[0].mxu0
      %v4486 = vadd.f32 %v4414, %v4485
      %v4487 = vpop.f32.mrb[0].mxu0
      %4488 = vdwg.mxu0
      %v4489 = vmax.f32 %v4486, 0.0
      %s4490 = scalar_lea.vmem %s24, 256
      %v4491 = vld [vmem:[%s4490] sm:$0xff]
      %v4492 = vld [vmem:[%s4490 + $0x8] sm:$0xff]
      %v4493 = vld [vmem:[%s4490 + $0x10] sm:$0xff]
      %v4494 = vld [vmem:[%s4490 + $0x18] sm:$0xff]
      %v4495 = vld [vmem:[%s4490 + $0x20] sm:$0xff]
      %v4496 = vld [vmem:[%s4490 + $0x28] sm:$0xff]
      %v4497 = vld [vmem:[%s4490 + $0x30] sm:$0xff]
      %v4498 = vld [vmem:[%s4490 + $0x38] sm:$0xff]
      %s4499 = scalar_lea.vmem %s25, 4
      %v4500 = vld [vmem:[%s4499] sm:$0x1]
      %v4502 = vlaneseq
      %v4503 = vshrl.u32 %v4502, 7
      %v4504 = vsub.s32 0, %v4503
      %v4505 = vrot.slane %v4500, %v4504
      %v4508 = vsel %vm2288, %v4489, 0
      %4510 = vmatprep.subr.mxu0 0.0
      %4511 = vmatpush1.msra.mxu0 %v4491
      %4512 = vmatprep.subr.mxu0 0.0
      %4513 = vmatpush1.msra.mxu0 %v4492
      %4514 = vmatprep.subr.mxu0 0.0
      %4515 = vmatpush1.msra.mxu0 %v4493
      %4516 = vmatprep.subr.mxu0 0.0
      %4517 = vmatpush1.msra.mxu0 %v4494
      %4518 = vmatprep.subr.mxu0 0.0
      %4519 = vmatpush1.msra.mxu0 %v4495
      %4520 = vmatprep.subr.mxu0 0.0
      %4521 = vmatpush1.msra.mxu0 %v4496
      %4522 = vmatprep.subr.mxu0 0.0
      %4523 = vmatpush1.msra.mxu0 %v4497
      %4524 = vmatprep.subr.mxu0 0.0
      %4525 = vmatpush1.msra.mxu0 %v4498
      %4526 = vmatprep.subr.mxu0 0.0
      %4527 = vmatpush1.msra.mxu0 0.0
      %4528 = vmatprep.subr.mxu0 0.0
      %4529 = vmatpush1.msra.mxu0 0.0
      %4530 = vmatprep.subr.mxu0 0.0
      %4531 = vmatpush1.msra.mxu0 0.0
      %4532 = vmatprep.subr.mxu0 0.0
      %4533 = vmatpush1.msra.mxu0 0.0
      %4534 = vmatprep.subr.mxu0 0.0
      %4535 = vmatpush1.msra.mxu0 0.0
      %4536 = vmatprep.subr.mxu0 0.0
      %4537 = vmatpush1.msra.mxu0 0.0
      %4538 = vmatprep.subr.mxu0 0.0
      %4539 = vmatpush1.msra.mxu0 0.0
      %4540 = vmatprep.subr.mxu0 0.0
      %4541 = vmatpush1.msra.mxu0 0.0
      %4542 = vmatprep.subr.mxu0 0.0
      %4543 = vmatpush1.msra.mxu0 0.0
      %4544 = vmatprep.subr.mxu0 0.0
      %4545 = vmatpush1.msra.mxu0 0.0
      %4546 = vmatprep.subr.mxu0 0.0
      %4547 = vmatpush1.msra.mxu0 0.0
      %4548 = vmatprep.subr.mxu0 0.0
      %4549 = vmatpush1.msra.mxu0 0.0
      %4550 = vmatprep.subr.mxu0 0.0
      %4551 = vmatpush1.msra.mxu0 0.0
      %4552 = vmatprep.subr.mxu0 0.0
      %4553 = vmatpush1.msra.mxu0 0.0
      %4554 = vmatprep.subr.mxu0 0.0
      %4555 = vmatpush1.msra.mxu0 0.0
      %4556 = vmatprep.subr.mxu0 0.0
      %4557 = vmatpush1.msra.mxu0 0.0
      %4558 = vmatprep.subr.mxu0 0.0
      %4559 = vmatpush1.msra.mxu0 0.0
      %4560 = vmatprep.subr.mxu0 0.0
      %4561 = vmatpush1.msra.mxu0 0.0
      %4562 = vmatprep.subr.mxu0 0.0
      %4563 = vmatpush1.msra.mxu0 0.0
      %4564 = vmatprep.subr.mxu0 0.0
      %4565 = vmatpush1.msra.mxu0 0.0
      %4566 = vmatprep.subr.mxu0 0.0
      %4567 = vmatpush1.msra.mxu0 0.0
      %4568 = vmatprep.subr.mxu0 0.0
      %4569 = vmatpush1.msra.mxu0 0.0
      %4570 = vmatprep.subr.mxu0 0.0
      %4571 = vmatpush1.msra.mxu0 0.0
      %4572 = vmatprep.subr.mxu0 0.0
      %4573 = vmatpush1.msra.mxu0 0.0
      %4574 = vmatprep.mubr.f32.mxu0 0.0
      %4575 = vmatmul.mubr.f32.gmra.mrb[0].mxu0 %v4508
      %v4576 = vpop.f32.mrb[0].mxu0
      %v4577 = vadd.f32 %v4505, %v4576
      %v4578 = vpop.f32.mrb[0].mxu0
      %4579 = vdwg.mxu0
      %v4580 = vadd.f32 %v4402, %v4577
      %s4581 = scalar_lea.vmem %s20, 4
      %v4582 = vld [vmem:[%s4581] sm:$0x1]
      %s4583 = scalar_lea.vmem %s21, 4
      %v4584 = vld [vmem:[%s4583] sm:$0x1]
      %v4585 = vsel %vm966, %v4580, 0.0
      %4586 = vadd.xlane.f32.xlu0 %v4585
      %v4587 = vpop.xlane.xlu0 %4586
      %v4588 = vmul.f32 %v4587, %v2142
      %v4589 = vsub.f32 %v4580, %v4588
      %v4590 = vmul.f32 %v4589, %v4589
      %v4591 = vsel %vm966, %v4590, 0.0
      %4592 = vadd.xlane.f32.xlu0 %v4591
      %v4593 = vpop.xlane.xlu0 %4592
      %v4594 = vmul.f32 %v4593, %v2142
      %v4595 = vadd.f32 %v4594, 1e-05
      %v4596 = vrsqrt.pop %v4595
      %v4597 = vmul.f32 %v4589, %v4596
      %v4599 = vlaneseq
      %v4600 = vshrl.u32 %v4599, 7
      %v4601 = vsub.s32 0, %v4600
      %v4602 = vrot.slane %v4582, %v4601
      %v4604 = vmul.f32 %v4597, %v4602
      %v4606 = vlaneseq
      %v4607 = vshrl.u32 %v4606, 7
      %v4608 = vsub.s32 0, %v4607
      %v4609 = vrot.slane %v4584, %v4608
      %v4611 = vadd.f32 %v4604, %v4609
      %4612 = vst.msk [vmem:[#allocation4] sm:$0xfc] %vm2416, %v4611
      %v4614 = vlaneseq
      %v4615 = vshrl.u32 %v4614, 7
      %v4616 = vsub.s32 0, %v4615
      %v4617 = vrot.slane %v1090, %v4616
      %4618 = vset.pattern.permute.xlu0 0
      %4619 = vperm.xlu0 %4618, %v4617
      %v4620 = vpop.permute.xlu0 %4619
      %v4622 = vmul.f32 %v4620, %v2414
      %v4624 = vlaneseq
      %v4625 = vshrl.u32 %v4624, 7
      %v4626 = vsub.s32 0, %v4625
      %v4627 = vrot.slane %v1095, %v4626
      %4628 = vset.pattern.permute.xlu0 1
      %4629 = vperm.xlu0 %4628, %v4627
      %v4630 = vpop.permute.xlu0 %4629
      %v4632 = vmul.f32 %v4630, %v3514
      %v4633 = vadd.f32 %v4622, %v4632
      %v4635 = vlaneseq
      %v4636 = vshrl.u32 %v4635, 7
      %v4637 = vsub.s32 0, %v4636
      %v4638 = vrot.slane %v1099, %v4637
      %4639 = vset.pattern.permute.xlu0 2
      %4640 = vperm.xlu0 %4639, %v4638
      %v4641 = vpop.permute.xlu0 %4640
      %v4643 = vmul.f32 %v4641, %v4611
      %v4644 = vadd.f32 %v4633, %v4643
      %4645 = vst.msk [vmem:[#allocation2] sm:$0x3] %vm964, %v4644
      %4646 = vst.msk [vmem:[#allocation3] sm:$0x3] %vm964, %v4644
      %4647 = vst.msk [vmem:[#allocation4] sm:$0x3] %vm964, %v4644
      %v4648 = vld [vmem:[#allocation2] sm:$0xff]
      %v4649 = vld [vmem:[#allocation2 + $0x8] sm:$0xff]
      %s4650 = scalar_lea.vmem %s14, 32
      %v4651 = vld [vmem:[%s4650] sm:$0xff]
      %v4652 = vld [vmem:[%s4650 + $0x8] sm:$0xff]
      %v4653 = vld [vmem:[%s4650 + $0x10] sm:$0xff]
      %v4654 = vld [vmem:[%s4650 + $0x18] sm:$0xff]
      %s4655 = scalar_lea.vmem %s15, 1
      %v4656 = vld [vmem:[%s4655] sm:$0x1]
      %v4658 = vlaneseq
      %v4659 = vshrl.u32 %v4658, 7
      %v4660 = vsub.s32 0, %v4659
      %v4661 = vrot.slane %v4656, %v4660
      %v4664 = vsel %vm966, %v4648, 0
      %v4667 = vsel %vm966, %v4649, 0
      %4669 = vmatprep.subr.mxu0 0.0
      %4670 = vmatpush1.msra.mxu0 %v4651
      %4671 = vmatprep.subr.mxu0 0.0
      %4672 = vmatpush1.msra.mxu0 %v4652
      %4673 = vmatprep.subr.mxu0 0.0
      %4674 = vmatpush1.msra.mxu0 %v4653
      %4675 = vmatprep.subr.mxu0 0.0
      %4676 = vmatpush1.msra.mxu0 %v4654
      %4677 = vmatprep.subr.mxu0 0.0
      %4678 = vmatpush1.msra.mxu0 0.0
      %4679 = vmatprep.subr.mxu0 0.0
      %4680 = vmatpush1.msra.mxu0 0.0
      %4681 = vmatprep.subr.mxu0 0.0
      %4682 = vmatpush1.msra.mxu0 0.0
      %4683 = vmatprep.subr.mxu0 0.0
      %4684 = vmatpush1.msra.mxu0 0.0
      %4685 = vmatprep.subr.mxu0 0.0
      %4686 = vmatpush1.msra.mxu0 0.0
      %4687 = vmatprep.subr.mxu0 0.0
      %4688 = vmatpush1.msra.mxu0 0.0
      %4689 = vmatprep.subr.mxu0 0.0
      %4690 = vmatpush1.msra.mxu0 0.0
      %4691 = vmatprep.subr.mxu0 0.0
      %4692 = vmatpush1.msra.mxu0 0.0
      %4693 = vmatprep.subr.mxu0 0.0
      %4694 = vmatpush1.msra.mxu0 0.0
      %4695 = vmatprep.subr.mxu0 0.0
      %4696 = vmatpush1.msra.mxu0 0.0
      %4697 = vmatprep.subr.mxu0 0.0
      %4698 = vmatpush1.msra.mxu0 0.0
      %4699 = vmatprep.subr.mxu0 0.0
      %4700 = vmatpush1.msra.mxu0 0.0
      %4701 = vmatprep.subr.mxu0 0.0
      %4702 = vmatpush1.msra.mxu0 0.0
      %4703 = vmatprep.subr.mxu0 0.0
      %4704 = vmatpush1.msra.mxu0 0.0
      %4705 = vmatprep.subr.mxu0 0.0
      %4706 = vmatpush1.msra.mxu0 0.0
      %4707 = vmatprep.subr.mxu0 0.0
      %4708 = vmatpush1.msra.mxu0 0.0
      %4709 = vmatprep.subr.mxu0 0.0
      %4710 = vmatpush1.msra.mxu0 0.0
      %4711 = vmatprep.subr.mxu0 0.0
      %4712 = vmatpush1.msra.mxu0 0.0
      %4713 = vmatprep.subr.mxu0 0.0
      %4714 = vmatpush1.msra.mxu0 0.0
      %4715 = vmatprep.subr.mxu0 0.0
      %4716 = vmatpush1.msra.mxu0 0.0
      %4717 = vmatprep.subr.mxu0 0.0
      %4718 = vmatpush1.msra.mxu0 0.0
      %4719 = vmatprep.subr.mxu0 0.0
      %4720 = vmatpush1.msra.mxu0 0.0
      %4721 = vmatprep.subr.mxu0 0.0
      %4722 = vmatpush1.msra.mxu0 0.0
      %4723 = vmatprep.subr.mxu0 0.0
      %4724 = vmatpush1.msra.mxu0 0.0
      %4725 = vmatprep.subr.mxu0 0.0
      %4726 = vmatpush1.msra.mxu0 0.0
      %4727 = vmatprep.subr.mxu0 0.0
      %4728 = vmatpush1.msra.mxu0 0.0
      %4729 = vmatprep.subr.mxu0 0.0
      %4730 = vmatpush1.msra.mxu0 0.0
      %4731 = vmatprep.subr.mxu0 0.0
      %4732 = vmatpush1.msra.mxu0 0.0
      %4733 = vmatprep.mubr.f32.mxu0 0.0
      %4734 = vmatmul.mubr.f32.gmra.mrb[0].mxu0 %v4664
      %v4735 = vpop.f32.mrb[0].mxu0
      %v4736 = vadd.f32 %v4661, %v4735
      %v4737 = vpop.f32.mrb[0].mxu0
      %4738 = vmatprep.mubr.f32.mxu0 0.0
      %4739 = vmatmul.mubr.f32.gmra.mrb[0].mxu0 %v4667
      %v4740 = vpop.f32.mrb[0].mxu0
      %v4741 = vadd.f32 %v4661, %v4740
      %v4742 = vpop.f32.mrb[0].mxu0
      %4743 = vdwg.mxu0
      %4746 = vrot.lane.b32.xlu0 %v4736, 96
      %v4747 = vpop.permute.xlu0 %4746
      %4748 = vrot.lane.b32.xlu0 %v4741, 96
      %v4749 = vpop.permute.xlu0 %4748
      %v4750 = vsel %vm1200, %v4736, 0
      %v4752 = vsel %vm1200, %v4741, 0
      %v4754 = vsel %vm1200, %v4747, 0
      %v4756 = vsel %vm1200, %v4749, 0
      %4758 = vmatprep.subr.mxu0 0.0
      %4759 = vmatpush1.xpose.msra.mxu0 %v4754
      %4760 = vmatprep.subr.mxu0 0.0
      %4761 = vmatpush1.xpose.msra.mxu0 %v4756
      %4762 = vmatprep.subr.mxu0 0.0
      %4763 = vmatpush1.xpose.msra.mxu0 0.0
      %4764 = vmatprep.subr.mxu0 0.0
      %4765 = vmatpush1.xpose.msra.mxu0 0.0
      %4766 = vmatprep.subr.mxu0 0.0
      %4767 = vmatpush1.xpose.msra.mxu0 0.0
      %4768 = vmatprep.subr.mxu0 0.0
      %4769 = vmatpush1.xpose.msra.mxu0 0.0
      %4770 = vmatprep.subr.mxu0 0.0
      %4771 = vmatpush1.xpose.msra.mxu0 0.0
      %4772 = vmatprep.subr.mxu0 0.0
      %4773 = vmatpush1.xpose.msra.mxu0 0.0
      %4774 = vmatprep.subr.mxu0 0.0
      %4775 = vmatpush1.xpose.msra.mxu0 0.0
      %4776 = vmatprep.subr.mxu0 0.0
      %4777 = vmatpush1.xpose.msra.mxu0 0.0
      %4778 = vmatprep.subr.mxu0 0.0
      %4779 = vmatpush1.xpose.msra.mxu0 0.0
      %4780 = vmatprep.subr.mxu0 0.0
      %4781 = vmatpush1.xpose.msra.mxu0 0.0
      %4782 = vmatprep.subr.mxu0 0.0
      %4783 = vmatpush1.xpose.msra.mxu0 0.0
      %4784 = vmatprep.subr.mxu0 0.0
      %4785 = vmatpush1.xpose.msra.mxu0 0.0
      %4786 = vmatprep.subr.mxu0 0.0
      %4787 = vmatpush1.xpose.msra.mxu0 0.0
      %4788 = vmatprep.subr.mxu0 0.0
      %4789 = vmatpush1.xpose.msra.mxu0 0.0
      %4790 = vmatprep.subr.mxu0 0.0
      %4791 = vmatpush1.xpose.msra.mxu0 0.0
      %4792 = vmatprep.subr.mxu0 0.0
      %4793 = vmatpush1.xpose.msra.mxu0 0.0
      %4794 = vmatprep.subr.mxu0 0.0
      %4795 = vmatpush1.xpose.msra.mxu0 0.0
      %4796 = vmatprep.subr.mxu0 0.0
      %4797 = vmatpush1.xpose.msra.mxu0 0.0
      %4798 = vmatprep.subr.mxu0 0.0
      %4799 = vmatpush1.xpose.msra.mxu0 0.0
      %4800 = vmatprep.subr.mxu0 0.0
      %4801 = vmatpush1.xpose.msra.mxu0 0.0
      %4802 = vmatprep.subr.mxu0 0.0
      %4803 = vmatpush1.xpose.msra.mxu0 0.0
      %4804 = vmatprep.subr.mxu0 0.0
      %4805 = vmatpush1.xpose.msra.mxu0 0.0
      %4806 = vmatprep.subr.mxu0 0.0
      %4807 = vmatpush1.xpose.msra.mxu0 0.0
      %4808 = vmatprep.subr.mxu0 0.0
      %4809 = vmatpush1.xpose.msra.mxu0 0.0
      %4810 = vmatprep.subr.mxu0 0.0
      %4811 = vmatpush1.xpose.msra.mxu0 0.0
      %4812 = vmatprep.subr.mxu0 0.0
      %4813 = vmatpush1.xpose.msra.mxu0 0.0
      %4814 = vmatprep.subr.mxu0 0.0
      %4815 = vmatpush1.xpose.msra.mxu0 0.0
      %4816 = vmatprep.subr.mxu0 0.0
      %4817 = vmatpush1.xpose.msra.mxu0 0.0
      %4818 = vmatprep.subr.mxu0 0.0
      %4819 = vmatpush1.xpose.msra.mxu0 0.0
      %4820 = vmatprep.subr.mxu0 0.0
      %4821 = vmatpush1.xpose.msra.mxu0 0.0
      %4822 = vmatprep.mubr.f32.mxu0 0.0
      %4823 = vmatmul.mubr.f32.gmra.mrb[0].mxu0 %v4750
      %v4824 = vpop.f32.mrb[0].mxu0
      %v4825 = vadd.f32 0.0, %v4824
      %v4826 = vpop.f32.mrb[0].mxu0
      %4827 = vmatprep.mubr.f32.mxu0 0.0
      %4828 = vmatmul.mubr.f32.gmra.mrb[0].mxu0 %v4752
      %v4829 = vpop.f32.mrb[0].mxu0
      %v4830 = vadd.f32 0.0, %v4829
      %v4831 = vpop.f32.mrb[0].mxu0
      %4832 = vdwg.mxu0
      %v4833 = vmul.f32 %v4825, 0.35355338
      %v4834 = vmul.f32 %v4830, 0.35355338
      %v4835 = vadd.f32 %v4833, %v1073
      %v4836 = vadd.f32 %v4834, %v1073
      %v4837 = vsel %vm1288, %v4835, -inf
      %4838 = vmax.xlane.f32.xlu0 %v4837
      %v4839 = vpop.xlane.xlu0 %4838
      %v4840 = vsel %vm1288, %v4836, -inf
      %4841 = vmax.xlane.f32.xlu0 %v4840
      %v4842 = vpop.xlane.xlu0 %4841
      %v4843 = vsub.f32 %v4835, %v4839
      %v4844 = vsub.f32 %v4836, %v4842
      %v4845 = vmul.f32 %v4843, 1.442695
      %v4846 = vpow.pop %v4845
      %v4847 = vmul.f32 %v4844, 1.442695
      %v4848 = vpow.pop %v4847
      %v4849 = vsel %vm1288, %v4846, 0.0
      %4850 = vadd.xlane.f32.xlu0 %v4849
      %v4851 = vpop.xlane.xlu0 %4850
      %v4852 = vsel %vm1288, %v4848, 0.0
      %4853 = vadd.xlane.f32.xlu0 %v4852
      %v4854 = vpop.xlane.xlu0 %4853
      %v4855 = vrcp.pop %v4851
      %v4856 = vrcp.pop %v4854
      %v4857 = vmul.f32 %v4846, %v4855
      %v4858 = vmul.f32 %v4848, %v4856
      %4859 = vrot.lane.b32.xlu0 %v4736, 64
      %v4860 = vpop.permute.xlu0 %4859
      %4861 = vrot.lane.b32.xlu0 %v4741, 64
      %v4862 = vpop.permute.xlu0 %4861
      %v4866 = vsel %vm1288, %v4857, 0
      %v4869 = vsel %vm1288, %v4858, 0
      %4871 = vmatprep.subr.mxu0 0.0
      %4872 = vmatpush1.msra.mxu0 %v4860
      %4873 = vmatprep.subr.mxu0 0.0
      %4874 = vmatpush1.msra.mxu0 %v4862
      %4875 = vmatprep.subr.mxu0 0.0
      %4876 = vmatpush1.msra.mxu0 0.0
      %4877 = vmatprep.subr.mxu0 0.0
      %4878 = vmatpush1.msra.mxu0 0.0
      %4879 = vmatprep.subr.mxu0 0.0
      %4880 = vmatpush1.msra.mxu0 0.0
      %4881 = vmatprep.subr.mxu0 0.0
      %4882 = vmatpush1.msra.mxu0 0.0
      %4883 = vmatprep.subr.mxu0 0.0
      %4884 = vmatpush1.msra.mxu0 0.0
      %4885 = vmatprep.subr.mxu0 0.0
      %4886 = vmatpush1.msra.mxu0 0.0
      %4887 = vmatprep.subr.mxu0 0.0
      %4888 = vmatpush1.msra.mxu0 0.0
      %4889 = vmatprep.subr.mxu0 0.0
      %4890 = vmatpush1.msra.mxu0 0.0
      %4891 = vmatprep.subr.mxu0 0.0
      %4892 = vmatpush1.msra.mxu0 0.0
      %4893 = vmatprep.subr.mxu0 0.0
      %4894 = vmatpush1.msra.mxu0 0.0
      %4895 = vmatprep.subr.mxu0 0.0
      %4896 = vmatpush1.msra.mxu0 0.0
      %4897 = vmatprep.subr.mxu0 0.0
      %4898 = vmatpush1.msra.mxu0 0.0
      %4899 = vmatprep.subr.mxu0 0.0
      %4900 = vmatpush1.msra.mxu0 0.0
      %4901 = vmatprep.subr.mxu0 0.0
      %4902 = vmatpush1.msra.mxu0 0.0
      %4903 = vmatprep.subr.mxu0 0.0
      %4904 = vmatpush1.msra.mxu0 0.0
      %4905 = vmatprep.subr.mxu0 0.0
      %4906 = vmatpush1.msra.mxu0 0.0
      %4907 = vmatprep.subr.mxu0 0.0
      %4908 = vmatpush1.msra.mxu0 0.0
      %4909 = vmatprep.subr.mxu0 0.0
      %4910 = vmatpush1.msra.mxu0 0.0
      %4911 = vmatprep.subr.mxu0 0.0
      %4912 = vmatpush1.msra.mxu0 0.0
      %4913 = vmatprep.subr.mxu0 0.0
      %4914 = vmatpush1.msra.mxu0 0.0
      %4915 = vmatprep.subr.mxu0 0.0
      %4916 = vmatpush1.msra.mxu0 0.0
      %4917 = vmatprep.subr.mxu0 0.0
      %4918 = vmatpush1.msra.mxu0 0.0
      %4919 = vmatprep.subr.mxu0 0.0
      %4920 = vmatpush1.msra.mxu0 0.0
      %4921 = vmatprep.subr.mxu0 0.0
      %4922 = vmatpush1.msra.mxu0 0.0
      %4923 = vmatprep.subr.mxu0 0.0
      %4924 = vmatpush1.msra.mxu0 0.0
      %4925 = vmatprep.subr.mxu0 0.0
      %4926 = vmatpush1.msra.mxu0 0.0
      %4927 = vmatprep.subr.mxu0 0.0
      %4928 = vmatpush1.msra.mxu0 0.0
      %4929 = vmatprep.subr.mxu0 0.0
      %4930 = vmatpush1.msra.mxu0 0.0
      %4931 = vmatprep.subr.mxu0 0.0
      %4932 = vmatpush1.msra.mxu0 0.0
      %4933 = vmatprep.subr.mxu0 0.0
      %4934 = vmatpush1.msra.mxu0 0.0
      %4935 = vmatprep.mubr.f32.mxu0 0.0
      %4936 = vmatmul.mubr.f32.gmra.mrb[0].mxu0 %v4866
      %v4937 = vpop.f32.mrb[0].mxu0
      %v4938 = vadd.f32 0.0, %v4937
      %v4939 = vpop.f32.mrb[0].mxu0
      %4940 = vmatprep.mubr.f32.mxu0 0.0
      %4941 = vmatmul.mubr.f32.gmra.mrb[0].mxu0 %v4869
      %v4942 = vpop.f32.mrb[0].mxu0
      %v4943 = vadd.f32 0.0, %v4942
      %v4944 = vpop.f32.mrb[0].mxu0
      %4945 = vdwg.mxu0
      %4946 = vrot.lane.b32.xlu0 %v4736, 120
      %v4947 = vpop.permute.xlu0 %4946
      %4948 = vrot.lane.b32.xlu0 %v4741, 120
      %v4949 = vpop.permute.xlu0 %4948
      %4950 = vrot.lane.b32.xlu0 %v4736, 88
      %v4951 = vpop.permute.xlu0 %4950
      %4952 = vrot.lane.b32.xlu0 %v4741, 88
      %v4953 = vpop.permute.xlu0 %4952
      %v4954 = vsel %vm1200, %v4947, 0
      %v4956 = vsel %vm1200, %v4949, 0
      %v4958 = vsel %vm1200, %v4951, 0
      %v4960 = vsel %vm1200, %v4953, 0
      %4962 = vmatprep.subr.mxu0 0.0
      %4963 = vmatpush1.xpose.msra.mxu0 %v4958
      %4964 = vmatprep.subr.mxu0 0.0
      %4965 = vmatpush1.xpose.msra.mxu0 %v4960
      %4966 = vmatprep.subr.mxu0 0.0
      %4967 = vmatpush1.xpose.msra.mxu0 0.0
      %4968 = vmatprep.subr.mxu0 0.0
      %4969 = vmatpush1.xpose.msra.mxu0 0.0
      %4970 = vmatprep.subr.mxu0 0.0
      %4971 = vmatpush1.xpose.msra.mxu0 0.0
      %4972 = vmatprep.subr.mxu0 0.0
      %4973 = vmatpush1.xpose.msra.mxu0 0.0
      %4974 = vmatprep.subr.mxu0 0.0
      %4975 = vmatpush1.xpose.msra.mxu0 0.0
      %4976 = vmatprep.subr.mxu0 0.0
      %4977 = vmatpush1.xpose.msra.mxu0 0.0
      %4978 = vmatprep.subr.mxu0 0.0
      %4979 = vmatpush1.xpose.msra.mxu0 0.0
      %4980 = vmatprep.subr.mxu0 0.0
      %4981 = vmatpush1.xpose.msra.mxu0 0.0
      %4982 = vmatprep.subr.mxu0 0.0
      %4983 = vmatpush1.xpose.msra.mxu0 0.0
      %4984 = vmatprep.subr.mxu0 0.0
      %4985 = vmatpush1.xpose.msra.mxu0 0.0
      %4986 = vmatprep.subr.mxu0 0.0
      %4987 = vmatpush1.xpose.msra.mxu0 0.0
      %4988 = vmatprep.subr.mxu0 0.0
      %4989 = vmatpush1.xpose.msra.mxu0 0.0
      %4990 = vmatprep.subr.mxu0 0.0
      %4991 = vmatpush1.xpose.msra.mxu0 0.0
      %4992 = vmatprep.subr.mxu0 0.0
      %4993 = vmatpush1.xpose.msra.mxu0 0.0
      %4994 = vmatprep.subr.mxu0 0.0
      %4995 = vmatpush1.xpose.msra.mxu0 0.0
      %4996 = vmatprep.subr.mxu0 0.0
      %4997 = vmatpush1.xpose.msra.mxu0 0.0
      %4998 = vmatprep.subr.mxu0 0.0
      %4999 = vmatpush1.xpose.msra.mxu0 0.0
      %5000 = vmatprep.subr.mxu0 0.0
      %5001 = vmatpush1.xpose.msra.mxu0 0.0
      %5002 = vmatprep.subr.mxu0 0.0
      %5003 = vmatpush1.xpose.msra.mxu0 0.0
      %5004 = vmatprep.subr.mxu0 0.0
      %5005 = vmatpush1.xpose.msra.mxu0 0.0
      %5006 = vmatprep.subr.mxu0 0.0
      %5007 = vmatpush1.xpose.msra.mxu0 0.0
      %5008 = vmatprep.subr.mxu0 0.0
      %5009 = vmatpush1.xpose.msra.mxu0 0.0
      %5010 = vmatprep.subr.mxu0 0.0
      %5011 = vmatpush1.xpose.msra.mxu0 0.0
      %5012 = vmatprep.subr.mxu0 0.0
      %5013 = vmatpush1.xpose.msra.mxu0 0.0
      %5014 = vmatprep.subr.mxu0 0.0
      %5015 = vmatpush1.xpose.msra.mxu0 0.0
      %5016 = vmatprep.subr.mxu0 0.0
      %5017 = vmatpush1.xpose.msra.mxu0 0.0
      %5018 = vmatprep.subr.mxu0 0.0
      %5019 = vmatpush1.xpose.msra.mxu0 0.0
      %5020 = vmatprep.subr.mxu0 0.0
      %5021 = vmatpush1.xpose.msra.mxu0 0.0
      %5022 = vmatprep.subr.mxu0 0.0
      %5023 = vmatpush1.xpose.msra.mxu0 0.0
      %5024 = vmatprep.subr.mxu0 0.0
      %5025 = vmatpush1.xpose.msra.mxu0 0.0
      %5026 = vmatprep.mubr.f32.mxu0 0.0
      %5027 = vmatmul.mubr.f32.gmra.mrb[0].mxu0 %v4954
      %v5028 = vpop.f32.mrb[0].mxu0
      %v5029 = vadd.f32 0.0, %v5028
      %v5030 = vpop.f32.mrb[0].mxu0
      %5031 = vmatprep.mubr.f32.mxu0 0.0
      %5032 = vmatmul.mubr.f32.gmra.mrb[0].mxu0 %v4956
      %v5033 = vpop.f32.mrb[0].mxu0
      %v5034 = vadd.f32 0.0, %v5033
      %v5035 = vpop.f32.mrb[0].mxu0
      %5036 = vdwg.mxu0
      %v5037 = vmul.f32 %v5029, 0.35355338
      %v5038 = vmul.f32 %v5034, 0.35355338
      %v5039 = vadd.f32 %v5037, %v1073
      %v5040 = vadd.f32 %v5038, %v1073
      %v5041 = vsel %vm1288, %v5039, -inf
      %5042 = vmax.xlane.f32.xlu0 %v5041
      %v5043 = vpop.xlane.xlu0 %5042
      %v5044 = vsel %vm1288, %v5040, -inf
      %5045 = vmax.xlane.f32.xlu0 %v5044
      %v5046 = vpop.xlane.xlu0 %5045
      %v5047 = vsub.f32 %v5039, %v5043
      %v5048 = vsub.f32 %v5040, %v5046
      %v5049 = vmul.f32 %v5047, 1.442695
      %v5050 = vpow.pop %v5049
      %v5051 = vmul.f32 %v5048, 1.442695
      %v5052 = vpow.pop %v5051
      %v5053 = vsel %vm1288, %v5050, 0.0
      %5054 = vadd.xlane.f32.xlu0 %v5053
      %v5055 = vpop.xlane.xlu0 %5054
      %v5056 = vsel %vm1288, %v5052, 0.0
      %5057 = vadd.xlane.f32.xlu0 %v5056
      %v5058 = vpop.xlane.xlu0 %5057
      %v5059 = vrcp.pop %v5055
      %v5060 = vrcp.pop %v5058
      %v5061 = vmul.f32 %v5050, %v5059
      %v5062 = vmul.f32 %v5052, %v5060
      %5063 = vrot.lane.b32.xlu0 %v4736, 56
      %v5064 = vpop.permute.xlu0 %5063
      %5065 = vrot.lane.b32.xlu0 %v4741, 56
      %v5066 = vpop.permute.xlu0 %5065
      %v5070 = vsel %vm1288, %v5061, 0
      %v5073 = vsel %vm1288, %v5062, 0
      %5075 = vmatprep.subr.mxu0 0.0
      %5076 = vmatpush1.msra.mxu0 %v5064
      %5077 = vmatprep.subr.mxu0 0.0
      %5078 = vmatpush1.msra.mxu0 %v5066
      %5079 = vmatprep.subr.mxu0 0.0
      %5080 = vmatpush1.msra.mxu0 0.0
      %5081 = vmatprep.subr.mxu0 0.0
      %5082 = vmatpush1.msra.mxu0 0.0
      %5083 = vmatprep.subr.mxu0 0.0
      %5084 = vmatpush1.msra.mxu0 0.0
      %5085 = vmatprep.subr.mxu0 0.0
      %5086 = vmatpush1.msra.mxu0 0.0
      %5087 = vmatprep.subr.mxu0 0.0
      %5088 = vmatpush1.msra.mxu0 0.0
      %5089 = vmatprep.subr.mxu0 0.0
      %5090 = vmatpush1.msra.mxu0 0.0
      %5091 = vmatprep.subr.mxu0 0.0
      %5092 = vmatpush1.msra.mxu0 0.0
      %5093 = vmatprep.subr.mxu0 0.0
      %5094 = vmatpush1.msra.mxu0 0.0
      %5095 = vmatprep.subr.mxu0 0.0
      %5096 = vmatpush1.msra.mxu0 0.0
      %5097 = vmatprep.subr.mxu0 0.0
      %5098 = vmatpush1.msra.mxu0 0.0
      %5099 = vmatprep.subr.mxu0 0.0
      %5100 = vmatpush1.msra.mxu0 0.0
      %5101 = vmatprep.subr.mxu0 0.0
      %5102 = vmatpush1.msra.mxu0 0.0
      %5103 = vmatprep.subr.mxu0 0.0
      %5104 = vmatpush1.msra.mxu0 0.0
      %5105 = vmatprep.subr.mxu0 0.0
      %5106 = vmatpush1.msra.mxu0 0.0
      %5107 = vmatprep.subr.mxu0 0.0
      %5108 = vmatpush1.msra.mxu0 0.0
      %5109 = vmatprep.subr.mxu0 0.0
      %5110 = vmatpush1.msra.mxu0 0.0
      %5111 = vmatprep.subr.mxu0 0.0
      %5112 = vmatpush1.msra.mxu0 0.0
      %5113 = vmatprep.subr.mxu0 0.0
      %5114 = vmatpush1.msra.mxu0 0.0
      %5115 = vmatprep.subr.mxu0 0.0
      %5116 = vmatpush1.msra.mxu0 0.0
      %5117 = vmatprep.subr.mxu0 0.0
      %5118 = vmatpush1.msra.mxu0 0.0
      %5119 = vmatprep.subr.mxu0 0.0
      %5120 = vmatpush1.msra.mxu0 0.0
      %5121 = vmatprep.subr.mxu0 0.0
      %5122 = vmatpush1.msra.mxu0 0.0
      %5123 = vmatprep.subr.mxu0 0.0
      %5124 = vmatpush1.msra.mxu0 0.0
      %5125 = vmatprep.subr.mxu0 0.0
      %5126 = vmatpush1.msra.mxu0 0.0
      %5127 = vmatprep.subr.mxu0 0.0
      %5128 = vmatpush1.msra.mxu0 0.0
      %5129 = vmatprep.subr.mxu0 0.0
      %5130 = vmatpush1.msra.mxu0 0.0
      %5131 = vmatprep.subr.mxu0 0.0
      %5132 = vmatpush1.msra.mxu0 0.0
      %5133 = vmatprep.subr.mxu0 0.0
      %5134 = vmatpush1.msra.mxu0 0.0
      %5135 = vmatprep.subr.mxu0 0.0
      %5136 = vmatpush1.msra.mxu0 0.0
      %5137 = vmatprep.subr.mxu0 0.0
      %5138 = vmatpush1.msra.mxu0 0.0
      %5139 = vmatprep.mubr.f32.mxu0 0.0
      %5140 = vmatmul.mubr.f32.gmra.mrb[0].mxu0 %v5070
      %v5141 = vpop.f32.mrb[0].mxu0
      %v5142 = vadd.f32 0.0, %v5141
      %v5143 = vpop.f32.mrb[0].mxu0
      %5144 = vmatprep.mubr.f32.mxu0 0.0
      %5145 = vmatmul.mubr.f32.gmra.mrb[0].mxu0 %v5073
      %v5146 = vpop.f32.mrb[0].mxu0
      %v5147 = vadd.f32 0.0, %v5146
      %v5148 = vpop.f32.mrb[0].mxu0
      %5149 = vdwg.mxu0
      %5150 = vrot.lane.b32.xlu0 %v4736, 112
      %v5151 = vpop.permute.xlu0 %5150
      %5152 = vrot.lane.b32.xlu0 %v4741, 112
      %v5153 = vpop.permute.xlu0 %5152
      %5154 = vrot.lane.b32.xlu0 %v4736, 80
      %v5155 = vpop.permute.xlu0 %5154
      %5156 = vrot.lane.b32.xlu0 %v4741, 80
      %v5157 = vpop.permute.xlu0 %5156
      %v5158 = vsel %vm1200, %v5151, 0
      %v5160 = vsel %vm1200, %v5153, 0
      %v5162 = vsel %vm1200, %v5155, 0
      %v5164 = vsel %vm1200, %v5157, 0
      %5166 = vmatprep.subr.mxu0 0.0
      %5167 = vmatpush1.xpose.msra.mxu0 %v5162
      %5168 = vmatprep.subr.mxu0 0.0
      %5169 = vmatpush1.xpose.msra.mxu0 %v5164
      %5170 = vmatprep.subr.mxu0 0.0
      %5171 = vmatpush1.xpose.msra.mxu0 0.0
      %5172 = vmatprep.subr.mxu0 0.0
      %5173 = vmatpush1.xpose.msra.mxu0 0.0
      %5174 = vmatprep.subr.mxu0 0.0
      %5175 = vmatpush1.xpose.msra.mxu0 0.0
      %5176 = vmatprep.subr.mxu0 0.0
      %5177 = vmatpush1.xpose.msra.mxu0 0.0
      %5178 = vmatprep.subr.mxu0 0.0
      %5179 = vmatpush1.xpose.msra.mxu0 0.0
      %5180 = vmatprep.subr.mxu0 0.0
      %5181 = vmatpush1.xpose.msra.mxu0 0.0
      %5182 = vmatprep.subr.mxu0 0.0
      %5183 = vmatpush1.xpose.msra.mxu0 0.0
      %5184 = vmatprep.subr.mxu0 0.0
      %5185 = vmatpush1.xpose.msra.mxu0 0.0
      %5186 = vmatprep.subr.mxu0 0.0
      %5187 = vmatpush1.xpose.msra.mxu0 0.0
      %5188 = vmatprep.subr.mxu0 0.0
      %5189 = vmatpush1.xpose.msra.mxu0 0.0
      %5190 = vmatprep.subr.mxu0 0.0
      %5191 = vmatpush1.xpose.msra.mxu0 0.0
      %5192 = vmatprep.subr.mxu0 0.0
      %5193 = vmatpush1.xpose.msra.mxu0 0.0
      %5194 = vmatprep.subr.mxu0 0.0
      %5195 = vmatpush1.xpose.msra.mxu0 0.0
      %5196 = vmatprep.subr.mxu0 0.0
      %5197 = vmatpush1.xpose.msra.mxu0 0.0
      %5198 = vmatprep.subr.mxu0 0.0
      %5199 = vmatpush1.xpose.msra.mxu0 0.0
      %5200 = vmatprep.subr.mxu0 0.0
      %5201 = vmatpush1.xpose.msra.mxu0 0.0
      %5202 = vmatprep.subr.mxu0 0.0
      %5203 = vmatpush1.xpose.msra.mxu0 0.0
      %5204 = vmatprep.subr.mxu0 0.0
      %5205 = vmatpush1.xpose.msra.mxu0 0.0
      %5206 = vmatprep.subr.mxu0 0.0
      %5207 = vmatpush1.xpose.msra.mxu0 0.0
      %5208 = vmatprep.subr.mxu0 0.0
      %5209 = vmatpush1.xpose.msra.mxu0 0.0
      %5210 = vmatprep.subr.mxu0 0.0
      %5211 = vmatpush1.xpose.msra.mxu0 0.0
      %5212 = vmatprep.subr.mxu0 0.0
      %5213 = vmatpush1.xpose.msra.mxu0 0.0
      %5214 = vmatprep.subr.mxu0 0.0
      %5215 = vmatpush1.xpose.msra.mxu0 0.0
      %5216 = vmatprep.subr.mxu0 0.0
      %5217 = vmatpush1.xpose.msra.mxu0 0.0
      %5218 = vmatprep.subr.mxu0 0.0
      %5219 = vmatpush1.xpose.msra.mxu0 0.0
      %5220 = vmatprep.subr.mxu0 0.0
      %5221 = vmatpush1.xpose.msra.mxu0 0.0
      %5222 = vmatprep.subr.mxu0 0.0
      %5223 = vmatpush1.xpose.msra.mxu0 0.0
      %5224 = vmatprep.subr.mxu0 0.0
      %5225 = vmatpush1.xpose.msra.mxu0 0.0
      %5226 = vmatprep.subr.mxu0 0.0
      %5227 = vmatpush1.xpose.msra.mxu0 0.0
      %5228 = vmatprep.subr.mxu0 0.0
      %5229 = vmatpush1.xpose.msra.mxu0 0.0
      %5230 = vmatprep.mubr.f32.mxu0 0.0
      %5231 = vmatmul.mubr.f32.gmra.mrb[0].mxu0 %v5158
      %v5232 = vpop.f32.mrb[0].mxu0
      %v5233 = vadd.f32 0.0, %v5232
      %v5234 = vpop.f32.mrb[0].mxu0
      %5235 = vmatprep.mubr.f32.mxu0 0.0
      %5236 = vmatmul.mubr.f32.gmra.mrb[0].mxu0 %v5160
      %v5237 = vpop.f32.mrb[0].mxu0
      %v5238 = vadd.f32 0.0, %v5237
      %v5239 = vpop.f32.mrb[0].mxu0
      %5240 = vdwg.mxu0
      %v5241 = vmul.f32 %v5233, 0.35355338
      %v5242 = vmul.f32 %v5238, 0.35355338
      %v5243 = vadd.f32 %v5241, %v1073
      %v5244 = vadd.f32 %v5242, %v1073
      %v5245 = vsel %vm1288, %v5243, -inf
      %5246 = vmax.xlane.f32.xlu0 %v5245
      %v5247 = vpop.xlane.xlu0 %5246
      %v5248 = vsel %vm1288, %v5244, -inf
      %5249 = vmax.xlane.f32.xlu0 %v5248
      %v5250 = vpop.xlane.xlu0 %5249
      %v5251 = vsub.f32 %v5243, %v5247
      %v5252 = vsub.f32 %v5244, %v5250
      %v5253 = vmul.f32 %v5251, 1.442695
      %v5254 = vpow.pop %v5253
      %v5255 = vmul.f32 %v5252, 1.442695
      %v5256 = vpow.pop %v5255
      %v5257 = vsel %vm1288, %v5254, 0.0
      %5258 = vadd.xlane.f32.xlu0 %v5257
      %v5259 = vpop.xlane.xlu0 %5258
      %v5260 = vsel %vm1288, %v5256, 0.0
      %5261 = vadd.xlane.f32.xlu0 %v5260
      %v5262 = vpop.xlane.xlu0 %5261
      %v5263 = vrcp.pop %v5259
      %v5264 = vrcp.pop %v5262
      %v5265 = vmul.f32 %v5254, %v5263
      %v5266 = vmul.f32 %v5256, %v5264
      %5267 = vrot.lane.b32.xlu0 %v4736, 48
      %v5268 = vpop.permute.xlu0 %5267
      %5269 = vrot.lane.b32.xlu0 %v4741, 48
      %v5270 = vpop.permute.xlu0 %5269
      %v5274 = vsel %vm1288, %v5265, 0
      %v5277 = vsel %vm1288, %v5266, 0
      %5279 = vmatprep.subr.mxu0 0.0
      %5280 = vmatpush1.msra.mxu0 %v5268
      %5281 = vmatprep.subr.mxu0 0.0
      %5282 = vmatpush1.msra.mxu0 %v5270
      %5283 = vmatprep.subr.mxu0 0.0
      %5284 = vmatpush1.msra.mxu0 0.0
      %5285 = vmatprep.subr.mxu0 0.0
      %5286 = vmatpush1.msra.mxu0 0.0
      %5287 = vmatprep.subr.mxu0 0.0
      %5288 = vmatpush1.msra.mxu0 0.0
      %5289 = vmatprep.subr.mxu0 0.0
      %5290 = vmatpush1.msra.mxu0 0.0
      %5291 = vmatprep.subr.mxu0 0.0
      %5292 = vmatpush1.msra.mxu0 0.0
      %5293 = vmatprep.subr.mxu0 0.0
      %5294 = vmatpush1.msra.mxu0 0.0
      %5295 = vmatprep.subr.mxu0 0.0
      %5296 = vmatpush1.msra.mxu0 0.0
      %5297 = vmatprep.subr.mxu0 0.0
      %5298 = vmatpush1.msra.mxu0 0.0
      %5299 = vmatprep.subr.mxu0 0.0
      %5300 = vmatpush1.msra.mxu0 0.0
      %5301 = vmatprep.subr.mxu0 0.0
      %5302 = vmatpush1.msra.mxu0 0.0
      %5303 = vmatprep.subr.mxu0 0.0
      %5304 = vmatpush1.msra.mxu0 0.0
      %5305 = vmatprep.subr.mxu0 0.0
      %5306 = vmatpush1.msra.mxu0 0.0
      %5307 = vmatprep.subr.mxu0 0.0
      %5308 = vmatpush1.msra.mxu0 0.0
      %5309 = vmatprep.subr.mxu0 0.0
      %5310 = vmatpush1.msra.mxu0 0.0
      %5311 = vmatprep.subr.mxu0 0.0
      %5312 = vmatpush1.msra.mxu0 0.0
      %5313 = vmatprep.subr.mxu0 0.0
      %5314 = vmatpush1.msra.mxu0 0.0
      %5315 = vmatprep.subr.mxu0 0.0
      %5316 = vmatpush1.msra.mxu0 0.0
      %5317 = vmatprep.subr.mxu0 0.0
      %5318 = vmatpush1.msra.mxu0 0.0
      %5319 = vmatprep.subr.mxu0 0.0
      %5320 = vmatpush1.msra.mxu0 0.0
      %5321 = vmatprep.subr.mxu0 0.0
      %5322 = vmatpush1.msra.mxu0 0.0
      %5323 = vmatprep.subr.mxu0 0.0
      %5324 = vmatpush1.msra.mxu0 0.0
      %5325 = vmatprep.subr.mxu0 0.0
      %5326 = vmatpush1.msra.mxu0 0.0
      %5327 = vmatprep.subr.mxu0 0.0
      %5328 = vmatpush1.msra.mxu0 0.0
      %5329 = vmatprep.subr.mxu0 0.0
      %5330 = vmatpush1.msra.mxu0 0.0
      %5331 = vmatprep.subr.mxu0 0.0
      %5332 = vmatpush1.msra.mxu0 0.0
      %5333 = vmatprep.subr.mxu0 0.0
      %5334 = vmatpush1.msra.mxu0 0.0
      %5335 = vmatprep.subr.mxu0 0.0
      %5336 = vmatpush1.msra.mxu0 0.0
      %5337 = vmatprep.subr.mxu0 0.0
      %5338 = vmatpush1.msra.mxu0 0.0
      %5339 = vmatprep.subr.mxu0 0.0
      %5340 = vmatpush1.msra.mxu0 0.0
      %5341 = vmatprep.subr.mxu0 0.0
      %5342 = vmatpush1.msra.mxu0 0.0
      %5343 = vmatprep.mubr.f32.mxu0 0.0
      %5344 = vmatmul.mubr.f32.gmra.mrb[0].mxu0 %v5274
      %v5345 = vpop.f32.mrb[0].mxu0
      %v5346 = vadd.f32 0.0, %v5345
      %v5347 = vpop.f32.mrb[0].mxu0
      %5348 = vmatprep.mubr.f32.mxu0 0.0
      %5349 = vmatmul.mubr.f32.gmra.mrb[0].mxu0 %v5277
      %v5350 = vpop.f32.mrb[0].mxu0
      %v5351 = vadd.f32 0.0, %v5350
      %v5352 = vpop.f32.mrb[0].mxu0
      %5353 = vdwg.mxu0
      %5354 = vrot.lane.b32.xlu0 %v4736, 104
      %v5355 = vpop.permute.xlu0 %5354
      %5356 = vrot.lane.b32.xlu0 %v4741, 104
      %v5357 = vpop.permute.xlu0 %5356
      %5358 = vrot.lane.b32.xlu0 %v4736, 72
      %v5359 = vpop.permute.xlu0 %5358
      %5360 = vrot.lane.b32.xlu0 %v4741, 72
      %v5361 = vpop.permute.xlu0 %5360
      %v5362 = vsel %vm1200, %v5355, 0
      %v5364 = vsel %vm1200, %v5357, 0
      %v5366 = vsel %vm1200, %v5359, 0
      %v5368 = vsel %vm1200, %v5361, 0
      %5370 = vmatprep.subr.mxu0 0.0
      %5371 = vmatpush1.xpose.msra.mxu0 %v5366
      %5372 = vmatprep.subr.mxu0 0.0
      %5373 = vmatpush1.xpose.msra.mxu0 %v5368
      %5374 = vmatprep.subr.mxu0 0.0
      %5375 = vmatpush1.xpose.msra.mxu0 0.0
      %5376 = vmatprep.subr.mxu0 0.0
      %5377 = vmatpush1.xpose.msra.mxu0 0.0
      %5378 = vmatprep.subr.mxu0 0.0
      %5379 = vmatpush1.xpose.msra.mxu0 0.0
      %5380 = vmatprep.subr.mxu0 0.0
      %5381 = vmatpush1.xpose.msra.mxu0 0.0
      %5382 = vmatprep.subr.mxu0 0.0
      %5383 = vmatpush1.xpose.msra.mxu0 0.0
      %5384 = vmatprep.subr.mxu0 0.0
      %5385 = vmatpush1.xpose.msra.mxu0 0.0
      %5386 = vmatprep.subr.mxu0 0.0
      %5387 = vmatpush1.xpose.msra.mxu0 0.0
      %5388 = vmatprep.subr.mxu0 0.0
      %5389 = vmatpush1.xpose.msra.mxu0 0.0
      %5390 = vmatprep.subr.mxu0 0.0
      %5391 = vmatpush1.xpose.msra.mxu0 0.0
      %5392 = vmatprep.subr.mxu0 0.0
      %5393 = vmatpush1.xpose.msra.mxu0 0.0
      %5394 = vmatprep.subr.mxu0 0.0
      %5395 = vmatpush1.xpose.msra.mxu0 0.0
      %5396 = vmatprep.subr.mxu0 0.0
      %5397 = vmatpush1.xpose.msra.mxu0 0.0
      %5398 = vmatprep.subr.mxu0 0.0
      %5399 = vmatpush1.xpose.msra.mxu0 0.0
      %5400 = vmatprep.subr.mxu0 0.0
      %5401 = vmatpush1.xpose.msra.mxu0 0.0
      %5402 = vmatprep.subr.mxu0 0.0
      %5403 = vmatpush1.xpose.msra.mxu0 0.0
      %5404 = vmatprep.subr.mxu0 0.0
      %5405 = vmatpush1.xpose.msra.mxu0 0.0
      %5406 = vmatprep.subr.mxu0 0.0
      %5407 = vmatpush1.xpose.msra.mxu0 0.0
      %5408 = vmatprep.subr.mxu0 0.0
      %5409 = vmatpush1.xpose.msra.mxu0 0.0
      %5410 = vmatprep.subr.mxu0 0.0
      %5411 = vmatpush1.xpose.msra.mxu0 0.0
      %5412 = vmatprep.subr.mxu0 0.0
      %5413 = vmatpush1.xpose.msra.mxu0 0.0
      %5414 = vmatprep.subr.mxu0 0.0
      %5415 = vmatpush1.xpose.msra.mxu0 0.0
      %5416 = vmatprep.subr.mxu0 0.0
      %5417 = vmatpush1.xpose.msra.mxu0 0.0
      %5418 = vmatprep.subr.mxu0 0.0
      %5419 = vmatpush1.xpose.msra.mxu0 0.0
      %5420 = vmatprep.subr.mxu0 0.0
      %5421 = vmatpush1.xpose.msra.mxu0 0.0
      %5422 = vmatprep.subr.mxu0 0.0
      %5423 = vmatpush1.xpose.msra.mxu0 0.0
      %5424 = vmatprep.subr.mxu0 0.0
      %5425 = vmatpush1.xpose.msra.mxu0 0.0
      %5426 = vmatprep.subr.mxu0 0.0
      %5427 = vmatpush1.xpose.msra.mxu0 0.0
      %5428 = vmatprep.subr.mxu0 0.0
      %5429 = vmatpush1.xpose.msra.mxu0 0.0
      %5430 = vmatprep.subr.mxu0 0.0
      %5431 = vmatpush1.xpose.msra.mxu0 0.0
      %5432 = vmatprep.subr.mxu0 0.0
      %5433 = vmatpush1.xpose.msra.mxu0 0.0
      %5434 = vmatprep.mubr.f32.mxu0 0.0
      %5435 = vmatmul.mubr.f32.gmra.mrb[0].mxu0 %v5362
      %v5436 = vpop.f32.mrb[0].mxu0
      %v5437 = vadd.f32 0.0, %v5436
      %v5438 = vpop.f32.mrb[0].mxu0
      %5439 = vmatprep.mubr.f32.mxu0 0.0
      %5440 = vmatmul.mubr.f32.gmra.mrb[0].mxu0 %v5364
      %v5441 = vpop.f32.mrb[0].mxu0
      %v5442 = vadd.f32 0.0, %v5441
      %v5443 = vpop.f32.mrb[0].mxu0
      %5444 = vdwg.mxu0
      %v5445 = vmul.f32 %v5437, 0.35355338
      %v5446 = vmul.f32 %v5442, 0.35355338
      %v5447 = vadd.f32 %v5445, %v1073
      %v5448 = vadd.f32 %v5446, %v1073
      %v5449 = vsel %vm1288, %v5447, -inf
      %5450 = vmax.xlane.f32.xlu0 %v5449
      %v5451 = vpop.xlane.xlu0 %5450
      %v5452 = vsel %vm1288, %v5448, -inf
      %5453 = vmax.xlane.f32.xlu0 %v5452
      %v5454 = vpop.xlane.xlu0 %5453
      %v5455 = vsub.f32 %v5447, %v5451
      %v5456 = vsub.f32 %v5448, %v5454
      %v5457 = vmul.f32 %v5455, 1.442695
      %v5458 = vpow.pop %v5457
      %v5459 = vmul.f32 %v5456, 1.442695
      %v5460 = vpow.pop %v5459
      %v5461 = vsel %vm1288, %v5458, 0.0
      %5462 = vadd.xlane.f32.xlu0 %v5461
      %v5463 = vpop.xlane.xlu0 %5462
      %v5464 = vsel %vm1288, %v5460, 0.0
      %5465 = vadd.xlane.f32.xlu0 %v5464
      %v5466 = vpop.xlane.xlu0 %5465
      %v5467 = vrcp.pop %v5463
      %v5468 = vrcp.pop %v5466
      %v5469 = vmul.f32 %v5458, %v5467
      %v5470 = vmul.f32 %v5460, %v5468
      %5471 = vrot.lane.b32.xlu0 %v4736, 40
      %v5472 = vpop.permute.xlu0 %5471
      %5473 = vrot.lane.b32.xlu0 %v4741, 40
      %v5474 = vpop.permute.xlu0 %5473
      %v5478 = vsel %vm1288, %v5469, 0
      %v5481 = vsel %vm1288, %v5470, 0
      %5483 = vmatprep.subr.mxu0 0.0
      %5484 = vmatpush1.msra.mxu0 %v5472
      %5485 = vmatprep.subr.mxu0 0.0
      %5486 = vmatpush1.msra.mxu0 %v5474
      %5487 = vmatprep.subr.mxu0 0.0
      %5488 = vmatpush1.msra.mxu0 0.0
      %5489 = vmatprep.subr.mxu0 0.0
      %5490 = vmatpush1.msra.mxu0 0.0
      %5491 = vmatprep.subr.mxu0 0.0
      %5492 = vmatpush1.msra.mxu0 0.0
      %5493 = vmatprep.subr.mxu0 0.0
      %5494 = vmatpush1.msra.mxu0 0.0
      %5495 = vmatprep.subr.mxu0 0.0
      %5496 = vmatpush1.msra.mxu0 0.0
      %5497 = vmatprep.subr.mxu0 0.0
      %5498 = vmatpush1.msra.mxu0 0.0
      %5499 = vmatprep.subr.mxu0 0.0
      %5500 = vmatpush1.msra.mxu0 0.0
      %5501 = vmatprep.subr.mxu0 0.0
      %5502 = vmatpush1.msra.mxu0 0.0
      %5503 = vmatprep.subr.mxu0 0.0
      %5504 = vmatpush1.msra.mxu0 0.0
      %5505 = vmatprep.subr.mxu0 0.0
      %5506 = vmatpush1.msra.mxu0 0.0
      %5507 = vmatprep.subr.mxu0 0.0
      %5508 = vmatpush1.msra.mxu0 0.0
      %5509 = vmatprep.subr.mxu0 0.0
      %5510 = vmatpush1.msra.mxu0 0.0
      %5511 = vmatprep.subr.mxu0 0.0
      %5512 = vmatpush1.msra.mxu0 0.0
      %5513 = vmatprep.subr.mxu0 0.0
      %5514 = vmatpush1.msra.mxu0 0.0
      %5515 = vmatprep.subr.mxu0 0.0
      %5516 = vmatpush1.msra.mxu0 0.0
      %5517 = vmatprep.subr.mxu0 0.0
      %5518 = vmatpush1.msra.mxu0 0.0
      %5519 = vmatprep.subr.mxu0 0.0
      %5520 = vmatpush1.msra.mxu0 0.0
      %5521 = vmatprep.subr.mxu0 0.0
      %5522 = vmatpush1.msra.mxu0 0.0
      %5523 = vmatprep.subr.mxu0 0.0
      %5524 = vmatpush1.msra.mxu0 0.0
      %5525 = vmatprep.subr.mxu0 0.0
      %5526 = vmatpush1.msra.mxu0 0.0
      %5527 = vmatprep.subr.mxu0 0.0
      %5528 = vmatpush1.msra.mxu0 0.0
      %5529 = vmatprep.subr.mxu0 0.0
      %5530 = vmatpush1.msra.mxu0 0.0
      %5531 = vmatprep.subr.mxu0 0.0
      %5532 = vmatpush1.msra.mxu0 0.0
      %5533 = vmatprep.subr.mxu0 0.0
      %5534 = vmatpush1.msra.mxu0 0.0
      %5535 = vmatprep.subr.mxu0 0.0
      %5536 = vmatpush1.msra.mxu0 0.0
      %5537 = vmatprep.subr.mxu0 0.0
      %5538 = vmatpush1.msra.mxu0 0.0
      %5539 = vmatprep.subr.mxu0 0.0
      %5540 = vmatpush1.msra.mxu0 0.0
      %5541 = vmatprep.subr.mxu0 0.0
      %5542 = vmatpush1.msra.mxu0 0.0
      %5543 = vmatprep.subr.mxu0 0.0
      %5544 = vmatpush1.msra.mxu0 0.0
      %5545 = vmatprep.subr.mxu0 0.0
      %5546 = vmatpush1.msra.mxu0 0.0
      %5547 = vmatprep.mubr.f32.mxu0 0.0
      %5548 = vmatmul.mubr.f32.gmra.mrb[0].mxu0 %v5478
      %v5549 = vpop.f32.mrb[0].mxu0
      %v5550 = vadd.f32 0.0, %v5549
      %v5551 = vpop.f32.mrb[0].mxu0
      %5552 = vmatprep.mubr.f32.mxu0 0.0
      %5553 = vmatmul.mubr.f32.gmra.mrb[0].mxu0 %v5481
      %v5554 = vpop.f32.mrb[0].mxu0
      %v5555 = vadd.f32 0.0, %v5554
      %v5556 = vpop.f32.mrb[0].mxu0
      %5557 = vdwg.mxu0
      %5560 = vrot.lane.b32.xlu0 %v5142, 8
      %v5561 = vpop.permute.xlu0 %5560
      %5562 = vrot.lane.b32.xlu0 %v5147, 8
      %v5563 = vpop.permute.xlu0 %5562
      %5568 = vrot.lane.b32.xlu0 %v5346, 16
      %v5569 = vpop.permute.xlu0 %5568
      %5570 = vrot.lane.b32.xlu0 %v5351, 16
      %v5571 = vpop.permute.xlu0 %5570
      %5576 = vrot.lane.b32.xlu0 %v5550, 24
      %v5577 = vpop.permute.xlu0 %5576
      %5578 = vrot.lane.b32.xlu0 %v5555, 24
      %v5579 = vpop.permute.xlu0 %5578
      %v5582 = vsel %vm1200, %v4938, %v5561
      %v5583 = vsel %vm1200, %v4943, %v5563
      %v5584 = vsel %vm1288, %v5582, %v5569
      %v5585 = vsel %vm1288, %v5583, %v5571
      %v5586 = vsel %vm981, %v5584, %v5577
      %v5587 = vsel %vm981, %v5585, %v5579
      %s5588 = scalar_lea.vmem %s16, 32
      %v5589 = vld [vmem:[%s5588] sm:$0xff]
      %v5590 = vld [vmem:[%s5588 + $0x8] sm:$0xff]
      %v5591 = vld [vmem:[%s5588 + $0x10] sm:$0xff]
      %v5592 = vld [vmem:[%s5588 + $0x18] sm:$0xff]
      %s5593 = scalar_lea.vmem %s17, 1
      %v5594 = vld [vmem:[%s5593] sm:$0x1]
      %v5596 = vlaneseq
      %v5597 = vshrl.u32 %v5596, 7
      %v5598 = vsub.s32 0, %v5597
      %v5599 = vrot.slane %v5594, %v5598
      %v5602 = vsel %vm966, %v5586, 0
      %v5605 = vsel %vm966, %v5587, 0
      %5607 = vmatprep.subr.mxu0 0.0
      %5608 = vmatpush1.msra.mxu0 %v5589
      %5609 = vmatprep.subr.mxu0 0.0
      %5610 = vmatpush1.msra.mxu0 %v5590
      %5611 = vmatprep.subr.mxu0 0.0
      %5612 = vmatpush1.msra.mxu0 %v5591
      %5613 = vmatprep.subr.mxu0 0.0
      %5614 = vmatpush1.msra.mxu0 %v5592
      %5615 = vmatprep.subr.mxu0 0.0
      %5616 = vmatpush1.msra.mxu0 0.0
      %5617 = vmatprep.subr.mxu0 0.0
      %5618 = vmatpush1.msra.mxu0 0.0
      %5619 = vmatprep.subr.mxu0 0.0
      %5620 = vmatpush1.msra.mxu0 0.0
      %5621 = vmatprep.subr.mxu0 0.0
      %5622 = vmatpush1.msra.mxu0 0.0
      %5623 = vmatprep.subr.mxu0 0.0
      %5624 = vmatpush1.msra.mxu0 0.0
      %5625 = vmatprep.subr.mxu0 0.0
      %5626 = vmatpush1.msra.mxu0 0.0
      %5627 = vmatprep.subr.mxu0 0.0
      %5628 = vmatpush1.msra.mxu0 0.0
      %5629 = vmatprep.subr.mxu0 0.0
      %5630 = vmatpush1.msra.mxu0 0.0
      %5631 = vmatprep.subr.mxu0 0.0
      %5632 = vmatpush1.msra.mxu0 0.0
      %5633 = vmatprep.subr.mxu0 0.0
      %5634 = vmatpush1.msra.mxu0 0.0
      %5635 = vmatprep.subr.mxu0 0.0
      %5636 = vmatpush1.msra.mxu0 0.0
      %5637 = vmatprep.subr.mxu0 0.0
      %5638 = vmatpush1.msra.mxu0 0.0
      %5639 = vmatprep.subr.mxu0 0.0
      %5640 = vmatpush1.msra.mxu0 0.0
      %5641 = vmatprep.subr.mxu0 0.0
      %5642 = vmatpush1.msra.mxu0 0.0
      %5643 = vmatprep.subr.mxu0 0.0
      %5644 = vmatpush1.msra.mxu0 0.0
      %5645 = vmatprep.subr.mxu0 0.0
      %5646 = vmatpush1.msra.mxu0 0.0
      %5647 = vmatprep.subr.mxu0 0.0
      %5648 = vmatpush1.msra.mxu0 0.0
      %5649 = vmatprep.subr.mxu0 0.0
      %5650 = vmatpush1.msra.mxu0 0.0
      %5651 = vmatprep.subr.mxu0 0.0
      %5652 = vmatpush1.msra.mxu0 0.0
      %5653 = vmatprep.subr.mxu0 0.0
      %5654 = vmatpush1.msra.mxu0 0.0
      %5655 = vmatprep.subr.mxu0 0.0
      %5656 = vmatpush1.msra.mxu0 0.0
      %5657 = vmatprep.subr.mxu0 0.0
      %5658 = vmatpush1.msra.mxu0 0.0
      %5659 = vmatprep.subr.mxu0 0.0
      %5660 = vmatpush1.msra.mxu0 0.0
      %5661 = vmatprep.subr.mxu0 0.0
      %5662 = vmatpush1.msra.mxu0 0.0
      %5663 = vmatprep.subr.mxu0 0.0
      %5664 = vmatpush1.msra.mxu0 0.0
      %5665 = vmatprep.subr.mxu0 0.0
      %5666 = vmatpush1.msra.mxu0 0.0
      %5667 = vmatprep.subr.mxu0 0.0
      %5668 = vmatpush1.msra.mxu0 0.0
      %5669 = vmatprep.subr.mxu0 0.0
      %5670 = vmatpush1.msra.mxu0 0.0
      %5671 = vmatprep.mubr.f32.mxu0 0.0
      %5672 = vmatmul.mubr.f32.gmra.mrb[0].mxu0 %v5602
      %v5673 = vpop.f32.mrb[0].mxu0
      %v5674 = vadd.f32 %v5599, %v5673
      %v5675 = vpop.f32.mrb[0].mxu0
      %5676 = vmatprep.mubr.f32.mxu0 0.0
      %5677 = vmatmul.mubr.f32.gmra.mrb[0].mxu0 %v5605
      %v5678 = vpop.f32.mrb[0].mxu0
      %v5679 = vadd.f32 %v5599, %v5678
      %v5680 = vpop.f32.mrb[0].mxu0
      %5681 = vdwg.mxu0
      %v5682 = vadd.f32 %v4648, %v5674
      %v5683 = vadd.f32 %v4649, %v5679
      %s5684 = scalar_lea.vmem %s18, 1
      %v5685 = vld [vmem:[%s5684] sm:$0x1]
      %s5686 = scalar_lea.vmem %s19, 1
      %v5687 = vld [vmem:[%s5686] sm:$0x1]
      %v5688 = vsel %vm966, %v5682, 0.0
      %5689 = vadd.xlane.f32.xlu0 %v5688
      %v5690 = vpop.xlane.xlu0 %5689
      %v5691 = vsel %vm966, %v5683, 0.0
      %5692 = vadd.xlane.f32.xlu0 %v5691
      %v5693 = vpop.xlane.xlu0 %5692
      %v5694 = vmul.f32 %v5690, %v2142
      %v5695 = vmul.f32 %v5693, %v2142
      %v5696 = vsub.f32 %v5682, %v5694
      %v5697 = vsub.f32 %v5683, %v5695
      %v5698 = vmul.f32 %v5696, %v5696
      %v5699 = vmul.f32 %v5697, %v5697
      %v5700 = vsel %vm966, %v5698, 0.0
      %5701 = vadd.xlane.f32.xlu0 %v5700
      %v5702 = vpop.xlane.xlu0 %5701
      %v5703 = vsel %vm966, %v5699, 0.0
      %5704 = vadd.xlane.f32.xlu0 %v5703
      %v5705 = vpop.xlane.xlu0 %5704
      %v5706 = vmul.f32 %v5702, %v2142
      %v5707 = vmul.f32 %v5705, %v2142
      %v5708 = vadd.f32 %v5706, 1e-05
      %v5709 = vadd.f32 %v5707, 1e-05
      %v5710 = vrsqrt.pop %v5708
      %v5711 = vrsqrt.pop %v5709
      %v5712 = vmul.f32 %v5696, %v5710
      %v5713 = vmul.f32 %v5697, %v5711
      %v5715 = vlaneseq
      %v5716 = vshrl.u32 %v5715, 7
      %v5717 = vsub.s32 0, %v5716
      %v5718 = vrot.slane %v5685, %v5717
      %v5720 = vmul.f32 %v5712, %v5718
      %v5721 = vmul.f32 %v5713, %v5718
      %v5723 = vlaneseq
      %v5724 = vshrl.u32 %v5723, 7
      %v5725 = vsub.s32 0, %v5724
      %v5726 = vrot.slane %v5687, %v5725
      %v5728 = vadd.f32 %v5720, %v5726
      %v5729 = vadd.f32 %v5721, %v5726
      %s5730 = scalar_lea.vmem %s22, 32
      %v5731 = vld [vmem:[%s5730] sm:$0xff]
      %v5732 = vld [vmem:[%s5730 + $0x8] sm:$0xff]
      %v5733 = vld [vmem:[%s5730 + $0x10] sm:$0xff]
      %v5734 = vld [vmem:[%s5730 + $0x18] sm:$0xff]
      %s5735 = scalar_lea.vmem %s23, 1
      %v5736 = vld [vmem:[%s5735] sm:$0x1]
      %v5738 = vlaneseq
      %v5739 = vshrl.u32 %v5738, 7
      %v5740 = vsub.s32 0, %v5739
      %v5741 = vrot.slane %v5736, %v5740
      %v5744 = vsel %vm966, %v5728, 0
      %v5747 = vsel %vm966, %v5729, 0
      %5749 = vmatprep.subr.mxu0 0.0
      %5750 = vmatpush1.msra.mxu0 %v5731
      %5751 = vmatprep.subr.mxu0 0.0
      %5752 = vmatpush1.msra.mxu0 %v5732
      %5753 = vmatprep.subr.mxu0 0.0
      %5754 = vmatpush1.msra.mxu0 %v5733
      %5755 = vmatprep.subr.mxu0 0.0
      %5756 = vmatpush1.msra.mxu0 %v5734
      %5757 = vmatprep.subr.mxu0 0.0
      %5758 = vmatpush1.msra.mxu0 0.0
      %5759 = vmatprep.subr.mxu0 0.0
      %5760 = vmatpush1.msra.mxu0 0.0
      %5761 = vmatprep.subr.mxu0 0.0
      %5762 = vmatpush1.msra.mxu0 0.0
      %5763 = vmatprep.subr.mxu0 0.0
      %5764 = vmatpush1.msra.mxu0 0.0
      %5765 = vmatprep.subr.mxu0 0.0
      %5766 = vmatpush1.msra.mxu0 0.0
      %5767 = vmatprep.subr.mxu0 0.0
      %5768 = vmatpush1.msra.mxu0 0.0
      %5769 = vmatprep.subr.mxu0 0.0
      %5770 = vmatpush1.msra.mxu0 0.0
      %5771 = vmatprep.subr.mxu0 0.0
      %5772 = vmatpush1.msra.mxu0 0.0
      %5773 = vmatprep.subr.mxu0 0.0
      %5774 = vmatpush1.msra.mxu0 0.0
      %5775 = vmatprep.subr.mxu0 0.0
      %5776 = vmatpush1.msra.mxu0 0.0
      %5777 = vmatprep.subr.mxu0 0.0
      %5778 = vmatpush1.msra.mxu0 0.0
      %5779 = vmatprep.subr.mxu0 0.0
      %5780 = vmatpush1.msra.mxu0 0.0
      %5781 = vmatprep.subr.mxu0 0.0
      %5782 = vmatpush1.msra.mxu0 0.0
      %5783 = vmatprep.subr.mxu0 0.0
      %5784 = vmatpush1.msra.mxu0 0.0
      %5785 = vmatprep.subr.mxu0 0.0
      %5786 = vmatpush1.msra.mxu0 0.0
      %5787 = vmatprep.subr.mxu0 0.0
      %5788 = vmatpush1.msra.mxu0 0.0
      %5789 = vmatprep.subr.mxu0 0.0
      %5790 = vmatpush1.msra.mxu0 0.0
      %5791 = vmatprep.subr.mxu0 0.0
      %5792 = vmatpush1.msra.mxu0 0.0
      %5793 = vmatprep.subr.mxu0 0.0
      %5794 = vmatpush1.msra.mxu0 0.0
      %5795 = vmatprep.subr.mxu0 0.0
      %5796 = vmatpush1.msra.mxu0 0.0
      %5797 = vmatprep.subr.mxu0 0.0
      %5798 = vmatpush1.msra.mxu0 0.0
      %5799 = vmatprep.subr.mxu0 0.0
      %5800 = vmatpush1.msra.mxu0 0.0
      %5801 = vmatprep.subr.mxu0 0.0
      %5802 = vmatpush1.msra.mxu0 0.0
      %5803 = vmatprep.subr.mxu0 0.0
      %5804 = vmatpush1.msra.mxu0 0.0
      %5805 = vmatprep.subr.mxu0 0.0
      %5806 = vmatpush1.msra.mxu0 0.0
      %5807 = vmatprep.subr.mxu0 0.0
      %5808 = vmatpush1.msra.mxu0 0.0
      %5809 = vmatprep.subr.mxu0 0.0
      %5810 = vmatpush1.msra.mxu0 0.0
      %5811 = vmatprep.subr.mxu0 0.0
      %5812 = vmatpush1.msra.mxu0 0.0
      %5813 = vmatprep.mubr.f32.mxu0 0.0
      %5814 = vmatmul.mubr.f32.gmra.mrb[0].mxu0 %v5744
      %v5815 = vpop.f32.mrb[0].mxu0
      %v5816 = vadd.f32 %v5741, %v5815
      %v5817 = vpop.f32.mrb[0].mxu0
      %5818 = vmatprep.mubr.f32.mxu0 0.0
      %5819 = vmatmul.mubr.f32.gmra.mrb[0].mxu0 %v5747
      %v5820 = vpop.f32.mrb[0].mxu0
      %v5821 = vadd.f32 %v5741, %v5820
      %v5822 = vpop.f32.mrb[0].mxu0
      %5823 = vdwg.mxu0
      %v5824 = vmax.f32 %v5816, 0.0
      %v5825 = vmax.f32 %v5821, 0.0
      %s5826 = scalar_lea.vmem %s24, 64
      %v5827 = vld [vmem:[%s5826] sm:$0xff]
      %v5828 = vld [vmem:[%s5826 + $0x8] sm:$0xff]
      %v5829 = vld [vmem:[%s5826 + $0x10] sm:$0xff]
      %v5830 = vld [vmem:[%s5826 + $0x18] sm:$0xff]
      %v5831 = vld [vmem:[%s5826 + $0x20] sm:$0xff]
      %v5832 = vld [vmem:[%s5826 + $0x28] sm:$0xff]
      %v5833 = vld [vmem:[%s5826 + $0x30] sm:$0xff]
      %v5834 = vld [vmem:[%s5826 + $0x38] sm:$0xff]
      %s5835 = scalar_lea.vmem %s25, 1
      %v5836 = vld [vmem:[%s5835] sm:$0x1]
      %v5838 = vlaneseq
      %v5839 = vshrl.u32 %v5838, 7
      %v5840 = vsub.s32 0, %v5839
      %v5841 = vrot.slane %v5836, %v5840
      %v5844 = vsel %vm2288, %v5824, 0
      %v5847 = vsel %vm2288, %v5825, 0
      %5849 = vmatprep.subr.mxu0 0.0
      %5850 = vmatpush1.msra.mxu0 %v5827
      %5851 = vmatprep.subr.mxu0 0.0
      %5852 = vmatpush1.msra.mxu0 %v5828
      %5853 = vmatprep.subr.mxu0 0.0
      %5854 = vmatpush1.msra.mxu0 %v5829
      %5855 = vmatprep.subr.mxu0 0.0
      %5856 = vmatpush1.msra.mxu0 %v5830
      %5857 = vmatprep.subr.mxu0 0.0
      %5858 = vmatpush1.msra.mxu0 %v5831
      %5859 = vmatprep.subr.mxu0 0.0
      %5860 = vmatpush1.msra.mxu0 %v5832
      %5861 = vmatprep.subr.mxu0 0.0
      %5862 = vmatpush1.msra.mxu0 %v5833
      %5863 = vmatprep.subr.mxu0 0.0
      %5864 = vmatpush1.msra.mxu0 %v5834
      %5865 = vmatprep.subr.mxu0 0.0
      %5866 = vmatpush1.msra.mxu0 0.0
      %5867 = vmatprep.subr.mxu0 0.0
      %5868 = vmatpush1.msra.mxu0 0.0
      %5869 = vmatprep.subr.mxu0 0.0
      %5870 = vmatpush1.msra.mxu0 0.0
      %5871 = vmatprep.subr.mxu0 0.0
      %5872 = vmatpush1.msra.mxu0 0.0
      %5873 = vmatprep.subr.mxu0 0.0
      %5874 = vmatpush1.msra.mxu0 0.0
      %5875 = vmatprep.subr.mxu0 0.0
      %5876 = vmatpush1.msra.mxu0 0.0
      %5877 = vmatprep.subr.mxu0 0.0
      %5878 = vmatpush1.msra.mxu0 0.0
      %5879 = vmatprep.subr.mxu0 0.0
      %5880 = vmatpush1.msra.mxu0 0.0
      %5881 = vmatprep.subr.mxu0 0.0
      %5882 = vmatpush1.msra.mxu0 0.0
      %5883 = vmatprep.subr.mxu0 0.0
      %5884 = vmatpush1.msra.mxu0 0.0
      %5885 = vmatprep.subr.mxu0 0.0
      %5886 = vmatpush1.msra.mxu0 0.0
      %5887 = vmatprep.subr.mxu0 0.0
      %5888 = vmatpush1.msra.mxu0 0.0
      %5889 = vmatprep.subr.mxu0 0.0
      %5890 = vmatpush1.msra.mxu0 0.0
      %5891 = vmatprep.subr.mxu0 0.0
      %5892 = vmatpush1.msra.mxu0 0.0
      %5893 = vmatprep.subr.mxu0 0.0
      %5894 = vmatpush1.msra.mxu0 0.0
      %5895 = vmatprep.subr.mxu0 0.0
      %5896 = vmatpush1.msra.mxu0 0.0
      %5897 = vmatprep.subr.mxu0 0.0
      %5898 = vmatpush1.msra.mxu0 0.0
      %5899 = vmatprep.subr.mxu0 0.0
      %5900 = vmatpush1.msra.mxu0 0.0
      %5901 = vmatprep.subr.mxu0 0.0
      %5902 = vmatpush1.msra.mxu0 0.0
      %5903 = vmatprep.subr.mxu0 0.0
      %5904 = vmatpush1.msra.mxu0 0.0
      %5905 = vmatprep.subr.mxu0 0.0
      %5906 = vmatpush1.msra.mxu0 0.0
      %5907 = vmatprep.subr.mxu0 0.0
      %5908 = vmatpush1.msra.mxu0 0.0
      %5909 = vmatprep.subr.mxu0 0.0
      %5910 = vmatpush1.msra.mxu0 0.0
      %5911 = vmatprep.subr.mxu0 0.0
      %5912 = vmatpush1.msra.mxu0 0.0
      %5913 = vmatprep.mubr.f32.mxu0 0.0
      %5914 = vmatmul.mubr.f32.gmra.mrb[0].mxu0 %v5844
      %v5915 = vpop.f32.mrb[0].mxu0
      %v5916 = vadd.f32 %v5841, %v5915
      %v5917 = vpop.f32.mrb[0].mxu0
      %5918 = vmatprep.mubr.f32.mxu0 0.0
      %5919 = vmatmul.mubr.f32.gmra.mrb[0].mxu0 %v5847
      %v5920 = vpop.f32.mrb[0].mxu0
      %v5921 = vpop.f32.mrb[0].mxu0
      %5922 = vdwg.mxu0
      %v5923 = vadd.f32 %v5728, %v5916
      %s5924 = scalar_lea.vmem %s20, 1
      %v5925 = vld [vmem:[%s5924] sm:$0x1]
      %s5926 = scalar_lea.vmem %s21, 1
      %v5927 = vld [vmem:[%s5926] sm:$0x1]
      %v5928 = vsel %vm966, %v5923, 0.0
      %5929 = vadd.xlane.f32.xlu0 %v5928
      %v5930 = vpop.xlane.xlu0 %5929
      %v5931 = vmul.f32 %v5930, %v2142
      %v5932 = vsub.f32 %v5923, %v5931
      %v5933 = vmul.f32 %v5932, %v5932
      %v5934 = vsel %vm966, %v5933, 0.0
      %5935 = vadd.xlane.f32.xlu0 %v5934
      %v5936 = vpop.xlane.xlu0 %5935
      %v5937 = vmul.f32 %v5936, %v2142
      %v5938 = vadd.f32 %v5937, 1e-05
      %v5939 = vrsqrt.pop %v5938
      %v5940 = vmul.f32 %v5932, %v5939
      %v5942 = vlaneseq
      %v5943 = vshrl.u32 %v5942, 7
      %v5944 = vsub.s32 0, %v5943
      %v5945 = vrot.slane %v5925, %v5944
      %v5947 = vmul.f32 %v5940, %v5945
      %v5949 = vlaneseq
      %v5950 = vshrl.u32 %v5949, 7
      %v5951 = vsub.s32 0, %v5950
      %v5952 = vrot.slane %v5927, %v5951
      %v5954 = vadd.f32 %v5947, %v5952
      %v5955 = vld [vmem:[#allocation3] sm:$0xff]
      %s5956 = scalar_lea.vmem %s14, 96
      %v5957 = vld [vmem:[%s5956] sm:$0xff]
      %v5958 = vld [vmem:[%s5956 + $0x8] sm:$0xff]
      %v5959 = vld [vmem:[%s5956 + $0x10] sm:$0xff]
      %v5960 = vld [vmem:[%s5956 + $0x18] sm:$0xff]
      %s5961 = scalar_lea.vmem %s15, 3
      %v5962 = vld [vmem:[%s5961] sm:$0x1]
      %v5964 = vlaneseq
      %v5965 = vshrl.u32 %v5964, 7
      %v5966 = vsub.s32 0, %v5965
      %v5967 = vrot.slane %v5962, %v5966
      %v5970 = vsel %vm966, %v5955, 0
      %5972 = vmatprep.subr.mxu0 0.0
      %5973 = vmatpush1.msra.mxu0 %v5957
      %5974 = vmatprep.subr.mxu0 0.0
      %5975 = vmatpush1.msra.mxu0 %v5958
      %5976 = vmatprep.subr.mxu0 0.0
      %5977 = vmatpush1.msra.mxu0 %v5959
      %5978 = vmatprep.subr.mxu0 0.0
      %5979 = vmatpush1.msra.mxu0 %v5960
      %5980 = vmatprep.subr.mxu0 0.0
      %5981 = vmatpush1.msra.mxu0 0.0
      %5982 = vmatprep.subr.mxu0 0.0
      %5983 = vmatpush1.msra.mxu0 0.0
      %5984 = vmatprep.subr.mxu0 0.0
      %5985 = vmatpush1.msra.mxu0 0.0
      %5986 = vmatprep.subr.mxu0 0.0
      %5987 = vmatpush1.msra.mxu0 0.0
      %5988 = vmatprep.subr.mxu0 0.0
      %5989 = vmatpush1.msra.mxu0 0.0
      %5990 = vmatprep.subr.mxu0 0.0
      %5991 = vmatpush1.msra.mxu0 0.0
      %5992 = vmatprep.subr.mxu0 0.0
      %5993 = vmatpush1.msra.mxu0 0.0
      %5994 = vmatprep.subr.mxu0 0.0
      %5995 = vmatpush1.msra.mxu0 0.0
      %5996 = vmatprep.subr.mxu0 0.0
      %5997 = vmatpush1.msra.mxu0 0.0
      %5998 = vmatprep.subr.mxu0 0.0
      %5999 = vmatpush1.msra.mxu0 0.0
      %6000 = vmatprep.subr.mxu0 0.0
      %6001 = vmatpush1.msra.mxu0 0.0
      %6002 = vmatprep.subr.mxu0 0.0
      %6003 = vmatpush1.msra.mxu0 0.0
      %6004 = vmatprep.subr.mxu0 0.0
      %6005 = vmatpush1.msra.mxu0 0.0
      %6006 = vmatprep.subr.mxu0 0.0
      %6007 = vmatpush1.msra.mxu0 0.0
      %6008 = vmatprep.subr.mxu0 0.0
      %6009 = vmatpush1.msra.mxu0 0.0
      %6010 = vmatprep.subr.mxu0 0.0
      %6011 = vmatpush1.msra.mxu0 0.0
      %6012 = vmatprep.subr.mxu0 0.0
      %6013 = vmatpush1.msra.mxu0 0.0
      %6014 = vmatprep.subr.mxu0 0.0
      %6015 = vmatpush1.msra.mxu0 0.0
      %6016 = vmatprep.subr.mxu0 0.0
      %6017 = vmatpush1.msra.mxu0 0.0
      %6018 = vmatprep.subr.mxu0 0.0
      %6019 = vmatpush1.msra.mxu0 0.0
      %6020 = vmatprep.subr.mxu0 0.0
      %6021 = vmatpush1.msra.mxu0 0.0
      %6022 = vmatprep.subr.mxu0 0.0
      %6023 = vmatpush1.msra.mxu0 0.0
      %6024 = vmatprep.subr.mxu0 0.0
      %6025 = vmatpush1.msra.mxu0 0.0
      %6026 = vmatprep.subr.mxu0 0.0
      %6027 = vmatpush1.msra.mxu0 0.0
      %6028 = vmatprep.subr.mxu0 0.0
      %6029 = vmatpush1.msra.mxu0 0.0
      %6030 = vmatprep.subr.mxu0 0.0
      %6031 = vmatpush1.msra.mxu0 0.0
      %6032 = vmatprep.subr.mxu0 0.0
      %6033 = vmatpush1.msra.mxu0 0.0
      %6034 = vmatprep.subr.mxu0 0.0
      %6035 = vmatpush1.msra.mxu0 0.0
      %6036 = vmatprep.mubr.f32.mxu0 0.0
      %6037 = vmatmul.mubr.f32.gmra.mrb[0].mxu0 %v5970
      %v6038 = vpop.f32.mrb[0].mxu0
      %v6039 = vadd.f32 %v5967, %v6038
      %v6040 = vpop.f32.mrb[0].mxu0
      %6041 = vdwg.mxu0
      %6043 = vrot.lane.b32.xlu0 %v6039, 96
      %v6044 = vpop.permute.xlu0 %6043
      %v6045 = vsel %vm1200, %v6039, 0
      %v6047 = vsel %vm1200, %v6044, 0
      %6049 = vmatprep.subr.mxu0 0.0
      %6050 = vmatpush1.xpose.msra.mxu0 %v6047
      %6051 = vmatprep.subr.mxu0 0.0
      %6052 = vmatpush1.xpose.msra.mxu0 0.0
      %6053 = vmatprep.subr.mxu0 0.0
      %6054 = vmatpush1.xpose.msra.mxu0 0.0
      %6055 = vmatprep.subr.mxu0 0.0
      %6056 = vmatpush1.xpose.msra.mxu0 0.0
      %6057 = vmatprep.subr.mxu0 0.0
      %6058 = vmatpush1.xpose.msra.mxu0 0.0
      %6059 = vmatprep.subr.mxu0 0.0
      %6060 = vmatpush1.xpose.msra.mxu0 0.0
      %6061 = vmatprep.subr.mxu0 0.0
      %6062 = vmatpush1.xpose.msra.mxu0 0.0
      %6063 = vmatprep.subr.mxu0 0.0
      %6064 = vmatpush1.xpose.msra.mxu0 0.0
      %6065 = vmatprep.subr.mxu0 0.0
      %6066 = vmatpush1.xpose.msra.mxu0 0.0
      %6067 = vmatprep.subr.mxu0 0.0
      %6068 = vmatpush1.xpose.msra.mxu0 0.0
      %6069 = vmatprep.subr.mxu0 0.0
      %6070 = vmatpush1.xpose.msra.mxu0 0.0
      %6071 = vmatprep.subr.mxu0 0.0
      %6072 = vmatpush1.xpose.msra.mxu0 0.0
      %6073 = vmatprep.subr.mxu0 0.0
      %6074 = vmatpush1.xpose.msra.mxu0 0.0
      %6075 = vmatprep.subr.mxu0 0.0
      %6076 = vmatpush1.xpose.msra.mxu0 0.0
      %6077 = vmatprep.subr.mxu0 0.0
      %6078 = vmatpush1.xpose.msra.mxu0 0.0
      %6079 = vmatprep.subr.mxu0 0.0
      %6080 = vmatpush1.xpose.msra.mxu0 0.0
      %6081 = vmatprep.subr.mxu0 0.0
      %6082 = vmatpush1.xpose.msra.mxu0 0.0
      %6083 = vmatprep.subr.mxu0 0.0
      %6084 = vmatpush1.xpose.msra.mxu0 0.0
      %6085 = vmatprep.subr.mxu0 0.0
      %6086 = vmatpush1.xpose.msra.mxu0 0.0
      %6087 = vmatprep.subr.mxu0 0.0
      %6088 = vmatpush1.xpose.msra.mxu0 0.0
      %6089 = vmatprep.subr.mxu0 0.0
      %6090 = vmatpush1.xpose.msra.mxu0 0.0
      %6091 = vmatprep.subr.mxu0 0.0
      %6092 = vmatpush1.xpose.msra.mxu0 0.0
      %6093 = vmatprep.subr.mxu0 0.0
      %6094 = vmatpush1.xpose.msra.mxu0 0.0
      %6095 = vmatprep.subr.mxu0 0.0
      %6096 = vmatpush1.xpose.msra.mxu0 0.0
      %6097 = vmatprep.subr.mxu0 0.0
      %6098 = vmatpush1.xpose.msra.mxu0 0.0
      %6099 = vmatprep.subr.mxu0 0.0
      %6100 = vmatpush1.xpose.msra.mxu0 0.0
      %6101 = vmatprep.subr.mxu0 0.0
      %6102 = vmatpush1.xpose.msra.mxu0 0.0
      %6103 = vmatprep.subr.mxu0 0.0
      %6104 = vmatpush1.xpose.msra.mxu0 0.0
      %6105 = vmatprep.subr.mxu0 0.0
      %6106 = vmatpush1.xpose.msra.mxu0 0.0
      %6107 = vmatprep.subr.mxu0 0.0
      %6108 = vmatpush1.xpose.msra.mxu0 0.0
      %6109 = vmatprep.subr.mxu0 0.0
      %6110 = vmatpush1.xpose.msra.mxu0 0.0
      %6111 = vmatprep.subr.mxu0 0.0
      %6112 = vmatpush1.xpose.msra.mxu0 0.0
      %6113 = vmatprep.mubr.f32.mxu0 0.0
      %6114 = vmatmul.mubr.f32.gmra.mrb[0].mxu0 %v6045
      %v6115 = vpop.f32.mrb[0].mxu0
      %v6116 = vadd.f32 0.0, %v6115
      %v6117 = vpop.f32.mrb[0].mxu0
      %6118 = vdwg.mxu0
      %v6119 = vmul.f32 %v6116, 0.35355338
      %v6120 = vadd.f32 %v6119, %v1075
      %v6121 = vsel %vm1200, %v6120, -inf
      %6122 = vmax.xlane.f32.xlu0 %v6121
      %v6123 = vpop.xlane.xlu0 %6122
      %v6124 = vsub.f32 %v6120, %v6123
      %v6125 = vmul.f32 %v6124, 1.442695
      %v6126 = vpow.pop %v6125
      %v6127 = vsel %vm1200, %v6126, 0.0
      %6128 = vadd.xlane.f32.xlu0 %v6127
      %v6129 = vpop.xlane.xlu0 %6128
      %v6130 = vrcp.pop %v6129
      %v6131 = vmul.f32 %v6126, %v6130
      %6132 = vrot.lane.b32.xlu0 %v6039, 64
      %v6133 = vpop.permute.xlu0 %6132
      %v6136 = vsel %vm1200, %v6131, 0
      %6138 = vmatprep.subr.mxu0 0.0
      %6139 = vmatpush1.msra.mxu0 %v6133
      %6140 = vmatprep.subr.mxu0 0.0
      %6141 = vmatpush1.msra.mxu0 0.0
      %6142 = vmatprep.subr.mxu0 0.0
      %6143 = vmatpush1.msra.mxu0 0.0
      %6144 = vmatprep.subr.mxu0 0.0
      %6145 = vmatpush1.msra.mxu0 0.0
      %6146 = vmatprep.subr.mxu0 0.0
      %6147 = vmatpush1.msra.mxu0 0.0
      %6148 = vmatprep.subr.mxu0 0.0
      %6149 = vmatpush1.msra.mxu0 0.0
      %6150 = vmatprep.subr.mxu0 0.0
      %6151 = vmatpush1.msra.mxu0 0.0
      %6152 = vmatprep.subr.mxu0 0.0
      %6153 = vmatpush1.msra.mxu0 0.0
      %6154 = vmatprep.subr.mxu0 0.0
      %6155 = vmatpush1.msra.mxu0 0.0
      %6156 = vmatprep.subr.mxu0 0.0
      %6157 = vmatpush1.msra.mxu0 0.0
      %6158 = vmatprep.subr.mxu0 0.0
      %6159 = vmatpush1.msra.mxu0 0.0
      %6160 = vmatprep.subr.mxu0 0.0
      %6161 = vmatpush1.msra.mxu0 0.0
      %6162 = vmatprep.subr.mxu0 0.0
      %6163 = vmatpush1.msra.mxu0 0.0
      %6164 = vmatprep.subr.mxu0 0.0
      %6165 = vmatpush1.msra.mxu0 0.0
      %6166 = vmatprep.subr.mxu0 0.0
      %6167 = vmatpush1.msra.mxu0 0.0
      %6168 = vmatprep.subr.mxu0 0.0
      %6169 = vmatpush1.msra.mxu0 0.0
      %6170 = vmatprep.subr.mxu0 0.0
      %6171 = vmatpush1.msra.mxu0 0.0
      %6172 = vmatprep.subr.mxu0 0.0
      %6173 = vmatpush1.msra.mxu0 0.0
      %6174 = vmatprep.subr.mxu0 0.0
      %6175 = vmatpush1.msra.mxu0 0.0
      %6176 = vmatprep.subr.mxu0 0.0
      %6177 = vmatpush1.msra.mxu0 0.0
      %6178 = vmatprep.subr.mxu0 0.0
      %6179 = vmatpush1.msra.mxu0 0.0
      %6180 = vmatprep.subr.mxu0 0.0
      %6181 = vmatpush1.msra.mxu0 0.0
      %6182 = vmatprep.subr.mxu0 0.0
      %6183 = vmatpush1.msra.mxu0 0.0
      %6184 = vmatprep.subr.mxu0 0.0
      %6185 = vmatpush1.msra.mxu0 0.0
      %6186 = vmatprep.subr.mxu0 0.0
      %6187 = vmatpush1.msra.mxu0 0.0
      %6188 = vmatprep.subr.mxu0 0.0
      %6189 = vmatpush1.msra.mxu0 0.0
      %6190 = vmatprep.subr.mxu0 0.0
      %6191 = vmatpush1.msra.mxu0 0.0
      %6192 = vmatprep.subr.mxu0 0.0
      %6193 = vmatpush1.msra.mxu0 0.0
      %6194 = vmatprep.subr.mxu0 0.0
      %6195 = vmatpush1.msra.mxu0 0.0
      %6196 = vmatprep.subr.mxu0 0.0
      %6197 = vmatpush1.msra.mxu0 0.0
      %6198 = vmatprep.subr.mxu0 0.0
      %6199 = vmatpush1.msra.mxu0 0.0
      %6200 = vmatprep.subr.mxu0 0.0
      %6201 = vmatpush1.msra.mxu0 0.0
      %6202 = vmatprep.mubr.f32.mxu0 0.0
      %6203 = vmatmul.mubr.f32.gmra.mrb[0].mxu0 %v6136
      %v6204 = vpop.f32.mrb[0].mxu0
      %v6205 = vadd.f32 0.0, %v6204
      %v6206 = vpop.f32.mrb[0].mxu0
      %6207 = vdwg.mxu0
      %6208 = vrot.lane.b32.xlu0 %v6039, 120
      %v6209 = vpop.permute.xlu0 %6208
      %6210 = vrot.lane.b32.xlu0 %v6039, 88
      %v6211 = vpop.permute.xlu0 %6210
      %v6212 = vsel %vm1200, %v6209, 0
      %v6214 = vsel %vm1200, %v6211, 0
      %6216 = vmatprep.subr.mxu0 0.0
      %6217 = vmatpush1.xpose.msra.mxu0 %v6214
      %6218 = vmatprep.subr.mxu0 0.0
      %6219 = vmatpush1.xpose.msra.mxu0 0.0
      %6220 = vmatprep.subr.mxu0 0.0
      %6221 = vmatpush1.xpose.msra.mxu0 0.0
      %6222 = vmatprep.subr.mxu0 0.0
      %6223 = vmatpush1.xpose.msra.mxu0 0.0
      %6224 = vmatprep.subr.mxu0 0.0
      %6225 = vmatpush1.xpose.msra.mxu0 0.0
      %6226 = vmatprep.subr.mxu0 0.0
      %6227 = vmatpush1.xpose.msra.mxu0 0.0
      %6228 = vmatprep.subr.mxu0 0.0
      %6229 = vmatpush1.xpose.msra.mxu0 0.0
      %6230 = vmatprep.subr.mxu0 0.0
      %6231 = vmatpush1.xpose.msra.mxu0 0.0
      %6232 = vmatprep.subr.mxu0 0.0
      %6233 = vmatpush1.xpose.msra.mxu0 0.0
      %6234 = vmatprep.subr.mxu0 0.0
      %6235 = vmatpush1.xpose.msra.mxu0 0.0
      %6236 = vmatprep.subr.mxu0 0.0
      %6237 = vmatpush1.xpose.msra.mxu0 0.0
      %6238 = vmatprep.subr.mxu0 0.0
      %6239 = vmatpush1.xpose.msra.mxu0 0.0
      %6240 = vmatprep.subr.mxu0 0.0
      %6241 = vmatpush1.xpose.msra.mxu0 0.0
      %6242 = vmatprep.subr.mxu0 0.0
      %6243 = vmatpush1.xpose.msra.mxu0 0.0
      %6244 = vmatprep.subr.mxu0 0.0
      %6245 = vmatpush1.xpose.msra.mxu0 0.0
      %6246 = vmatprep.subr.mxu0 0.0
      %6247 = vmatpush1.xpose.msra.mxu0 0.0
      %6248 = vmatprep.subr.mxu0 0.0
      %6249 = vmatpush1.xpose.msra.mxu0 0.0
      %6250 = vmatprep.subr.mxu0 0.0
      %6251 = vmatpush1.xpose.msra.mxu0 0.0
      %6252 = vmatprep.subr.mxu0 0.0
      %6253 = vmatpush1.xpose.msra.mxu0 0.0
      %6254 = vmatprep.subr.mxu0 0.0
      %6255 = vmatpush1.xpose.msra.mxu0 0.0
      %6256 = vmatprep.subr.mxu0 0.0
      %6257 = vmatpush1.xpose.msra.mxu0 0.0
      %6258 = vmatprep.subr.mxu0 0.0
      %6259 = vmatpush1.xpose.msra.mxu0 0.0
      %6260 = vmatprep.subr.mxu0 0.0
      %6261 = vmatpush1.xpose.msra.mxu0 0.0
      %6262 = vmatprep.subr.mxu0 0.0
      %6263 = vmatpush1.xpose.msra.mxu0 0.0
      %6264 = vmatprep.subr.mxu0 0.0
      %6265 = vmatpush1.xpose.msra.mxu0 0.0
      %6266 = vmatprep.subr.mxu0 0.0
      %6267 = vmatpush1.xpose.msra.mxu0 0.0
      %6268 = vmatprep.subr.mxu0 0.0
      %6269 = vmatpush1.xpose.msra.mxu0 0.0
      %6270 = vmatprep.subr.mxu0 0.0
      %6271 = vmatpush1.xpose.msra.mxu0 0.0
      %6272 = vmatprep.subr.mxu0 0.0
      %6273 = vmatpush1.xpose.msra.mxu0 0.0
      %6274 = vmatprep.subr.mxu0 0.0
      %6275 = vmatpush1.xpose.msra.mxu0 0.0
      %6276 = vmatprep.subr.mxu0 0.0
      %6277 = vmatpush1.xpose.msra.mxu0 0.0
      %6278 = vmatprep.subr.mxu0 0.0
      %6279 = vmatpush1.xpose.msra.mxu0 0.0
      %6280 = vmatprep.mubr.f32.mxu0 0.0
      %6281 = vmatmul.mubr.f32.gmra.mrb[0].mxu0 %v6212
      %v6282 = vpop.f32.mrb[0].mxu0
      %v6283 = vadd.f32 0.0, %v6282
      %v6284 = vpop.f32.mrb[0].mxu0
      %6285 = vdwg.mxu0
      %v6286 = vmul.f32 %v6283, 0.35355338
      %v6287 = vadd.f32 %v6286, %v1075
      %v6288 = vsel %vm1200, %v6287, -inf
      %6289 = vmax.xlane.f32.xlu0 %v6288
      %v6290 = vpop.xlane.xlu0 %6289
      %v6291 = vsub.f32 %v6287, %v6290
      %v6292 = vmul.f32 %v6291, 1.442695
      %v6293 = vpow.pop %v6292
      %v6294 = vsel %vm1200, %v6293, 0.0
      %6295 = vadd.xlane.f32.xlu0 %v6294
      %v6296 = vpop.xlane.xlu0 %6295
      %v6297 = vrcp.pop %v6296
      %v6298 = vmul.f32 %v6293, %v6297
      %6299 = vrot.lane.b32.xlu0 %v6039, 56
      %v6300 = vpop.permute.xlu0 %6299
      %v6303 = vsel %vm1200, %v6298, 0
      %6305 = vmatprep.subr.mxu0 0.0
      %6306 = vmatpush1.msra.mxu0 %v6300
      %6307 = vmatprep.subr.mxu0 0.0
      %6308 = vmatpush1.msra.mxu0 0.0
      %6309 = vmatprep.subr.mxu0 0.0
      %6310 = vmatpush1.msra.mxu0 0.0
      %6311 = vmatprep.subr.mxu0 0.0
      %6312 = vmatpush1.msra.mxu0 0.0
      %6313 = vmatprep.subr.mxu0 0.0
      %6314 = vmatpush1.msra.mxu0 0.0
      %6315 = vmatprep.subr.mxu0 0.0
      %6316 = vmatpush1.msra.mxu0 0.0
      %6317 = vmatprep.subr.mxu0 0.0
      %6318 = vmatpush1.msra.mxu0 0.0
      %6319 = vmatprep.subr.mxu0 0.0
      %6320 = vmatpush1.msra.mxu0 0.0
      %6321 = vmatprep.subr.mxu0 0.0
      %6322 = vmatpush1.msra.mxu0 0.0
      %6323 = vmatprep.subr.mxu0 0.0
      %6324 = vmatpush1.msra.mxu0 0.0
      %6325 = vmatprep.subr.mxu0 0.0
      %6326 = vmatpush1.msra.mxu0 0.0
      %6327 = vmatprep.subr.mxu0 0.0
      %6328 = vmatpush1.msra.mxu0 0.0
      %6329 = vmatprep.subr.mxu0 0.0
      %6330 = vmatpush1.msra.mxu0 0.0
      %6331 = vmatprep.subr.mxu0 0.0
      %6332 = vmatpush1.msra.mxu0 0.0
      %6333 = vmatprep.subr.mxu0 0.0
      %6334 = vmatpush1.msra.mxu0 0.0
      %6335 = vmatprep.subr.mxu0 0.0
      %6336 = vmatpush1.msra.mxu0 0.0
      %6337 = vmatprep.subr.mxu0 0.0
      %6338 = vmatpush1.msra.mxu0 0.0
      %6339 = vmatprep.subr.mxu0 0.0
      %6340 = vmatpush1.msra.mxu0 0.0
      %6341 = vmatprep.subr.mxu0 0.0
      %6342 = vmatpush1.msra.mxu0 0.0
      %6343 = vmatprep.subr.mxu0 0.0
      %6344 = vmatpush1.msra.mxu0 0.0
      %6345 = vmatprep.subr.mxu0 0.0
      %6346 = vmatpush1.msra.mxu0 0.0
      %6347 = vmatprep.subr.mxu0 0.0
      %6348 = vmatpush1.msra.mxu0 0.0
      %6349 = vmatprep.subr.mxu0 0.0
      %6350 = vmatpush1.msra.mxu0 0.0
      %6351 = vmatprep.subr.mxu0 0.0
      %6352 = vmatpush1.msra.mxu0 0.0
      %6353 = vmatprep.subr.mxu0 0.0
      %6354 = vmatpush1.msra.mxu0 0.0
      %6355 = vmatprep.subr.mxu0 0.0
      %6356 = vmatpush1.msra.mxu0 0.0
      %6357 = vmatprep.subr.mxu0 0.0
      %6358 = vmatpush1.msra.mxu0 0.0
      %6359 = vmatprep.subr.mxu0 0.0
      %6360 = vmatpush1.msra.mxu0 0.0
      %6361 = vmatprep.subr.mxu0 0.0
      %6362 = vmatpush1.msra.mxu0 0.0
      %6363 = vmatprep.subr.mxu0 0.0
      %6364 = vmatpush1.msra.mxu0 0.0
      %6365 = vmatprep.subr.mxu0 0.0
      %6366 = vmatpush1.msra.mxu0 0.0
      %6367 = vmatprep.subr.mxu0 0.0
      %6368 = vmatpush1.msra.mxu0 0.0
      %6369 = vmatprep.mubr.f32.mxu0 0.0
      %6370 = vmatmul.mubr.f32.gmra.mrb[0].mxu0 %v6303
      %v6371 = vpop.f32.mrb[0].mxu0
      %v6372 = vadd.f32 0.0, %v6371
      %v6373 = vpop.f32.mrb[0].mxu0
      %6374 = vdwg.mxu0
      %6375 = vrot.lane.b32.xlu0 %v6039, 112
      %v6376 = vpop.permute.xlu0 %6375
      %6377 = vrot.lane.b32.xlu0 %v6039, 80
      %v6378 = vpop.permute.xlu0 %6377
      %v6379 = vsel %vm1200, %v6376, 0
      %v6381 = vsel %vm1200, %v6378, 0
      %6383 = vmatprep.subr.mxu0 0.0
      %6384 = vmatpush1.xpose.msra.mxu0 %v6381
      %6385 = vmatprep.subr.mxu0 0.0
      %6386 = vmatpush1.xpose.msra.mxu0 0.0
      %6387 = vmatprep.subr.mxu0 0.0
      %6388 = vmatpush1.xpose.msra.mxu0 0.0
      %6389 = vmatprep.subr.mxu0 0.0
      %6390 = vmatpush1.xpose.msra.mxu0 0.0
      %6391 = vmatprep.subr.mxu0 0.0
      %6392 = vmatpush1.xpose.msra.mxu0 0.0
      %6393 = vmatprep.subr.mxu0 0.0
      %6394 = vmatpush1.xpose.msra.mxu0 0.0
      %6395 = vmatprep.subr.mxu0 0.0
      %6396 = vmatpush1.xpose.msra.mxu0 0.0
      %6397 = vmatprep.subr.mxu0 0.0
      %6398 = vmatpush1.xpose.msra.mxu0 0.0
      %6399 = vmatprep.subr.mxu0 0.0
      %6400 = vmatpush1.xpose.msra.mxu0 0.0
      %6401 = vmatprep.subr.mxu0 0.0
      %6402 = vmatpush1.xpose.msra.mxu0 0.0
      %6403 = vmatprep.subr.mxu0 0.0
      %6404 = vmatpush1.xpose.msra.mxu0 0.0
      %6405 = vmatprep.subr.mxu0 0.0
      %6406 = vmatpush1.xpose.msra.mxu0 0.0
      %6407 = vmatprep.subr.mxu0 0.0
      %6408 = vmatpush1.xpose.msra.mxu0 0.0
      %6409 = vmatprep.subr.mxu0 0.0
      %6410 = vmatpush1.xpose.msra.mxu0 0.0
      %6411 = vmatprep.subr.mxu0 0.0
      %6412 = vmatpush1.xpose.msra.mxu0 0.0
      %6413 = vmatprep.subr.mxu0 0.0
      %6414 = vmatpush1.xpose.msra.mxu0 0.0
      %6415 = vmatprep.subr.mxu0 0.0
      %6416 = vmatpush1.xpose.msra.mxu0 0.0
      %6417 = vmatprep.subr.mxu0 0.0
      %6418 = vmatpush1.xpose.msra.mxu0 0.0
      %6419 = vmatprep.subr.mxu0 0.0
      %6420 = vmatpush1.xpose.msra.mxu0 0.0
      %6421 = vmatprep.subr.mxu0 0.0
      %6422 = vmatpush1.xpose.msra.mxu0 0.0
      %6423 = vmatprep.subr.mxu0 0.0
      %6424 = vmatpush1.xpose.msra.mxu0 0.0
      %6425 = vmatprep.subr.mxu0 0.0
      %6426 = vmatpush1.xpose.msra.mxu0 0.0
      %6427 = vmatprep.subr.mxu0 0.0
      %6428 = vmatpush1.xpose.msra.mxu0 0.0
      %6429 = vmatprep.subr.mxu0 0.0
      %6430 = vmatpush1.xpose.msra.mxu0 0.0
      %6431 = vmatprep.subr.mxu0 0.0
      %6432 = vmatpush1.xpose.msra.mxu0 0.0
      %6433 = vmatprep.subr.mxu0 0.0
      %6434 = vmatpush1.xpose.msra.mxu0 0.0
      %6435 = vmatprep.subr.mxu0 0.0
      %6436 = vmatpush1.xpose.msra.mxu0 0.0
      %6437 = vmatprep.subr.mxu0 0.0
      %6438 = vmatpush1.xpose.msra.mxu0 0.0
      %6439 = vmatprep.subr.mxu0 0.0
      %6440 = vmatpush1.xpose.msra.mxu0 0.0
      %6441 = vmatprep.subr.mxu0 0.0
      %6442 = vmatpush1.xpose.msra.mxu0 0.0
      %6443 = vmatprep.subr.mxu0 0.0
      %6444 = vmatpush1.xpose.msra.mxu0 0.0
      %6445 = vmatprep.subr.mxu0 0.0
      %6446 = vmatpush1.xpose.msra.mxu0 0.0
      %6447 = vmatprep.mubr.f32.mxu0 0.0
      %6448 = vmatmul.mubr.f32.gmra.mrb[0].mxu0 %v6379
      %v6449 = vpop.f32.mrb[0].mxu0
      %v6450 = vadd.f32 0.0, %v6449
      %v6451 = vpop.f32.mrb[0].mxu0
      %6452 = vdwg.mxu0
      %v6453 = vmul.f32 %v6450, 0.35355338
      %v6454 = vadd.f32 %v6453, %v1075
      %v6455 = vsel %vm1200, %v6454, -inf
      %6456 = vmax.xlane.f32.xlu0 %v6455
      %v6457 = vpop.xlane.xlu0 %6456
      %v6458 = vsub.f32 %v6454, %v6457
      %v6459 = vmul.f32 %v6458, 1.442695
      %v6460 = vpow.pop %v6459
      %v6461 = vsel %vm1200, %v6460, 0.0
      %6462 = vadd.xlane.f32.xlu0 %v6461
      %v6463 = vpop.xlane.xlu0 %6462
      %v6464 = vrcp.pop %v6463
      %v6465 = vmul.f32 %v6460, %v6464
      %6466 = vrot.lane.b32.xlu0 %v6039, 48
      %v6467 = vpop.permute.xlu0 %6466
      %v6470 = vsel %vm1200, %v6465, 0
      %6472 = vmatprep.subr.mxu0 0.0
      %6473 = vmatpush1.msra.mxu0 %v6467
      %6474 = vmatprep.subr.mxu0 0.0
      %6475 = vmatpush1.msra.mxu0 0.0
      %6476 = vmatprep.subr.mxu0 0.0
      %6477 = vmatpush1.msra.mxu0 0.0
      %6478 = vmatprep.subr.mxu0 0.0
      %6479 = vmatpush1.msra.mxu0 0.0
      %6480 = vmatprep.subr.mxu0 0.0
      %6481 = vmatpush1.msra.mxu0 0.0
      %6482 = vmatprep.subr.mxu0 0.0
      %6483 = vmatpush1.msra.mxu0 0.0
      %6484 = vmatprep.subr.mxu0 0.0
      %6485 = vmatpush1.msra.mxu0 0.0
      %6486 = vmatprep.subr.mxu0 0.0
      %6487 = vmatpush1.msra.mxu0 0.0
      %6488 = vmatprep.subr.mxu0 0.0
      %6489 = vmatpush1.msra.mxu0 0.0
      %6490 = vmatprep.subr.mxu0 0.0
      %6491 = vmatpush1.msra.mxu0 0.0
      %6492 = vmatprep.subr.mxu0 0.0
      %6493 = vmatpush1.msra.mxu0 0.0
      %6494 = vmatprep.subr.mxu0 0.0
      %6495 = vmatpush1.msra.mxu0 0.0
      %6496 = vmatprep.subr.mxu0 0.0
      %6497 = vmatpush1.msra.mxu0 0.0
      %6498 = vmatprep.subr.mxu0 0.0
      %6499 = vmatpush1.msra.mxu0 0.0
      %6500 = vmatprep.subr.mxu0 0.0
      %6501 = vmatpush1.msra.mxu0 0.0
      %6502 = vmatprep.subr.mxu0 0.0
      %6503 = vmatpush1.msra.mxu0 0.0
      %6504 = vmatprep.subr.mxu0 0.0
      %6505 = vmatpush1.msra.mxu0 0.0
      %6506 = vmatprep.subr.mxu0 0.0
      %6507 = vmatpush1.msra.mxu0 0.0
      %6508 = vmatprep.subr.mxu0 0.0
      %6509 = vmatpush1.msra.mxu0 0.0
      %6510 = vmatprep.subr.mxu0 0.0
      %6511 = vmatpush1.msra.mxu0 0.0
      %6512 = vmatprep.subr.mxu0 0.0
      %6513 = vmatpush1.msra.mxu0 0.0
      %6514 = vmatprep.subr.mxu0 0.0
      %6515 = vmatpush1.msra.mxu0 0.0
      %6516 = vmatprep.subr.mxu0 0.0
      %6517 = vmatpush1.msra.mxu0 0.0
      %6518 = vmatprep.subr.mxu0 0.0
      %6519 = vmatpush1.msra.mxu0 0.0
      %6520 = vmatprep.subr.mxu0 0.0
      %6521 = vmatpush1.msra.mxu0 0.0
      %6522 = vmatprep.subr.mxu0 0.0
      %6523 = vmatpush1.msra.mxu0 0.0
      %6524 = vmatprep.subr.mxu0 0.0
      %6525 = vmatpush1.msra.mxu0 0.0
      %6526 = vmatprep.subr.mxu0 0.0
      %6527 = vmatpush1.msra.mxu0 0.0
      %6528 = vmatprep.subr.mxu0 0.0
      %6529 = vmatpush1.msra.mxu0 0.0
      %6530 = vmatprep.subr.mxu0 0.0
      %6531 = vmatpush1.msra.mxu0 0.0
      %6532 = vmatprep.subr.mxu0 0.0
      %6533 = vmatpush1.msra.mxu0 0.0
      %6534 = vmatprep.subr.mxu0 0.0
      %6535 = vmatpush1.msra.mxu0 0.0
      %6536 = vmatprep.mubr.f32.mxu0 0.0
      %6537 = vmatmul.mubr.f32.gmra.mrb[0].mxu0 %v6470
      %v6538 = vpop.f32.mrb[0].mxu0
      %v6539 = vadd.f32 0.0, %v6538
      %v6540 = vpop.f32.mrb[0].mxu0
      %6541 = vdwg.mxu0
      %6542 = vrot.lane.b32.xlu0 %v6039, 104
      %v6543 = vpop.permute.xlu0 %6542
      %6544 = vrot.lane.b32.xlu0 %v6039, 72
      %v6545 = vpop.permute.xlu0 %6544
      %v6546 = vsel %vm1200, %v6543, 0
      %v6548 = vsel %vm1200, %v6545, 0
      %6550 = vmatprep.subr.mxu0 0.0
      %6551 = vmatpush1.xpose.msra.mxu0 %v6548
      %6552 = vmatprep.subr.mxu0 0.0
      %6553 = vmatpush1.xpose.msra.mxu0 0.0
      %6554 = vmatprep.subr.mxu0 0.0
      %6555 = vmatpush1.xpose.msra.mxu0 0.0
      %6556 = vmatprep.subr.mxu0 0.0
      %6557 = vmatpush1.xpose.msra.mxu0 0.0
      %6558 = vmatprep.subr.mxu0 0.0
      %6559 = vmatpush1.xpose.msra.mxu0 0.0
      %6560 = vmatprep.subr.mxu0 0.0
      %6561 = vmatpush1.xpose.msra.mxu0 0.0
      %6562 = vmatprep.subr.mxu0 0.0
      %6563 = vmatpush1.xpose.msra.mxu0 0.0
      %6564 = vmatprep.subr.mxu0 0.0
      %6565 = vmatpush1.xpose.msra.mxu0 0.0
      %6566 = vmatprep.subr.mxu0 0.0
      %6567 = vmatpush1.xpose.msra.mxu0 0.0
      %6568 = vmatprep.subr.mxu0 0.0
      %6569 = vmatpush1.xpose.msra.mxu0 0.0
      %6570 = vmatprep.subr.mxu0 0.0
      %6571 = vmatpush1.xpose.msra.mxu0 0.0
      %6572 = vmatprep.subr.mxu0 0.0
      %6573 = vmatpush1.xpose.msra.mxu0 0.0
      %6574 = vmatprep.subr.mxu0 0.0
      %6575 = vmatpush1.xpose.msra.mxu0 0.0
      %6576 = vmatprep.subr.mxu0 0.0
      %6577 = vmatpush1.xpose.msra.mxu0 0.0
      %6578 = vmatprep.subr.mxu0 0.0
      %6579 = vmatpush1.xpose.msra.mxu0 0.0
      %6580 = vmatprep.subr.mxu0 0.0
      %6581 = vmatpush1.xpose.msra.mxu0 0.0
      %6582 = vmatprep.subr.mxu0 0.0
      %6583 = vmatpush1.xpose.msra.mxu0 0.0
      %6584 = vmatprep.subr.mxu0 0.0
      %6585 = vmatpush1.xpose.msra.mxu0 0.0
      %6586 = vmatprep.subr.mxu0 0.0
      %6587 = vmatpush1.xpose.msra.mxu0 0.0
      %6588 = vmatprep.subr.mxu0 0.0
      %6589 = vmatpush1.xpose.msra.mxu0 0.0
      %6590 = vmatprep.subr.mxu0 0.0
      %6591 = vmatpush1.xpose.msra.mxu0 0.0
      %6592 = vmatprep.subr.mxu0 0.0
      %6593 = vmatpush1.xpose.msra.mxu0 0.0
      %6594 = vmatprep.subr.mxu0 0.0
      %6595 = vmatpush1.xpose.msra.mxu0 0.0
      %6596 = vmatprep.subr.mxu0 0.0
      %6597 = vmatpush1.xpose.msra.mxu0 0.0
      %6598 = vmatprep.subr.mxu0 0.0
      %6599 = vmatpush1.xpose.msra.mxu0 0.0
      %6600 = vmatprep.subr.mxu0 0.0
      %6601 = vmatpush1.xpose.msra.mxu0 0.0
      %6602 = vmatprep.subr.mxu0 0.0
      %6603 = vmatpush1.xpose.msra.mxu0 0.0
      %6604 = vmatprep.subr.mxu0 0.0
      %6605 = vmatpush1.xpose.msra.mxu0 0.0
      %6606 = vmatprep.subr.mxu0 0.0
      %6607 = vmatpush1.xpose.msra.mxu0 0.0
      %6608 = vmatprep.subr.mxu0 0.0
      %6609 = vmatpush1.xpose.msra.mxu0 0.0
      %6610 = vmatprep.subr.mxu0 0.0
      %6611 = vmatpush1.xpose.msra.mxu0 0.0
      %6612 = vmatprep.subr.mxu0 0.0
      %6613 = vmatpush1.xpose.msra.mxu0 0.0
      %6614 = vmatprep.mubr.f32.mxu0 0.0
      %6615 = vmatmul.mubr.f32.gmra.mrb[0].mxu0 %v6546
      %v6616 = vpop.f32.mrb[0].mxu0
      %v6617 = vadd.f32 0.0, %v6616
      %v6618 = vpop.f32.mrb[0].mxu0
      %6619 = vdwg.mxu0
      %v6620 = vmul.f32 %v6617, 0.35355338
      %v6621 = vadd.f32 %v6620, %v1075
      %v6622 = vsel %vm1200, %v6621, -inf
      %6623 = vmax.xlane.f32.xlu0 %v6622
      %v6624 = vpop.xlane.xlu0 %6623
      %v6625 = vsub.f32 %v6621, %v6624
      %v6626 = vmul.f32 %v6625, 1.442695
      %v6627 = vpow.pop %v6626
      %v6628 = vsel %vm1200, %v6627, 0.0
      %6629 = vadd.xlane.f32.xlu0 %v6628
      %v6630 = vpop.xlane.xlu0 %6629
      %v6631 = vrcp.pop %v6630
      %v6632 = vmul.f32 %v6627, %v6631
      %6633 = vrot.lane.b32.xlu0 %v6039, 40
      %v6634 = vpop.permute.xlu0 %6633
      %v6637 = vsel %vm1200, %v6632, 0
      %6639 = vmatprep.subr.mxu0 0.0
      %6640 = vmatpush1.msra.mxu0 %v6634
      %6641 = vmatprep.subr.mxu0 0.0
      %6642 = vmatpush1.msra.mxu0 0.0
      %6643 = vmatprep.subr.mxu0 0.0
      %6644 = vmatpush1.msra.mxu0 0.0
      %6645 = vmatprep.subr.mxu0 0.0
      %6646 = vmatpush1.msra.mxu0 0.0
      %6647 = vmatprep.subr.mxu0 0.0
      %6648 = vmatpush1.msra.mxu0 0.0
      %6649 = vmatprep.subr.mxu0 0.0
      %6650 = vmatpush1.msra.mxu0 0.0
      %6651 = vmatprep.subr.mxu0 0.0
      %6652 = vmatpush1.msra.mxu0 0.0
      %6653 = vmatprep.subr.mxu0 0.0
      %6654 = vmatpush1.msra.mxu0 0.0
      %6655 = vmatprep.subr.mxu0 0.0
      %6656 = vmatpush1.msra.mxu0 0.0
      %6657 = vmatprep.subr.mxu0 0.0
      %6658 = vmatpush1.msra.mxu0 0.0
      %6659 = vmatprep.subr.mxu0 0.0
      %6660 = vmatpush1.msra.mxu0 0.0
      %6661 = vmatprep.subr.mxu0 0.0
      %6662 = vmatpush1.msra.mxu0 0.0
      %6663 = vmatprep.subr.mxu0 0.0
      %6664 = vmatpush1.msra.mxu0 0.0
      %6665 = vmatprep.subr.mxu0 0.0
      %6666 = vmatpush1.msra.mxu0 0.0
      %6667 = vmatprep.subr.mxu0 0.0
      %6668 = vmatpush1.msra.mxu0 0.0
      %6669 = vmatprep.subr.mxu0 0.0
      %6670 = vmatpush1.msra.mxu0 0.0
      %6671 = vmatprep.subr.mxu0 0.0
      %6672 = vmatpush1.msra.mxu0 0.0
      %6673 = vmatprep.subr.mxu0 0.0
      %6674 = vmatpush1.msra.mxu0 0.0
      %6675 = vmatprep.subr.mxu0 0.0
      %6676 = vmatpush1.msra.mxu0 0.0
      %6677 = vmatprep.subr.mxu0 0.0
      %6678 = vmatpush1.msra.mxu0 0.0
      %6679 = vmatprep.subr.mxu0 0.0
      %6680 = vmatpush1.msra.mxu0 0.0
      %6681 = vmatprep.subr.mxu0 0.0
      %6682 = vmatpush1.msra.mxu0 0.0
      %6683 = vmatprep.subr.mxu0 0.0
      %6684 = vmatpush1.msra.mxu0 0.0
      %6685 = vmatprep.subr.mxu0 0.0
      %6686 = vmatpush1.msra.mxu0 0.0
      %6687 = vmatprep.subr.mxu0 0.0
      %6688 = vmatpush1.msra.mxu0 0.0
      %6689 = vmatprep.subr.mxu0 0.0
      %6690 = vmatpush1.msra.mxu0 0.0
      %6691 = vmatprep.subr.mxu0 0.0
      %6692 = vmatpush1.msra.mxu0 0.0
      %6693 = vmatprep.subr.mxu0 0.0
      %6694 = vmatpush1.msra.mxu0 0.0
      %6695 = vmatprep.subr.mxu0 0.0
      %6696 = vmatpush1.msra.mxu0 0.0
      %6697 = vmatprep.subr.mxu0 0.0
      %6698 = vmatpush1.msra.mxu0 0.0
      %6699 = vmatprep.subr.mxu0 0.0
      %6700 = vmatpush1.msra.mxu0 0.0
      %6701 = vmatprep.subr.mxu0 0.0
      %6702 = vmatpush1.msra.mxu0 0.0
      %6703 = vmatprep.mubr.f32.mxu0 0.0
      %6704 = vmatmul.mubr.f32.gmra.mrb[0].mxu0 %v6637
      %v6705 = vpop.f32.mrb[0].mxu0
      %v6706 = vadd.f32 0.0, %v6705
      %v6707 = vpop.f32.mrb[0].mxu0
      %6708 = vdwg.mxu0
      %6710 = vrot.lane.b32.xlu0 %v6372, 8
      %v6711 = vpop.permute.xlu0 %6710
      %6714 = vrot.lane.b32.xlu0 %v6539, 16
      %v6715 = vpop.permute.xlu0 %6714
      %6718 = vrot.lane.b32.xlu0 %v6706, 24
      %v6719 = vpop.permute.xlu0 %6718
      %v6721 = vsel %vm1200, %v6205, %v6711
      %v6722 = vsel %vm1288, %v6721, %v6715
      %v6723 = vsel %vm981, %v6722, %v6719
      %s6724 = scalar_lea.vmem %s16, 96
      %v6725 = vld [vmem:[%s6724] sm:$0xff]
      %v6726 = vld [vmem:[%s6724 + $0x8] sm:$0xff]
      %v6727 = vld [vmem:[%s6724 + $0x10] sm:$0xff]
      %v6728 = vld [vmem:[%s6724 + $0x18] sm:$0xff]
      %s6729 = scalar_lea.vmem %s17, 3
      %v6730 = vld [vmem:[%s6729] sm:$0x1]
      %v6732 = vlaneseq
      %v6733 = vshrl.u32 %v6732, 7
      %v6734 = vsub.s32 0, %v6733
      %v6735 = vrot.slane %v6730, %v6734
      %v6738 = vsel %vm966, %v6723, 0
      %6740 = vmatprep.subr.mxu0 0.0
      %6741 = vmatpush1.msra.mxu0 %v6725
      %6742 = vmatprep.subr.mxu0 0.0
      %6743 = vmatpush1.msra.mxu0 %v6726
      %6744 = vmatprep.subr.mxu0 0.0
      %6745 = vmatpush1.msra.mxu0 %v6727
      %6746 = vmatprep.subr.mxu0 0.0
      %6747 = vmatpush1.msra.mxu0 %v6728
      %6748 = vmatprep.subr.mxu0 0.0
      %6749 = vmatpush1.msra.mxu0 0.0
      %6750 = vmatprep.subr.mxu0 0.0
      %6751 = vmatpush1.msra.mxu0 0.0
      %6752 = vmatprep.subr.mxu0 0.0
      %6753 = vmatpush1.msra.mxu0 0.0
      %6754 = vmatprep.subr.mxu0 0.0
      %6755 = vmatpush1.msra.mxu0 0.0
      %6756 = vmatprep.subr.mxu0 0.0
      %6757 = vmatpush1.msra.mxu0 0.0
      %6758 = vmatprep.subr.mxu0 0.0
      %6759 = vmatpush1.msra.mxu0 0.0
      %6760 = vmatprep.subr.mxu0 0.0
      %6761 = vmatpush1.msra.mxu0 0.0
      %6762 = vmatprep.subr.mxu0 0.0
      %6763 = vmatpush1.msra.mxu0 0.0
      %6764 = vmatprep.subr.mxu0 0.0
      %6765 = vmatpush1.msra.mxu0 0.0
      %6766 = vmatprep.subr.mxu0 0.0
      %6767 = vmatpush1.msra.mxu0 0.0
      %6768 = vmatprep.subr.mxu0 0.0
      %6769 = vmatpush1.msra.mxu0 0.0
      %6770 = vmatprep.subr.mxu0 0.0
      %6771 = vmatpush1.msra.mxu0 0.0
      %6772 = vmatprep.subr.mxu0 0.0
      %6773 = vmatpush1.msra.mxu0 0.0
      %6774 = vmatprep.subr.mxu0 0.0
      %6775 = vmatpush1.msra.mxu0 0.0
      %6776 = vmatprep.subr.mxu0 0.0
      %6777 = vmatpush1.msra.mxu0 0.0
      %6778 = vmatprep.subr.mxu0 0.0
      %6779 = vmatpush1.msra.mxu0 0.0
      %6780 = vmatprep.subr.mxu0 0.0
      %6781 = vmatpush1.msra.mxu0 0.0
      %6782 = vmatprep.subr.mxu0 0.0
      %6783 = vmatpush1.msra.mxu0 0.0
      %6784 = vmatprep.subr.mxu0 0.0
      %6785 = vmatpush1.msra.mxu0 0.0
      %6786 = vmatprep.subr.mxu0 0.0
      %6787 = vmatpush1.msra.mxu0 0.0
      %6788 = vmatprep.subr.mxu0 0.0
      %6789 = vmatpush1.msra.mxu0 0.0
      %6790 = vmatprep.subr.mxu0 0.0
      %6791 = vmatpush1.msra.mxu0 0.0
      %6792 = vmatprep.subr.mxu0 0.0
      %6793 = vmatpush1.msra.mxu0 0.0
      %6794 = vmatprep.subr.mxu0 0.0
      %6795 = vmatpush1.msra.mxu0 0.0
      %6796 = vmatprep.subr.mxu0 0.0
      %6797 = vmatpush1.msra.mxu0 0.0
      %6798 = vmatprep.subr.mxu0 0.0
      %6799 = vmatpush1.msra.mxu0 0.0
      %6800 = vmatprep.subr.mxu0 0.0
      %6801 = vmatpush1.msra.mxu0 0.0
      %6802 = vmatprep.subr.mxu0 0.0
      %6803 = vmatpush1.msra.mxu0 0.0
      %6804 = vmatprep.mubr.f32.mxu0 0.0
      %6805 = vmatmul.mubr.f32.gmra.mrb[0].mxu0 %v6738
      %v6806 = vpop.f32.mrb[0].mxu0
      %v6807 = vadd.f32 %v6735, %v6806
      %v6808 = vpop.f32.mrb[0].mxu0
      %6809 = vdwg.mxu0
      %v6810 = vadd.f32 %v5955, %v6807
      %s6811 = scalar_lea.vmem %s18, 3
      %v6812 = vld [vmem:[%s6811] sm:$0x1]
      %s6813 = scalar_lea.vmem %s19, 3
      %v6814 = vld [vmem:[%s6813] sm:$0x1]
      %v6815 = vsel %vm966, %v6810, 0.0
      %6816 = vadd.xlane.f32.xlu0 %v6815
      %v6817 = vpop.xlane.xlu0 %6816
      %v6818 = vmul.f32 %v6817, %v2142
      %v6819 = vsub.f32 %v6810, %v6818
      %v6820 = vmul.f32 %v6819, %v6819
      %v6821 = vsel %vm966, %v6820, 0.0
      %6822 = vadd.xlane.f32.xlu0 %v6821
      %v6823 = vpop.xlane.xlu0 %6822
      %v6824 = vmul.f32 %v6823, %v2142
      %v6825 = vadd.f32 %v6824, 1e-05
      %v6826 = vrsqrt.pop %v6825
      %v6827 = vmul.f32 %v6819, %v6826
      %v6829 = vlaneseq
      %v6830 = vshrl.u32 %v6829, 7
      %v6831 = vsub.s32 0, %v6830
      %v6832 = vrot.slane %v6812, %v6831
      %v6834 = vmul.f32 %v6827, %v6832
      %v6836 = vlaneseq
      %v6837 = vshrl.u32 %v6836, 7
      %v6838 = vsub.s32 0, %v6837
      %v6839 = vrot.slane %v6814, %v6838
      %v6841 = vadd.f32 %v6834, %v6839
      %s6842 = scalar_lea.vmem %s22, 96
      %v6843 = vld [vmem:[%s6842] sm:$0xff]
      %v6844 = vld [vmem:[%s6842 + $0x8] sm:$0xff]
      %v6845 = vld [vmem:[%s6842 + $0x10] sm:$0xff]
      %v6846 = vld [vmem:[%s6842 + $0x18] sm:$0xff]
      %s6847 = scalar_lea.vmem %s23, 3
      %v6848 = vld [vmem:[%s6847] sm:$0x1]
      %v6850 = vlaneseq
      %v6851 = vshrl.u32 %v6850, 7
      %v6852 = vsub.s32 0, %v6851
      %v6853 = vrot.slane %v6848, %v6852
      %v6856 = vsel %vm966, %v6841, 0
      %6858 = vmatprep.subr.mxu0 0.0
      %6859 = vmatpush1.msra.mxu0 %v6843
      %6860 = vmatprep.subr.mxu0 0.0
      %6861 = vmatpush1.msra.mxu0 %v6844
      %6862 = vmatprep.subr.mxu0 0.0
      %6863 = vmatpush1.msra.mxu0 %v6845
      %6864 = vmatprep.subr.mxu0 0.0
      %6865 = vmatpush1.msra.mxu0 %v6846
      %6866 = vmatprep.subr.mxu0 0.0
      %6867 = vmatpush1.msra.mxu0 0.0
      %6868 = vmatprep.subr.mxu0 0.0
      %6869 = vmatpush1.msra.mxu0 0.0
      %6870 = vmatprep.subr.mxu0 0.0
      %6871 = vmatpush1.msra.mxu0 0.0
      %6872 = vmatprep.subr.mxu0 0.0
      %6873 = vmatpush1.msra.mxu0 0.0
      %6874 = vmatprep.subr.mxu0 0.0
      %6875 = vmatpush1.msra.mxu0 0.0
      %6876 = vmatprep.subr.mxu0 0.0
      %6877 = vmatpush1.msra.mxu0 0.0
      %6878 = vmatprep.subr.mxu0 0.0
      %6879 = vmatpush1.msra.mxu0 0.0
      %6880 = vmatprep.subr.mxu0 0.0
      %6881 = vmatpush1.msra.mxu0 0.0
      %6882 = vmatprep.subr.mxu0 0.0
      %6883 = vmatpush1.msra.mxu0 0.0
      %6884 = vmatprep.subr.mxu0 0.0
      %6885 = vmatpush1.msra.mxu0 0.0
      %6886 = vmatprep.subr.mxu0 0.0
      %6887 = vmatpush1.msra.mxu0 0.0
      %6888 = vmatprep.subr.mxu0 0.0
      %6889 = vmatpush1.msra.mxu0 0.0
      %6890 = vmatprep.subr.mxu0 0.0
      %6891 = vmatpush1.msra.mxu0 0.0
      %6892 = vmatprep.subr.mxu0 0.0
      %6893 = vmatpush1.msra.mxu0 0.0
      %6894 = vmatprep.subr.mxu0 0.0
      %6895 = vmatpush1.msra.mxu0 0.0
      %6896 = vmatprep.subr.mxu0 0.0
      %6897 = vmatpush1.msra.mxu0 0.0
      %6898 = vmatprep.subr.mxu0 0.0
      %6899 = vmatpush1.msra.mxu0 0.0
      %6900 = vmatprep.subr.mxu0 0.0
      %6901 = vmatpush1.msra.mxu0 0.0
      %6902 = vmatprep.subr.mxu0 0.0
      %6903 = vmatpush1.msra.mxu0 0.0
      %6904 = vmatprep.subr.mxu0 0.0
      %6905 = vmatpush1.msra.mxu0 0.0
      %6906 = vmatprep.subr.mxu0 0.0
      %6907 = vmatpush1.msra.mxu0 0.0
      %6908 = vmatprep.subr.mxu0 0.0
      %6909 = vmatpush1.msra.mxu0 0.0
      %6910 = vmatprep.subr.mxu0 0.0
      %6911 = vmatpush1.msra.mxu0 0.0
      %6912 = vmatprep.subr.mxu0 0.0
      %6913 = vmatpush1.msra.mxu0 0.0
      %6914 = vmatprep.subr.mxu0 0.0
      %6915 = vmatpush1.msra.mxu0 0.0
      %6916 = vmatprep.subr.mxu0 0.0
      %6917 = vmatpush1.msra.mxu0 0.0
      %6918 = vmatprep.subr.mxu0 0.0
      %6919 = vmatpush1.msra.mxu0 0.0
      %6920 = vmatprep.subr.mxu0 0.0
      %6921 = vmatpush1.msra.mxu0 0.0
      %6922 = vmatprep.mubr.f32.mxu0 0.0
      %6923 = vmatmul.mubr.f32.gmra.mrb[0].mxu0 %v6856
      %v6924 = vpop.f32.mrb[0].mxu0
      %v6925 = vadd.f32 %v6853, %v6924
      %v6926 = vpop.f32.mrb[0].mxu0
      %6927 = vdwg.mxu0
      %v6928 = vmax.f32 %v6925, 0.0
      %s6929 = scalar_lea.vmem %s24, 192
      %v6930 = vld [vmem:[%s6929] sm:$0xff]
      %v6931 = vld [vmem:[%s6929 + $0x8] sm:$0xff]
      %v6932 = vld [vmem:[%s6929 + $0x10] sm:$0xff]
      %v6933 = vld [vmem:[%s6929 + $0x18] sm:$0xff]
      %v6934 = vld [vmem:[%s6929 + $0x20] sm:$0xff]
      %v6935 = vld [vmem:[%s6929 + $0x28] sm:$0xff]
      %v6936 = vld [vmem:[%s6929 + $0x30] sm:$0xff]
      %v6937 = vld [vmem:[%s6929 + $0x38] sm:$0xff]
      %s6938 = scalar_lea.vmem %s25, 3
      %v6939 = vld [vmem:[%s6938] sm:$0x1]
      %v6941 = vlaneseq
      %v6942 = vshrl.u32 %v6941, 7
      %v6943 = vsub.s32 0, %v6942
      %v6944 = vrot.slane %v6939, %v6943
      %v6947 = vsel %vm2288, %v6928, 0
      %6949 = vmatprep.subr.mxu0 0.0
      %6950 = vmatpush1.msra.mxu0 %v6930
      %6951 = vmatprep.subr.mxu0 0.0
      %6952 = vmatpush1.msra.mxu0 %v6931
      %6953 = vmatprep.subr.mxu0 0.0
      %6954 = vmatpush1.msra.mxu0 %v6932
      %6955 = vmatprep.subr.mxu0 0.0
      %6956 = vmatpush1.msra.mxu0 %v6933
      %6957 = vmatprep.subr.mxu0 0.0
      %6958 = vmatpush1.msra.mxu0 %v6934
      %6959 = vmatprep.subr.mxu0 0.0
      %6960 = vmatpush1.msra.mxu0 %v6935
      %6961 = vmatprep.subr.mxu0 0.0
      %6962 = vmatpush1.msra.mxu0 %v6936
      %6963 = vmatprep.subr.mxu0 0.0
      %6964 = vmatpush1.msra.mxu0 %v6937
      %6965 = vmatprep.subr.mxu0 0.0
      %6966 = vmatpush1.msra.mxu0 0.0
      %6967 = vmatprep.subr.mxu0 0.0
      %6968 = vmatpush1.msra.mxu0 0.0
      %6969 = vmatprep.subr.mxu0 0.0
      %6970 = vmatpush1.msra.mxu0 0.0
      %6971 = vmatprep.subr.mxu0 0.0
      %6972 = vmatpush1.msra.mxu0 0.0
      %6973 = vmatprep.subr.mxu0 0.0
      %6974 = vmatpush1.msra.mxu0 0.0
      %6975 = vmatprep.subr.mxu0 0.0
      %6976 = vmatpush1.msra.mxu0 0.0
      %6977 = vmatprep.subr.mxu0 0.0
      %6978 = vmatpush1.msra.mxu0 0.0
      %6979 = vmatprep.subr.mxu0 0.0
      %6980 = vmatpush1.msra.mxu0 0.0
      %6981 = vmatprep.subr.mxu0 0.0
      %6982 = vmatpush1.msra.mxu0 0.0
      %6983 = vmatprep.subr.mxu0 0.0
      %6984 = vmatpush1.msra.mxu0 0.0
      %6985 = vmatprep.subr.mxu0 0.0
      %6986 = vmatpush1.msra.mxu0 0.0
      %6987 = vmatprep.subr.mxu0 0.0
      %6988 = vmatpush1.msra.mxu0 0.0
      %6989 = vmatprep.subr.mxu0 0.0
      %6990 = vmatpush1.msra.mxu0 0.0
      %6991 = vmatprep.subr.mxu0 0.0
      %6992 = vmatpush1.msra.mxu0 0.0
      %6993 = vmatprep.subr.mxu0 0.0
      %6994 = vmatpush1.msra.mxu0 0.0
      %6995 = vmatprep.subr.mxu0 0.0
      %6996 = vmatpush1.msra.mxu0 0.0
      %6997 = vmatprep.subr.mxu0 0.0
      %6998 = vmatpush1.msra.mxu0 0.0
      %6999 = vmatprep.subr.mxu0 0.0
      %7000 = vmatpush1.msra.mxu0 0.0
      %7001 = vmatprep.subr.mxu0 0.0
      %7002 = vmatpush1.msra.mxu0 0.0
      %7003 = vmatprep.subr.mxu0 0.0
      %7004 = vmatpush1.msra.mxu0 0.0
      %7005 = vmatprep.subr.mxu0 0.0
      %7006 = vmatpush1.msra.mxu0 0.0
      %7007 = vmatprep.subr.mxu0 0.0
      %7008 = vmatpush1.msra.mxu0 0.0
      %7009 = vmatprep.subr.mxu0 0.0
      %7010 = vmatpush1.msra.mxu0 0.0
      %7011 = vmatprep.subr.mxu0 0.0
      %7012 = vmatpush1.msra.mxu0 0.0
      %7013 = vmatprep.mubr.f32.mxu0 0.0
      %7014 = vmatmul.mubr.f32.gmra.mrb[0].mxu0 %v6947
      %v7015 = vpop.f32.mrb[0].mxu0
      %v7016 = vadd.f32 %v6944, %v7015
      %v7017 = vpop.f32.mrb[0].mxu0
      %7018 = vdwg.mxu0
      %v7019 = vadd.f32 %v6841, %v7016
      %s7020 = scalar_lea.vmem %s20, 3
      %v7021 = vld [vmem:[%s7020] sm:$0x1]
      %s7022 = scalar_lea.vmem %s21, 3
      %v7023 = vld [vmem:[%s7022] sm:$0x1]
      %v7024 = vsel %vm966, %v7019, 0.0
      %7025 = vadd.xlane.f32.xlu0 %v7024
      %v7026 = vpop.xlane.xlu0 %7025
      %v7027 = vmul.f32 %v7026, %v2142
      %v7028 = vsub.f32 %v7019, %v7027
      %v7029 = vmul.f32 %v7028, %v7028
      %v7030 = vsel %vm966, %v7029, 0.0
      %7031 = vadd.xlane.f32.xlu0 %v7030
      %v7032 = vpop.xlane.xlu0 %7031
      %v7033 = vmul.f32 %v7032, %v2142
      %v7034 = vadd.f32 %v7033, 1e-05
      %v7035 = vrsqrt.pop %v7034
      %v7036 = vmul.f32 %v7028, %v7035
      %v7038 = vlaneseq
      %v7039 = vshrl.u32 %v7038, 7
      %v7040 = vsub.s32 0, %v7039
      %v7041 = vrot.slane %v7021, %v7040
      %v7043 = vmul.f32 %v7036, %v7041
      %v7045 = vlaneseq
      %v7046 = vshrl.u32 %v7045, 7
      %v7047 = vsub.s32 0, %v7046
      %v7048 = vrot.slane %v7023, %v7047
      %v7050 = vadd.f32 %v7043, %v7048
      %v7051 = vld [vmem:[#allocation4] sm:$0xff]
      %s7052 = scalar_lea.vmem %s14, 160
      %v7053 = vld [vmem:[%s7052] sm:$0xff]
      %v7054 = vld [vmem:[%s7052 + $0x8] sm:$0xff]
      %v7055 = vld [vmem:[%s7052 + $0x10] sm:$0xff]
      %v7056 = vld [vmem:[%s7052 + $0x18] sm:$0xff]
      %s7057 = scalar_lea.vmem %s15, 5
      %v7058 = vld [vmem:[%s7057] sm:$0x1]
      %v7060 = vlaneseq
      %v7061 = vshrl.u32 %v7060, 7
      %v7062 = vsub.s32 0, %v7061
      %v7063 = vrot.slane %v7058, %v7062
      %v7066 = vsel %vm966, %v7051, 0
      %7068 = vmatprep.subr.mxu0 0.0
      %7069 = vmatpush1.msra.mxu0 %v7053
      %7070 = vmatprep.subr.mxu0 0.0
      %7071 = vmatpush1.msra.mxu0 %v7054
      %7072 = vmatprep.subr.mxu0 0.0
      %7073 = vmatpush1.msra.mxu0 %v7055
      %7074 = vmatprep.subr.mxu0 0.0
      %7075 = vmatpush1.msra.mxu0 %v7056
      %7076 = vmatprep.subr.mxu0 0.0
      %7077 = vmatpush1.msra.mxu0 0.0
      %7078 = vmatprep.subr.mxu0 0.0
      %7079 = vmatpush1.msra.mxu0 0.0
      %7080 = vmatprep.subr.mxu0 0.0
      %7081 = vmatpush1.msra.mxu0 0.0
      %7082 = vmatprep.subr.mxu0 0.0
      %7083 = vmatpush1.msra.mxu0 0.0
      %7084 = vmatprep.subr.mxu0 0.0
      %7085 = vmatpush1.msra.mxu0 0.0
      %7086 = vmatprep.subr.mxu0 0.0
      %7087 = vmatpush1.msra.mxu0 0.0
      %7088 = vmatprep.subr.mxu0 0.0
      %7089 = vmatpush1.msra.mxu0 0.0
      %7090 = vmatprep.subr.mxu0 0.0
      %7091 = vmatpush1.msra.mxu0 0.0
      %7092 = vmatprep.subr.mxu0 0.0
      %7093 = vmatpush1.msra.mxu0 0.0
      %7094 = vmatprep.subr.mxu0 0.0
      %7095 = vmatpush1.msra.mxu0 0.0
      %7096 = vmatprep.subr.mxu0 0.0
      %7097 = vmatpush1.msra.mxu0 0.0
      %7098 = vmatprep.subr.mxu0 0.0
      %7099 = vmatpush1.msra.mxu0 0.0
      %7100 = vmatprep.subr.mxu0 0.0
      %7101 = vmatpush1.msra.mxu0 0.0
      %7102 = vmatprep.subr.mxu0 0.0
      %7103 = vmatpush1.msra.mxu0 0.0
      %7104 = vmatprep.subr.mxu0 0.0
      %7105 = vmatpush1.msra.mxu0 0.0
      %7106 = vmatprep.subr.mxu0 0.0
      %7107 = vmatpush1.msra.mxu0 0.0
      %7108 = vmatprep.subr.mxu0 0.0
      %7109 = vmatpush1.msra.mxu0 0.0
      %7110 = vmatprep.subr.mxu0 0.0
      %7111 = vmatpush1.msra.mxu0 0.0
      %7112 = vmatprep.subr.mxu0 0.0
      %7113 = vmatpush1.msra.mxu0 0.0
      %7114 = vmatprep.subr.mxu0 0.0
      %7115 = vmatpush1.msra.mxu0 0.0
      %7116 = vmatprep.subr.mxu0 0.0
      %7117 = vmatpush1.msra.mxu0 0.0
      %7118 = vmatprep.subr.mxu0 0.0
      %7119 = vmatpush1.msra.mxu0 0.0
      %7120 = vmatprep.subr.mxu0 0.0
      %7121 = vmatpush1.msra.mxu0 0.0
      %7122 = vmatprep.subr.mxu0 0.0
      %7123 = vmatpush1.msra.mxu0 0.0
      %7124 = vmatprep.subr.mxu0 0.0
      %7125 = vmatpush1.msra.mxu0 0.0
      %7126 = vmatprep.subr.mxu0 0.0
      %7127 = vmatpush1.msra.mxu0 0.0
      %7128 = vmatprep.subr.mxu0 0.0
      %7129 = vmatpush1.msra.mxu0 0.0
      %7130 = vmatprep.subr.mxu0 0.0
      %7131 = vmatpush1.msra.mxu0 0.0
      %7132 = vmatprep.mubr.f32.mxu0 0.0
      %7133 = vmatmul.mubr.f32.gmra.mrb[0].mxu0 %v7066
      %v7134 = vpop.f32.mrb[0].mxu0
      %v7135 = vadd.f32 %v7063, %v7134
      %v7136 = vpop.f32.mrb[0].mxu0
      %7137 = vdwg.mxu0
      %7139 = vrot.lane.b32.xlu0 %v7135, 96
      %v7140 = vpop.permute.xlu0 %7139
      %v7141 = vsel %vm1200, %v7135, 0
      %v7143 = vsel %vm1200, %v7140, 0
      %7145 = vmatprep.subr.mxu0 0.0
      %7146 = vmatpush1.xpose.msra.mxu0 %v7143
      %7147 = vmatprep.subr.mxu0 0.0
      %7148 = vmatpush1.xpose.msra.mxu0 0.0
      %7149 = vmatprep.subr.mxu0 0.0
      %7150 = vmatpush1.xpose.msra.mxu0 0.0
      %7151 = vmatprep.subr.mxu0 0.0
      %7152 = vmatpush1.xpose.msra.mxu0 0.0
      %7153 = vmatprep.subr.mxu0 0.0
      %7154 = vmatpush1.xpose.msra.mxu0 0.0
      %7155 = vmatprep.subr.mxu0 0.0
      %7156 = vmatpush1.xpose.msra.mxu0 0.0
      %7157 = vmatprep.subr.mxu0 0.0
      %7158 = vmatpush1.xpose.msra.mxu0 0.0
      %7159 = vmatprep.subr.mxu0 0.0
      %7160 = vmatpush1.xpose.msra.mxu0 0.0
      %7161 = vmatprep.subr.mxu0 0.0
      %7162 = vmatpush1.xpose.msra.mxu0 0.0
      %7163 = vmatprep.subr.mxu0 0.0
      %7164 = vmatpush1.xpose.msra.mxu0 0.0
      %7165 = vmatprep.subr.mxu0 0.0
      %7166 = vmatpush1.xpose.msra.mxu0 0.0
      %7167 = vmatprep.subr.mxu0 0.0
      %7168 = vmatpush1.xpose.msra.mxu0 0.0
      %7169 = vmatprep.subr.mxu0 0.0
      %7170 = vmatpush1.xpose.msra.mxu0 0.0
      %7171 = vmatprep.subr.mxu0 0.0
      %7172 = vmatpush1.xpose.msra.mxu0 0.0
      %7173 = vmatprep.subr.mxu0 0.0
      %7174 = vmatpush1.xpose.msra.mxu0 0.0
      %7175 = vmatprep.subr.mxu0 0.0
      %7176 = vmatpush1.xpose.msra.mxu0 0.0
      %7177 = vmatprep.subr.mxu0 0.0
      %7178 = vmatpush1.xpose.msra.mxu0 0.0
      %7179 = vmatprep.subr.mxu0 0.0
      %7180 = vmatpush1.xpose.msra.mxu0 0.0
      %7181 = vmatprep.subr.mxu0 0.0
      %7182 = vmatpush1.xpose.msra.mxu0 0.0
      %7183 = vmatprep.subr.mxu0 0.0
      %7184 = vmatpush1.xpose.msra.mxu0 0.0
      %7185 = vmatprep.subr.mxu0 0.0
      %7186 = vmatpush1.xpose.msra.mxu0 0.0
      %7187 = vmatprep.subr.mxu0 0.0
      %7188 = vmatpush1.xpose.msra.mxu0 0.0
      %7189 = vmatprep.subr.mxu0 0.0
      %7190 = vmatpush1.xpose.msra.mxu0 0.0
      %7191 = vmatprep.subr.mxu0 0.0
      %7192 = vmatpush1.xpose.msra.mxu0 0.0
      %7193 = vmatprep.subr.mxu0 0.0
      %7194 = vmatpush1.xpose.msra.mxu0 0.0
      %7195 = vmatprep.subr.mxu0 0.0
      %7196 = vmatpush1.xpose.msra.mxu0 0.0
      %7197 = vmatprep.subr.mxu0 0.0
      %7198 = vmatpush1.xpose.msra.mxu0 0.0
      %7199 = vmatprep.subr.mxu0 0.0
      %7200 = vmatpush1.xpose.msra.mxu0 0.0
      %7201 = vmatprep.subr.mxu0 0.0
      %7202 = vmatpush1.xpose.msra.mxu0 0.0
      %7203 = vmatprep.subr.mxu0 0.0
      %7204 = vmatpush1.xpose.msra.mxu0 0.0
      %7205 = vmatprep.subr.mxu0 0.0
      %7206 = vmatpush1.xpose.msra.mxu0 0.0
      %7207 = vmatprep.subr.mxu0 0.0
      %7208 = vmatpush1.xpose.msra.mxu0 0.0
      %7209 = vmatprep.mubr.f32.mxu0 0.0
      %7210 = vmatmul.mubr.f32.gmra.mrb[0].mxu0 %v7141
      %v7211 = vpop.f32.mrb[0].mxu0
      %v7212 = vadd.f32 0.0, %v7211
      %v7213 = vpop.f32.mrb[0].mxu0
      %7214 = vdwg.mxu0
      %v7215 = vmul.f32 %v7212, 0.35355338
      %v7216 = vadd.f32 %v7215, %v1077
      %v7217 = vsel %vm1200, %v7216, -inf
      %7218 = vmax.xlane.f32.xlu0 %v7217
      %v7219 = vpop.xlane.xlu0 %7218
      %v7220 = vsub.f32 %v7216, %v7219
      %v7221 = vmul.f32 %v7220, 1.442695
      %v7222 = vpow.pop %v7221
      %v7223 = vsel %vm1200, %v7222, 0.0
      %7224 = vadd.xlane.f32.xlu0 %v7223
      %v7225 = vpop.xlane.xlu0 %7224
      %v7226 = vrcp.pop %v7225
      %v7227 = vmul.f32 %v7222, %v7226
      %7228 = vrot.lane.b32.xlu0 %v7135, 64
      %v7229 = vpop.permute.xlu0 %7228
      %v7232 = vsel %vm1200, %v7227, 0
      %7234 = vmatprep.subr.mxu0 0.0
      %7235 = vmatpush1.msra.mxu0 %v7229
      %7236 = vmatprep.subr.mxu0 0.0
      %7237 = vmatpush1.msra.mxu0 0.0
      %7238 = vmatprep.subr.mxu0 0.0
      %7239 = vmatpush1.msra.mxu0 0.0
      %7240 = vmatprep.subr.mxu0 0.0
      %7241 = vmatpush1.msra.mxu0 0.0
      %7242 = vmatprep.subr.mxu0 0.0
      %7243 = vmatpush1.msra.mxu0 0.0
      %7244 = vmatprep.subr.mxu0 0.0
      %7245 = vmatpush1.msra.mxu0 0.0
      %7246 = vmatprep.subr.mxu0 0.0
      %7247 = vmatpush1.msra.mxu0 0.0
      %7248 = vmatprep.subr.mxu0 0.0
      %7249 = vmatpush1.msra.mxu0 0.0
      %7250 = vmatprep.subr.mxu0 0.0
      %7251 = vmatpush1.msra.mxu0 0.0
      %7252 = vmatprep.subr.mxu0 0.0
      %7253 = vmatpush1.msra.mxu0 0.0
      %7254 = vmatprep.subr.mxu0 0.0
      %7255 = vmatpush1.msra.mxu0 0.0
      %7256 = vmatprep.subr.mxu0 0.0
      %7257 = vmatpush1.msra.mxu0 0.0
      %7258 = vmatprep.subr.mxu0 0.0
      %7259 = vmatpush1.msra.mxu0 0.0
      %7260 = vmatprep.subr.mxu0 0.0
      %7261 = vmatpush1.msra.mxu0 0.0
      %7262 = vmatprep.subr.mxu0 0.0
      %7263 = vmatpush1.msra.mxu0 0.0
      %7264 = vmatprep.subr.mxu0 0.0
      %7265 = vmatpush1.msra.mxu0 0.0
      %7266 = vmatprep.subr.mxu0 0.0
      %7267 = vmatpush1.msra.mxu0 0.0
      %7268 = vmatprep.subr.mxu0 0.0
      %7269 = vmatpush1.msra.mxu0 0.0
      %7270 = vmatprep.subr.mxu0 0.0
      %7271 = vmatpush1.msra.mxu0 0.0
      %7272 = vmatprep.subr.mxu0 0.0
      %7273 = vmatpush1.msra.mxu0 0.0
      %7274 = vmatprep.subr.mxu0 0.0
      %7275 = vmatpush1.msra.mxu0 0.0
      %7276 = vmatprep.subr.mxu0 0.0
      %7277 = vmatpush1.msra.mxu0 0.0
      %7278 = vmatprep.subr.mxu0 0.0
      %7279 = vmatpush1.msra.mxu0 0.0
      %7280 = vmatprep.subr.mxu0 0.0
      %7281 = vmatpush1.msra.mxu0 0.0
      %7282 = vmatprep.subr.mxu0 0.0
      %7283 = vmatpush1.msra.mxu0 0.0
      %7284 = vmatprep.subr.mxu0 0.0
      %7285 = vmatpush1.msra.mxu0 0.0
      %7286 = vmatprep.subr.mxu0 0.0
      %7287 = vmatpush1.msra.mxu0 0.0
      %7288 = vmatprep.subr.mxu0 0.0
      %7289 = vmatpush1.msra.mxu0 0.0
      %7290 = vmatprep.subr.mxu0 0.0
      %7291 = vmatpush1.msra.mxu0 0.0
      %7292 = vmatprep.subr.mxu0 0.0
      %7293 = vmatpush1.msra.mxu0 0.0
      %7294 = vmatprep.subr.mxu0 0.0
      %7295 = vmatpush1.msra.mxu0 0.0
      %7296 = vmatprep.subr.mxu0 0.0
      %7297 = vmatpush1.msra.mxu0 0.0
      %7298 = vmatprep.mubr.f32.mxu0 0.0
      %7299 = vmatmul.mubr.f32.gmra.mrb[0].mxu0 %v7232
      %v7300 = vpop.f32.mrb[0].mxu0
      %v7301 = vadd.f32 0.0, %v7300
      %v7302 = vpop.f32.mrb[0].mxu0
      %7303 = vdwg.mxu0
      %7304 = vrot.lane.b32.xlu0 %v7135, 120
      %v7305 = vpop.permute.xlu0 %7304
      %7306 = vrot.lane.b32.xlu0 %v7135, 88
      %v7307 = vpop.permute.xlu0 %7306
      %v7308 = vsel %vm1200, %v7305, 0
      %v7310 = vsel %vm1200, %v7307, 0
      %7312 = vmatprep.subr.mxu0 0.0
      %7313 = vmatpush1.xpose.msra.mxu0 %v7310
      %7314 = vmatprep.subr.mxu0 0.0
      %7315 = vmatpush1.xpose.msra.mxu0 0.0
      %7316 = vmatprep.subr.mxu0 0.0
      %7317 = vmatpush1.xpose.msra.mxu0 0.0
      %7318 = vmatprep.subr.mxu0 0.0
      %7319 = vmatpush1.xpose.msra.mxu0 0.0
      %7320 = vmatprep.subr.mxu0 0.0
      %7321 = vmatpush1.xpose.msra.mxu0 0.0
      %7322 = vmatprep.subr.mxu0 0.0
      %7323 = vmatpush1.xpose.msra.mxu0 0.0
      %7324 = vmatprep.subr.mxu0 0.0
      %7325 = vmatpush1.xpose.msra.mxu0 0.0
      %7326 = vmatprep.subr.mxu0 0.0
      %7327 = vmatpush1.xpose.msra.mxu0 0.0
      %7328 = vmatprep.subr.mxu0 0.0
      %7329 = vmatpush1.xpose.msra.mxu0 0.0
      %7330 = vmatprep.subr.mxu0 0.0
      %7331 = vmatpush1.xpose.msra.mxu0 0.0
      %7332 = vmatprep.subr.mxu0 0.0
      %7333 = vmatpush1.xpose.msra.mxu0 0.0
      %7334 = vmatprep.subr.mxu0 0.0
      %7335 = vmatpush1.xpose.msra.mxu0 0.0
      %7336 = vmatprep.subr.mxu0 0.0
      %7337 = vmatpush1.xpose.msra.mxu0 0.0
      %7338 = vmatprep.subr.mxu0 0.0
      %7339 = vmatpush1.xpose.msra.mxu0 0.0
      %7340 = vmatprep.subr.mxu0 0.0
      %7341 = vmatpush1.xpose.msra.mxu0 0.0
      %7342 = vmatprep.subr.mxu0 0.0
      %7343 = vmatpush1.xpose.msra.mxu0 0.0
      %7344 = vmatprep.subr.mxu0 0.0
      %7345 = vmatpush1.xpose.msra.mxu0 0.0
      %7346 = vmatprep.subr.mxu0 0.0
      %7347 = vmatpush1.xpose.msra.mxu0 0.0
      %7348 = vmatprep.subr.mxu0 0.0
      %7349 = vmatpush1.xpose.msra.mxu0 0.0
      %7350 = vmatprep.subr.mxu0 0.0
      %7351 = vmatpush1.xpose.msra.mxu0 0.0
      %7352 = vmatprep.subr.mxu0 0.0
      %7353 = vmatpush1.xpose.msra.mxu0 0.0
      %7354 = vmatprep.subr.mxu0 0.0
      %7355 = vmatpush1.xpose.msra.mxu0 0.0
      %7356 = vmatprep.subr.mxu0 0.0
      %7357 = vmatpush1.xpose.msra.mxu0 0.0
      %7358 = vmatprep.subr.mxu0 0.0
      %7359 = vmatpush1.xpose.msra.mxu0 0.0
      %7360 = vmatprep.subr.mxu0 0.0
      %7361 = vmatpush1.xpose.msra.mxu0 0.0
      %7362 = vmatprep.subr.mxu0 0.0
      %7363 = vmatpush1.xpose.msra.mxu0 0.0
      %7364 = vmatprep.subr.mxu0 0.0
      %7365 = vmatpush1.xpose.msra.mxu0 0.0
      %7366 = vmatprep.subr.mxu0 0.0
      %7367 = vmatpush1.xpose.msra.mxu0 0.0
      %7368 = vmatprep.subr.mxu0 0.0
      %7369 = vmatpush1.xpose.msra.mxu0 0.0
      %7370 = vmatprep.subr.mxu0 0.0
      %7371 = vmatpush1.xpose.msra.mxu0 0.0
      %7372 = vmatprep.subr.mxu0 0.0
      %7373 = vmatpush1.xpose.msra.mxu0 0.0
      %7374 = vmatprep.subr.mxu0 0.0
      %7375 = vmatpush1.xpose.msra.mxu0 0.0
      %7376 = vmatprep.mubr.f32.mxu0 0.0
      %7377 = vmatmul.mubr.f32.gmra.mrb[0].mxu0 %v7308
      %v7378 = vpop.f32.mrb[0].mxu0
      %v7379 = vadd.f32 0.0, %v7378
      %v7380 = vpop.f32.mrb[0].mxu0
      %7381 = vdwg.mxu0
      %v7382 = vmul.f32 %v7379, 0.35355338
      %v7383 = vadd.f32 %v7382, %v1077
      %v7384 = vsel %vm1200, %v7383, -inf
      %7385 = vmax.xlane.f32.xlu0 %v7384
      %v7386 = vpop.xlane.xlu0 %7385
      %v7387 = vsub.f32 %v7383, %v7386
      %v7388 = vmul.f32 %v7387, 1.442695
      %v7389 = vpow.pop %v7388
      %v7390 = vsel %vm1200, %v7389, 0.0
      %7391 = vadd.xlane.f32.xlu0 %v7390
      %v7392 = vpop.xlane.xlu0 %7391
      %v7393 = vrcp.pop %v7392
      %v7394 = vmul.f32 %v7389, %v7393
      %7395 = vrot.lane.b32.xlu0 %v7135, 56
      %v7396 = vpop.permute.xlu0 %7395
      %v7399 = vsel %vm1200, %v7394, 0
      %7401 = vmatprep.subr.mxu0 0.0
      %7402 = vmatpush1.msra.mxu0 %v7396
      %7403 = vmatprep.subr.mxu0 0.0
      %7404 = vmatpush1.msra.mxu0 0.0
      %7405 = vmatprep.subr.mxu0 0.0
      %7406 = vmatpush1.msra.mxu0 0.0
      %7407 = vmatprep.subr.mxu0 0.0
      %7408 = vmatpush1.msra.mxu0 0.0
      %7409 = vmatprep.subr.mxu0 0.0
      %7410 = vmatpush1.msra.mxu0 0.0
      %7411 = vmatprep.subr.mxu0 0.0
      %7412 = vmatpush1.msra.mxu0 0.0
      %7413 = vmatprep.subr.mxu0 0.0
      %7414 = vmatpush1.msra.mxu0 0.0
      %7415 = vmatprep.subr.mxu0 0.0
      %7416 = vmatpush1.msra.mxu0 0.0
      %7417 = vmatprep.subr.mxu0 0.0
      %7418 = vmatpush1.msra.mxu0 0.0
      %7419 = vmatprep.subr.mxu0 0.0
      %7420 = vmatpush1.msra.mxu0 0.0
      %7421 = vmatprep.subr.mxu0 0.0
      %7422 = vmatpush1.msra.mxu0 0.0
      %7423 = vmatprep.subr.mxu0 0.0
      %7424 = vmatpush1.msra.mxu0 0.0
      %7425 = vmatprep.subr.mxu0 0.0
      %7426 = vmatpush1.msra.mxu0 0.0
      %7427 = vmatprep.subr.mxu0 0.0
      %7428 = vmatpush1.msra.mxu0 0.0
      %7429 = vmatprep.subr.mxu0 0.0
      %7430 = vmatpush1.msra.mxu0 0.0
      %7431 = vmatprep.subr.mxu0 0.0
      %7432 = vmatpush1.msra.mxu0 0.0
      %7433 = vmatprep.subr.mxu0 0.0
      %7434 = vmatpush1.msra.mxu0 0.0
      %7435 = vmatprep.subr.mxu0 0.0
      %7436 = vmatpush1.msra.mxu0 0.0
      %7437 = vmatprep.subr.mxu0 0.0
      %7438 = vmatpush1.msra.mxu0 0.0
      %7439 = vmatprep.subr.mxu0 0.0
      %7440 = vmatpush1.msra.mxu0 0.0
      %7441 = vmatprep.subr.mxu0 0.0
      %7442 = vmatpush1.msra.mxu0 0.0
      %7443 = vmatprep.subr.mxu0 0.0
      %7444 = vmatpush1.msra.mxu0 0.0
      %7445 = vmatprep.subr.mxu0 0.0
      %7446 = vmatpush1.msra.mxu0 0.0
      %7447 = vmatprep.subr.mxu0 0.0
      %7448 = vmatpush1.msra.mxu0 0.0
      %7449 = vmatprep.subr.mxu0 0.0
      %7450 = vmatpush1.msra.mxu0 0.0
      %7451 = vmatprep.subr.mxu0 0.0
      %7452 = vmatpush1.msra.mxu0 0.0
      %7453 = vmatprep.subr.mxu0 0.0
      %7454 = vmatpush1.msra.mxu0 0.0
      %7455 = vmatprep.subr.mxu0 0.0
      %7456 = vmatpush1.msra.mxu0 0.0
      %7457 = vmatprep.subr.mxu0 0.0
      %7458 = vmatpush1.msra.mxu0 0.0
      %7459 = vmatprep.subr.mxu0 0.0
      %7460 = vmatpush1.msra.mxu0 0.0
      %7461 = vmatprep.subr.mxu0 0.0
      %7462 = vmatpush1.msra.mxu0 0.0
      %7463 = vmatprep.subr.mxu0 0.0
      %7464 = vmatpush1.msra.mxu0 0.0
      %7465 = vmatprep.mubr.f32.mxu0 0.0
      %7466 = vmatmul.mubr.f32.gmra.mrb[0].mxu0 %v7399
      %v7467 = vpop.f32.mrb[0].mxu0
      %v7468 = vadd.f32 0.0, %v7467
      %v7469 = vpop.f32.mrb[0].mxu0
      %7470 = vdwg.mxu0
      %7471 = vrot.lane.b32.xlu0 %v7135, 112
      %v7472 = vpop.permute.xlu0 %7471
      %7473 = vrot.lane.b32.xlu0 %v7135, 80
      %v7474 = vpop.permute.xlu0 %7473
      %v7475 = vsel %vm1200, %v7472, 0
      %v7477 = vsel %vm1200, %v7474, 0
      %7479 = vmatprep.subr.mxu0 0.0
      %7480 = vmatpush1.xpose.msra.mxu0 %v7477
      %7481 = vmatprep.subr.mxu0 0.0
      %7482 = vmatpush1.xpose.msra.mxu0 0.0
      %7483 = vmatprep.subr.mxu0 0.0
      %7484 = vmatpush1.xpose.msra.mxu0 0.0
      %7485 = vmatprep.subr.mxu0 0.0
      %7486 = vmatpush1.xpose.msra.mxu0 0.0
      %7487 = vmatprep.subr.mxu0 0.0
      %7488 = vmatpush1.xpose.msra.mxu0 0.0
      %7489 = vmatprep.subr.mxu0 0.0
      %7490 = vmatpush1.xpose.msra.mxu0 0.0
      %7491 = vmatprep.subr.mxu0 0.0
      %7492 = vmatpush1.xpose.msra.mxu0 0.0
      %7493 = vmatprep.subr.mxu0 0.0
      %7494 = vmatpush1.xpose.msra.mxu0 0.0
      %7495 = vmatprep.subr.mxu0 0.0
      %7496 = vmatpush1.xpose.msra.mxu0 0.0
      %7497 = vmatprep.subr.mxu0 0.0
      %7498 = vmatpush1.xpose.msra.mxu0 0.0
      %7499 = vmatprep.subr.mxu0 0.0
      %7500 = vmatpush1.xpose.msra.mxu0 0.0
      %7501 = vmatprep.subr.mxu0 0.0
      %7502 = vmatpush1.xpose.msra.mxu0 0.0
      %7503 = vmatprep.subr.mxu0 0.0
      %7504 = vmatpush1.xpose.msra.mxu0 0.0
      %7505 = vmatprep.subr.mxu0 0.0
      %7506 = vmatpush1.xpose.msra.mxu0 0.0
      %7507 = vmatprep.subr.mxu0 0.0
      %7508 = vmatpush1.xpose.msra.mxu0 0.0
      %7509 = vmatprep.subr.mxu0 0.0
      %7510 = vmatpush1.xpose.msra.mxu0 0.0
      %7511 = vmatprep.subr.mxu0 0.0
      %7512 = vmatpush1.xpose.msra.mxu0 0.0
      %7513 = vmatprep.subr.mxu0 0.0
      %7514 = vmatpush1.xpose.msra.mxu0 0.0
      %7515 = vmatprep.subr.mxu0 0.0
      %7516 = vmatpush1.xpose.msra.mxu0 0.0
      %7517 = vmatprep.subr.mxu0 0.0
      %7518 = vmatpush1.xpose.msra.mxu0 0.0
      %7519 = vmatprep.subr.mxu0 0.0
      %7520 = vmatpush1.xpose.msra.mxu0 0.0
      %7521 = vmatprep.subr.mxu0 0.0
      %7522 = vmatpush1.xpose.msra.mxu0 0.0
      %7523 = vmatprep.subr.mxu0 0.0
      %7524 = vmatpush1.xpose.msra.mxu0 0.0
      %7525 = vmatprep.subr.mxu0 0.0
      %7526 = vmatpush1.xpose.msra.mxu0 0.0
      %7527 = vmatprep.subr.mxu0 0.0
      %7528 = vmatpush1.xpose.msra.mxu0 0.0
      %7529 = vmatprep.subr.mxu0 0.0
      %7530 = vmatpush1.xpose.msra.mxu0 0.0
      %7531 = vmatprep.subr.mxu0 0.0
      %7532 = vmatpush1.xpose.msra.mxu0 0.0
      %7533 = vmatprep.subr.mxu0 0.0
      %7534 = vmatpush1.xpose.msra.mxu0 0.0
      %7535 = vmatprep.subr.mxu0 0.0
      %7536 = vmatpush1.xpose.msra.mxu0 0.0
      %7537 = vmatprep.subr.mxu0 0.0
      %7538 = vmatpush1.xpose.msra.mxu0 0.0
      %7539 = vmatprep.subr.mxu0 0.0
      %7540 = vmatpush1.xpose.msra.mxu0 0.0
      %7541 = vmatprep.subr.mxu0 0.0
      %7542 = vmatpush1.xpose.msra.mxu0 0.0
      %7543 = vmatprep.mubr.f32.mxu0 0.0
      %7544 = vmatmul.mubr.f32.gmra.mrb[0].mxu0 %v7475
      %v7545 = vpop.f32.mrb[0].mxu0
      %v7546 = vadd.f32 0.0, %v7545
      %v7547 = vpop.f32.mrb[0].mxu0
      %7548 = vdwg.mxu0
      %v7549 = vmul.f32 %v7546, 0.35355338
      %v7550 = vadd.f32 %v7549, %v1077
      %v7551 = vsel %vm1200, %v7550, -inf
      %7552 = vmax.xlane.f32.xlu0 %v7551
      %v7553 = vpop.xlane.xlu0 %7552
      %v7554 = vsub.f32 %v7550, %v7553
      %v7555 = vmul.f32 %v7554, 1.442695
      %v7556 = vpow.pop %v7555
      %v7557 = vsel %vm1200, %v7556, 0.0
      %7558 = vadd.xlane.f32.xlu0 %v7557
      %v7559 = vpop.xlane.xlu0 %7558
      %v7560 = vrcp.pop %v7559
      %v7561 = vmul.f32 %v7556, %v7560
      %7562 = vrot.lane.b32.xlu0 %v7135, 48
      %v7563 = vpop.permute.xlu0 %7562
      %v7566 = vsel %vm1200, %v7561, 0
      %7568 = vmatprep.subr.mxu0 0.0
      %7569 = vmatpush1.msra.mxu0 %v7563
      %7570 = vmatprep.subr.mxu0 0.0
      %7571 = vmatpush1.msra.mxu0 0.0
      %7572 = vmatprep.subr.mxu0 0.0
      %7573 = vmatpush1.msra.mxu0 0.0
      %7574 = vmatprep.subr.mxu0 0.0
      %7575 = vmatpush1.msra.mxu0 0.0
      %7576 = vmatprep.subr.mxu0 0.0
      %7577 = vmatpush1.msra.mxu0 0.0
      %7578 = vmatprep.subr.mxu0 0.0
      %7579 = vmatpush1.msra.mxu0 0.0
      %7580 = vmatprep.subr.mxu0 0.0
      %7581 = vmatpush1.msra.mxu0 0.0
      %7582 = vmatprep.subr.mxu0 0.0
      %7583 = vmatpush1.msra.mxu0 0.0
      %7584 = vmatprep.subr.mxu0 0.0
      %7585 = vmatpush1.msra.mxu0 0.0
      %7586 = vmatprep.subr.mxu0 0.0
      %7587 = vmatpush1.msra.mxu0 0.0
      %7588 = vmatprep.subr.mxu0 0.0
      %7589 = vmatpush1.msra.mxu0 0.0
      %7590 = vmatprep.subr.mxu0 0.0
      %7591 = vmatpush1.msra.mxu0 0.0
      %7592 = vmatprep.subr.mxu0 0.0
      %7593 = vmatpush1.msra.mxu0 0.0
      %7594 = vmatprep.subr.mxu0 0.0
      %7595 = vmatpush1.msra.mxu0 0.0
      %7596 = vmatprep.subr.mxu0 0.0
      %7597 = vmatpush1.msra.mxu0 0.0
      %7598 = vmatprep.subr.mxu0 0.0
      %7599 = vmatpush1.msra.mxu0 0.0
      %7600 = vmatprep.subr.mxu0 0.0
      %7601 = vmatpush1.msra.mxu0 0.0
      %7602 = vmatprep.subr.mxu0 0.0
      %7603 = vmatpush1.msra.mxu0 0.0
      %7604 = vmatprep.subr.mxu0 0.0
      %7605 = vmatpush1.msra.mxu0 0.0
      %7606 = vmatprep.subr.mxu0 0.0
      %7607 = vmatpush1.msra.mxu0 0.0
      %7608 = vmatprep.subr.mxu0 0.0
      %7609 = vmatpush1.msra.mxu0 0.0
      %7610 = vmatprep.subr.mxu0 0.0
      %7611 = vmatpush1.msra.mxu0 0.0
      %7612 = vmatprep.subr.mxu0 0.0
      %7613 = vmatpush1.msra.mxu0 0.0
      %7614 = vmatprep.subr.mxu0 0.0
      %7615 = vmatpush1.msra.mxu0 0.0
      %7616 = vmatprep.subr.mxu0 0.0
      %7617 = vmatpush1.msra.mxu0 0.0
      %7618 = vmatprep.subr.mxu0 0.0
      %7619 = vmatpush1.msra.mxu0 0.0
      %7620 = vmatprep.subr.mxu0 0.0
      %7621 = vmatpush1.msra.mxu0 0.0
      %7622 = vmatprep.subr.mxu0 0.0
      %7623 = vmatpush1.msra.mxu0 0.0
      %7624 = vmatprep.subr.mxu0 0.0
      %7625 = vmatpush1.msra.mxu0 0.0
      %7626 = vmatprep.subr.mxu0 0.0
      %7627 = vmatpush1.msra.mxu0 0.0
      %7628 = vmatprep.subr.mxu0 0.0
      %7629 = vmatpush1.msra.mxu0 0.0
      %7630 = vmatprep.subr.mxu0 0.0
      %7631 = vmatpush1.msra.mxu0 0.0
      %7632 = vmatprep.mubr.f32.mxu0 0.0
      %7633 = vmatmul.mubr.f32.gmra.mrb[0].mxu0 %v7566
      %v7634 = vpop.f32.mrb[0].mxu0
      %v7635 = vadd.f32 0.0, %v7634
      %v7636 = vpop.f32.mrb[0].mxu0
      %7637 = vdwg.mxu0
      %7638 = vrot.lane.b32.xlu0 %v7135, 104
      %v7639 = vpop.permute.xlu0 %7638
      %7640 = vrot.lane.b32.xlu0 %v7135, 72
      %v7641 = vpop.permute.xlu0 %7640
      %v7642 = vsel %vm1200, %v7639, 0
      %v7644 = vsel %vm1200, %v7641, 0
      %7646 = vmatprep.subr.mxu0 0.0
      %7647 = vmatpush1.xpose.msra.mxu0 %v7644
      %7648 = vmatprep.subr.mxu0 0.0
      %7649 = vmatpush1.xpose.msra.mxu0 0.0
      %7650 = vmatprep.subr.mxu0 0.0
      %7651 = vmatpush1.xpose.msra.mxu0 0.0
      %7652 = vmatprep.subr.mxu0 0.0
      %7653 = vmatpush1.xpose.msra.mxu0 0.0
      %7654 = vmatprep.subr.mxu0 0.0
      %7655 = vmatpush1.xpose.msra.mxu0 0.0
      %7656 = vmatprep.subr.mxu0 0.0
      %7657 = vmatpush1.xpose.msra.mxu0 0.0
      %7658 = vmatprep.subr.mxu0 0.0
      %7659 = vmatpush1.xpose.msra.mxu0 0.0
      %7660 = vmatprep.subr.mxu0 0.0
      %7661 = vmatpush1.xpose.msra.mxu0 0.0
      %7662 = vmatprep.subr.mxu0 0.0
      %7663 = vmatpush1.xpose.msra.mxu0 0.0
      %7664 = vmatprep.subr.mxu0 0.0
      %7665 = vmatpush1.xpose.msra.mxu0 0.0
      %7666 = vmatprep.subr.mxu0 0.0
      %7667 = vmatpush1.xpose.msra.mxu0 0.0
      %7668 = vmatprep.subr.mxu0 0.0
      %7669 = vmatpush1.xpose.msra.mxu0 0.0
      %7670 = vmatprep.subr.mxu0 0.0
      %7671 = vmatpush1.xpose.msra.mxu0 0.0
      %7672 = vmatprep.subr.mxu0 0.0
      %7673 = vmatpush1.xpose.msra.mxu0 0.0
      %7674 = vmatprep.subr.mxu0 0.0
      %7675 = vmatpush1.xpose.msra.mxu0 0.0
      %7676 = vmatprep.subr.mxu0 0.0
      %7677 = vmatpush1.xpose.msra.mxu0 0.0
      %7678 = vmatprep.subr.mxu0 0.0
      %7679 = vmatpush1.xpose.msra.mxu0 0.0
      %7680 = vmatprep.subr.mxu0 0.0
      %7681 = vmatpush1.xpose.msra.mxu0 0.0
      %7682 = vmatprep.subr.mxu0 0.0
      %7683 = vmatpush1.xpose.msra.mxu0 0.0
      %7684 = vmatprep.subr.mxu0 0.0
      %7685 = vmatpush1.xpose.msra.mxu0 0.0
      %7686 = vmatprep.subr.mxu0 0.0
      %7687 = vmatpush1.xpose.msra.mxu0 0.0
      %7688 = vmatprep.subr.mxu0 0.0
      %7689 = vmatpush1.xpose.msra.mxu0 0.0
      %7690 = vmatprep.subr.mxu0 0.0
      %7691 = vmatpush1.xpose.msra.mxu0 0.0
      %7692 = vmatprep.subr.mxu0 0.0
      %7693 = vmatpush1.xpose.msra.mxu0 0.0
      %7694 = vmatprep.subr.mxu0 0.0
      %7695 = vmatpush1.xpose.msra.mxu0 0.0
      %7696 = vmatprep.subr.mxu0 0.0
      %7697 = vmatpush1.xpose.msra.mxu0 0.0
      %7698 = vmatprep.subr.mxu0 0.0
      %7699 = vmatpush1.xpose.msra.mxu0 0.0
      %7700 = vmatprep.subr.mxu0 0.0
      %7701 = vmatpush1.xpose.msra.mxu0 0.0
      %7702 = vmatprep.subr.mxu0 0.0
      %7703 = vmatpush1.xpose.msra.mxu0 0.0
      %7704 = vmatprep.subr.mxu0 0.0
      %7705 = vmatpush1.xpose.msra.mxu0 0.0
      %7706 = vmatprep.subr.mxu0 0.0
      %7707 = vmatpush1.xpose.msra.mxu0 0.0
      %7708 = vmatprep.subr.mxu0 0.0
      %7709 = vmatpush1.xpose.msra.mxu0 0.0
      %7710 = vmatprep.mubr.f32.mxu0 0.0
      %7711 = vmatmul.mubr.f32.gmra.mrb[0].mxu0 %v7642
      %v7712 = vpop.f32.mrb[0].mxu0
      %v7713 = vadd.f32 0.0, %v7712
      %v7714 = vpop.f32.mrb[0].mxu0
      %7715 = vdwg.mxu0
      %v7716 = vmul.f32 %v7713, 0.35355338
      %v7717 = vadd.f32 %v7716, %v1077
      %v7718 = vsel %vm1200, %v7717, -inf
      %7719 = vmax.xlane.f32.xlu0 %v7718
      %v7720 = vpop.xlane.xlu0 %7719
      %v7721 = vsub.f32 %v7717, %v7720
      %v7722 = vmul.f32 %v7721, 1.442695
      %v7723 = vpow.pop %v7722
      %v7724 = vsel %vm1200, %v7723, 0.0
      %7725 = vadd.xlane.f32.xlu0 %v7724
      %v7726 = vpop.xlane.xlu0 %7725
      %v7727 = vrcp.pop %v7726
      %v7728 = vmul.f32 %v7723, %v7727
      %7729 = vrot.lane.b32.xlu0 %v7135, 40
      %v7730 = vpop.permute.xlu0 %7729
      %v7733 = vsel %vm1200, %v7728, 0
      %7735 = vmatprep.subr.mxu0 0.0
      %7736 = vmatpush1.msra.mxu0 %v7730
      %7737 = vmatprep.subr.mxu0 0.0
      %7738 = vmatpush1.msra.mxu0 0.0
      %7739 = vmatprep.subr.mxu0 0.0
      %7740 = vmatpush1.msra.mxu0 0.0
      %7741 = vmatprep.subr.mxu0 0.0
      %7742 = vmatpush1.msra.mxu0 0.0
      %7743 = vmatprep.subr.mxu0 0.0
      %7744 = vmatpush1.msra.mxu0 0.0
      %7745 = vmatprep.subr.mxu0 0.0
      %7746 = vmatpush1.msra.mxu0 0.0
      %7747 = vmatprep.subr.mxu0 0.0
      %7748 = vmatpush1.msra.mxu0 0.0
      %7749 = vmatprep.subr.mxu0 0.0
      %7750 = vmatpush1.msra.mxu0 0.0
      %7751 = vmatprep.subr.mxu0 0.0
      %7752 = vmatpush1.msra.mxu0 0.0
      %7753 = vmatprep.subr.mxu0 0.0
      %7754 = vmatpush1.msra.mxu0 0.0
      %7755 = vmatprep.subr.mxu0 0.0
      %7756 = vmatpush1.msra.mxu0 0.0
      %7757 = vmatprep.subr.mxu0 0.0
      %7758 = vmatpush1.msra.mxu0 0.0
      %7759 = vmatprep.subr.mxu0 0.0
      %7760 = vmatpush1.msra.mxu0 0.0
      %7761 = vmatprep.subr.mxu0 0.0
      %7762 = vmatpush1.msra.mxu0 0.0
      %7763 = vmatprep.subr.mxu0 0.0
      %7764 = vmatpush1.msra.mxu0 0.0
      %7765 = vmatprep.subr.mxu0 0.0
      %7766 = vmatpush1.msra.mxu0 0.0
      %7767 = vmatprep.subr.mxu0 0.0
      %7768 = vmatpush1.msra.mxu0 0.0
      %7769 = vmatprep.subr.mxu0 0.0
      %7770 = vmatpush1.msra.mxu0 0.0
      %7771 = vmatprep.subr.mxu0 0.0
      %7772 = vmatpush1.msra.mxu0 0.0
      %7773 = vmatprep.subr.mxu0 0.0
      %7774 = vmatpush1.msra.mxu0 0.0
      %7775 = vmatprep.subr.mxu0 0.0
      %7776 = vmatpush1.msra.mxu0 0.0
      %7777 = vmatprep.subr.mxu0 0.0
      %7778 = vmatpush1.msra.mxu0 0.0
      %7779 = vmatprep.subr.mxu0 0.0
      %7780 = vmatpush1.msra.mxu0 0.0
      %7781 = vmatprep.subr.mxu0 0.0
      %7782 = vmatpush1.msra.mxu0 0.0
      %7783 = vmatprep.subr.mxu0 0.0
      %7784 = vmatpush1.msra.mxu0 0.0
      %7785 = vmatprep.subr.mxu0 0.0
      %7786 = vmatpush1.msra.mxu0 0.0
      %7787 = vmatprep.subr.mxu0 0.0
      %7788 = vmatpush1.msra.mxu0 0.0
      %7789 = vmatprep.subr.mxu0 0.0
      %7790 = vmatpush1.msra.mxu0 0.0
      %7791 = vmatprep.subr.mxu0 0.0
      %7792 = vmatpush1.msra.mxu0 0.0
      %7793 = vmatprep.subr.mxu0 0.0
      %7794 = vmatpush1.msra.mxu0 0.0
      %7795 = vmatprep.subr.mxu0 0.0
      %7796 = vmatpush1.msra.mxu0 0.0
      %7797 = vmatprep.subr.mxu0 0.0
      %7798 = vmatpush1.msra.mxu0 0.0
      %7799 = vmatprep.mubr.f32.mxu0 0.0
      %7800 = vmatmul.mubr.f32.gmra.mrb[0].mxu0 %v7733
      %v7801 = vpop.f32.mrb[0].mxu0
      %v7802 = vadd.f32 0.0, %v7801
      %v7803 = vpop.f32.mrb[0].mxu0
      %7804 = vdwg.mxu0
      %7806 = vrot.lane.b32.xlu0 %v7468, 8
      %v7807 = vpop.permute.xlu0 %7806
      %7810 = vrot.lane.b32.xlu0 %v7635, 16
      %v7811 = vpop.permute.xlu0 %7810
      %7814 = vrot.lane.b32.xlu0 %v7802, 24
      %v7815 = vpop.permute.xlu0 %7814
      %v7817 = vsel %vm1200, %v7301, %v7807
      %v7818 = vsel %vm1288, %v7817, %v7811
      %v7819 = vsel %vm981, %v7818, %v7815
      %s7820 = scalar_lea.vmem %s16, 160
      %v7821 = vld [vmem:[%s7820] sm:$0xff]
      %v7822 = vld [vmem:[%s7820 + $0x8] sm:$0xff]
      %v7823 = vld [vmem:[%s7820 + $0x10] sm:$0xff]
      %v7824 = vld [vmem:[%s7820 + $0x18] sm:$0xff]
      %s7825 = scalar_lea.vmem %s17, 5
      %v7826 = vld [vmem:[%s7825] sm:$0x1]
      %v7828 = vlaneseq
      %v7829 = vshrl.u32 %v7828, 7
      %v7830 = vsub.s32 0, %v7829
      %v7831 = vrot.slane %v7826, %v7830
      %v7834 = vsel %vm966, %v7819, 0
      %7836 = vmatprep.subr.mxu0 0.0
      %7837 = vmatpush1.msra.mxu0 %v7821
      %7838 = vmatprep.subr.mxu0 0.0
      %7839 = vmatpush1.msra.mxu0 %v7822
      %7840 = vmatprep.subr.mxu0 0.0
      %7841 = vmatpush1.msra.mxu0 %v7823
      %7842 = vmatprep.subr.mxu0 0.0
      %7843 = vmatpush1.msra.mxu0 %v7824
      %7844 = vmatprep.subr.mxu0 0.0
      %7845 = vmatpush1.msra.mxu0 0.0
      %7846 = vmatprep.subr.mxu0 0.0
      %7847 = vmatpush1.msra.mxu0 0.0
      %7848 = vmatprep.subr.mxu0 0.0
      %7849 = vmatpush1.msra.mxu0 0.0
      %7850 = vmatprep.subr.mxu0 0.0
      %7851 = vmatpush1.msra.mxu0 0.0
      %7852 = vmatprep.subr.mxu0 0.0
      %7853 = vmatpush1.msra.mxu0 0.0
      %7854 = vmatprep.subr.mxu0 0.0
      %7855 = vmatpush1.msra.mxu0 0.0
      %7856 = vmatprep.subr.mxu0 0.0
      %7857 = vmatpush1.msra.mxu0 0.0
      %7858 = vmatprep.subr.mxu0 0.0
      %7859 = vmatpush1.msra.mxu0 0.0
      %7860 = vmatprep.subr.mxu0 0.0
      %7861 = vmatpush1.msra.mxu0 0.0
      %7862 = vmatprep.subr.mxu0 0.0
      %7863 = vmatpush1.msra.mxu0 0.0
      %7864 = vmatprep.subr.mxu0 0.0
      %7865 = vmatpush1.msra.mxu0 0.0
      %7866 = vmatprep.subr.mxu0 0.0
      %7867 = vmatpush1.msra.mxu0 0.0
      %7868 = vmatprep.subr.mxu0 0.0
      %7869 = vmatpush1.msra.mxu0 0.0
      %7870 = vmatprep.subr.mxu0 0.0
      %7871 = vmatpush1.msra.mxu0 0.0
      %7872 = vmatprep.subr.mxu0 0.0
      %7873 = vmatpush1.msra.mxu0 0.0
      %7874 = vmatprep.subr.mxu0 0.0
      %7875 = vmatpush1.msra.mxu0 0.0
      %7876 = vmatprep.subr.mxu0 0.0
      %7877 = vmatpush1.msra.mxu0 0.0
      %7878 = vmatprep.subr.mxu0 0.0
      %7879 = vmatpush1.msra.mxu0 0.0
      %7880 = vmatprep.subr.mxu0 0.0
      %7881 = vmatpush1.msra.mxu0 0.0
      %7882 = vmatprep.subr.mxu0 0.0
      %7883 = vmatpush1.msra.mxu0 0.0
      %7884 = vmatprep.subr.mxu0 0.0
      %7885 = vmatpush1.msra.mxu0 0.0
      %7886 = vmatprep.subr.mxu0 0.0
      %7887 = vmatpush1.msra.mxu0 0.0
      %7888 = vmatprep.subr.mxu0 0.0
      %7889 = vmatpush1.msra.mxu0 0.0
      %7890 = vmatprep.subr.mxu0 0.0
      %7891 = vmatpush1.msra.mxu0 0.0
      %7892 = vmatprep.subr.mxu0 0.0
      %7893 = vmatpush1.msra.mxu0 0.0
      %7894 = vmatprep.subr.mxu0 0.0
      %7895 = vmatpush1.msra.mxu0 0.0
      %7896 = vmatprep.subr.mxu0 0.0
      %7897 = vmatpush1.msra.mxu0 0.0
      %7898 = vmatprep.subr.mxu0 0.0
      %7899 = vmatpush1.msra.mxu0 0.0
      %7900 = vmatprep.mubr.f32.mxu0 0.0
      %7901 = vmatmul.mubr.f32.gmra.mrb[0].mxu0 %v7834
      %v7902 = vpop.f32.mrb[0].mxu0
      %v7903 = vadd.f32 %v7831, %v7902
      %v7904 = vpop.f32.mrb[0].mxu0
      %7905 = vdwg.mxu0
      %v7906 = vadd.f32 %v7051, %v7903
      %s7907 = scalar_lea.vmem %s18, 5
      %v7908 = vld [vmem:[%s7907] sm:$0x1]
      %s7909 = scalar_lea.vmem %s19, 5
      %v7910 = vld [vmem:[%s7909] sm:$0x1]
      %v7911 = vsel %vm966, %v7906, 0.0
      %7912 = vadd.xlane.f32.xlu0 %v7911
      %v7913 = vpop.xlane.xlu0 %7912
      %v7914 = vmul.f32 %v7913, %v2142
      %v7915 = vsub.f32 %v7906, %v7914
      %v7916 = vmul.f32 %v7915, %v7915
      %v7917 = vsel %vm966, %v7916, 0.0
      %7918 = vadd.xlane.f32.xlu0 %v7917
      %v7919 = vpop.xlane.xlu0 %7918
      %v7920 = vmul.f32 %v7919, %v2142
      %v7921 = vadd.f32 %v7920, 1e-05
      %v7922 = vrsqrt.pop %v7921
      %v7923 = vmul.f32 %v7915, %v7922
      %v7925 = vlaneseq
      %v7926 = vshrl.u32 %v7925, 7
      %v7927 = vsub.s32 0, %v7926
      %v7928 = vrot.slane %v7908, %v7927
      %v7930 = vmul.f32 %v7923, %v7928
      %v7932 = vlaneseq
      %v7933 = vshrl.u32 %v7932, 7
      %v7934 = vsub.s32 0, %v7933
      %v7935 = vrot.slane %v7910, %v7934
      %v7937 = vadd.f32 %v7930, %v7935
      %s7938 = scalar_lea.vmem %s22, 160
      %v7939 = vld [vmem:[%s7938] sm:$0xff]
      %v7940 = vld [vmem:[%s7938 + $0x8] sm:$0xff]
      %v7941 = vld [vmem:[%s7938 + $0x10] sm:$0xff]
      %v7942 = vld [vmem:[%s7938 + $0x18] sm:$0xff]
      %s7943 = scalar_lea.vmem %s23, 5
      %v7944 = vld [vmem:[%s7943] sm:$0x1]
      %v7946 = vlaneseq
      %v7947 = vshrl.u32 %v7946, 7
      %v7948 = vsub.s32 0, %v7947
      %v7949 = vrot.slane %v7944, %v7948
      %v7952 = vsel %vm966, %v7937, 0
      %7954 = vmatprep.subr.mxu0 0.0
      %7955 = vmatpush1.msra.mxu0 %v7939
      %7956 = vmatprep.subr.mxu0 0.0
      %7957 = vmatpush1.msra.mxu0 %v7940
      %7958 = vmatprep.subr.mxu0 0.0
      %7959 = vmatpush1.msra.mxu0 %v7941
      %7960 = vmatprep.subr.mxu0 0.0
      %7961 = vmatpush1.msra.mxu0 %v7942
      %7962 = vmatprep.subr.mxu0 0.0
      %7963 = vmatpush1.msra.mxu0 0.0
      %7964 = vmatprep.subr.mxu0 0.0
      %7965 = vmatpush1.msra.mxu0 0.0
      %7966 = vmatprep.subr.mxu0 0.0
      %7967 = vmatpush1.msra.mxu0 0.0
      %7968 = vmatprep.subr.mxu0 0.0
      %7969 = vmatpush1.msra.mxu0 0.0
      %7970 = vmatprep.subr.mxu0 0.0
      %7971 = vmatpush1.msra.mxu0 0.0
      %7972 = vmatprep.subr.mxu0 0.0
      %7973 = vmatpush1.msra.mxu0 0.0
      %7974 = vmatprep.subr.mxu0 0.0
      %7975 = vmatpush1.msra.mxu0 0.0
      %7976 = vmatprep.subr.mxu0 0.0
      %7977 = vmatpush1.msra.mxu0 0.0
      %7978 = vmatprep.subr.mxu0 0.0
      %7979 = vmatpush1.msra.mxu0 0.0
      %7980 = vmatprep.subr.mxu0 0.0
      %7981 = vmatpush1.msra.mxu0 0.0
      %7982 = vmatprep.subr.mxu0 0.0
      %7983 = vmatpush1.msra.mxu0 0.0
      %7984 = vmatprep.subr.mxu0 0.0
      %7985 = vmatpush1.msra.mxu0 0.0
      %7986 = vmatprep.subr.mxu0 0.0
      %7987 = vmatpush1.msra.mxu0 0.0
      %7988 = vmatprep.subr.mxu0 0.0
      %7989 = vmatpush1.msra.mxu0 0.0
      %7990 = vmatprep.subr.mxu0 0.0
      %7991 = vmatpush1.msra.mxu0 0.0
      %7992 = vmatprep.subr.mxu0 0.0
      %7993 = vmatpush1.msra.mxu0 0.0
      %7994 = vmatprep.subr.mxu0 0.0
      %7995 = vmatpush1.msra.mxu0 0.0
      %7996 = vmatprep.subr.mxu0 0.0
      %7997 = vmatpush1.msra.mxu0 0.0
      %7998 = vmatprep.subr.mxu0 0.0
      %7999 = vmatpush1.msra.mxu0 0.0
      %8000 = vmatprep.subr.mxu0 0.0
      %8001 = vmatpush1.msra.mxu0 0.0
      %8002 = vmatprep.subr.mxu0 0.0
      %8003 = vmatpush1.msra.mxu0 0.0
      %8004 = vmatprep.subr.mxu0 0.0
      %8005 = vmatpush1.msra.mxu0 0.0
      %8006 = vmatprep.subr.mxu0 0.0
      %8007 = vmatpush1.msra.mxu0 0.0
      %8008 = vmatprep.subr.mxu0 0.0
      %8009 = vmatpush1.msra.mxu0 0.0
      %8010 = vmatprep.subr.mxu0 0.0
      %8011 = vmatpush1.msra.mxu0 0.0
      %8012 = vmatprep.subr.mxu0 0.0
      %8013 = vmatpush1.msra.mxu0 0.0
      %8014 = vmatprep.subr.mxu0 0.0
      %8015 = vmatpush1.msra.mxu0 0.0
      %8016 = vmatprep.subr.mxu0 0.0
      %8017 = vmatpush1.msra.mxu0 0.0
      %8018 = vmatprep.mubr.f32.mxu0 0.0
      %8019 = vmatmul.mubr.f32.gmra.mrb[0].mxu0 %v7952
      %v8020 = vpop.f32.mrb[0].mxu0
      %v8021 = vadd.f32 %v7949, %v8020
      %v8022 = vpop.f32.mrb[0].mxu0
      %8023 = vdwg.mxu0
      %v8024 = vmax.f32 %v8021, 0.0
      %s8025 = scalar_lea.vmem %s24, 320
      %v8026 = vld [vmem:[%s8025] sm:$0xff]
      %v8027 = vld [vmem:[%s8025 + $0x8] sm:$0xff]
      %v8028 = vld [vmem:[%s8025 + $0x10] sm:$0xff]
      %v8029 = vld [vmem:[%s8025 + $0x18] sm:$0xff]
      %v8030 = vld [vmem:[%s8025 + $0x20] sm:$0xff]
      %v8031 = vld [vmem:[%s8025 + $0x28] sm:$0xff]
      %v8032 = vld [vmem:[%s8025 + $0x30] sm:$0xff]
      %v8033 = vld [vmem:[%s8025 + $0x38] sm:$0xff]
      %s8034 = scalar_lea.vmem %s25, 5
      %v8035 = vld [vmem:[%s8034] sm:$0x1]
      %v8037 = vlaneseq
      %v8038 = vshrl.u32 %v8037, 7
      %v8039 = vsub.s32 0, %v8038
      %v8040 = vrot.slane %v8035, %v8039
      %v8043 = vsel %vm2288, %v8024, 0
      %8045 = vmatprep.subr.mxu0 0.0
      %8046 = vmatpush1.msra.mxu0 %v8026
      %8047 = vmatprep.subr.mxu0 0.0
      %8048 = vmatpush1.msra.mxu0 %v8027
      %8049 = vmatprep.subr.mxu0 0.0
      %8050 = vmatpush1.msra.mxu0 %v8028
      %8051 = vmatprep.subr.mxu0 0.0
      %8052 = vmatpush1.msra.mxu0 %v8029
      %8053 = vmatprep.subr.mxu0 0.0
      %8054 = vmatpush1.msra.mxu0 %v8030
      %8055 = vmatprep.subr.mxu0 0.0
      %8056 = vmatpush1.msra.mxu0 %v8031
      %8057 = vmatprep.subr.mxu0 0.0
      %8058 = vmatpush1.msra.mxu0 %v8032
      %8059 = vmatprep.subr.mxu0 0.0
      %8060 = vmatpush1.msra.mxu0 %v8033
      %8061 = vmatprep.subr.mxu0 0.0
      %8062 = vmatpush1.msra.mxu0 0.0
      %8063 = vmatprep.subr.mxu0 0.0
      %8064 = vmatpush1.msra.mxu0 0.0
      %8065 = vmatprep.subr.mxu0 0.0
      %8066 = vmatpush1.msra.mxu0 0.0
      %8067 = vmatprep.subr.mxu0 0.0
      %8068 = vmatpush1.msra.mxu0 0.0
      %8069 = vmatprep.subr.mxu0 0.0
      %8070 = vmatpush1.msra.mxu0 0.0
      %8071 = vmatprep.subr.mxu0 0.0
      %8072 = vmatpush1.msra.mxu0 0.0
      %8073 = vmatprep.subr.mxu0 0.0
      %8074 = vmatpush1.msra.mxu0 0.0
      %8075 = vmatprep.subr.mxu0 0.0
      %8076 = vmatpush1.msra.mxu0 0.0
      %8077 = vmatprep.subr.mxu0 0.0
      %8078 = vmatpush1.msra.mxu0 0.0
      %8079 = vmatprep.subr.mxu0 0.0
      %8080 = vmatpush1.msra.mxu0 0.0
      %8081 = vmatprep.subr.mxu0 0.0
      %8082 = vmatpush1.msra.mxu0 0.0
      %8083 = vmatprep.subr.mxu0 0.0
      %8084 = vmatpush1.msra.mxu0 0.0
      %8085 = vmatprep.subr.mxu0 0.0
      %8086 = vmatpush1.msra.mxu0 0.0
      %8087 = vmatprep.subr.mxu0 0.0
      %8088 = vmatpush1.msra.mxu0 0.0
      %8089 = vmatprep.subr.mxu0 0.0
      %8090 = vmatpush1.msra.mxu0 0.0
      %8091 = vmatprep.subr.mxu0 0.0
      %8092 = vmatpush1.msra.mxu0 0.0
      %8093 = vmatprep.subr.mxu0 0.0
      %8094 = vmatpush1.msra.mxu0 0.0
      %8095 = vmatprep.subr.mxu0 0.0
      %8096 = vmatpush1.msra.mxu0 0.0
      %8097 = vmatprep.subr.mxu0 0.0
      %8098 = vmatpush1.msra.mxu0 0.0
      %8099 = vmatprep.subr.mxu0 0.0
      %8100 = vmatpush1.msra.mxu0 0.0
      %8101 = vmatprep.subr.mxu0 0.0
      %8102 = vmatpush1.msra.mxu0 0.0
      %8103 = vmatprep.subr.mxu0 0.0
      %8104 = vmatpush1.msra.mxu0 0.0
      %8105 = vmatprep.subr.mxu0 0.0
      %8106 = vmatpush1.msra.mxu0 0.0
      %8107 = vmatprep.subr.mxu0 0.0
      %8108 = vmatpush1.msra.mxu0 0.0
      %8109 = vmatprep.mubr.f32.mxu0 0.0
      %8110 = vmatmul.mubr.f32.gmra.mrb[0].mxu0 %v8043
      %v8111 = vpop.f32.mrb[0].mxu0
      %v8112 = vadd.f32 %v8040, %v8111
      %v8113 = vpop.f32.mrb[0].mxu0
      %8114 = vdwg.mxu0
      %v8115 = vadd.f32 %v7937, %v8112
      %s8116 = scalar_lea.vmem %s20, 5
      %v8117 = vld [vmem:[%s8116] sm:$0x1]
      %s8118 = scalar_lea.vmem %s21, 5
      %v8119 = vld [vmem:[%s8118] sm:$0x1]
      %v8120 = vsel %vm966, %v8115, 0.0
      %8121 = vadd.xlane.f32.xlu0 %v8120
      %v8122 = vpop.xlane.xlu0 %8121
      %v8123 = vmul.f32 %v8122, %v2142
      %v8124 = vsub.f32 %v8115, %v8123
      %v8125 = vmul.f32 %v8124, %v8124
      %v8126 = vsel %vm966, %v8125, 0.0
      %8127 = vadd.xlane.f32.xlu0 %v8126
      %v8128 = vpop.xlane.xlu0 %8127
      %v8129 = vmul.f32 %v8128, %v2142
      %v8130 = vadd.f32 %v8129, 1e-05
      %v8131 = vrsqrt.pop %v8130
      %v8132 = vmul.f32 %v8124, %v8131
      %v8134 = vlaneseq
      %v8135 = vshrl.u32 %v8134, 7
      %v8136 = vsub.s32 0, %v8135
      %v8137 = vrot.slane %v8117, %v8136
      %v8139 = vmul.f32 %v8132, %v8137
      %v8141 = vlaneseq
      %v8142 = vshrl.u32 %v8141, 7
      %v8143 = vsub.s32 0, %v8142
      %v8144 = vrot.slane %v8119, %v8143
      %v8146 = vadd.f32 %v8139, %v8144
      %v8147 = vmul.f32 %v4620, %v5954
      %v8148 = vmul.f32 %v4630, %v7050
      %v8149 = vadd.f32 %v8147, %v8148
      %v8150 = vmul.f32 %v4641, %v8146
      %v8151 = vadd.f32 %v8149, %v8150
      %v8152 = vld [vmem:[%s26] sm:$0xff]
      %v8153 = vld [vmem:[%s26 + $0x8] sm:$0xff]
      %v8154 = vld [vmem:[%s26 + $0x10] sm:$0xff]
      %v8155 = vld [vmem:[%s26 + $0x18] sm:$0xff]
      %v8156 = vld [vmem:[%s27] sm:$0x1]
      %v8158 = vsel %vm966, %v8151, 0
      %8160 = vmatprep.subr.mxu0 0.0
      %8161 = vmatpush1.msra.mxu0 %v8152
      %8162 = vmatprep.subr.mxu0 0.0
      %8163 = vmatpush1.msra.mxu0 %v8153
      %8164 = vmatprep.subr.mxu0 0.0
      %8165 = vmatpush1.msra.mxu0 %v8154
      %8166 = vmatprep.subr.mxu0 0.0
      %8167 = vmatpush1.msra.mxu0 %v8155
      %8168 = vmatprep.subr.mxu0 0.0
      %8169 = vmatpush1.msra.mxu0 0.0
      %8170 = vmatprep.subr.mxu0 0.0
      %8171 = vmatpush1.msra.mxu0 0.0
      %8172 = vmatprep.subr.mxu0 0.0
      %8173 = vmatpush1.msra.mxu0 0.0
      %8174 = vmatprep.subr.mxu0 0.0
      %8175 = vmatpush1.msra.mxu0 0.0
      %8176 = vmatprep.subr.mxu0 0.0
      %8177 = vmatpush1.msra.mxu0 0.0
      %8178 = vmatprep.subr.mxu0 0.0
      %8179 = vmatpush1.msra.mxu0 0.0
      %8180 = vmatprep.subr.mxu0 0.0
      %8181 = vmatpush1.msra.mxu0 0.0
      %8182 = vmatprep.subr.mxu0 0.0
      %8183 = vmatpush1.msra.mxu0 0.0
      %8184 = vmatprep.subr.mxu0 0.0
      %8185 = vmatpush1.msra.mxu0 0.0
      %8186 = vmatprep.subr.mxu0 0.0
      %8187 = vmatpush1.msra.mxu0 0.0
      %8188 = vmatprep.subr.mxu0 0.0
      %8189 = vmatpush1.msra.mxu0 0.0
      %8190 = vmatprep.subr.mxu0 0.0
      %8191 = vmatpush1.msra.mxu0 0.0
      %8192 = vmatprep.subr.mxu0 0.0
      %8193 = vmatpush1.msra.mxu0 0.0
      %8194 = vmatprep.subr.mxu0 0.0
      %8195 = vmatpush1.msra.mxu0 0.0
      %8196 = vmatprep.subr.mxu0 0.0
      %8197 = vmatpush1.msra.mxu0 0.0
      %8198 = vmatprep.subr.mxu0 0.0
      %8199 = vmatpush1.msra.mxu0 0.0
      %8200 = vmatprep.subr.mxu0 0.0
      %8201 = vmatpush1.msra.mxu0 0.0
      %8202 = vmatprep.subr.mxu0 0.0
      %8203 = vmatpush1.msra.mxu0 0.0
      %8204 = vmatprep.subr.mxu0 0.0
      %8205 = vmatpush1.msra.mxu0 0.0
      %8206 = vmatprep.subr.mxu0 0.0
      %8207 = vmatpush1.msra.mxu0 0.0
      %8208 = vmatprep.subr.mxu0 0.0
      %8209 = vmatpush1.msra.mxu0 0.0
      %8210 = vmatprep.subr.mxu0 0.0
      %8211 = vmatpush1.msra.mxu0 0.0
      %8212 = vmatprep.subr.mxu0 0.0
      %8213 = vmatpush1.msra.mxu0 0.0
      %8214 = vmatprep.subr.mxu0 0.0
      %8215 = vmatpush1.msra.mxu0 0.0
      %8216 = vmatprep.subr.mxu0 0.0
      %8217 = vmatpush1.msra.mxu0 0.0
      %8218 = vmatprep.subr.mxu0 0.0
      %8219 = vmatpush1.msra.mxu0 0.0
      %8220 = vmatprep.subr.mxu0 0.0
      %8221 = vmatpush1.msra.mxu0 0.0
      %8222 = vmatprep.subr.mxu0 0.0
      %8223 = vmatpush1.msra.mxu0 0.0
      %8224 = vmatprep.mubr.f32.mxu0 0.0
      %8225 = vmatmul.mubr.f32.gmra.mrb[0].mxu0 %v8158
      %v8226 = vpop.f32.mrb[0].mxu0
      %v8227 = vadd.f32 %v8156, %v8226
      %v8228 = vpop.f32.mrb[0].mxu0
      %8229 = vdwg.mxu0
      %8230 = vst [vmem:[%s872] sm:$0x1] %v8227
      %p8231 = scmp.lt.s32.totalorder %s39, 1
      %s8232 = scalar_select %p8231, %s39, 1
      %s8233 = scalar_lea.vmem %s28, %s8232
      // Predicated region
      $region133: #{forward.1} parent=131 // pred_check
        %p8234 = pneg %p660
      $region134: #{forward.1} parent=131 // pred_check_branch
        %8236 = sbr.rel (%p8234) target = $region136
      $region135: #{forward.1} parent=131 // pred_region
        _
      $region136: #{forward.1} parent=131 // pred_fallthru
        _
    $region132: #{forward.1} parent=5 // pred_fallthru
      _
    %p8237 = scmp.le.s32.totalorder 2, %s34
    // Predicated region
    $region137: #{forward.1} parent=5 // pred_check
      %p8238 = pneg %p8237
    $region138: #{forward.1} parent=5 // pred_check_branch
      %8240 = sbr.rel (%p8238) target = $region140
    $region139: #{forward.1} parent=5 // pred_region
      %s8241 = ssub.s32 %s34, 2
      // Predicated region
      $region141: #{forward.1} parent=139 // pred_check
        %p8242 = pneg %p666
      $region142: #{forward.1} parent=139 // pred_check_branch
        %8244 = sbr.rel (%p8242) target = $region144
      $region143: #{forward.1} parent=139 // pred_region
        %p8245 = scmp.lt.s32.totalorder %s40, 1
        %s8246 = scalar_select %p8245, %s40, 1
        %s8247 = scalar_lea.vmem %s28, %s8246
      $region144: #{forward.1} parent=139 // pred_fallthru
        _
    $region140: #{forward.1} parent=5 // pred_fallthru
      _
  $region6: #{forward.1} parent=0 // loop_footer
    %s38 = sadd.s32 1, %s34
  $region7: #{forward.1} parent=0 // loop_footer_branch
    %33 = sbr.rel target = $region3
  $region8: #{forward.1} parent=0 // loop_exit
    _

</llo_original>
